<compile_context>
chip_gen: v7x
topology: tpu7x:2x2x1
jax: 0.10.0
libtpu: 0.0.40
codegen_flags: <defaults>
</compile_context>

<pallas_src>
import functools
import math

import jax
import jax.numpy as jnp
import numpy as np
from jax.experimental import pallas as pl
from jax.experimental.pallas import tpu as pltpu


# ----------------------------------------------------------------------------
# Pallas kernel: one fused EncoderBlock (self-attn + add&norm + FFN + add&norm),
# optionally followed by the Encoder's final LayerNormalization.
# ----------------------------------------------------------------------------
def _encoder_block_kernel(
    # activations / attention bias
    xq_ref, xkv_ref, bias_ref,
    # self-attention weights, head-major: (H, D, dk), (H, 1, dk), (H, dk, D)
    wq_ref, bq_ref, wk_ref, bk_ref, wv_ref, bv_ref, wo_ref, bo_ref,
    # norm after attention
    g1_ref, be1_ref,
    # feed-forward, chunk-major: (C, D, dffc), (C, 1, dffc), (C, dffc, D)
    w1_ref, b1_ref, w2_ref, b2_ref,
    # norm after feed-forward
    g2_ref, be2_ref,
    # final Encoder norm (used only when apply_final_norm)
    gf_ref, bf_ref,
    # output
    out_ref,
    *, eps: float, apply_final_norm: bool, matmul_dtype):
  d_model = xq_ref.shape[-1]
  n_heads = wq_ref.shape[0]
  d_k = wq_ref.shape[-1]
  n_ff_chunks = w1_ref.shape[0]
  inv_sqrt_dk = 1.0 / math.sqrt(d_k)

  def mm(a, b):  # MXU matmul, optional bf16 inputs, f32 accumulation
    return jnp.dot(a.astype(matmul_dtype), b.astype(matmul_dtype),
                   preferred_element_type=jnp.float32)

  def mm_nt(a, b):  # a @ b.T without materializing the transpose
    return jax.lax.dot_general(
        a.astype(matmul_dtype), b.astype(matmul_dtype),
        dimension_numbers=(((1,), (1,)), ((), ())),
        preferred_element_type=jnp.float32)

  def layer_norm(z, g_ref, b_ref):
    mean = jnp.mean(z, axis=-1, keepdims=True)
    # torch.std is the UNBIASED (ddof=1) standard deviation; denom is (std+eps).
    var = jnp.sum((z - mean) ** 2, axis=-1, keepdims=True) * (1.0 / (d_model - 1))
    inv = pl.reciprocal(jnp.sqrt(var) + eps, approx=True)   # EUP slot
    return g_ref[...] * ((z - mean) * inv) + b_ref[...]

  x_q = xq_ref[0]        # (tq, D): query rows / residual rows for this tile
  x_kv = xkv_ref[0]      # (S , D): full sequence for keys/values
  bias = bias_ref[...]   # (tq, S): additive attention bias (0 / -1e9), hoisted

  # --- multi-head self-attention, accumulated head-by-head through Wo ---
  acc = jnp.zeros(x_q.shape, jnp.float32)
  for h in range(n_heads):                       # short static loop
    q_h = mm(x_q, wq_ref[h]) + bq_ref[h]         # (tq, dk)
    k_h = mm(x_kv, wk_ref[h]) + bk_ref[h]        # (S , dk)
    v_h = mm(x_kv, wv_ref[h]) + bv_ref[h]        # (S , dk)
    s = mm_nt(q_h, k_h) * inv_sqrt_dk + bias     # (tq, S)
    s = s - jnp.max(s, axis=-1, keepdims=True)
    p = jnp.exp(s)
    p = p * pl.reciprocal(jnp.sum(p, axis=-1, keepdims=True), approx=True)
    acc = acc + mm(mm(p, v_h), wo_ref[h])        # accumulate through Wo slice
  x1 = layer_norm(x_q + acc + bo_ref[...], g1_ref, be1_ref)

  # --- feed-forward (chunked over the hidden dim), residual + norm ---
  ff = jnp.zeros(x_q.shape, jnp.float32)
  for c in range(n_ff_chunks):
    hdn = jnp.maximum(mm(x1, w1_ref[c]) + b1_ref[c], 0.0)   # (tq, dffc)
    ff = ff + mm(hdn, w2_ref[c])
  x2 = layer_norm(x1 + ff + b2_ref[...], g2_ref, be2_ref)

  # --- Encoder's final LayerNormalization, fused into the last block ---
  if apply_final_norm:
    x2 = layer_norm(x2, gf_ref, bf_ref)

  out_ref[0] = x2


# ----------------------------------------------------------------------------
# Per-block wrapper: reshapes weights head/chunk-major and calls pallas_call
# ----------------------------------------------------------------------------
def _encoder_block_call(x, attn_bias, lp, gamma_f, beta_f, *, n_heads,
                        apply_final_norm, eps, tq, ff_chunks, matmul_dtype):
  B, S, D = x.shape
  assert D % n_heads == 0 and S % tq == 0
  d_k = D // n_heads
  dff = lp["w1"].shape[1]
  assert dff % ff_chunks == 0
  dff_c = dff // ff_chunks
  wdt = matmul_dtype

  # Head-major / chunk-major weight layouts (plain JAX, once per call).
  wq3 = lp["wq"].reshape(D, n_heads, d_k).transpose(1, 0, 2).astype(wdt)
  wk3 = lp["wk"].reshape(D, n_heads, d_k).transpose(1, 0, 2).astype(wdt)
  wv3 = lp["wv"].reshape(D, n_heads, d_k).transpose(1, 0, 2).astype(wdt)
  wo3 = lp["wo"].reshape(n_heads, d_k, D).astype(wdt)
  bq3 = lp["bq"].reshape(n_heads, 1, d_k)
  bk3 = lp["bk"].reshape(n_heads, 1, d_k)
  bv3 = lp["bv"].reshape(n_heads, 1, d_k)
  w1c = lp["w1"].reshape(D, ff_chunks, dff_c).transpose(1, 0, 2).astype(wdt)
  b1c = lp["b1"].reshape(ff_chunks, 1, dff_c)
  w2c = lp["w2"].reshape(ff_chunks, dff_c, D).astype(wdt)

  operands = [
      x, x, attn_bias,
      wq3, bq3, wk3, bk3, wv3, bv3, wo3, lp["bo"],
      lp["g1"], lp["be1"],
      w1c, b1c, w2c, lp["b2"],
      lp["g2"], lp["be2"],
      gamma_f, beta_f,
  ]

  kernel = functools.partial(_encoder_block_kernel, eps=eps,
                             apply_final_norm=apply_final_norm,
                             matmul_dtype=matmul_dtype)

  def build(optimized):
    def const_spec(a):
      # Full-array operand whose block never changes across the grid
      # -> single-buffer it (halves resident-weight VMEM) when supported.
      nd = a.ndim
      if optimized:
        return pl.BlockSpec(a.shape, lambda b, q: (0,) * nd,
                            pipeline_mode=pl.Buffered(1))
      return pl.BlockSpec(a.shape, lambda b, q: (0,) * nd)

    in_specs = [
        pl.BlockSpec((1, tq, D), lambda b, q: (b, q, 0)),   # query/residual rows
        pl.BlockSpec((1, S, D), lambda b, q: (b, 0, 0)),    # full rows for K/V
        pl.BlockSpec((tq, S), lambda b, q: (q, 0)),         # attn bias rows
    ] + [const_spec(a) for a in operands[3:]]

    cp_kwargs = dict(dimension_semantics=("parallel", "parallel"))
    if optimized:
      cp_kwargs["vmem_limit_bytes"] = 64 * 1024 * 1024

    return pl.pallas_call(
        kernel,
        out_shape=jax.ShapeDtypeStruct((B, S, D), jnp.float32),
        grid_spec=pltpu.PrefetchScalarGridSpec(
            num_scalar_prefetch=0,
            grid=(B, S // tq),
            in_specs=in_specs,
            out_specs=pl.BlockSpec((1, tq, D), lambda b, q: (b, q, 0)),
        ),
        compiler_params=pltpu.CompilerParams(**cp_kwargs),
    )

  try:
    return build(True)(*operands)
  except Exception:
    # Fallback for jax builds without BlockSpec.pipeline_mode support.
    return build(False)(*operands)


# ----------------------------------------------------------------------------
# Encoder forward: chain of fused block kernels; final norm fused into last one
# ----------------------------------------------------------------------------
def encoder_forward(x, mask, layer_params, gamma_f, beta_f, *, n_heads,
                    eps=1e-5, tq=None, ff_chunks=1,
                    matmul_dtype=jnp.float32):
  B, S, D = x.shape
  if tq is None or tq > S:
    tq = S
  assert len(layer_params) >= 1
  # Additive attention bias computed ONCE for all layers (hoists the
  # masked_fill/select out of every head loop of every layer kernel).
  attn_bias = jnp.where(mask == 0.0, jnp.float32(-1e9), jnp.float32(0.0))
  n_layers = len(layer_params)
  for i, lp in enumerate(layer_params):
    x = _encoder_block_call(
        x, attn_bias, lp, gamma_f, beta_f, n_heads=n_heads,
        apply_final_norm=(i == n_layers - 1), eps=eps, tq=tq,
        ff_chunks=ff_chunks, matmul_dtype=matmul_dtype)
  return x


# ----------------------------------------------------------------------------
# Pure-JAX reference (mirrors the PyTorch module) for self-check
# ----------------------------------------------------------------------------
def _ref_encoder(x, mask, layer_params, gamma_f, beta_f, *, n_heads, eps=1e-5):
  D = x.shape[-1]
  d_k = D // n_heads

  def layer_norm(z, g, b):
    mean = jnp.mean(z, -1, keepdims=True)
    std = jnp.sqrt(jnp.sum((z - mean) ** 2, -1, keepdims=True) / (D - 1))
    return g * (z - mean) / (std + eps) + b

  def mha(xx, lp):
    def lin(z, w, b): return z @ w + b
    q = lin(xx, lp["wq"], lp["bq"])
    k = lin(xx, lp["wk"], lp["bk"])
    v = lin(xx, lp["wv"], lp["bv"])
    def split(t):
      B, S, _ = t.shape
      return t.reshape(B, S, n_heads, d_k).transpose(0, 2, 1, 3)
    q, k, v = split(q), split(k), split(v)
    s = (q @ jnp.swapaxes(k, -2, -1)) / np.sqrt(d_k)
    s = jnp.where(mask == 0.0, -1e9, s)            # torch masked_fill_
    a = jax.nn.softmax(s, axis=-1)
    o = (a @ v).transpose(0, 2, 1, 3).reshape(xx.shape[0], -1, D)
    return lin(o, lp["wo"], lp["bo"])

  for lp in layer_params:
    x1 = layer_norm(x + mha(x, lp), lp["g1"], lp["be1"])
    ff = jnp.maximum(x1 @ lp["w1"] + lp["b1"], 0.0) @ lp["w2"] + lp["b2"]
    x = layer_norm(x1 + ff, lp["g2"], lp["be2"])
  return layer_norm(x, gamma_f, beta_f)


# ----------------------------------------------------------------------------
if __name__ == "__main__":
  B, S, D, H, DFF, N_LAYERS = 2, 16, 32, 4, 64, 2

  keys = iter(jax.random.split(jax.random.PRNGKey(0), 64))

  def w(shape, scale=0.08):
    return (scale * jax.random.normal(next(keys), shape)).astype(jnp.float32)

  layer_params = []
  for _ in range(N_LAYERS):
    lp = {}
    for name in ("q", "k", "v", "o"):
      lp["w" + name] = w((D, D))
      lp["b" + name] = w((1, D))
    lp["w1"] = w((D, DFF)); lp["b1"] = w((1, DFF))
    lp["w2"] = w((DFF, D)); lp["b2"] = w((1, D))
    lp["g1"] = 1.0 + w((1, D)); lp["be1"] = w((1, D))
    lp["g2"] = 1.0 + w((1, D)); lp["be2"] = w((1, D))
    layer_params.append(lp)
  gamma_f = 1.0 + w((1, D))
  beta_f = w((1, D))

  x = jax.random.normal(next(keys), (B, S, D), jnp.float32)
  # Padding-style mask: last 3 key positions masked out (1 = keep, 0 = mask).
  mask = jnp.ones((S, S), jnp.float32).at[:, S - 3:].set(0.0)

  ref = _ref_encoder(x, mask, layer_params, gamma_f, beta_f, n_heads=H)

  # f32 matmuls (tight check)
  out = encoder_forward(x, mask, layer_params, gamma_f, beta_f, n_heads=H,
                        tq=8, ff_chunks=2, matmul_dtype=jnp.float32)
  out = jax.block_until_ready(out)
  np.testing.assert_allclose(np.asarray(out), np.asarray(ref),
                             rtol=5e-3, atol=5e-3)

  # bf16 matmul inputs with f32 accumulation (per v6e/v7x feedback)
  out_bf16 = encoder_forward(x, mask, layer_params, gamma_f, beta_f, n_heads=H,
                             tq=8, ff_chunks=2, matmul_dtype=jnp.bfloat16)
  out_bf16 = jax.block_until_ready(out_bf16)
  np.testing.assert_allclose(np.asarray(out_bf16), np.asarray(ref),
                             rtol=5e-2, atol=5e-2)

  print("KERNEL_OK")
</pallas_src>

<mosaic_0001>
module attributes {stable_mosaic.version = 11 : i64} {
  func.func @_encoder_block_kernel(%arg0: i32, %arg1: i32, %arg2: memref<1x8x32xf32, #tpu.memory_space<vmem>>, %arg3: memref<1x16x32xf32, #tpu.memory_space<vmem>>, %arg4: memref<8x16xf32, #tpu.memory_space<vmem>>, %arg5: memref<4x32x8xf32, #tpu.memory_space<vmem>>, %arg6: memref<4x1x8xf32, #tpu.memory_space<vmem>>, %arg7: memref<4x32x8xf32, #tpu.memory_space<vmem>>, %arg8: memref<4x1x8xf32, #tpu.memory_space<vmem>>, %arg9: memref<4x32x8xf32, #tpu.memory_space<vmem>>, %arg10: memref<4x1x8xf32, #tpu.memory_space<vmem>>, %arg11: memref<4x8x32xf32, #tpu.memory_space<vmem>>, %arg12: memref<1x32xf32, #tpu.memory_space<vmem>>, %arg13: memref<1x32xf32, #tpu.memory_space<vmem>>, %arg14: memref<1x32xf32, #tpu.memory_space<vmem>>, %arg15: memref<2x32x32xf32, #tpu.memory_space<vmem>>, %arg16: memref<2x1x32xf32, #tpu.memory_space<vmem>>, %arg17: memref<2x32x32xf32, #tpu.memory_space<vmem>>, %arg18: memref<1x32xf32, #tpu.memory_space<vmem>>, %arg19: memref<1x32xf32, #tpu.memory_space<vmem>>, %arg20: memref<1x32xf32, #tpu.memory_space<vmem>>, %arg21: memref<1x32xf32, #tpu.memory_space<vmem>>, %arg22: memref<1x32xf32, #tpu.memory_space<vmem>>, %arg23: memref<1x8x32xf32, #tpu.memory_space<vmem>>) attributes {dimension_semantics = [#tpu.dimension_semantics<parallel>, #tpu.dimension_semantics<parallel>], iteration_bounds = array<i64: 2, 2>, scalar_prefetch = 0 : i64, scratch_operands = 0 : i64, tpu.core_type = #tpu.core_type<tc>, window_params = [{transform_indices = @transform_0, window_bounds = array<i64: 1, 8, 32>}, {transform_indices = @transform_1, window_bounds = array<i64: 1, 16, 32>}, {transform_indices = @transform_2, window_bounds = array<i64: 8, 16>}, {pipeline_mode = #tpu.pipeline_mode<synchronous>, transform_indices = @transform_3, window_bounds = array<i64: 4, 32, 8>}, {pipeline_mode = #tpu.pipeline_mode<synchronous>, transform_indices = @transform_4, window_bounds = array<i64: 4, 1, 8>}, {pipeline_mode = #tpu.pipeline_mode<synchronous>, transform_indices = @transform_5, window_bounds = array<i64: 4, 32, 8>}, {pipeline_mode = #tpu.pipeline_mode<synchronous>, transform_indices = @transform_6, window_bounds = array<i64: 4, 1, 8>}, {pipeline_mode = #tpu.pipeline_mode<synchronous>, transform_indices = @transform_7, window_bounds = array<i64: 4, 32, 8>}, {pipeline_mode = #tpu.pipeline_mode<synchronous>, transform_indices = @transform_8, window_bounds = array<i64: 4, 1, 8>}, {pipeline_mode = #tpu.pipeline_mode<synchronous>, transform_indices = @transform_9, window_bounds = array<i64: 4, 8, 32>}, {pipeline_mode = #tpu.pipeline_mode<synchronous>, transform_indices = @transform_10, window_bounds = array<i64: 1, 32>}, {pipeline_mode = #tpu.pipeline_mode<synchronous>, transform_indices = @transform_11, window_bounds = array<i64: 1, 32>}, {pipeline_mode = #tpu.pipeline_mode<synchronous>, transform_indices = @transform_12, window_bounds = array<i64: 1, 32>}, {pipeline_mode = #tpu.pipeline_mode<synchronous>, transform_indices = @transform_13, window_bounds = array<i64: 2, 32, 32>}, {pipeline_mode = #tpu.pipeline_mode<synchronous>, transform_indices = @transform_14, window_bounds = array<i64: 2, 1, 32>}, {pipeline_mode = #tpu.pipeline_mode<synchronous>, transform_indices = @transform_15, window_bounds = array<i64: 2, 32, 32>}, {pipeline_mode = #tpu.pipeline_mode<synchronous>, transform_indices = @transform_16, window_bounds = array<i64: 1, 32>}, {pipeline_mode = #tpu.pipeline_mode<synchronous>, transform_indices = @transform_17, window_bounds = array<i64: 1, 32>}, {pipeline_mode = #tpu.pipeline_mode<synchronous>, transform_indices = @transform_18, window_bounds = array<i64: 1, 32>}, {pipeline_mode = #tpu.pipeline_mode<synchronous>, transform_indices = @transform_19, window_bounds = array<i64: 1, 32>}, {pipeline_mode = #tpu.pipeline_mode<synchronous>, transform_indices = @transform_20, window_bounds = array<i64: 1, 32>}, {transform_indices = @transform_21, window_bounds = array<i64: 1, 8, 32>}]} {
    %c0 = arith.constant 0 : index
    %c0_0 = arith.constant 0 : index
    %c0_1 = arith.constant 0 : index
    %0 = vector.load %arg2[%c0, %c0_0, %c0_1] : memref<1x8x32xf32, #tpu.memory_space<vmem>>, vector<1x8x32xf32>
    %1 = vector.shape_cast %0 : vector<1x8x32xf32> to vector<8x32xf32>
    %c0_2 = arith.constant 0 : index
    %c0_3 = arith.constant 0 : index
    %c0_4 = arith.constant 0 : index
    %2 = vector.load %arg3[%c0_2, %c0_3, %c0_4] : memref<1x16x32xf32, #tpu.memory_space<vmem>>, vector<1x16x32xf32>
    %3 = vector.shape_cast %2 : vector<1x16x32xf32> to vector<16x32xf32>
    %c0_5 = arith.constant 0 : index
    %c0_6 = arith.constant 0 : index
    %4 = vector.load %arg4[%c0_5, %c0_6] : memref<8x16xf32, #tpu.memory_space<vmem>>, vector<8x16xf32>
    %cst = arith.constant 0.000000e+00 : f32
    %5 = vector.broadcast %cst : f32 to vector<8x32xf32>
    %c0_7 = arith.constant 0 : index
    %c0_8 = arith.constant 0 : index
    %c0_9 = arith.constant 0 : index
    %6 = vector.load %arg5[%c0_7, %c0_8, %c0_9] : memref<4x32x8xf32, #tpu.memory_space<vmem>>, vector<1x32x8xf32>
    %7 = vector.shape_cast %6 : vector<1x32x8xf32> to vector<32x8xf32>
    %cst_10 = arith.constant dense<0.000000e+00> : vector<8x8xf32>
    %8 = tpu.matmul %1, %7, %cst_10 {dimension_numbers = #tpu.dot_dimension_numbers<[1], [0], [0], [1], [0, 0, 1, 1], [], []>} : vector<8x32xf32>, vector<32x8xf32>, vector<8x8xf32> -> vector<8x8xf32>
    %c0_11 = arith.constant 0 : index
    %c0_12 = arith.constant 0 : index
    %c0_13 = arith.constant 0 : index
    %9 = vector.load %arg6[%c0_11, %c0_12, %c0_13] : memref<4x1x8xf32, #tpu.memory_space<vmem>>, vector<1x1x8xf32>
    %10 = vector.shape_cast %9 : vector<1x1x8xf32> to vector<1x8xf32>
    %11 = vector.broadcast %10 : vector<1x8xf32> to vector<8x8xf32>
    %12 = arith.addf %8, %11 : vector<8x8xf32>
    %c0_14 = arith.constant 0 : index
    %c0_15 = arith.constant 0 : index
    %c0_16 = arith.constant 0 : index
    %13 = vector.load %arg7[%c0_14, %c0_15, %c0_16] : memref<4x32x8xf32, #tpu.memory_space<vmem>>, vector<1x32x8xf32>
    %14 = vector.shape_cast %13 : vector<1x32x8xf32> to vector<32x8xf32>
    %cst_17 = arith.constant dense<0.000000e+00> : vector<16x8xf32>
    %15 = tpu.matmul %3, %14, %cst_17 {dimension_numbers = #tpu.dot_dimension_numbers<[1], [0], [0], [1], [0, 0, 1, 1], [], []>} : vector<16x32xf32>, vector<32x8xf32>, vector<16x8xf32> -> vector<16x8xf32>
    %c0_18 = arith.constant 0 : index
    %c0_19 = arith.constant 0 : index
    %c0_20 = arith.constant 0 : index
    %16 = vector.load %arg8[%c0_18, %c0_19, %c0_20] : memref<4x1x8xf32, #tpu.memory_space<vmem>>, vector<1x1x8xf32>
    %17 = vector.shape_cast %16 : vector<1x1x8xf32> to vector<1x8xf32>
    %18 = vector.broadcast %17 : vector<1x8xf32> to vector<16x8xf32>
    %19 = arith.addf %15, %18 : vector<16x8xf32>
    %c0_21 = arith.constant 0 : index
    %c0_22 = arith.constant 0 : index
    %c0_23 = arith.constant 0 : index
    %20 = vector.load %arg9[%c0_21, %c0_22, %c0_23] : memref<4x32x8xf32, #tpu.memory_space<vmem>>, vector<1x32x8xf32>
    %21 = vector.shape_cast %20 : vector<1x32x8xf32> to vector<32x8xf32>
    %cst_24 = arith.constant dense<0.000000e+00> : vector<16x8xf32>
    %22 = tpu.matmul %3, %21, %cst_24 {dimension_numbers = #tpu.dot_dimension_numbers<[1], [0], [0], [1], [0, 0, 1, 1], [], []>} : vector<16x32xf32>, vector<32x8xf32>, vector<16x8xf32> -> vector<16x8xf32>
    %c0_25 = arith.constant 0 : index
    %c0_26 = arith.constant 0 : index
    %c0_27 = arith.constant 0 : index
    %23 = vector.load %arg10[%c0_25, %c0_26, %c0_27] : memref<4x1x8xf32, #tpu.memory_space<vmem>>, vector<1x1x8xf32>
    %24 = vector.shape_cast %23 : vector<1x1x8xf32> to vector<1x8xf32>
    %25 = vector.broadcast %24 : vector<1x8xf32> to vector<16x8xf32>
    %26 = arith.addf %22, %25 : vector<16x8xf32>
    %cst_28 = arith.constant dense<0.000000e+00> : vector<8x16xf32>
    %27 = tpu.matmul %12, %19, %cst_28 {dimension_numbers = #tpu.dot_dimension_numbers<[1], [1], [0], [0], [0, 0, 1, 0], [], []>} : vector<8x8xf32>, vector<16x8xf32>, vector<8x16xf32> -> vector<8x16xf32>
    %cst_29 = arith.constant 0.353553385 : f32
    %28 = vector.broadcast %cst_29 : f32 to vector<8x16xf32>
    %29 = arith.mulf %27, %28 : vector<8x16xf32>
    %30 = arith.addf %29, %4 : vector<8x16xf32>
    %cst_30 = arith.constant dense<0xFF800000> : vector<8xf32>
    %31 = vector.multi_reduction <maximumf>, %30, %cst_30 [1] : vector<8x16xf32> to vector<8xf32>
    %32 = vector.shape_cast %31 : vector<8xf32> to vector<8x1xf32>
    %33 = vector.broadcast %32 : vector<8x1xf32> to vector<8x16xf32>
    %34 = arith.subf %30, %33 : vector<8x16xf32>
    %35 = math.exp %34 : vector<8x16xf32>
    %cst_31 = arith.constant dense<0.000000e+00> : vector<8xf32>
    %36 = vector.multi_reduction <add>, %35, %cst_31 [1] : vector<8x16xf32> to vector<8xf32>
    %37 = vector.shape_cast %36 : vector<8xf32> to vector<8x1xf32>
    %38 = tpu.reciprocal %37 {approx = true} : vector<8x1xf32> -> vector<8x1xf32>
    %39 = vector.broadcast %38 : vector<8x1xf32> to vector<8x16xf32>
    %40 = arith.mulf %35, %39 : vector<8x16xf32>
    %cst_32 = arith.constant dense<0.000000e+00> : vector<8x8xf32>
    %41 = tpu.matmul %40, %26, %cst_32 {dimension_numbers = #tpu.dot_dimension_numbers<[1], [0], [0], [1], [0, 0, 1, 1], [], []>} : vector<8x16xf32>, vector<16x8xf32>, vector<8x8xf32> -> vector<8x8xf32>
    %c0_33 = arith.constant 0 : index
    %c0_34 = arith.constant 0 : index
    %c0_35 = arith.constant 0 : index
    %42 = vector.load %arg11[%c0_33, %c0_34, %c0_35] : memref<4x8x32xf32, #tpu.memory_space<vmem>>, vector<1x8x32xf32>
    %43 = vector.shape_cast %42 : vector<1x8x32xf32> to vector<8x32xf32>
    %cst_36 = arith.constant dense<0.000000e+00> : vector<8x32xf32>
    %44 = tpu.matmul %41, %43, %cst_36 {dimension_numbers = #tpu.dot_dimension_numbers<[1], [0], [0], [1], [0, 0, 1, 1], [], []>} : vector<8x8xf32>, vector<8x32xf32>, vector<8x32xf32> -> vector<8x32xf32>
    %45 = arith.addf %5, %44 : vector<8x32xf32>
    %c1 = arith.constant 1 : index
    %c0_37 = arith.constant 0 : index
    %c0_38 = arith.constant 0 : index
    %46 = vector.load %arg5[%c1, %c0_37, %c0_38] : memref<4x32x8xf32, #tpu.memory_space<vmem>>, vector<1x32x8xf32>
    %47 = vector.shape_cast %46 : vector<1x32x8xf32> to vector<32x8xf32>
    %cst_39 = arith.constant dense<0.000000e+00> : vector<8x8xf32>
    %48 = tpu.matmul %1, %47, %cst_39 {dimension_numbers = #tpu.dot_dimension_numbers<[1], [0], [0], [1], [0, 0, 1, 1], [], []>} : vector<8x32xf32>, vector<32x8xf32>, vector<8x8xf32> -> vector<8x8xf32>
    %c1_40 = arith.constant 1 : index
    %c0_41 = arith.constant 0 : index
    %c0_42 = arith.constant 0 : index
    %49 = vector.load %arg6[%c1_40, %c0_41, %c0_42] : memref<4x1x8xf32, #tpu.memory_space<vmem>>, vector<1x1x8xf32>
    %50 = vector.shape_cast %49 : vector<1x1x8xf32> to vector<1x8xf32>
    %51 = vector.broadcast %50 : vector<1x8xf32> to vector<8x8xf32>
    %52 = arith.addf %48, %51 : vector<8x8xf32>
    %c1_43 = arith.constant 1 : index
    %c0_44 = arith.constant 0 : index
    %c0_45 = arith.constant 0 : index
    %53 = vector.load %arg7[%c1_43, %c0_44, %c0_45] : memref<4x32x8xf32, #tpu.memory_space<vmem>>, vector<1x32x8xf32>
    %54 = vector.shape_cast %53 : vector<1x32x8xf32> to vector<32x8xf32>
    %cst_46 = arith.constant dense<0.000000e+00> : vector<16x8xf32>
    %55 = tpu.matmul %3, %54, %cst_46 {dimension_numbers = #tpu.dot_dimension_numbers<[1], [0], [0], [1], [0, 0, 1, 1], [], []>} : vector<16x32xf32>, vector<32x8xf32>, vector<16x8xf32> -> vector<16x8xf32>
    %c1_47 = arith.constant 1 : index
    %c0_48 = arith.constant 0 : index
    %c0_49 = arith.constant 0 : index
    %56 = vector.load %arg8[%c1_47, %c0_48, %c0_49] : memref<4x1x8xf32, #tpu.memory_space<vmem>>, vector<1x1x8xf32>
    %57 = vector.shape_cast %56 : vector<1x1x8xf32> to vector<1x8xf32>
    %58 = vector.broadcast %57 : vector<1x8xf32> to vector<16x8xf32>
    %59 = arith.addf %55, %58 : vector<16x8xf32>
    %c1_50 = arith.constant 1 : index
    %c0_51 = arith.constant 0 : index
    %c0_52 = arith.constant 0 : index
    %60 = vector.load %arg9[%c1_50, %c0_51, %c0_52] : memref<4x32x8xf32, #tpu.memory_space<vmem>>, vector<1x32x8xf32>
    %61 = vector.shape_cast %60 : vector<1x32x8xf32> to vector<32x8xf32>
    %cst_53 = arith.constant dense<0.000000e+00> : vector<16x8xf32>
    %62 = tpu.matmul %3, %61, %cst_53 {dimension_numbers = #tpu.dot_dimension_numbers<[1], [0], [0], [1], [0, 0, 1, 1], [], []>} : vector<16x32xf32>, vector<32x8xf32>, vector<16x8xf32> -> vector<16x8xf32>
    %c1_54 = arith.constant 1 : index
    %c0_55 = arith.constant 0 : index
    %c0_56 = arith.constant 0 : index
    %63 = vector.load %arg10[%c1_54, %c0_55, %c0_56] : memref<4x1x8xf32, #tpu.memory_space<vmem>>, vector<1x1x8xf32>
    %64 = vector.shape_cast %63 : vector<1x1x8xf32> to vector<1x8xf32>
    %65 = vector.broadcast %64 : vector<1x8xf32> to vector<16x8xf32>
    %66 = arith.addf %62, %65 : vector<16x8xf32>
    %cst_57 = arith.constant dense<0.000000e+00> : vector<8x16xf32>
    %67 = tpu.matmul %52, %59, %cst_57 {dimension_numbers = #tpu.dot_dimension_numbers<[1], [1], [0], [0], [0, 0, 1, 0], [], []>} : vector<8x8xf32>, vector<16x8xf32>, vector<8x16xf32> -> vector<8x16xf32>
    %cst_58 = arith.constant 0.353553385 : f32
    %68 = vector.broadcast %cst_58 : f32 to vector<8x16xf32>
    %69 = arith.mulf %67, %68 : vector<8x16xf32>
    %70 = arith.addf %69, %4 : vector<8x16xf32>
    %cst_59 = arith.constant dense<0xFF800000> : vector<8xf32>
    %71 = vector.multi_reduction <maximumf>, %70, %cst_59 [1] : vector<8x16xf32> to vector<8xf32>
    %72 = vector.shape_cast %71 : vector<8xf32> to vector<8x1xf32>
    %73 = vector.broadcast %72 : vector<8x1xf32> to vector<8x16xf32>
    %74 = arith.subf %70, %73 : vector<8x16xf32>
    %75 = math.exp %74 : vector<8x16xf32>
    %cst_60 = arith.constant dense<0.000000e+00> : vector<8xf32>
    %76 = vector.multi_reduction <add>, %75, %cst_60 [1] : vector<8x16xf32> to vector<8xf32>
    %77 = vector.shape_cast %76 : vector<8xf32> to vector<8x1xf32>
    %78 = tpu.reciprocal %77 {approx = true} : vector<8x1xf32> -> vector<8x1xf32>
    %79 = vector.broadcast %78 : vector<8x1xf32> to vector<8x16xf32>
    %80 = arith.mulf %75, %79 : vector<8x16xf32>
    %cst_61 = arith.constant dense<0.000000e+00> : vector<8x8xf32>
    %81 = tpu.matmul %80, %66, %cst_61 {dimension_numbers = #tpu.dot_dimension_numbers<[1], [0], [0], [1], [0, 0, 1, 1], [], []>} : vector<8x16xf32>, vector<16x8xf32>, vector<8x8xf32> -> vector<8x8xf32>
    %c1_62 = arith.constant 1 : index
    %c0_63 = arith.constant 0 : index
    %c0_64 = arith.constant 0 : index
    %82 = vector.load %arg11[%c1_62, %c0_63, %c0_64] : memref<4x8x32xf32, #tpu.memory_space<vmem>>, vector<1x8x32xf32>
    %83 = vector.shape_cast %82 : vector<1x8x32xf32> to vector<8x32xf32>
    %cst_65 = arith.constant dense<0.000000e+00> : vector<8x32xf32>
    %84 = tpu.matmul %81, %83, %cst_65 {dimension_numbers = #tpu.dot_dimension_numbers<[1], [0], [0], [1], [0, 0, 1, 1], [], []>} : vector<8x8xf32>, vector<8x32xf32>, vector<8x32xf32> -> vector<8x32xf32>
    %85 = arith.addf %45, %84 : vector<8x32xf32>
    %c2 = arith.constant 2 : index
    %c0_66 = arith.constant 0 : index
    %c0_67 = arith.constant 0 : index
    %86 = vector.load %arg5[%c2, %c0_66, %c0_67] : memref<4x32x8xf32, #tpu.memory_space<vmem>>, vector<1x32x8xf32>
    %87 = vector.shape_cast %86 : vector<1x32x8xf32> to vector<32x8xf32>
    %cst_68 = arith.constant dense<0.000000e+00> : vector<8x8xf32>
    %88 = tpu.matmul %1, %87, %cst_68 {dimension_numbers = #tpu.dot_dimension_numbers<[1], [0], [0], [1], [0, 0, 1, 1], [], []>} : vector<8x32xf32>, vector<32x8xf32>, vector<8x8xf32> -> vector<8x8xf32>
    %c2_69 = arith.constant 2 : index
    %c0_70 = arith.constant 0 : index
    %c0_71 = arith.constant 0 : index
    %89 = vector.load %arg6[%c2_69, %c0_70, %c0_71] : memref<4x1x8xf32, #tpu.memory_space<vmem>>, vector<1x1x8xf32>
    %90 = vector.shape_cast %89 : vector<1x1x8xf32> to vector<1x8xf32>
    %91 = vector.broadcast %90 : vector<1x8xf32> to vector<8x8xf32>
    %92 = arith.addf %88, %91 : vector<8x8xf32>
    %c2_72 = arith.constant 2 : index
    %c0_73 = arith.constant 0 : index
    %c0_74 = arith.constant 0 : index
    %93 = vector.load %arg7[%c2_72, %c0_73, %c0_74] : memref<4x32x8xf32, #tpu.memory_space<vmem>>, vector<1x32x8xf32>
    %94 = vector.shape_cast %93 : vector<1x32x8xf32> to vector<32x8xf32>
    %cst_75 = arith.constant dense<0.000000e+00> : vector<16x8xf32>
    %95 = tpu.matmul %3, %94, %cst_75 {dimension_numbers = #tpu.dot_dimension_numbers<[1], [0], [0], [1], [0, 0, 1, 1], [], []>} : vector<16x32xf32>, vector<32x8xf32>, vector<16x8xf32> -> vector<16x8xf32>
    %c2_76 = arith.constant 2 : index
    %c0_77 = arith.constant 0 : index
    %c0_78 = arith.constant 0 : index
    %96 = vector.load %arg8[%c2_76, %c0_77, %c0_78] : memref<4x1x8xf32, #tpu.memory_space<vmem>>, vector<1x1x8xf32>
    %97 = vector.shape_cast %96 : vector<1x1x8xf32> to vector<1x8xf32>
    %98 = vector.broadcast %97 : vector<1x8xf32> to vector<16x8xf32>
    %99 = arith.addf %95, %98 : vector<16x8xf32>
    %c2_79 = arith.constant 2 : index
    %c0_80 = arith.constant 0 : index
    %c0_81 = arith.constant 0 : index
    %100 = vector.load %arg9[%c2_79, %c0_80, %c0_81] : memref<4x32x8xf32, #tpu.memory_space<vmem>>, vector<1x32x8xf32>
    %101 = vector.shape_cast %100 : vector<1x32x8xf32> to vector<32x8xf32>
    %cst_82 = arith.constant dense<0.000000e+00> : vector<16x8xf32>
    %102 = tpu.matmul %3, %101, %cst_82 {dimension_numbers = #tpu.dot_dimension_numbers<[1], [0], [0], [1], [0, 0, 1, 1], [], []>} : vector<16x32xf32>, vector<32x8xf32>, vector<16x8xf32> -> vector<16x8xf32>
    %c2_83 = arith.constant 2 : index
    %c0_84 = arith.constant 0 : index
    %c0_85 = arith.constant 0 : index
    %103 = vector.load %arg10[%c2_83, %c0_84, %c0_85] : memref<4x1x8xf32, #tpu.memory_space<vmem>>, vector<1x1x8xf32>
    %104 = vector.shape_cast %103 : vector<1x1x8xf32> to vector<1x8xf32>
    %105 = vector.broadcast %104 : vector<1x8xf32> to vector<16x8xf32>
    %106 = arith.addf %102, %105 : vector<16x8xf32>
    %cst_86 = arith.constant dense<0.000000e+00> : vector<8x16xf32>
    %107 = tpu.matmul %92, %99, %cst_86 {dimension_numbers = #tpu.dot_dimension_numbers<[1], [1], [0], [0], [0, 0, 1, 0], [], []>} : vector<8x8xf32>, vector<16x8xf32>, vector<8x16xf32> -> vector<8x16xf32>
    %cst_87 = arith.constant 0.353553385 : f32
    %108 = vector.broadcast %cst_87 : f32 to vector<8x16xf32>
    %109 = arith.mulf %107, %108 : vector<8x16xf32>
    %110 = arith.addf %109, %4 : vector<8x16xf32>
    %cst_88 = arith.constant dense<0xFF800000> : vector<8xf32>
    %111 = vector.multi_reduction <maximumf>, %110, %cst_88 [1] : vector<8x16xf32> to vector<8xf32>
    %112 = vector.shape_cast %111 : vector<8xf32> to vector<8x1xf32>
    %113 = vector.broadcast %112 : vector<8x1xf32> to vector<8x16xf32>
    %114 = arith.subf %110, %113 : vector<8x16xf32>
    %115 = math.exp %114 : vector<8x16xf32>
    %cst_89 = arith.constant dense<0.000000e+00> : vector<8xf32>
    %116 = vector.multi_reduction <add>, %115, %cst_89 [1] : vector<8x16xf32> to vector<8xf32>
    %117 = vector.shape_cast %116 : vector<8xf32> to vector<8x1xf32>
    %118 = tpu.reciprocal %117 {approx = true} : vector<8x1xf32> -> vector<8x1xf32>
    %119 = vector.broadcast %118 : vector<8x1xf32> to vector<8x16xf32>
    %120 = arith.mulf %115, %119 : vector<8x16xf32>
    %cst_90 = arith.constant dense<0.000000e+00> : vector<8x8xf32>
    %121 = tpu.matmul %120, %106, %cst_90 {dimension_numbers = #tpu.dot_dimension_numbers<[1], [0], [0], [1], [0, 0, 1, 1], [], []>} : vector<8x16xf32>, vector<16x8xf32>, vector<8x8xf32> -> vector<8x8xf32>
    %c2_91 = arith.constant 2 : index
    %c0_92 = arith.constant 0 : index
    %c0_93 = arith.constant 0 : index
    %122 = vector.load %arg11[%c2_91, %c0_92, %c0_93] : memref<4x8x32xf32, #tpu.memory_space<vmem>>, vector<1x8x32xf32>
    %123 = vector.shape_cast %122 : vector<1x8x32xf32> to vector<8x32xf32>
    %cst_94 = arith.constant dense<0.000000e+00> : vector<8x32xf32>
    %124 = tpu.matmul %121, %123, %cst_94 {dimension_numbers = #tpu.dot_dimension_numbers<[1], [0], [0], [1], [0, 0, 1, 1], [], []>} : vector<8x8xf32>, vector<8x32xf32>, vector<8x32xf32> -> vector<8x32xf32>
    %125 = arith.addf %85, %124 : vector<8x32xf32>
    %c3 = arith.constant 3 : index
    %c0_95 = arith.constant 0 : index
    %c0_96 = arith.constant 0 : index
    %126 = vector.load %arg5[%c3, %c0_95, %c0_96] : memref<4x32x8xf32, #tpu.memory_space<vmem>>, vector<1x32x8xf32>
    %127 = vector.shape_cast %126 : vector<1x32x8xf32> to vector<32x8xf32>
    %cst_97 = arith.constant dense<0.000000e+00> : vector<8x8xf32>
    %128 = tpu.matmul %1, %127, %cst_97 {dimension_numbers = #tpu.dot_dimension_numbers<[1], [0], [0], [1], [0, 0, 1, 1], [], []>} : vector<8x32xf32>, vector<32x8xf32>, vector<8x8xf32> -> vector<8x8xf32>
    %c3_98 = arith.constant 3 : index
    %c0_99 = arith.constant 0 : index
    %c0_100 = arith.constant 0 : index
    %129 = vector.load %arg6[%c3_98, %c0_99, %c0_100] : memref<4x1x8xf32, #tpu.memory_space<vmem>>, vector<1x1x8xf32>
    %130 = vector.shape_cast %129 : vector<1x1x8xf32> to vector<1x8xf32>
    %131 = vector.broadcast %130 : vector<1x8xf32> to vector<8x8xf32>
    %132 = arith.addf %128, %131 : vector<8x8xf32>
    %c3_101 = arith.constant 3 : index
    %c0_102 = arith.constant 0 : index
    %c0_103 = arith.constant 0 : index
    %133 = vector.load %arg7[%c3_101, %c0_102, %c0_103] : memref<4x32x8xf32, #tpu.memory_space<vmem>>, vector<1x32x8xf32>
    %134 = vector.shape_cast %133 : vector<1x32x8xf32> to vector<32x8xf32>
    %cst_104 = arith.constant dense<0.000000e+00> : vector<16x8xf32>
    %135 = tpu.matmul %3, %134, %cst_104 {dimension_numbers = #tpu.dot_dimension_numbers<[1], [0], [0], [1], [0, 0, 1, 1], [], []>} : vector<16x32xf32>, vector<32x8xf32>, vector<16x8xf32> -> vector<16x8xf32>
    %c3_105 = arith.constant 3 : index
    %c0_106 = arith.constant 0 : index
    %c0_107 = arith.constant 0 : index
    %136 = vector.load %arg8[%c3_105, %c0_106, %c0_107] : memref<4x1x8xf32, #tpu.memory_space<vmem>>, vector<1x1x8xf32>
    %137 = vector.shape_cast %136 : vector<1x1x8xf32> to vector<1x8xf32>
    %138 = vector.broadcast %137 : vector<1x8xf32> to vector<16x8xf32>
    %139 = arith.addf %135, %138 : vector<16x8xf32>
    %c3_108 = arith.constant 3 : index
    %c0_109 = arith.constant 0 : index
    %c0_110 = arith.constant 0 : index
    %140 = vector.load %arg9[%c3_108, %c0_109, %c0_110] : memref<4x32x8xf32, #tpu.memory_space<vmem>>, vector<1x32x8xf32>
    %141 = vector.shape_cast %140 : vector<1x32x8xf32> to vector<32x8xf32>
    %cst_111 = arith.constant dense<0.000000e+00> : vector<16x8xf32>
    %142 = tpu.matmul %3, %141, %cst_111 {dimension_numbers = #tpu.dot_dimension_numbers<[1], [0], [0], [1], [0, 0, 1, 1], [], []>} : vector<16x32xf32>, vector<32x8xf32>, vector<16x8xf32> -> vector<16x8xf32>
    %c3_112 = arith.constant 3 : index
    %c0_113 = arith.constant 0 : index
    %c0_114 = arith.constant 0 : index
    %143 = vector.load %arg10[%c3_112, %c0_113, %c0_114] : memref<4x1x8xf32, #tpu.memory_space<vmem>>, vector<1x1x8xf32>
    %144 = vector.shape_cast %143 : vector<1x1x8xf32> to vector<1x8xf32>
    %145 = vector.broadcast %144 : vector<1x8xf32> to vector<16x8xf32>
    %146 = arith.addf %142, %145 : vector<16x8xf32>
    %cst_115 = arith.constant dense<0.000000e+00> : vector<8x16xf32>
    %147 = tpu.matmul %132, %139, %cst_115 {dimension_numbers = #tpu.dot_dimension_numbers<[1], [1], [0], [0], [0, 0, 1, 0], [], []>} : vector<8x8xf32>, vector<16x8xf32>, vector<8x16xf32> -> vector<8x16xf32>
    %cst_116 = arith.constant 0.353553385 : f32
    %148 = vector.broadcast %cst_116 : f32 to vector<8x16xf32>
    %149 = arith.mulf %147, %148 : vector<8x16xf32>
    %150 = arith.addf %149, %4 : vector<8x16xf32>
    %cst_117 = arith.constant dense<0xFF800000> : vector<8xf32>
    %151 = vector.multi_reduction <maximumf>, %150, %cst_117 [1] : vector<8x16xf32> to vector<8xf32>
    %152 = vector.shape_cast %151 : vector<8xf32> to vector<8x1xf32>
    %153 = vector.broadcast %152 : vector<8x1xf32> to vector<8x16xf32>
    %154 = arith.subf %150, %153 : vector<8x16xf32>
    %155 = math.exp %154 : vector<8x16xf32>
    %cst_118 = arith.constant dense<0.000000e+00> : vector<8xf32>
    %156 = vector.multi_reduction <add>, %155, %cst_118 [1] : vector<8x16xf32> to vector<8xf32>
    %157 = vector.shape_cast %156 : vector<8xf32> to vector<8x1xf32>
    %158 = tpu.reciprocal %157 {approx = true} : vector<8x1xf32> -> vector<8x1xf32>
    %159 = vector.broadcast %158 : vector<8x1xf32> to vector<8x16xf32>
    %160 = arith.mulf %155, %159 : vector<8x16xf32>
    %cst_119 = arith.constant dense<0.000000e+00> : vector<8x8xf32>
    %161 = tpu.matmul %160, %146, %cst_119 {dimension_numbers = #tpu.dot_dimension_numbers<[1], [0], [0], [1], [0, 0, 1, 1], [], []>} : vector<8x16xf32>, vector<16x8xf32>, vector<8x8xf32> -> vector<8x8xf32>
    %c3_120 = arith.constant 3 : index
    %c0_121 = arith.constant 0 : index
    %c0_122 = arith.constant 0 : index
    %162 = vector.load %arg11[%c3_120, %c0_121, %c0_122] : memref<4x8x32xf32, #tpu.memory_space<vmem>>, vector<1x8x32xf32>
    %163 = vector.shape_cast %162 : vector<1x8x32xf32> to vector<8x32xf32>
    %cst_123 = arith.constant dense<0.000000e+00> : vector<8x32xf32>
    %164 = tpu.matmul %161, %163, %cst_123 {dimension_numbers = #tpu.dot_dimension_numbers<[1], [0], [0], [1], [0, 0, 1, 1], [], []>} : vector<8x8xf32>, vector<8x32xf32>, vector<8x32xf32> -> vector<8x32xf32>
    %165 = arith.addf %125, %164 : vector<8x32xf32>
    %166 = arith.addf %1, %165 : vector<8x32xf32>
    %c0_124 = arith.constant 0 : index
    %c0_125 = arith.constant 0 : index
    %167 = vector.load %arg12[%c0_124, %c0_125] : memref<1x32xf32, #tpu.memory_space<vmem>>, vector<1x32xf32>
    %168 = vector.broadcast %167 : vector<1x32xf32> to vector<8x32xf32>
    %169 = arith.addf %166, %168 : vector<8x32xf32>
    %cst_126 = arith.constant dense<0.000000e+00> : vector<8xf32>
    %170 = vector.multi_reduction <add>, %169, %cst_126 [1] : vector<8x32xf32> to vector<8xf32>
    %171 = vector.shape_cast %170 : vector<8xf32> to vector<8x1xf32>
    %cst_127 = arith.constant 3.200000e+01 : f32
    %172 = vector.broadcast %cst_127 : f32 to vector<8x1xf32>
    %173 = arith.divf %171, %172 : vector<8x1xf32>
    %174 = vector.broadcast %173 : vector<8x1xf32> to vector<8x32xf32>
    %175 = arith.subf %169, %174 : vector<8x32xf32>
    %176 = arith.mulf %175, %175 : vector<8x32xf32>
    %cst_128 = arith.constant dense<0.000000e+00> : vector<8xf32>
    %177 = vector.multi_reduction <add>, %176, %cst_128 [1] : vector<8x32xf32> to vector<8xf32>
    %178 = vector.shape_cast %177 : vector<8xf32> to vector<8x1xf32>
    %cst_129 = arith.constant 0.0322580636 : f32
    %179 = vector.broadcast %cst_129 : f32 to vector<8x1xf32>
    %180 = arith.mulf %178, %179 : vector<8x1xf32>
    %181 = math.sqrt %180 : vector<8x1xf32>
    %cst_130 = arith.constant 9.99999974E-6 : f32
    %182 = vector.broadcast %cst_130 : f32 to vector<8x1xf32>
    %183 = arith.addf %181, %182 : vector<8x1xf32>
    %184 = tpu.reciprocal %183 {approx = true} : vector<8x1xf32> -> vector<8x1xf32>
    %c0_131 = arith.constant 0 : index
    %c0_132 = arith.constant 0 : index
    %185 = vector.load %arg13[%c0_131, %c0_132] : memref<1x32xf32, #tpu.memory_space<vmem>>, vector<1x32xf32>
    %186 = vector.broadcast %173 : vector<8x1xf32> to vector<8x32xf32>
    %187 = arith.subf %169, %186 : vector<8x32xf32>
    %188 = vector.broadcast %184 : vector<8x1xf32> to vector<8x32xf32>
    %189 = arith.mulf %187, %188 : vector<8x32xf32>
    %190 = vector.broadcast %185 : vector<1x32xf32> to vector<8x32xf32>
    %191 = arith.mulf %190, %189 : vector<8x32xf32>
    %c0_133 = arith.constant 0 : index
    %c0_134 = arith.constant 0 : index
    %192 = vector.load %arg14[%c0_133, %c0_134] : memref<1x32xf32, #tpu.memory_space<vmem>>, vector<1x32xf32>
    %193 = vector.broadcast %192 : vector<1x32xf32> to vector<8x32xf32>
    %194 = arith.addf %191, %193 : vector<8x32xf32>
    %cst_135 = arith.constant 0.000000e+00 : f32
    %195 = vector.broadcast %cst_135 : f32 to vector<8x32xf32>
    %c0_136 = arith.constant 0 : index
    %c0_137 = arith.constant 0 : index
    %c0_138 = arith.constant 0 : index
    %196 = vector.load %arg15[%c0_136, %c0_137, %c0_138] : memref<2x32x32xf32, #tpu.memory_space<vmem>>, vector<1x32x32xf32>
    %197 = vector.shape_cast %196 : vector<1x32x32xf32> to vector<32x32xf32>
    %cst_139 = arith.constant dense<0.000000e+00> : vector<8x32xf32>
    %198 = tpu.matmul %194, %197, %cst_139 {dimension_numbers = #tpu.dot_dimension_numbers<[1], [0], [0], [1], [0, 0, 1, 1], [], []>} : vector<8x32xf32>, vector<32x32xf32>, vector<8x32xf32> -> vector<8x32xf32>
    %c0_140 = arith.constant 0 : index
    %c0_141 = arith.constant 0 : index
    %c0_142 = arith.constant 0 : index
    %199 = vector.load %arg16[%c0_140, %c0_141, %c0_142] : memref<2x1x32xf32, #tpu.memory_space<vmem>>, vector<1x1x32xf32>
    %200 = vector.shape_cast %199 : vector<1x1x32xf32> to vector<1x32xf32>
    %201 = vector.broadcast %200 : vector<1x32xf32> to vector<8x32xf32>
    %202 = arith.addf %198, %201 : vector<8x32xf32>
    %cst_143 = arith.constant 0.000000e+00 : f32
    %203 = vector.broadcast %cst_143 : f32 to vector<8x32xf32>
    %204 = arith.maximumf %202, %203 : vector<8x32xf32>
    %c0_144 = arith.constant 0 : index
    %c0_145 = arith.constant 0 : index
    %c0_146 = arith.constant 0 : index
    %205 = vector.load %arg17[%c0_144, %c0_145, %c0_146] : memref<2x32x32xf32, #tpu.memory_space<vmem>>, vector<1x32x32xf32>
    %206 = vector.shape_cast %205 : vector<1x32x32xf32> to vector<32x32xf32>
    %cst_147 = arith.constant dense<0.000000e+00> : vector<8x32xf32>
    %207 = tpu.matmul %204, %206, %cst_147 {dimension_numbers = #tpu.dot_dimension_numbers<[1], [0], [0], [1], [0, 0, 1, 1], [], []>} : vector<8x32xf32>, vector<32x32xf32>, vector<8x32xf32> -> vector<8x32xf32>
    %208 = arith.addf %195, %207 : vector<8x32xf32>
    %c1_148 = arith.constant 1 : index
    %c0_149 = arith.constant 0 : index
    %c0_150 = arith.constant 0 : index
    %209 = vector.load %arg15[%c1_148, %c0_149, %c0_150] : memref<2x32x32xf32, #tpu.memory_space<vmem>>, vector<1x32x32xf32>
    %210 = vector.shape_cast %209 : vector<1x32x32xf32> to vector<32x32xf32>
    %cst_151 = arith.constant dense<0.000000e+00> : vector<8x32xf32>
    %211 = tpu.matmul %194, %210, %cst_151 {dimension_numbers = #tpu.dot_dimension_numbers<[1], [0], [0], [1], [0, 0, 1, 1], [], []>} : vector<8x32xf32>, vector<32x32xf32>, vector<8x32xf32> -> vector<8x32xf32>
    %c1_152 = arith.constant 1 : index
    %c0_153 = arith.constant 0 : index
    %c0_154 = arith.constant 0 : index
    %212 = vector.load %arg16[%c1_152, %c0_153, %c0_154] : memref<2x1x32xf32, #tpu.memory_space<vmem>>, vector<1x1x32xf32>
    %213 = vector.shape_cast %212 : vector<1x1x32xf32> to vector<1x32xf32>
    %214 = vector.broadcast %213 : vector<1x32xf32> to vector<8x32xf32>
    %215 = arith.addf %211, %214 : vector<8x32xf32>
    %cst_155 = arith.constant 0.000000e+00 : f32
    %216 = vector.broadcast %cst_155 : f32 to vector<8x32xf32>
    %217 = arith.maximumf %215, %216 : vector<8x32xf32>
    %c1_156 = arith.constant 1 : index
    %c0_157 = arith.constant 0 : index
    %c0_158 = arith.constant 0 : index
    %218 = vector.load %arg17[%c1_156, %c0_157, %c0_158] : memref<2x32x32xf32, #tpu.memory_space<vmem>>, vector<1x32x32xf32>
    %219 = vector.shape_cast %218 : vector<1x32x32xf32> to vector<32x32xf32>
    %cst_159 = arith.constant dense<0.000000e+00> : vector<8x32xf32>
    %220 = tpu.matmul %217, %219, %cst_159 {dimension_numbers = #tpu.dot_dimension_numbers<[1], [0], [0], [1], [0, 0, 1, 1], [], []>} : vector<8x32xf32>, vector<32x32xf32>, vector<8x32xf32> -> vector<8x32xf32>
    %221 = arith.addf %208, %220 : vector<8x32xf32>
    %222 = arith.addf %194, %221 : vector<8x32xf32>
    %c0_160 = arith.constant 0 : index
    %c0_161 = arith.constant 0 : index
    %223 = vector.load %arg18[%c0_160, %c0_161] : memref<1x32xf32, #tpu.memory_space<vmem>>, vector<1x32xf32>
    %224 = vector.broadcast %223 : vector<1x32xf32> to vector<8x32xf32>
    %225 = arith.addf %222, %224 : vector<8x32xf32>
    %cst_162 = arith.constant dense<0.000000e+00> : vector<8xf32>
    %226 = vector.multi_reduction <add>, %225, %cst_162 [1] : vector<8x32xf32> to vector<8xf32>
    %227 = vector.shape_cast %226 : vector<8xf32> to vector<8x1xf32>
    %cst_163 = arith.constant 3.200000e+01 : f32
    %228 = vector.broadcast %cst_163 : f32 to vector<8x1xf32>
    %229 = arith.divf %227, %228 : vector<8x1xf32>
    %230 = vector.broadcast %229 : vector<8x1xf32> to vector<8x32xf32>
    %231 = arith.subf %225, %230 : vector<8x32xf32>
    %232 = arith.mulf %231, %231 : vector<8x32xf32>
    %cst_164 = arith.constant dense<0.000000e+00> : vector<8xf32>
    %233 = vector.multi_reduction <add>, %232, %cst_164 [1] : vector<8x32xf32> to vector<8xf32>
    %234 = vector.shape_cast %233 : vector<8xf32> to vector<8x1xf32>
    %cst_165 = arith.constant 0.0322580636 : f32
    %235 = vector.broadcast %cst_165 : f32 to vector<8x1xf32>
    %236 = arith.mulf %234, %235 : vector<8x1xf32>
    %237 = math.sqrt %236 : vector<8x1xf32>
    %cst_166 = arith.constant 9.99999974E-6 : f32
    %238 = vector.broadcast %cst_166 : f32 to vector<8x1xf32>
    %239 = arith.addf %237, %238 : vector<8x1xf32>
    %240 = tpu.reciprocal %239 {approx = true} : vector<8x1xf32> -> vector<8x1xf32>
    %c0_167 = arith.constant 0 : index
    %c0_168 = arith.constant 0 : index
    %241 = vector.load %arg19[%c0_167, %c0_168] : memref<1x32xf32, #tpu.memory_space<vmem>>, vector<1x32xf32>
    %242 = vector.broadcast %229 : vector<8x1xf32> to vector<8x32xf32>
    %243 = arith.subf %225, %242 : vector<8x32xf32>
    %244 = vector.broadcast %240 : vector<8x1xf32> to vector<8x32xf32>
    %245 = arith.mulf %243, %244 : vector<8x32xf32>
    %246 = vector.broadcast %241 : vector<1x32xf32> to vector<8x32xf32>
    %247 = arith.mulf %246, %245 : vector<8x32xf32>
    %c0_169 = arith.constant 0 : index
    %c0_170 = arith.constant 0 : index
    %248 = vector.load %arg20[%c0_169, %c0_170] : memref<1x32xf32, #tpu.memory_space<vmem>>, vector<1x32xf32>
    %249 = vector.broadcast %248 : vector<1x32xf32> to vector<8x32xf32>
    %250 = arith.addf %247, %249 : vector<8x32xf32>
    %c0_171 = arith.constant 0 : index
    %c0_172 = arith.constant 0 : index
    %c0_173 = arith.constant 0 : index
    %251 = vector.load %arg23[%c0_171, %c0_172, %c0_173] : memref<1x8x32xf32, #tpu.memory_space<vmem>>, vector<1x8x32xf32>
    %252 = vector.shape_cast %251 : vector<1x8x32xf32> to vector<8x32xf32>
    %253 = vector.shape_cast %250 : vector<8x32xf32> to vector<1x8x32xf32>
    tpu.vector_store %arg23[%c0_171, %c0_172, %c0_173], %253 {strides = array<i32>} : memref<1x8x32xf32, #tpu.memory_space<vmem>>, vector<1x8x32xf32>,
    return
  }
  func.func @transform_0(%arg0: i32, %arg1: i32) -> (i32, i32, i32) {
    %c0_i32 = arith.constant 0 : i32
    %c0_i32_0 = arith.constant 0 : i32
    return %arg0, %arg1, %c0_i32 : i32, i32, i32
  }
  func.func @transform_1(%arg0: i32, %arg1: i32) -> (i32, i32, i32) {
    %c0_i32 = arith.constant 0 : i32
    %c0_i32_0 = arith.constant 0 : i32
    %c0_i32_1 = arith.constant 0 : i32
    return %arg0, %c0_i32, %c0_i32_0 : i32, i32, i32
  }
  func.func @transform_2(%arg0: i32, %arg1: i32) -> (i32, i32) {
    %c0_i32 = arith.constant 0 : i32
    %c0_i32_0 = arith.constant 0 : i32
    return %arg1, %c0_i32 : i32, i32
  }
  func.func @transform_3(%arg0: i32, %arg1: i32) -> (i32, i32, i32) {
    %c0_i32 = arith.constant 0 : i32
    %c0_i32_0 = arith.constant 0 : i32
    %c0_i32_1 = arith.constant 0 : i32
    %c0_i32_2 = arith.constant 0 : i32
    return %c0_i32, %c0_i32_0, %c0_i32_1 : i32, i32, i32
  }
  func.func @transform_4(%arg0: i32, %arg1: i32) -> (i32, i32, i32) {
    %c0_i32 = arith.constant 0 : i32
    %c0_i32_0 = arith.constant 0 : i32
    %c0_i32_1 = arith.constant 0 : i32
    %c0_i32_2 = arith.constant 0 : i32
    return %c0_i32, %c0_i32_0, %c0_i32_1 : i32, i32, i32
  }
  func.func @transform_5(%arg0: i32, %arg1: i32) -> (i32, i32, i32) {
    %c0_i32 = arith.constant 0 : i32
    %c0_i32_0 = arith.constant 0 : i32
    %c0_i32_1 = arith.constant 0 : i32
    %c0_i32_2 = arith.constant 0 : i32
    return %c0_i32, %c0_i32_0, %c0_i32_1 : i32, i32, i32
  }
  func.func @transform_6(%arg0: i32, %arg1: i32) -> (i32, i32, i32) {
    %c0_i32 = arith.constant 0 : i32
    %c0_i32_0 = arith.constant 0 : i32
    %c0_i32_1 = arith.constant 0 : i32
    %c0_i32_2 = arith.constant 0 : i32
    return %c0_i32, %c0_i32_0, %c0_i32_1 : i32, i32, i32
  }
  func.func @transform_7(%arg0: i32, %arg1: i32) -> (i32, i32, i32) {
    %c0_i32 = arith.constant 0 : i32
    %c0_i32_0 = arith.constant 0 : i32
    %c0_i32_1 = arith.constant 0 : i32
    %c0_i32_2 = arith.constant 0 : i32
    return %c0_i32, %c0_i32_0, %c0_i32_1 : i32, i32, i32
  }
  func.func @transform_8(%arg0: i32, %arg1: i32) -> (i32, i32, i32) {
    %c0_i32 = arith.constant 0 : i32
    %c0_i32_0 = arith.constant 0 : i32
    %c0_i32_1 = arith.constant 0 : i32
    %c0_i32_2 = arith.constant 0 : i32
    return %c0_i32, %c0_i32_0, %c0_i32_1 : i32, i32, i32
  }
  func.func @transform_9(%arg0: i32, %arg1: i32) -> (i32, i32, i32) {
    %c0_i32 = arith.constant 0 : i32
    %c0_i32_0 = arith.constant 0 : i32
    %c0_i32_1 = arith.constant 0 : i32
    %c0_i32_2 = arith.constant 0 : i32
    return %c0_i32, %c0_i32_0, %c0_i32_1 : i32, i32, i32
  }
  func.func @transform_10(%arg0: i32, %arg1: i32) -> (i32, i32) {
    %c0_i32 = arith.constant 0 : i32
    %c0_i32_0 = arith.constant 0 : i32
    %c0_i32_1 = arith.constant 0 : i32
    return %c0_i32, %c0_i32_0 : i32, i32
  }
  func.func @transform_11(%arg0: i32, %arg1: i32) -> (i32, i32) {
    %c0_i32 = arith.constant 0 : i32
    %c0_i32_0 = arith.constant 0 : i32
    %c0_i32_1 = arith.constant 0 : i32
    return %c0_i32, %c0_i32_0 : i32, i32
  }
  func.func @transform_12(%arg0: i32, %arg1: i32) -> (i32, i32) {
    %c0_i32 = arith.constant 0 : i32
    %c0_i32_0 = arith.constant 0 : i32
    %c0_i32_1 = arith.constant 0 : i32
    return %c0_i32, %c0_i32_0 : i32, i32
  }
  func.func @transform_13(%arg0: i32, %arg1: i32) -> (i32, i32, i32) {
    %c0_i32 = arith.constant 0 : i32
    %c0_i32_0 = arith.constant 0 : i32
    %c0_i32_1 = arith.constant 0 : i32
    %c0_i32_2 = arith.constant 0 : i32
    return %c0_i32, %c0_i32_0, %c0_i32_1 : i32, i32, i32
  }
  func.func @transform_14(%arg0: i32, %arg1: i32) -> (i32, i32, i32) {
    %c0_i32 = arith.constant 0 : i32
    %c0_i32_0 = arith.constant 0 : i32
    %c0_i32_1 = arith.constant 0 : i32
    %c0_i32_2 = arith.constant 0 : i32
    return %c0_i32, %c0_i32_0, %c0_i32_1 : i32, i32, i32
  }
  func.func @transform_15(%arg0: i32, %arg1: i32) -> (i32, i32, i32) {
    %c0_i32 = arith.constant 0 : i32
    %c0_i32_0 = arith.constant 0 : i32
    %c0_i32_1 = arith.constant 0 : i32
    %c0_i32_2 = arith.constant 0 : i32
    return %c0_i32, %c0_i32_0, %c0_i32_1 : i32, i32, i32
  }
  func.func @transform_16(%arg0: i32, %arg1: i32) -> (i32, i32) {
    %c0_i32 = arith.constant 0 : i32
    %c0_i32_0 = arith.constant 0 : i32
    %c0_i32_1 = arith.constant 0 : i32
    return %c0_i32, %c0_i32_0 : i32, i32
  }
  func.func @transform_17(%arg0: i32, %arg1: i32) -> (i32, i32) {
    %c0_i32 = arith.constant 0 : i32
    %c0_i32_0 = arith.constant 0 : i32
    %c0_i32_1 = arith.constant 0 : i32
    return %c0_i32, %c0_i32_0 : i32, i32
  }
  func.func @transform_18(%arg0: i32, %arg1: i32) -> (i32, i32) {
    %c0_i32 = arith.constant 0 : i32
    %c0_i32_0 = arith.constant 0 : i32
    %c0_i32_1 = arith.constant 0 : i32
    return %c0_i32, %c0_i32_0 : i32, i32
  }
  func.func @transform_19(%arg0: i32, %arg1: i32) -> (i32, i32) {
    %c0_i32 = arith.constant 0 : i32
    %c0_i32_0 = arith.constant 0 : i32
    %c0_i32_1 = arith.constant 0 : i32
    return %c0_i32, %c0_i32_0 : i32, i32
  }
  func.func @transform_20(%arg0: i32, %arg1: i32) -> (i32, i32) {
    %c0_i32 = arith.constant 0 : i32
    %c0_i32_0 = arith.constant 0 : i32
    %c0_i32_1 = arith.constant 0 : i32
    return %c0_i32, %c0_i32_0 : i32, i32
  }
  func.func @transform_21(%arg0: i32, %arg1: i32) -> (i32, i32, i32) {
    %c0_i32 = arith.constant 0 : i32
    %c0_i32_0 = arith.constant 0 : i32
    return %arg0, %arg1, %c0_i32 : i32, i32, i32
  }
}

module attributes {stable_mosaic.version = 11 : i64} {
  func.func @_encoder_block_kernel(%arg0: i32, %arg1: i32, %arg2: memref<1x8x32xf32, #tpu.memory_space<vmem>>, %arg3: memref<1x16x32xf32, #tpu.memory_space<vmem>>, %arg4: memref<8x16xf32, #tpu.memory_space<vmem>>, %arg5: memref<4x32x8xf32, #tpu.memory_space<vmem>>, %arg6: memref<4x1x8xf32, #tpu.memory_space<vmem>>, %arg7: memref<4x32x8xf32, #tpu.memory_space<vmem>>, %arg8: memref<4x1x8xf32, #tpu.memory_space<vmem>>, %arg9: memref<4x32x8xf32, #tpu.memory_space<vmem>>, %arg10: memref<4x1x8xf32, #tpu.memory_space<vmem>>, %arg11: memref<4x8x32xf32, #tpu.memory_space<vmem>>, %arg12: memref<1x32xf32, #tpu.memory_space<vmem>>, %arg13: memref<1x32xf32, #tpu.memory_space<vmem>>, %arg14: memref<1x32xf32, #tpu.memory_space<vmem>>, %arg15: memref<2x32x32xf32, #tpu.memory_space<vmem>>, %arg16: memref<2x1x32xf32, #tpu.memory_space<vmem>>, %arg17: memref<2x32x32xf32, #tpu.memory_space<vmem>>, %arg18: memref<1x32xf32, #tpu.memory_space<vmem>>, %arg19: memref<1x32xf32, #tpu.memory_space<vmem>>, %arg20: memref<1x32xf32, #tpu.memory_space<vmem>>, %arg21: memref<1x32xf32, #tpu.memory_space<vmem>>, %arg22: memref<1x32xf32, #tpu.memory_space<vmem>>, %arg23: memref<1x8x32xf32, #tpu.memory_space<vmem>>) attributes {dimension_semantics = [#tpu.dimension_semantics<parallel>, #tpu.dimension_semantics<parallel>], iteration_bounds = array<i64: 2, 2>, scalar_prefetch = 0 : i64, scratch_operands = 0 : i64, tpu.core_type = #tpu.core_type<tc>, window_params = [{transform_indices = @transform_0, window_bounds = array<i64: 1, 8, 32>}, {transform_indices = @transform_1, window_bounds = array<i64: 1, 16, 32>}, {transform_indices = @transform_2, window_bounds = array<i64: 8, 16>}, {pipeline_mode = #tpu.pipeline_mode<synchronous>, transform_indices = @transform_3, window_bounds = array<i64: 4, 32, 8>}, {pipeline_mode = #tpu.pipeline_mode<synchronous>, transform_indices = @transform_4, window_bounds = array<i64: 4, 1, 8>}, {pipeline_mode = #tpu.pipeline_mode<synchronous>, transform_indices = @transform_5, window_bounds = array<i64: 4, 32, 8>}, {pipeline_mode = #tpu.pipeline_mode<synchronous>, transform_indices = @transform_6, window_bounds = array<i64: 4, 1, 8>}, {pipeline_mode = #tpu.pipeline_mode<synchronous>, transform_indices = @transform_7, window_bounds = array<i64: 4, 32, 8>}, {pipeline_mode = #tpu.pipeline_mode<synchronous>, transform_indices = @transform_8, window_bounds = array<i64: 4, 1, 8>}, {pipeline_mode = #tpu.pipeline_mode<synchronous>, transform_indices = @transform_9, window_bounds = array<i64: 4, 8, 32>}, {pipeline_mode = #tpu.pipeline_mode<synchronous>, transform_indices = @transform_10, window_bounds = array<i64: 1, 32>}, {pipeline_mode = #tpu.pipeline_mode<synchronous>, transform_indices = @transform_11, window_bounds = array<i64: 1, 32>}, {pipeline_mode = #tpu.pipeline_mode<synchronous>, transform_indices = @transform_12, window_bounds = array<i64: 1, 32>}, {pipeline_mode = #tpu.pipeline_mode<synchronous>, transform_indices = @transform_13, window_bounds = array<i64: 2, 32, 32>}, {pipeline_mode = #tpu.pipeline_mode<synchronous>, transform_indices = @transform_14, window_bounds = array<i64: 2, 1, 32>}, {pipeline_mode = #tpu.pipeline_mode<synchronous>, transform_indices = @transform_15, window_bounds = array<i64: 2, 32, 32>}, {pipeline_mode = #tpu.pipeline_mode<synchronous>, transform_indices = @transform_16, window_bounds = array<i64: 1, 32>}, {pipeline_mode = #tpu.pipeline_mode<synchronous>, transform_indices = @transform_17, window_bounds = array<i64: 1, 32>}, {pipeline_mode = #tpu.pipeline_mode<synchronous>, transform_indices = @transform_18, window_bounds = array<i64: 1, 32>}, {pipeline_mode = #tpu.pipeline_mode<synchronous>, transform_indices = @transform_19, window_bounds = array<i64: 1, 32>}, {pipeline_mode = #tpu.pipeline_mode<synchronous>, transform_indices = @transform_20, window_bounds = array<i64: 1, 32>}, {transform_indices = @transform_21, window_bounds = array<i64: 1, 8, 32>}]} {
    %c0 = arith.constant 0 : index
    %c0_0 = arith.constant 0 : index
    %c0_1 = arith.constant 0 : index
    %0 = vector.load %arg2[%c0, %c0_0, %c0_1] : memref<1x8x32xf32, #tpu.memory_space<vmem>>, vector<1x8x32xf32>
    %1 = vector.shape_cast %0 : vector<1x8x32xf32> to vector<8x32xf32>
    %c0_2 = arith.constant 0 : index
    %c0_3 = arith.constant 0 : index
    %c0_4 = arith.constant 0 : index
    %2 = vector.load %arg3[%c0_2, %c0_3, %c0_4] : memref<1x16x32xf32, #tpu.memory_space<vmem>>, vector<1x16x32xf32>
    %3 = vector.shape_cast %2 : vector<1x16x32xf32> to vector<16x32xf32>
    %c0_5 = arith.constant 0 : index
    %c0_6 = arith.constant 0 : index
    %4 = vector.load %arg4[%c0_5, %c0_6] : memref<8x16xf32, #tpu.memory_space<vmem>>, vector<8x16xf32>
    %cst = arith.constant 0.000000e+00 : f32
    %5 = vector.broadcast %cst : f32 to vector<8x32xf32>
    %c0_7 = arith.constant 0 : index
    %c0_8 = arith.constant 0 : index
    %c0_9 = arith.constant 0 : index
    %6 = vector.load %arg5[%c0_7, %c0_8, %c0_9] : memref<4x32x8xf32, #tpu.memory_space<vmem>>, vector<1x32x8xf32>
    %7 = vector.shape_cast %6 : vector<1x32x8xf32> to vector<32x8xf32>
    %cst_10 = arith.constant dense<0.000000e+00> : vector<8x8xf32>
    %8 = tpu.matmul %1, %7, %cst_10 {dimension_numbers = #tpu.dot_dimension_numbers<[1], [0], [0], [1], [0, 0, 1, 1], [], []>} : vector<8x32xf32>, vector<32x8xf32>, vector<8x8xf32> -> vector<8x8xf32>
    %c0_11 = arith.constant 0 : index
    %c0_12 = arith.constant 0 : index
    %c0_13 = arith.constant 0 : index
    %9 = vector.load %arg6[%c0_11, %c0_12, %c0_13] : memref<4x1x8xf32, #tpu.memory_space<vmem>>, vector<1x1x8xf32>
    %10 = vector.shape_cast %9 : vector<1x1x8xf32> to vector<1x8xf32>
    %11 = vector.broadcast %10 : vector<1x8xf32> to vector<8x8xf32>
    %12 = arith.addf %8, %11 : vector<8x8xf32>
    %c0_14 = arith.constant 0 : index
    %c0_15 = arith.constant 0 : index
    %c0_16 = arith.constant 0 : index
    %13 = vector.load %arg7[%c0_14, %c0_15, %c0_16] : memref<4x32x8xf32, #tpu.memory_space<vmem>>, vector<1x32x8xf32>
    %14 = vector.shape_cast %13 : vector<1x32x8xf32> to vector<32x8xf32>
    %cst_17 = arith.constant dense<0.000000e+00> : vector<16x8xf32>
    %15 = tpu.matmul %3, %14, %cst_17 {dimension_numbers = #tpu.dot_dimension_numbers<[1], [0], [0], [1], [0, 0, 1, 1], [], []>} : vector<16x32xf32>, vector<32x8xf32>, vector<16x8xf32> -> vector<16x8xf32>
    %c0_18 = arith.constant 0 : index
    %c0_19 = arith.constant 0 : index
    %c0_20 = arith.constant 0 : index
    %16 = vector.load %arg8[%c0_18, %c0_19, %c0_20] : memref<4x1x8xf32, #tpu.memory_space<vmem>>, vector<1x1x8xf32>
    %17 = vector.shape_cast %16 : vector<1x1x8xf32> to vector<1x8xf32>
    %18 = vector.broadcast %17 : vector<1x8xf32> to vector<16x8xf32>
    %19 = arith.addf %15, %18 : vector<16x8xf32>
    %c0_21 = arith.constant 0 : index
    %c0_22 = arith.constant 0 : index
    %c0_23 = arith.constant 0 : index
    %20 = vector.load %arg9[%c0_21, %c0_22, %c0_23] : memref<4x32x8xf32, #tpu.memory_space<vmem>>, vector<1x32x8xf32>
    %21 = vector.shape_cast %20 : vector<1x32x8xf32> to vector<32x8xf32>
    %cst_24 = arith.constant dense<0.000000e+00> : vector<16x8xf32>
    %22 = tpu.matmul %3, %21, %cst_24 {dimension_numbers = #tpu.dot_dimension_numbers<[1], [0], [0], [1], [0, 0, 1, 1], [], []>} : vector<16x32xf32>, vector<32x8xf32>, vector<16x8xf32> -> vector<16x8xf32>
    %c0_25 = arith.constant 0 : index
    %c0_26 = arith.constant 0 : index
    %c0_27 = arith.constant 0 : index
    %23 = vector.load %arg10[%c0_25, %c0_26, %c0_27] : memref<4x1x8xf32, #tpu.memory_space<vmem>>, vector<1x1x8xf32>
    %24 = vector.shape_cast %23 : vector<1x1x8xf32> to vector<1x8xf32>
    %25 = vector.broadcast %24 : vector<1x8xf32> to vector<16x8xf32>
    %26 = arith.addf %22, %25 : vector<16x8xf32>
    %cst_28 = arith.constant dense<0.000000e+00> : vector<8x16xf32>
    %27 = tpu.matmul %12, %19, %cst_28 {dimension_numbers = #tpu.dot_dimension_numbers<[1], [1], [0], [0], [0, 0, 1, 0], [], []>} : vector<8x8xf32>, vector<16x8xf32>, vector<8x16xf32> -> vector<8x16xf32>
    %cst_29 = arith.constant 0.353553385 : f32
    %28 = vector.broadcast %cst_29 : f32 to vector<8x16xf32>
    %29 = arith.mulf %27, %28 : vector<8x16xf32>
    %30 = arith.addf %29, %4 : vector<8x16xf32>
    %cst_30 = arith.constant dense<0xFF800000> : vector<8xf32>
    %31 = vector.multi_reduction <maximumf>, %30, %cst_30 [1] : vector<8x16xf32> to vector<8xf32>
    %32 = vector.shape_cast %31 : vector<8xf32> to vector<8x1xf32>
    %33 = vector.broadcast %32 : vector<8x1xf32> to vector<8x16xf32>
    %34 = arith.subf %30, %33 : vector<8x16xf32>
    %35 = math.exp %34 : vector<8x16xf32>
    %cst_31 = arith.constant dense<0.000000e+00> : vector<8xf32>
    %36 = vector.multi_reduction <add>, %35, %cst_31 [1] : vector<8x16xf32> to vector<8xf32>
    %37 = vector.shape_cast %36 : vector<8xf32> to vector<8x1xf32>
    %38 = tpu.reciprocal %37 {approx = true} : vector<8x1xf32> -> vector<8x1xf32>
    %39 = vector.broadcast %38 : vector<8x1xf32> to vector<8x16xf32>
    %40 = arith.mulf %35, %39 : vector<8x16xf32>
    %cst_32 = arith.constant dense<0.000000e+00> : vector<8x8xf32>
    %41 = tpu.matmul %40, %26, %cst_32 {dimension_numbers = #tpu.dot_dimension_numbers<[1], [0], [0], [1], [0, 0, 1, 1], [], []>} : vector<8x16xf32>, vector<16x8xf32>, vector<8x8xf32> -> vector<8x8xf32>
    %c0_33 = arith.constant 0 : index
    %c0_34 = arith.constant 0 : index
    %c0_35 = arith.constant 0 : index
    %42 = vector.load %arg11[%c0_33, %c0_34, %c0_35] : memref<4x8x32xf32, #tpu.memory_space<vmem>>, vector<1x8x32xf32>
    %43 = vector.shape_cast %42 : vector<1x8x32xf32> to vector<8x32xf32>
    %cst_36 = arith.constant dense<0.000000e+00> : vector<8x32xf32>
    %44 = tpu.matmul %41, %43, %cst_36 {dimension_numbers = #tpu.dot_dimension_numbers<[1], [0], [0], [1], [0, 0, 1, 1], [], []>} : vector<8x8xf32>, vector<8x32xf32>, vector<8x32xf32> -> vector<8x32xf32>
    %45 = arith.addf %5, %44 : vector<8x32xf32>
    %c1 = arith.constant 1 : index
    %c0_37 = arith.constant 0 : index
    %c0_38 = arith.constant 0 : index
    %46 = vector.load %arg5[%c1, %c0_37, %c0_38] : memref<4x32x8xf32, #tpu.memory_space<vmem>>, vector<1x32x8xf32>
    %47 = vector.shape_cast %46 : vector<1x32x8xf32> to vector<32x8xf32>
    %cst_39 = arith.constant dense<0.000000e+00> : vector<8x8xf32>
    %48 = tpu.matmul %1, %47, %cst_39 {dimension_numbers = #tpu.dot_dimension_numbers<[1], [0], [0], [1], [0, 0, 1, 1], [], []>} : vector<8x32xf32>, vector<32x8xf32>, vector<8x8xf32> -> vector<8x8xf32>
    %c1_40 = arith.constant 1 : index
    %c0_41 = arith.constant 0 : index
    %c0_42 = arith.constant 0 : index
    %49 = vector.load %arg6[%c1_40, %c0_41, %c0_42] : memref<4x1x8xf32, #tpu.memory_space<vmem>>, vector<1x1x8xf32>
    %50 = vector.shape_cast %49 : vector<1x1x8xf32> to vector<1x8xf32>
    %51 = vector.broadcast %50 : vector<1x8xf32> to vector<8x8xf32>
    %52 = arith.addf %48, %51 : vector<8x8xf32>
    %c1_43 = arith.constant 1 : index
    %c0_44 = arith.constant 0 : index
    %c0_45 = arith.constant 0 : index
    %53 = vector.load %arg7[%c1_43, %c0_44, %c0_45] : memref<4x32x8xf32, #tpu.memory_space<vmem>>, vector<1x32x8xf32>
    %54 = vector.shape_cast %53 : vector<1x32x8xf32> to vector<32x8xf32>
    %cst_46 = arith.constant dense<0.000000e+00> : vector<16x8xf32>
    %55 = tpu.matmul %3, %54, %cst_46 {dimension_numbers = #tpu.dot_dimension_numbers<[1], [0], [0], [1], [0, 0, 1, 1], [], []>} : vector<16x32xf32>, vector<32x8xf32>, vector<16x8xf32> -> vector<16x8xf32>
    %c1_47 = arith.constant 1 : index
    %c0_48 = arith.constant 0 : index
    %c0_49 = arith.constant 0 : index
    %56 = vector.load %arg8[%c1_47, %c0_48, %c0_49] : memref<4x1x8xf32, #tpu.memory_space<vmem>>, vector<1x1x8xf32>
    %57 = vector.shape_cast %56 : vector<1x1x8xf32> to vector<1x8xf32>
    %58 = vector.broadcast %57 : vector<1x8xf32> to vector<16x8xf32>
    %59 = arith.addf %55, %58 : vector<16x8xf32>
    %c1_50 = arith.constant 1 : index
    %c0_51 = arith.constant 0 : index
    %c0_52 = arith.constant 0 : index
    %60 = vector.load %arg9[%c1_50, %c0_51, %c0_52] : memref<4x32x8xf32, #tpu.memory_space<vmem>>, vector<1x32x8xf32>
    %61 = vector.shape_cast %60 : vector<1x32x8xf32> to vector<32x8xf32>
    %cst_53 = arith.constant dense<0.000000e+00> : vector<16x8xf32>
    %62 = tpu.matmul %3, %61, %cst_53 {dimension_numbers = #tpu.dot_dimension_numbers<[1], [0], [0], [1], [0, 0, 1, 1], [], []>} : vector<16x32xf32>, vector<32x8xf32>, vector<16x8xf32> -> vector<16x8xf32>
    %c1_54 = arith.constant 1 : index
    %c0_55 = arith.constant 0 : index
    %c0_56 = arith.constant 0 : index
    %63 = vector.load %arg10[%c1_54, %c0_55, %c0_56] : memref<4x1x8xf32, #tpu.memory_space<vmem>>, vector<1x1x8xf32>
    %64 = vector.shape_cast %63 : vector<1x1x8xf32> to vector<1x8xf32>
    %65 = vector.broadcast %64 : vector<1x8xf32> to vector<16x8xf32>
    %66 = arith.addf %62, %65 : vector<16x8xf32>
    %cst_57 = arith.constant dense<0.000000e+00> : vector<8x16xf32>
    %67 = tpu.matmul %52, %59, %cst_57 {dimension_numbers = #tpu.dot_dimension_numbers<[1], [1], [0], [0], [0, 0, 1, 0], [], []>} : vector<8x8xf32>, vector<16x8xf32>, vector<8x16xf32> -> vector<8x16xf32>
    %cst_58 = arith.constant 0.353553385 : f32
    %68 = vector.broadcast %cst_58 : f32 to vector<8x16xf32>
    %69 = arith.mulf %67, %68 : vector<8x16xf32>
    %70 = arith.addf %69, %4 : vector<8x16xf32>
    %cst_59 = arith.constant dense<0xFF800000> : vector<8xf32>
    %71 = vector.multi_reduction <maximumf>, %70, %cst_59 [1] : vector<8x16xf32> to vector<8xf32>
    %72 = vector.shape_cast %71 : vector<8xf32> to vector<8x1xf32>
    %73 = vector.broadcast %72 : vector<8x1xf32> to vector<8x16xf32>
    %74 = arith.subf %70, %73 : vector<8x16xf32>
    %75 = math.exp %74 : vector<8x16xf32>
    %cst_60 = arith.constant dense<0.000000e+00> : vector<8xf32>
    %76 = vector.multi_reduction <add>, %75, %cst_60 [1] : vector<8x16xf32> to vector<8xf32>
    %77 = vector.shape_cast %76 : vector<8xf32> to vector<8x1xf32>
    %78 = tpu.reciprocal %77 {approx = true} : vector<8x1xf32> -> vector<8x1xf32>
    %79 = vector.broadcast %78 : vector<8x1xf32> to vector<8x16xf32>
    %80 = arith.mulf %75, %79 : vector<8x16xf32>
    %cst_61 = arith.constant dense<0.000000e+00> : vector<8x8xf32>
    %81 = tpu.matmul %80, %66, %cst_61 {dimension_numbers = #tpu.dot_dimension_numbers<[1], [0], [0], [1], [0, 0, 1, 1], [], []>} : vector<8x16xf32>, vector<16x8xf32>, vector<8x8xf32> -> vector<8x8xf32>
    %c1_62 = arith.constant 1 : index
    %c0_63 = arith.constant 0 : index
    %c0_64 = arith.constant 0 : index
    %82 = vector.load %arg11[%c1_62, %c0_63, %c0_64] : memref<4x8x32xf32, #tpu.memory_space<vmem>>, vector<1x8x32xf32>
    %83 = vector.shape_cast %82 : vector<1x8x32xf32> to vector<8x32xf32>
    %cst_65 = arith.constant dense<0.000000e+00> : vector<8x32xf32>
    %84 = tpu.matmul %81, %83, %cst_65 {dimension_numbers = #tpu.dot_dimension_numbers<[1], [0], [0], [1], [0, 0, 1, 1], [], []>} : vector<8x8xf32>, vector<8x32xf32>, vector<8x32xf32> -> vector<8x32xf32>
    %85 = arith.addf %45, %84 : vector<8x32xf32>
    %c2 = arith.constant 2 : index
    %c0_66 = arith.constant 0 : index
    %c0_67 = arith.constant 0 : index
    %86 = vector.load %arg5[%c2, %c0_66, %c0_67] : memref<4x32x8xf32, #tpu.memory_space<vmem>>, vector<1x32x8xf32>
    %87 = vector.shape_cast %86 : vector<1x32x8xf32> to vector<32x8xf32>
    %cst_68 = arith.constant dense<0.000000e+00> : vector<8x8xf32>
    %88 = tpu.matmul %1, %87, %cst_68 {dimension_numbers = #tpu.dot_dimension_numbers<[1], [0], [0], [1], [0, 0, 1, 1], [], []>} : vector<8x32xf32>, vector<32x8xf32>, vector<8x8xf32> -> vector<8x8xf32>
    %c2_69 = arith.constant 2 : index
    %c0_70 = arith.constant 0 : index
    %c0_71 = arith.constant 0 : index
    %89 = vector.load %arg6[%c2_69, %c0_70, %c0_71] : memref<4x1x8xf32, #tpu.memory_space<vmem>>, vector<1x1x8xf32>
    %90 = vector.shape_cast %89 : vector<1x1x8xf32> to vector<1x8xf32>
    %91 = vector.broadcast %90 : vector<1x8xf32> to vector<8x8xf32>
    %92 = arith.addf %88, %91 : vector<8x8xf32>
    %c2_72 = arith.constant 2 : index
    %c0_73 = arith.constant 0 : index
    %c0_74 = arith.constant 0 : index
    %93 = vector.load %arg7[%c2_72, %c0_73, %c0_74] : memref<4x32x8xf32, #tpu.memory_space<vmem>>, vector<1x32x8xf32>
    %94 = vector.shape_cast %93 : vector<1x32x8xf32> to vector<32x8xf32>
    %cst_75 = arith.constant dense<0.000000e+00> : vector<16x8xf32>
    %95 = tpu.matmul %3, %94, %cst_75 {dimension_numbers = #tpu.dot_dimension_numbers<[1], [0], [0], [1], [0, 0, 1, 1], [], []>} : vector<16x32xf32>, vector<32x8xf32>, vector<16x8xf32> -> vector<16x8xf32>
    %c2_76 = arith.constant 2 : index
    %c0_77 = arith.constant 0 : index
    %c0_78 = arith.constant 0 : index
    %96 = vector.load %arg8[%c2_76, %c0_77, %c0_78] : memref<4x1x8xf32, #tpu.memory_space<vmem>>, vector<1x1x8xf32>
    %97 = vector.shape_cast %96 : vector<1x1x8xf32> to vector<1x8xf32>
    %98 = vector.broadcast %97 : vector<1x8xf32> to vector<16x8xf32>
    %99 = arith.addf %95, %98 : vector<16x8xf32>
    %c2_79 = arith.constant 2 : index
    %c0_80 = arith.constant 0 : index
    %c0_81 = arith.constant 0 : index
    %100 = vector.load %arg9[%c2_79, %c0_80, %c0_81] : memref<4x32x8xf32, #tpu.memory_space<vmem>>, vector<1x32x8xf32>
    %101 = vector.shape_cast %100 : vector<1x32x8xf32> to vector<32x8xf32>
    %cst_82 = arith.constant dense<0.000000e+00> : vector<16x8xf32>
    %102 = tpu.matmul %3, %101, %cst_82 {dimension_numbers = #tpu.dot_dimension_numbers<[1], [0], [0], [1], [0, 0, 1, 1], [], []>} : vector<16x32xf32>, vector<32x8xf32>, vector<16x8xf32> -> vector<16x8xf32>
    %c2_83 = arith.constant 2 : index
    %c0_84 = arith.constant 0 : index
    %c0_85 = arith.constant 0 : index
    %103 = vector.load %arg10[%c2_83, %c0_84, %c0_85] : memref<4x1x8xf32, #tpu.memory_space<vmem>>, vector<1x1x8xf32>
    %104 = vector.shape_cast %103 : vector<1x1x8xf32> to vector<1x8xf32>
    %105 = vector.broadcast %104 : vector<1x8xf32> to vector<16x8xf32>
    %106 = arith.addf %102, %105 : vector<16x8xf32>
    %cst_86 = arith.constant dense<0.000000e+00> : vector<8x16xf32>
    %107 = tpu.matmul %92, %99, %cst_86 {dimension_numbers = #tpu.dot_dimension_numbers<[1], [1], [0], [0], [0, 0, 1, 0], [], []>} : vector<8x8xf32>, vector<16x8xf32>, vector<8x16xf32> -> vector<8x16xf32>
    %cst_87 = arith.constant 0.353553385 : f32
    %108 = vector.broadcast %cst_87 : f32 to vector<8x16xf32>
    %109 = arith.mulf %107, %108 : vector<8x16xf32>
    %110 = arith.addf %109, %4 : vector<8x16xf32>
    %cst_88 = arith.constant dense<0xFF800000> : vector<8xf32>
    %111 = vector.multi_reduction <maximumf>, %110, %cst_88 [1] : vector<8x16xf32> to vector<8xf32>
    %112 = vector.shape_cast %111 : vector<8xf32> to vector<8x1xf32>
    %113 = vector.broadcast %112 : vector<8x1xf32> to vector<8x16xf32>
    %114 = arith.subf %110, %113 : vector<8x16xf32>
    %115 = math.exp %114 : vector<8x16xf32>
    %cst_89 = arith.constant dense<0.000000e+00> : vector<8xf32>
    %116 = vector.multi_reduction <add>, %115, %cst_89 [1] : vector<8x16xf32> to vector<8xf32>
    %117 = vector.shape_cast %116 : vector<8xf32> to vector<8x1xf32>
    %118 = tpu.reciprocal %117 {approx = true} : vector<8x1xf32> -> vector<8x1xf32>
    %119 = vector.broadcast %118 : vector<8x1xf32> to vector<8x16xf32>
    %120 = arith.mulf %115, %119 : vector<8x16xf32>
    %cst_90 = arith.constant dense<0.000000e+00> : vector<8x8xf32>
    %121 = tpu.matmul %120, %106, %cst_90 {dimension_numbers = #tpu.dot_dimension_numbers<[1], [0], [0], [1], [0, 0, 1, 1], [], []>} : vector<8x16xf32>, vector<16x8xf32>, vector<8x8xf32> -> vector<8x8xf32>
    %c2_91 = arith.constant 2 : index
    %c0_92 = arith.constant 0 : index
    %c0_93 = arith.constant 0 : index
    %122 = vector.load %arg11[%c2_91, %c0_92, %c0_93] : memref<4x8x32xf32, #tpu.memory_space<vmem>>, vector<1x8x32xf32>
    %123 = vector.shape_cast %122 : vector<1x8x32xf32> to vector<8x32xf32>
    %cst_94 = arith.constant dense<0.000000e+00> : vector<8x32xf32>
    %124 = tpu.matmul %121, %123, %cst_94 {dimension_numbers = #tpu.dot_dimension_numbers<[1], [0], [0], [1], [0, 0, 1, 1], [], []>} : vector<8x8xf32>, vector<8x32xf32>, vector<8x32xf32> -> vector<8x32xf32>
    %125 = arith.addf %85, %124 : vector<8x32xf32>
    %c3 = arith.constant 3 : index
    %c0_95 = arith.constant 0 : index
    %c0_96 = arith.constant 0 : index
    %126 = vector.load %arg5[%c3, %c0_95, %c0_96] : memref<4x32x8xf32, #tpu.memory_space<vmem>>, vector<1x32x8xf32>
    %127 = vector.shape_cast %126 : vector<1x32x8xf32> to vector<32x8xf32>
    %cst_97 = arith.constant dense<0.000000e+00> : vector<8x8xf32>
    %128 = tpu.matmul %1, %127, %cst_97 {dimension_numbers = #tpu.dot_dimension_numbers<[1], [0], [0], [1], [0, 0, 1, 1], [], []>} : vector<8x32xf32>, vector<32x8xf32>, vector<8x8xf32> -> vector<8x8xf32>
    %c3_98 = arith.constant 3 : index
    %c0_99 = arith.constant 0 : index
    %c0_100 = arith.constant 0 : index
    %129 = vector.load %arg6[%c3_98, %c0_99, %c0_100] : memref<4x1x8xf32, #tpu.memory_space<vmem>>, vector<1x1x8xf32>
    %130 = vector.shape_cast %129 : vector<1x1x8xf32> to vector<1x8xf32>
    %131 = vector.broadcast %130 : vector<1x8xf32> to vector<8x8xf32>
    %132 = arith.addf %128, %131 : vector<8x8xf32>
    %c3_101 = arith.constant 3 : index
    %c0_102 = arith.constant 0 : index
    %c0_103 = arith.constant 0 : index
    %133 = vector.load %arg7[%c3_101, %c0_102, %c0_103] : memref<4x32x8xf32, #tpu.memory_space<vmem>>, vector<1x32x8xf32>
    %134 = vector.shape_cast %133 : vector<1x32x8xf32> to vector<32x8xf32>
    %cst_104 = arith.constant dense<0.000000e+00> : vector<16x8xf32>
    %135 = tpu.matmul %3, %134, %cst_104 {dimension_numbers = #tpu.dot_dimension_numbers<[1], [0], [0], [1], [0, 0, 1, 1], [], []>} : vector<16x32xf32>, vector<32x8xf32>, vector<16x8xf32> -> vector<16x8xf32>
    %c3_105 = arith.constant 3 : index
    %c0_106 = arith.constant 0 : index
    %c0_107 = arith.constant 0 : index
    %136 = vector.load %arg8[%c3_105, %c0_106, %c0_107] : memref<4x1x8xf32, #tpu.memory_space<vmem>>, vector<1x1x8xf32>
    %137 = vector.shape_cast %136 : vector<1x1x8xf32> to vector<1x8xf32>
    %138 = vector.broadcast %137 : vector<1x8xf32> to vector<16x8xf32>
    %139 = arith.addf %135, %138 : vector<16x8xf32>
    %c3_108 = arith.constant 3 : index
    %c0_109 = arith.constant 0 : index
    %c0_110 = arith.constant 0 : index
    %140 = vector.load %arg9[%c3_108, %c0_109, %c0_110] : memref<4x32x8xf32, #tpu.memory_space<vmem>>, vector<1x32x8xf32>
    %141 = vector.shape_cast %140 : vector<1x32x8xf32> to vector<32x8xf32>
    %cst_111 = arith.constant dense<0.000000e+00> : vector<16x8xf32>
    %142 = tpu.matmul %3, %141, %cst_111 {dimension_numbers = #tpu.dot_dimension_numbers<[1], [0], [0], [1], [0, 0, 1, 1], [], []>} : vector<16x32xf32>, vector<32x8xf32>, vector<16x8xf32> -> vector<16x8xf32>
    %c3_112 = arith.constant 3 : index
    %c0_113 = arith.constant 0 : index
    %c0_114 = arith.constant 0 : index
    %143 = vector.load %arg10[%c3_112, %c0_113, %c0_114] : memref<4x1x8xf32, #tpu.memory_space<vmem>>, vector<1x1x8xf32>
    %144 = vector.shape_cast %143 : vector<1x1x8xf32> to vector<1x8xf32>
    %145 = vector.broadcast %144 : vector<1x8xf32> to vector<16x8xf32>
    %146 = arith.addf %142, %145 : vector<16x8xf32>
    %cst_115 = arith.constant dense<0.000000e+00> : vector<8x16xf32>
    %147 = tpu.matmul %132, %139, %cst_115 {dimension_numbers = #tpu.dot_dimension_numbers<[1], [1], [0], [0], [0, 0, 1, 0], [], []>} : vector<8x8xf32>, vector<16x8xf32>, vector<8x16xf32> -> vector<8x16xf32>
    %cst_116 = arith.constant 0.353553385 : f32
    %148 = vector.broadcast %cst_116 : f32 to vector<8x16xf32>
    %149 = arith.mulf %147, %148 : vector<8x16xf32>
    %150 = arith.addf %149, %4 : vector<8x16xf32>
    %cst_117 = arith.constant dense<0xFF800000> : vector<8xf32>
    %151 = vector.multi_reduction <maximumf>, %150, %cst_117 [1] : vector<8x16xf32> to vector<8xf32>
    %152 = vector.shape_cast %151 : vector<8xf32> to vector<8x1xf32>
    %153 = vector.broadcast %152 : vector<8x1xf32> to vector<8x16xf32>
    %154 = arith.subf %150, %153 : vector<8x16xf32>
    %155 = math.exp %154 : vector<8x16xf32>
    %cst_118 = arith.constant dense<0.000000e+00> : vector<8xf32>
    %156 = vector.multi_reduction <add>, %155, %cst_118 [1] : vector<8x16xf32> to vector<8xf32>
    %157 = vector.shape_cast %156 : vector<8xf32> to vector<8x1xf32>
    %158 = tpu.reciprocal %157 {approx = true} : vector<8x1xf32> -> vector<8x1xf32>
    %159 = vector.broadcast %158 : vector<8x1xf32> to vector<8x16xf32>
    %160 = arith.mulf %155, %159 : vector<8x16xf32>
    %cst_119 = arith.constant dense<0.000000e+00> : vector<8x8xf32>
    %161 = tpu.matmul %160, %146, %cst_119 {dimension_numbers = #tpu.dot_dimension_numbers<[1], [0], [0], [1], [0, 0, 1, 1], [], []>} : vector<8x16xf32>, vector<16x8xf32>, vector<8x8xf32> -> vector<8x8xf32>
    %c3_120 = arith.constant 3 : index
    %c0_121 = arith.constant 0 : index
    %c0_122 = arith.constant 0 : index
    %162 = vector.load %arg11[%c3_120, %c0_121, %c0_122] : memref<4x8x32xf32, #tpu.memory_space<vmem>>, vector<1x8x32xf32>
    %163 = vector.shape_cast %162 : vector<1x8x32xf32> to vector<8x32xf32>
    %cst_123 = arith.constant dense<0.000000e+00> : vector<8x32xf32>
    %164 = tpu.matmul %161, %163, %cst_123 {dimension_numbers = #tpu.dot_dimension_numbers<[1], [0], [0], [1], [0, 0, 1, 1], [], []>} : vector<8x8xf32>, vector<8x32xf32>, vector<8x32xf32> -> vector<8x32xf32>
    %165 = arith.addf %125, %164 : vector<8x32xf32>
    %166 = arith.addf %1, %165 : vector<8x32xf32>
    %c0_124 = arith.constant 0 : index
    %c0_125 = arith.constant 0 : index
    %167 = vector.load %arg12[%c0_124, %c0_125] : memref<1x32xf32, #tpu.memory_space<vmem>>, vector<1x32xf32>
    %168 = vector.broadcast %167 : vector<1x32xf32> to vector<8x32xf32>
    %169 = arith.addf %166, %168 : vector<8x32xf32>
    %cst_126 = arith.constant dense<0.000000e+00> : vector<8xf32>
    %170 = vector.multi_reduction <add>, %169, %cst_126 [1] : vector<8x32xf32> to vector<8xf32>
    %171 = vector.shape_cast %170 : vector<8xf32> to vector<8x1xf32>
    %cst_127 = arith.constant 3.200000e+01 : f32
    %172 = vector.broadcast %cst_127 : f32 to vector<8x1xf32>
    %173 = arith.divf %171, %172 : vector<8x1xf32>
    %174 = vector.broadcast %173 : vector<8x1xf32> to vector<8x32xf32>
    %175 = arith.subf %169, %174 : vector<8x32xf32>
    %176 = arith.mulf %175, %175 : vector<8x32xf32>
    %cst_128 = arith.constant dense<0.000000e+00> : vector<8xf32>
    %177 = vector.multi_reduction <add>, %176, %cst_128 [1] : vector<8x32xf32> to vector<8xf32>
    %178 = vector.shape_cast %177 : vector<8xf32> to vector<8x1xf32>
    %cst_129 = arith.constant 0.0322580636 : f32
    %179 = vector.broadcast %cst_129 : f32 to vector<8x1xf32>
    %180 = arith.mulf %178, %179 : vector<8x1xf32>
    %181 = math.sqrt %180 : vector<8x1xf32>
    %cst_130 = arith.constant 9.99999974E-6 : f32
    %182 = vector.broadcast %cst_130 : f32 to vector<8x1xf32>
    %183 = arith.addf %181, %182 : vector<8x1xf32>
    %184 = tpu.reciprocal %183 {approx = true} : vector<8x1xf32> -> vector<8x1xf32>
    %c0_131 = arith.constant 0 : index
    %c0_132 = arith.constant 0 : index
    %185 = vector.load %arg13[%c0_131, %c0_132] : memref<1x32xf32, #tpu.memory_space<vmem>>, vector<1x32xf32>
    %186 = vector.broadcast %173 : vector<8x1xf32> to vector<8x32xf32>
    %187 = arith.subf %169, %186 : vector<8x32xf32>
    %188 = vector.broadcast %184 : vector<8x1xf32> to vector<8x32xf32>
    %189 = arith.mulf %187, %188 : vector<8x32xf32>
    %190 = vector.broadcast %185 : vector<1x32xf32> to vector<8x32xf32>
    %191 = arith.mulf %190, %189 : vector<8x32xf32>
    %c0_133 = arith.constant 0 : index
    %c0_134 = arith.constant 0 : index
    %192 = vector.load %arg14[%c0_133, %c0_134] : memref<1x32xf32, #tpu.memory_space<vmem>>, vector<1x32xf32>
    %193 = vector.broadcast %192 : vector<1x32xf32> to vector<8x32xf32>
    %194 = arith.addf %191, %193 : vector<8x32xf32>
    %cst_135 = arith.constant 0.000000e+00 : f32
    %195 = vector.broadcast %cst_135 : f32 to vector<8x32xf32>
    %c0_136 = arith.constant 0 : index
    %c0_137 = arith.constant 0 : index
    %c0_138 = arith.constant 0 : index
    %196 = vector.load %arg15[%c0_136, %c0_137, %c0_138] : memref<2x32x32xf32, #tpu.memory_space<vmem>>, vector<1x32x32xf32>
    %197 = vector.shape_cast %196 : vector<1x32x32xf32> to vector<32x32xf32>
    %cst_139 = arith.constant dense<0.000000e+00> : vector<8x32xf32>
    %198 = tpu.matmul %194, %197, %cst_139 {dimension_numbers = #tpu.dot_dimension_numbers<[1], [0], [0], [1], [0, 0, 1, 1], [], []>} : vector<8x32xf32>, vector<32x32xf32>, vector<8x32xf32> -> vector<8x32xf32>
    %c0_140 = arith.constant 0 : index
    %c0_141 = arith.constant 0 : index
    %c0_142 = arith.constant 0 : index
    %199 = vector.load %arg16[%c0_140, %c0_141, %c0_142] : memref<2x1x32xf32, #tpu.memory_space<vmem>>, vector<1x1x32xf32>
    %200 = vector.shape_cast %199 : vector<1x1x32xf32> to vector<1x32xf32>
    %201 = vector.broadcast %200 : vector<1x32xf32> to vector<8x32xf32>
    %202 = arith.addf %198, %201 : vector<8x32xf32>
    %cst_143 = arith.constant 0.000000e+00 : f32
    %203 = vector.broadcast %cst_143 : f32 to vector<8x32xf32>
    %204 = arith.maximumf %202, %203 : vector<8x32xf32>
    %c0_144 = arith.constant 0 : index
    %c0_145 = arith.constant 0 : index
    %c0_146 = arith.constant 0 : index
    %205 = vector.load %arg17[%c0_144, %c0_145, %c0_146] : memref<2x32x32xf32, #tpu.memory_space<vmem>>, vector<1x32x32xf32>
    %206 = vector.shape_cast %205 : vector<1x32x32xf32> to vector<32x32xf32>
    %cst_147 = arith.constant dense<0.000000e+00> : vector<8x32xf32>
    %207 = tpu.matmul %204, %206, %cst_147 {dimension_numbers = #tpu.dot_dimension_numbers<[1], [0], [0], [1], [0, 0, 1, 1], [], []>} : vector<8x32xf32>, vector<32x32xf32>, vector<8x32xf32> -> vector<8x32xf32>
    %208 = arith.addf %195, %207 : vector<8x32xf32>
    %c1_148 = arith.constant 1 : index
    %c0_149 = arith.constant 0 : index
    %c0_150 = arith.constant 0 : index
    %209 = vector.load %arg15[%c1_148, %c0_149, %c0_150] : memref<2x32x32xf32, #tpu.memory_space<vmem>>, vector<1x32x32xf32>
    %210 = vector.shape_cast %209 : vector<1x32x32xf32> to vector<32x32xf32>
    %cst_151 = arith.constant dense<0.000000e+00> : vector<8x32xf32>
    %211 = tpu.matmul %194, %210, %cst_151 {dimension_numbers = #tpu.dot_dimension_numbers<[1], [0], [0], [1], [0, 0, 1, 1], [], []>} : vector<8x32xf32>, vector<32x32xf32>, vector<8x32xf32> -> vector<8x32xf32>
    %c1_152 = arith.constant 1 : index
    %c0_153 = arith.constant 0 : index
    %c0_154 = arith.constant 0 : index
    %212 = vector.load %arg16[%c1_152, %c0_153, %c0_154] : memref<2x1x32xf32, #tpu.memory_space<vmem>>, vector<1x1x32xf32>
    %213 = vector.shape_cast %212 : vector<1x1x32xf32> to vector<1x32xf32>
    %214 = vector.broadcast %213 : vector<1x32xf32> to vector<8x32xf32>
    %215 = arith.addf %211, %214 : vector<8x32xf32>
    %cst_155 = arith.constant 0.000000e+00 : f32
    %216 = vector.broadcast %cst_155 : f32 to vector<8x32xf32>
    %217 = arith.maximumf %215, %216 : vector<8x32xf32>
    %c1_156 = arith.constant 1 : index
    %c0_157 = arith.constant 0 : index
    %c0_158 = arith.constant 0 : index
    %218 = vector.load %arg17[%c1_156, %c0_157, %c0_158] : memref<2x32x32xf32, #tpu.memory_space<vmem>>, vector<1x32x32xf32>
    %219 = vector.shape_cast %218 : vector<1x32x32xf32> to vector<32x32xf32>
    %cst_159 = arith.constant dense<0.000000e+00> : vector<8x32xf32>
    %220 = tpu.matmul %217, %219, %cst_159 {dimension_numbers = #tpu.dot_dimension_numbers<[1], [0], [0], [1], [0, 0, 1, 1], [], []>} : vector<8x32xf32>, vector<32x32xf32>, vector<8x32xf32> -> vector<8x32xf32>
    %221 = arith.addf %208, %220 : vector<8x32xf32>
    %222 = arith.addf %194, %221 : vector<8x32xf32>
    %c0_160 = arith.constant 0 : index
    %c0_161 = arith.constant 0 : index
    %223 = vector.load %arg18[%c0_160, %c0_161] : memref<1x32xf32, #tpu.memory_space<vmem>>, vector<1x32xf32>
    %224 = vector.broadcast %223 : vector<1x32xf32> to vector<8x32xf32>
    %225 = arith.addf %222, %224 : vector<8x32xf32>
    %cst_162 = arith.constant dense<0.000000e+00> : vector<8xf32>
    %226 = vector.multi_reduction <add>, %225, %cst_162 [1] : vector<8x32xf32> to vector<8xf32>
    %227 = vector.shape_cast %226 : vector<8xf32> to vector<8x1xf32>
    %cst_163 = arith.constant 3.200000e+01 : f32
    %228 = vector.broadcast %cst_163 : f32 to vector<8x1xf32>
    %229 = arith.divf %227, %228 : vector<8x1xf32>
    %230 = vector.broadcast %229 : vector<8x1xf32> to vector<8x32xf32>
    %231 = arith.subf %225, %230 : vector<8x32xf32>
    %232 = arith.mulf %231, %231 : vector<8x32xf32>
    %cst_164 = arith.constant dense<0.000000e+00> : vector<8xf32>
    %233 = vector.multi_reduction <add>, %232, %cst_164 [1] : vector<8x32xf32> to vector<8xf32>
    %234 = vector.shape_cast %233 : vector<8xf32> to vector<8x1xf32>
    %cst_165 = arith.constant 0.0322580636 : f32
    %235 = vector.broadcast %cst_165 : f32 to vector<8x1xf32>
    %236 = arith.mulf %234, %235 : vector<8x1xf32>
    %237 = math.sqrt %236 : vector<8x1xf32>
    %cst_166 = arith.constant 9.99999974E-6 : f32
    %238 = vector.broadcast %cst_166 : f32 to vector<8x1xf32>
    %239 = arith.addf %237, %238 : vector<8x1xf32>
    %240 = tpu.reciprocal %239 {approx = true} : vector<8x1xf32> -> vector<8x1xf32>
    %c0_167 = arith.constant 0 : index
    %c0_168 = arith.constant 0 : index
    %241 = vector.load %arg19[%c0_167, %c0_168] : memref<1x32xf32, #tpu.memory_space<vmem>>, vector<1x32xf32>
    %242 = vector.broadcast %229 : vector<8x1xf32> to vector<8x32xf32>
    %243 = arith.subf %225, %242 : vector<8x32xf32>
    %244 = vector.broadcast %240 : vector<8x1xf32> to vector<8x32xf32>
    %245 = arith.mulf %243, %244 : vector<8x32xf32>
    %246 = vector.broadcast %241 : vector<1x32xf32> to vector<8x32xf32>
    %247 = arith.mulf %246, %245 : vector<8x32xf32>
    %c0_169 = arith.constant 0 : index
    %c0_170 = arith.constant 0 : index
    %248 = vector.load %arg20[%c0_169, %c0_170] : memref<1x32xf32, #tpu.memory_space<vmem>>, vector<1x32xf32>
    %249 = vector.broadcast %248 : vector<1x32xf32> to vector<8x32xf32>
    %250 = arith.addf %247, %249 : vector<8x32xf32>
    %c0_171 = arith.constant 0 : index
    %c0_172 = arith.constant 0 : index
    %c0_173 = arith.constant 0 : index
    %251 = vector.load %arg23[%c0_171, %c0_172, %c0_173] : memref<1x8x32xf32, #tpu.memory_space<vmem>>, vector<1x8x32xf32>
    %252 = vector.shape_cast %251 : vector<1x8x32xf32> to vector<8x32xf32>
    %253 = vector.shape_cast %250 : vector<8x32xf32> to vector<1x8x32xf32>
    tpu.vector_store %arg23[%c0_171, %c0_172, %c0_173], %253 {strides = array<i32>} : memref<1x8x32xf32, #tpu.memory_space<vmem>>, vector<1x8x32xf32>,
    return
  }
  func.func @transform_0(%arg0: i32, %arg1: i32) -> (i32, i32, i32) {
    %c0_i32 = arith.constant 0 : i32
    %c0_i32_0 = arith.constant 0 : i32
    return %arg0, %arg1, %c0_i32 : i32, i32, i32
  }
  func.func @transform_1(%arg0: i32, %arg1: i32) -> (i32, i32, i32) {
    %c0_i32 = arith.constant 0 : i32
    %c0_i32_0 = arith.constant 0 : i32
    %c0_i32_1 = arith.constant 0 : i32
    return %arg0, %c0_i32, %c0_i32_0 : i32, i32, i32
  }
  func.func @transform_2(%arg0: i32, %arg1: i32) -> (i32, i32) {
    %c0_i32 = arith.constant 0 : i32
    %c0_i32_0 = arith.constant 0 : i32
    return %arg1, %c0_i32 : i32, i32
  }
  func.func @transform_3(%arg0: i32, %arg1: i32) -> (i32, i32, i32) {
    %c0_i32 = arith.constant 0 : i32
    %c0_i32_0 = arith.constant 0 : i32
    %c0_i32_1 = arith.constant 0 : i32
    %c0_i32_2 = arith.constant 0 : i32
    return %c0_i32, %c0_i32_0, %c0_i32_1 : i32, i32, i32
  }
  func.func @transform_4(%arg0: i32, %arg1: i32) -> (i32, i32, i32) {
    %c0_i32 = arith.constant 0 : i32
    %c0_i32_0 = arith.constant 0 : i32
    %c0_i32_1 = arith.constant 0 : i32
    %c0_i32_2 = arith.constant 0 : i32
    return %c0_i32, %c0_i32_0, %c0_i32_1 : i32, i32, i32
  }
  func.func @transform_5(%arg0: i32, %arg1: i32) -> (i32, i32, i32) {
    %c0_i32 = arith.constant 0 : i32
    %c0_i32_0 = arith.constant 0 : i32
    %c0_i32_1 = arith.constant 0 : i32
    %c0_i32_2 = arith.constant 0 : i32
    return %c0_i32, %c0_i32_0, %c0_i32_1 : i32, i32, i32
  }
  func.func @transform_6(%arg0: i32, %arg1: i32) -> (i32, i32, i32) {
    %c0_i32 = arith.constant 0 : i32
    %c0_i32_0 = arith.constant 0 : i32
    %c0_i32_1 = arith.constant 0 : i32
    %c0_i32_2 = arith.constant 0 : i32
    return %c0_i32, %c0_i32_0, %c0_i32_1 : i32, i32, i32
  }
  func.func @transform_7(%arg0: i32, %arg1: i32) -> (i32, i32, i32) {
    %c0_i32 = arith.constant 0 : i32
    %c0_i32_0 = arith.constant 0 : i32
    %c0_i32_1 = arith.constant 0 : i32
    %c0_i32_2 = arith.constant 0 : i32
    return %c0_i32, %c0_i32_0, %c0_i32_1 : i32, i32, i32
  }
  func.func @transform_8(%arg0: i32, %arg1: i32) -> (i32, i32, i32) {
    %c0_i32 = arith.constant 0 : i32
    %c0_i32_0 = arith.constant 0 : i32
    %c0_i32_1 = arith.constant 0 : i32
    %c0_i32_2 = arith.constant 0 : i32
    return %c0_i32, %c0_i32_0, %c0_i32_1 : i32, i32, i32
  }
  func.func @transform_9(%arg0: i32, %arg1: i32) -> (i32, i32, i32) {
    %c0_i32 = arith.constant 0 : i32
    %c0_i32_0 = arith.constant 0 : i32
    %c0_i32_1 = arith.constant 0 : i32
    %c0_i32_2 = arith.constant 0 : i32
    return %c0_i32, %c0_i32_0, %c0_i32_1 : i32, i32, i32
  }
  func.func @transform_10(%arg0: i32, %arg1: i32) -> (i32, i32) {
    %c0_i32 = arith.constant 0 : i32
    %c0_i32_0 = arith.constant 0 : i32
    %c0_i32_1 = arith.constant 0 : i32
    return %c0_i32, %c0_i32_0 : i32, i32
  }
  func.func @transform_11(%arg0: i32, %arg1: i32) -> (i32, i32) {
    %c0_i32 = arith.constant 0 : i32
    %c0_i32_0 = arith.constant 0 : i32
    %c0_i32_1 = arith.constant 0 : i32
    return %c0_i32, %c0_i32_0 : i32, i32
  }
  func.func @transform_12(%arg0: i32, %arg1: i32) -> (i32, i32) {
    %c0_i32 = arith.constant 0 : i32
    %c0_i32_0 = arith.constant 0 : i32
    %c0_i32_1 = arith.constant 0 : i32
    return %c0_i32, %c0_i32_0 : i32, i32
  }
  func.func @transform_13(%arg0: i32, %arg1: i32) -> (i32, i32, i32) {
    %c0_i32 = arith.constant 0 : i32
    %c0_i32_0 = arith.constant 0 : i32
    %c0_i32_1 = arith.constant 0 : i32
    %c0_i32_2 = arith.constant 0 : i32
    return %c0_i32, %c0_i32_0, %c0_i32_1 : i32, i32, i32
  }
  func.func @transform_14(%arg0: i32, %arg1: i32) -> (i32, i32, i32) {
    %c0_i32 = arith.constant 0 : i32
    %c0_i32_0 = arith.constant 0 : i32
    %c0_i32_1 = arith.constant 0 : i32
    %c0_i32_2 = arith.constant 0 : i32
    return %c0_i32, %c0_i32_0, %c0_i32_1 : i32, i32, i32
  }
  func.func @transform_15(%arg0: i32, %arg1: i32) -> (i32, i32, i32) {
    %c0_i32 = arith.constant 0 : i32
    %c0_i32_0 = arith.constant 0 : i32
    %c0_i32_1 = arith.constant 0 : i32
    %c0_i32_2 = arith.constant 0 : i32
    return %c0_i32, %c0_i32_0, %c0_i32_1 : i32, i32, i32
  }
  func.func @transform_16(%arg0: i32, %arg1: i32) -> (i32, i32) {
    %c0_i32 = arith.constant 0 : i32
    %c0_i32_0 = arith.constant 0 : i32
    %c0_i32_1 = arith.constant 0 : i32
    return %c0_i32, %c0_i32_0 : i32, i32
  }
  func.func @transform_17(%arg0: i32, %arg1: i32) -> (i32, i32) {
    %c0_i32 = arith.constant 0 : i32
    %c0_i32_0 = arith.constant 0 : i32
    %c0_i32_1 = arith.constant 0 : i32
    return %c0_i32, %c0_i32_0 : i32, i32
  }
  func.func @transform_18(%arg0: i32, %arg1: i32) -> (i32, i32) {
    %c0_i32 = arith.constant 0 : i32
    %c0_i32_0 = arith.constant 0 : i32
    %c0_i32_1 = arith.constant 0 : i32
    return %c0_i32, %c0_i32_0 : i32, i32
  }
  func.func @transform_19(%arg0: i32, %arg1: i32) -> (i32, i32) {
    %c0_i32 = arith.constant 0 : i32
    %c0_i32_0 = arith.constant 0 : i32
    %c0_i32_1 = arith.constant 0 : i32
    return %c0_i32, %c0_i32_0 : i32, i32
  }
  func.func @transform_20(%arg0: i32, %arg1: i32) -> (i32, i32) {
    %c0_i32 = arith.constant 0 : i32
    %c0_i32_0 = arith.constant 0 : i32
    %c0_i32_1 = arith.constant 0 : i32
    return %c0_i32, %c0_i32_0 : i32, i32
  }
  func.func @transform_21(%arg0: i32, %arg1: i32) -> (i32, i32, i32) {
    %c0_i32 = arith.constant 0 : i32
    %c0_i32_0 = arith.constant 0 : i32
    return %arg0, %arg1, %c0_i32 : i32, i32, i32
  }
}

</mosaic_0001>

<llo_original>
// kernel: tpu_custom_call.1
$region0: #{tpu_custom_call.1}
  #allocation0 [shape = 'u32[]', space=smem, size = 0x4, offset = 0x4, fixed_abs, tag = 'smem constant byte address 0x4 - core index']
  #allocation1 [shape = 'u32[144,128]{1,0:T(1,128)}', space=vmem, size = 0x12000, scoped, tag = 'internal scratch']
  %s0 = inlined_call_operand.hbm [shape: f32[2,16,32], index: 0, kind: input, shape index: {}]
  %s1 = inlined_call_operand.hbm [shape: f32[2,16,32], index: 1, kind: input, shape index: {}]
  %s2 = inlined_call_operand.hbm [shape: f32[16,16], index: 2, kind: input, shape index: {}]
  %s3 = inlined_call_operand.hbm [shape: f32[4,32,8], index: 3, kind: input, shape index: {}]
  %s4 = inlined_call_operand.hbm [shape: f32[4,1,8], index: 4, kind: input, shape index: {}]
  %s5 = inlined_call_operand.hbm [shape: f32[4,32,8], index: 5, kind: input, shape index: {}]
  %s6 = inlined_call_operand.hbm [shape: f32[4,1,8], index: 6, kind: input, shape index: {}]
  %s7 = inlined_call_operand.hbm [shape: f32[4,32,8], index: 7, kind: input, shape index: {}]
  %s8 = inlined_call_operand.hbm [shape: f32[4,1,8], index: 8, kind: input, shape index: {}]
  %s9 = inlined_call_operand.hbm [shape: f32[4,8,32], index: 9, kind: input, shape index: {}]
  %s10 = inlined_call_operand.hbm [shape: f32[1,32], index: 10, kind: input, shape index: {}]
  %s11 = inlined_call_operand.hbm [shape: f32[1,32], index: 11, kind: input, shape index: {}]
  %s12 = inlined_call_operand.hbm [shape: f32[1,32], index: 12, kind: input, shape index: {}]
  %s13 = inlined_call_operand.hbm [shape: f32[2,32,32], index: 13, kind: input, shape index: {}]
  %s14 = inlined_call_operand.hbm [shape: f32[2,1,32], index: 14, kind: input, shape index: {}]
  %s15 = inlined_call_operand.hbm [shape: f32[2,32,32], index: 15, kind: input, shape index: {}]
  %s16 = inlined_call_operand.hbm [shape: f32[1,32], index: 16, kind: input, shape index: {}]
  %s17 = inlined_call_operand.hbm [shape: f32[1,32], index: 17, kind: input, shape index: {}]
  %s18 = inlined_call_operand.hbm [shape: f32[1,32], index: 18, kind: input, shape index: {}]
  %s19 = inlined_call_operand.hbm [shape: f32[1,32], index: 19, kind: input, shape index: {}]
  %s20 = inlined_call_operand.hbm [shape: f32[1,32], index: 20, kind: input, shape index: {}]
  %s21 = inlined_call_operand.hbm [shape: f32[2,16,32], index: 21, kind: output, shape index: {}]
  %s22 = sld [smem:[#allocation0]]
  $region201: #{tpu_custom_call.1} parent=0
    _
  %s24 = ssub.s32 1, %s22
  %s25 = scalar_select 0, %s24, %s22
  $region1: #{tpu_custom_call.1} parent=0
    #allocation2 [shape = 'u8[8192]{0}', space=vmem, size = 0x2000, scoped, tag = 'input window, operand 0']
    #allocation3 [shape = 's32[2]{0}', space=sflag, size = 0x8, scoped, tag = 'scoped memory for tpu_custom_call.1']
    #allocation4 [shape = 's32[2]{0}', space=sflag, size = 0x8, scoped, tag = 'scoped memory for tpu_custom_call.1']
    #allocation5 [shape = 'u8[16384]{0}', space=vmem, size = 0x4000, scoped, tag = 'input window, operand 1']
    #allocation6 [shape = 's32[2]{0}', space=sflag, size = 0x8, scoped, tag = 'scoped memory for tpu_custom_call.1']
    #allocation7 [shape = 'u8[8192]{0}', space=vmem, size = 0x2000, scoped, tag = 'input window, operand 2']
    #allocation8 [shape = 'u8[65536]{0}', space=vmem, size = 0x10000, scoped, tag = 'input window, operand 3, single buffered']
    #allocation9 [shape = 's32[1]{0}', space=sflag, size = 0x4, scoped, tag = 'scoped memory for tpu_custom_call.1']
    #allocation10 [shape = 'u8[2048]{0}', space=vmem, size = 0x800, scoped, tag = 'input window, operand 4, single buffered']
    #allocation11 [shape = 'u8[65536]{0}', space=vmem, size = 0x10000, scoped, tag = 'input window, operand 5, single buffered']
    #allocation12 [shape = 's32[1]{0}', space=sflag, size = 0x4, scoped, tag = 'scoped memory for tpu_custom_call.1']
    #allocation13 [shape = 'u8[2048]{0}', space=vmem, size = 0x800, scoped, tag = 'input window, operand 6, single buffered']
    #allocation14 [shape = 'u8[65536]{0}', space=vmem, size = 0x10000, scoped, tag = 'input window, operand 7, single buffered']
    #allocation15 [shape = 's32[1]{0}', space=sflag, size = 0x4, scoped, tag = 'scoped memory for tpu_custom_call.1']
    #allocation16 [shape = 'u8[2048]{0}', space=vmem, size = 0x800, scoped, tag = 'input window, operand 8, single buffered']
    #allocation17 [shape = 'u8[16384]{0}', space=vmem, size = 0x4000, scoped, tag = 'input window, operand 9, single buffered']
    #allocation18 [shape = 's32[1]{0}', space=sflag, size = 0x4, scoped, tag = 'scoped memory for tpu_custom_call.1']
    #allocation19 [shape = 'u8[512]{0}', space=vmem, size = 0x400, scoped, tag = 'input window, operand 10, single buffered']
    #allocation20 [shape = 'u8[512]{0}', space=vmem, size = 0x400, scoped, tag = 'input window, operand 11, single buffered']
    #allocation21 [shape = 's32[1]{0}', space=sflag, size = 0x4, scoped, tag = 'scoped memory for tpu_custom_call.1']
    #allocation22 [shape = 'u8[512]{0}', space=vmem, size = 0x400, scoped, tag = 'input window, operand 12, single buffered']
    #allocation23 [shape = 'u8[32768]{0}', space=vmem, size = 0x8000, scoped, tag = 'input window, operand 13, single buffered']
    #allocation24 [shape = 's32[1]{0}', space=sflag, size = 0x4, scoped, tag = 'scoped memory for tpu_custom_call.1']
    #allocation25 [shape = 'u8[1024]{0}', space=vmem, size = 0x400, scoped, tag = 'input window, operand 14, single buffered']
    #allocation26 [shape = 'u8[32768]{0}', space=vmem, size = 0x8000, scoped, tag = 'input window, operand 15, single buffered']
    #allocation27 [shape = 's32[1]{0}', space=sflag, size = 0x4, scoped, tag = 'scoped memory for tpu_custom_call.1']
    #allocation28 [shape = 'u8[512]{0}', space=vmem, size = 0x400, scoped, tag = 'input window, operand 16, single buffered']
    #allocation29 [shape = 'u8[512]{0}', space=vmem, size = 0x400, scoped, tag = 'input window, operand 17, single buffered']
    #allocation30 [shape = 's32[1]{0}', space=sflag, size = 0x4, scoped, tag = 'scoped memory for tpu_custom_call.1']
    #allocation31 [shape = 'u8[512]{0}', space=vmem, size = 0x400, scoped, tag = 'input window, operand 18, single buffered']
    #allocation32 [shape = 'u8[512]{0}', space=vmem, size = 0x400, scoped, tag = 'input window, operand 19, single buffered']
    #allocation33 [shape = 's32[1]{0}', space=sflag, size = 0x4, scoped, tag = 'scoped memory for tpu_custom_call.1']
    #allocation34 [shape = 'u8[512]{0}', space=vmem, size = 0x400, scoped, tag = 'input window, operand 20, single buffered']
    #allocation35 [shape = 'u8[8192]{0}', space=vmem, size = 0x2000, scoped, tag = 'output window, operand 0']
    %26 = vsyncpa [#allocation3], 0
    %s27 = scalar_lea.sflag [#allocation3], 1
    %28 = vsyncpa %s27, 0
    %29 = vsyncpa [#allocation6], 0
    %s30 = scalar_lea.sflag [#allocation6], 1
    %31 = vsyncpa %s30, 0
    %32 = vsyncpa [#allocation9], 0
    %33 = vsyncpa [#allocation12], 0
    %34 = vsyncpa [#allocation15], 0
    %35 = vsyncpa [#allocation18], 0
    %36 = vsyncpa [#allocation21], 0
    %37 = vsyncpa [#allocation24], 0
    %38 = vsyncpa [#allocation27], 0
    %39 = vsyncpa [#allocation30], 0
    %40 = vsyncpa [#allocation33], 0
    %41 = vsyncpa [#allocation4], 0
    %s42 = scalar_lea.sflag [#allocation4], 1
    %43 = vsyncpa %s42, 0
    loop: start=0, step=1, limit=6
    $region2: #{tpu_custom_call.1} parent=1 // loop_pre_header
      _
    $region3: #{tpu_custom_call.1} parent=1 // loop_header
      %s45 = sphi 0, %s49
      %p46 = scmp.ge.s32.totalorder %s45, 6
      %s52 = sphi 0, %s64
      %s53 = sphi 0, %s60
      %s54 = sphi 0, %s52
      %s55 = sphi 0, %s53
      %s56 = sphi 0, %s54
      %s57 = sphi 0, %s55
      %s69 = sphi 0, %s71
      %s72 = sphi 0, %s69
      %s73 = sphi 0, %s72
      %s89 = sphi 0, %s73
      %s95 = sphi 0, %s97
      %s98 = sphi 0, %s95
      %s99 = sphi 0, %s98
      %s115 = sphi 0, %s99
      %s121 = sphi 0, %s123
      %s124 = sphi 0, %s121
      %s125 = sphi 0, %s124
      %s141 = sphi 0, %s125
      %s145 = sphi 0, %s145
      %s147 = sphi 0, %s145
      %s148 = sphi 0, %s147
      %s162 = sphi 0, %s148
      %s166 = sphi 0, %s166
      %s168 = sphi 0, %s166
      %s169 = sphi 0, %s168
      %s183 = sphi 0, %s169
      %s187 = sphi 0, %s187
      %s189 = sphi 0, %s187
      %s190 = sphi 0, %s189
      %s204 = sphi 0, %s190
      %s208 = sphi 0, %s208
      %s210 = sphi 0, %s208
      %s211 = sphi 0, %s210
      %s225 = sphi 0, %s211
      %s229 = sphi 0, %s229
      %s231 = sphi 0, %s229
      %s232 = sphi 0, %s231
      %s246 = sphi 0, %s232
      %s250 = sphi 0, %s250
      %s252 = sphi 0, %s250
      %s253 = sphi 0, %s252
      %s267 = sphi 0, %s253
      %s271 = sphi 0, %s271
      %s273 = sphi 0, %s271
      %s274 = sphi 0, %s273
      %s288 = sphi 0, %s274
      %s292 = sphi 0, %s292
      %s294 = sphi 0, %s292
      %s295 = sphi 0, %s294
      %s309 = sphi 0, %s295
      %s313 = sphi 0, %s313
      %s315 = sphi 0, %s313
      %s316 = sphi 0, %s315
      %s330 = sphi 0, %s316
      %s334 = sphi 0, %s334
      %s336 = sphi 0, %s334
      %s337 = sphi 0, %s336
      %s351 = sphi 0, %s337
      %s355 = sphi 0, %s355
      %s357 = sphi 0, %s355
      %s358 = sphi 0, %s357
      %s372 = sphi 0, %s358
      %s376 = sphi 0, %s376
      %s378 = sphi 0, %s376
      %s379 = sphi 0, %s378
      %s393 = sphi 0, %s379
      %s397 = sphi 0, %s397
      %s399 = sphi 0, %s397
      %s400 = sphi 0, %s399
      %s414 = sphi 0, %s400
      %s418 = sphi 0, %s418
      %s420 = sphi 0, %s418
      %s421 = sphi 0, %s420
      %s435 = sphi 0, %s421
      %s439 = sphi 0, %s439
      %s441 = sphi 0, %s439
      %s442 = sphi 0, %s441
      %s456 = sphi 0, %s442
      %s460 = sphi 0, %s460
      %s462 = sphi 0, %s460
      %s463 = sphi 0, %s462
      %s477 = sphi 0, %s463
      %s481 = sphi 0, %s481
      %s483 = sphi 0, %s481
      %s484 = sphi 0, %s483
      %s498 = sphi 0, %s484
      %s502 = sphi 0, %s502
      %s504 = sphi 0, %s502
      %s505 = sphi 0, %s504
      %s519 = sphi 0, %s505
      %s527 = sphi 0, %s529
      %s530 = sphi 0, %s527
      %s531 = sphi 0, %s530
      %s547 = sphi 0, %s531
    $region4: #{tpu_custom_call.1} parent=1 // loop_header_branch
      %48 = sbr.rel (%p46) target = $region8
    $region5: #{tpu_custom_call.1} parent=1 // loop_body
      %s50 = ssub.s32 %s45, 1
      %s51 = ssub.s32 %s45, 2
      %s58 = sadd.s32 1, %s53
      %p59 = scmp.ge.s32.totalorder %s58, 2
      %s60 = scalar_select %p59, 0, %s58
      %s61 = sadd.s32 1, %s52
      %s62 = scalar_select %p59, %s61, %s52
      %p63 = scmp.ge.s32.totalorder %s62, 2
      %s64 = scalar_select %p63, 0, %s62
      %s65 = ssub.s32 %s52, %s64
      %s66 = ssub.s32 %s53, %s60
      %s67 = sor.u32 %s65, %s66
      %p68 = scmp.eq.s32.totalorder %s67, 0
      %s70 = sadd.s32 %s69, 1
      %s71 = scalar_select %p68, %s69, %s70
      %p74 = pneg %p68
      %p75 = scmp.eq.s32.totalorder %s45, 3
      %p76 = por %p74, %p75
      %p77 = scmp.ne.s32.totalorder %s69, %s72
      %p78 = scmp.eq.s32.totalorder %s45, 0
      %p79 = por %p77, %p78
      %p80 = scmp.ne.s32.totalorder %s69, %s72
      %p81 = scmp.eq.s32.totalorder %s50, 3
      %p82 = por %p80, %p81
      %p83 = scmp.ne.s32.totalorder %s72, %s73
      %p84 = scmp.eq.s32.totalorder %s50, 0
      %p85 = por %p83, %p84
      %p86 = scmp.ne.s32.totalorder %s72, %s73
      %p87 = scmp.eq.s32.totalorder %s51, 3
      %p88 = por %p86, %p87
      %p90 = scmp.ne.s32.totalorder %s73, %s89
      %p91 = scmp.eq.s32.totalorder %s51, 0
      %p92 = por %p90, %p91
      %s93 = ssub.s32 %s52, %s64
      %p94 = scmp.eq.s32.totalorder %s93, 0
      %s96 = sadd.s32 %s95, 1
      %s97 = scalar_select %p94, %s95, %s96
      %p100 = pneg %p94
      %p101 = scmp.eq.s32.totalorder %s45, 3
      %p102 = por %p100, %p101
      %p103 = scmp.ne.s32.totalorder %s95, %s98
      %p104 = scmp.eq.s32.totalorder %s45, 0
      %p105 = por %p103, %p104
      %p106 = scmp.ne.s32.totalorder %s95, %s98
      %p107 = scmp.eq.s32.totalorder %s50, 3
      %p108 = por %p106, %p107
      %p109 = scmp.ne.s32.totalorder %s98, %s99
      %p110 = scmp.eq.s32.totalorder %s50, 0
      %p111 = por %p109, %p110
      %p112 = scmp.ne.s32.totalorder %s98, %s99
      %p113 = scmp.eq.s32.totalorder %s51, 3
      %p114 = por %p112, %p113
      %p116 = scmp.ne.s32.totalorder %s99, %s115
      %p117 = scmp.eq.s32.totalorder %s51, 0
      %p118 = por %p116, %p117
      %s119 = ssub.s32 %s53, %s60
      %p120 = scmp.eq.s32.totalorder %s119, 0
      %s122 = sadd.s32 %s121, 1
      %s123 = scalar_select %p120, %s121, %s122
      %p126 = pneg %p120
      %p127 = scmp.eq.s32.totalorder %s45, 3
      %p128 = por %p126, %p127
      %p129 = scmp.ne.s32.totalorder %s121, %s124
      %p130 = scmp.eq.s32.totalorder %s45, 0
      %p131 = por %p129, %p130
      %p132 = scmp.ne.s32.totalorder %s121, %s124
      %p133 = scmp.eq.s32.totalorder %s50, 3
      %p134 = por %p132, %p133
      %p135 = scmp.ne.s32.totalorder %s124, %s125
      %p136 = scmp.eq.s32.totalorder %s50, 0
      %p137 = por %p135, %p136
      %p138 = scmp.ne.s32.totalorder %s124, %s125
      %p139 = scmp.eq.s32.totalorder %s51, 3
      %p140 = por %p138, %p139
      %p142 = scmp.ne.s32.totalorder %s125, %s141
      %p143 = scmp.eq.s32.totalorder %s51, 0
      %p144 = por %p142, %p143
      %s146 = sadd.s32 %s145, 1
      %p149 = scmp.eq.s32.totalorder %s45, 3
      %p150 = scmp.ne.s32.totalorder %s145, %s147
      %p151 = scmp.eq.s32.totalorder %s45, 0
      %p152 = por %p150, %p151
      %p153 = scmp.ne.s32.totalorder %s145, %s147
      %p154 = scmp.eq.s32.totalorder %s50, 3
      %p155 = por %p153, %p154
      %p156 = scmp.ne.s32.totalorder %s147, %s148
      %p157 = scmp.eq.s32.totalorder %s50, 0
      %p158 = por %p156, %p157
      %p159 = scmp.ne.s32.totalorder %s147, %s148
      %p160 = scmp.eq.s32.totalorder %s51, 3
      %p161 = por %p159, %p160
      %p163 = scmp.ne.s32.totalorder %s148, %s162
      %p164 = scmp.eq.s32.totalorder %s51, 0
      %p165 = por %p163, %p164
      %s167 = sadd.s32 %s166, 1
      %p170 = scmp.eq.s32.totalorder %s45, 3
      %p171 = scmp.ne.s32.totalorder %s166, %s168
      %p172 = scmp.eq.s32.totalorder %s45, 0
      %p173 = por %p171, %p172
      %p174 = scmp.ne.s32.totalorder %s166, %s168
      %p175 = scmp.eq.s32.totalorder %s50, 3
      %p176 = por %p174, %p175
      %p177 = scmp.ne.s32.totalorder %s168, %s169
      %p178 = scmp.eq.s32.totalorder %s50, 0
      %p179 = por %p177, %p178
      %p180 = scmp.ne.s32.totalorder %s168, %s169
      %p181 = scmp.eq.s32.totalorder %s51, 3
      %p182 = por %p180, %p181
      %p184 = scmp.ne.s32.totalorder %s169, %s183
      %p185 = scmp.eq.s32.totalorder %s51, 0
      %p186 = por %p184, %p185
      %s188 = sadd.s32 %s187, 1
      %p191 = scmp.eq.s32.totalorder %s45, 3
      %p192 = scmp.ne.s32.totalorder %s187, %s189
      %p193 = scmp.eq.s32.totalorder %s45, 0
      %p194 = por %p192, %p193
      %p195 = scmp.ne.s32.totalorder %s187, %s189
      %p196 = scmp.eq.s32.totalorder %s50, 3
      %p197 = por %p195, %p196
      %p198 = scmp.ne.s32.totalorder %s189, %s190
      %p199 = scmp.eq.s32.totalorder %s50, 0
      %p200 = por %p198, %p199
      %p201 = scmp.ne.s32.totalorder %s189, %s190
      %p202 = scmp.eq.s32.totalorder %s51, 3
      %p203 = por %p201, %p202
      %p205 = scmp.ne.s32.totalorder %s190, %s204
      %p206 = scmp.eq.s32.totalorder %s51, 0
      %p207 = por %p205, %p206
      %s209 = sadd.s32 %s208, 1
      %p212 = scmp.eq.s32.totalorder %s45, 3
      %p213 = scmp.ne.s32.totalorder %s208, %s210
      %p214 = scmp.eq.s32.totalorder %s45, 0
      %p215 = por %p213, %p214
      %p216 = scmp.ne.s32.totalorder %s208, %s210
      %p217 = scmp.eq.s32.totalorder %s50, 3
      %p218 = por %p216, %p217
      %p219 = scmp.ne.s32.totalorder %s210, %s211
      %p220 = scmp.eq.s32.totalorder %s50, 0
      %p221 = por %p219, %p220
      %p222 = scmp.ne.s32.totalorder %s210, %s211
      %p223 = scmp.eq.s32.totalorder %s51, 3
      %p224 = por %p222, %p223
      %p226 = scmp.ne.s32.totalorder %s211, %s225
      %p227 = scmp.eq.s32.totalorder %s51, 0
      %p228 = por %p226, %p227
      %s230 = sadd.s32 %s229, 1
      %p233 = scmp.eq.s32.totalorder %s45, 3
      %p234 = scmp.ne.s32.totalorder %s229, %s231
      %p235 = scmp.eq.s32.totalorder %s45, 0
      %p236 = por %p234, %p235
      %p237 = scmp.ne.s32.totalorder %s229, %s231
      %p238 = scmp.eq.s32.totalorder %s50, 3
      %p239 = por %p237, %p238
      %p240 = scmp.ne.s32.totalorder %s231, %s232
      %p241 = scmp.eq.s32.totalorder %s50, 0
      %p242 = por %p240, %p241
      %p243 = scmp.ne.s32.totalorder %s231, %s232
      %p244 = scmp.eq.s32.totalorder %s51, 3
      %p245 = por %p243, %p244
      %p247 = scmp.ne.s32.totalorder %s232, %s246
      %p248 = scmp.eq.s32.totalorder %s51, 0
      %p249 = por %p247, %p248
      %s251 = sadd.s32 %s250, 1
      %p254 = scmp.eq.s32.totalorder %s45, 3
      %p255 = scmp.ne.s32.totalorder %s250, %s252
      %p256 = scmp.eq.s32.totalorder %s45, 0
      %p257 = por %p255, %p256
      %p258 = scmp.ne.s32.totalorder %s250, %s252
      %p259 = scmp.eq.s32.totalorder %s50, 3
      %p260 = por %p258, %p259
      %p261 = scmp.ne.s32.totalorder %s252, %s253
      %p262 = scmp.eq.s32.totalorder %s50, 0
      %p263 = por %p261, %p262
      %p264 = scmp.ne.s32.totalorder %s252, %s253
      %p265 = scmp.eq.s32.totalorder %s51, 3
      %p266 = por %p264, %p265
      %p268 = scmp.ne.s32.totalorder %s253, %s267
      %p269 = scmp.eq.s32.totalorder %s51, 0
      %p270 = por %p268, %p269
      %s272 = sadd.s32 %s271, 1
      %p275 = scmp.eq.s32.totalorder %s45, 3
      %p276 = scmp.ne.s32.totalorder %s271, %s273
      %p277 = scmp.eq.s32.totalorder %s45, 0
      %p278 = por %p276, %p277
      %p279 = scmp.ne.s32.totalorder %s271, %s273
      %p280 = scmp.eq.s32.totalorder %s50, 3
      %p281 = por %p279, %p280
      %p282 = scmp.ne.s32.totalorder %s273, %s274
      %p283 = scmp.eq.s32.totalorder %s50, 0
      %p284 = por %p282, %p283
      %p285 = scmp.ne.s32.totalorder %s273, %s274
      %p286 = scmp.eq.s32.totalorder %s51, 3
      %p287 = por %p285, %p286
      %p289 = scmp.ne.s32.totalorder %s274, %s288
      %p290 = scmp.eq.s32.totalorder %s51, 0
      %p291 = por %p289, %p290
      %s293 = sadd.s32 %s292, 1
      %p296 = scmp.eq.s32.totalorder %s45, 3
      %p297 = scmp.ne.s32.totalorder %s292, %s294
      %p298 = scmp.eq.s32.totalorder %s45, 0
      %p299 = por %p297, %p298
      %p300 = scmp.ne.s32.totalorder %s292, %s294
      %p301 = scmp.eq.s32.totalorder %s50, 3
      %p302 = por %p300, %p301
      %p303 = scmp.ne.s32.totalorder %s294, %s295
      %p304 = scmp.eq.s32.totalorder %s50, 0
      %p305 = por %p303, %p304
      %p306 = scmp.ne.s32.totalorder %s294, %s295
      %p307 = scmp.eq.s32.totalorder %s51, 3
      %p308 = por %p306, %p307
      %p310 = scmp.ne.s32.totalorder %s295, %s309
      %p311 = scmp.eq.s32.totalorder %s51, 0
      %p312 = por %p310, %p311
      %s314 = sadd.s32 %s313, 1
      %p317 = scmp.eq.s32.totalorder %s45, 3
      %p318 = scmp.ne.s32.totalorder %s313, %s315
      %p319 = scmp.eq.s32.totalorder %s45, 0
      %p320 = por %p318, %p319
      %p321 = scmp.ne.s32.totalorder %s313, %s315
      %p322 = scmp.eq.s32.totalorder %s50, 3
      %p323 = por %p321, %p322
      %p324 = scmp.ne.s32.totalorder %s315, %s316
      %p325 = scmp.eq.s32.totalorder %s50, 0
      %p326 = por %p324, %p325
      %p327 = scmp.ne.s32.totalorder %s315, %s316
      %p328 = scmp.eq.s32.totalorder %s51, 3
      %p329 = por %p327, %p328
      %p331 = scmp.ne.s32.totalorder %s316, %s330
      %p332 = scmp.eq.s32.totalorder %s51, 0
      %p333 = por %p331, %p332
      %s335 = sadd.s32 %s334, 1
      %p338 = scmp.eq.s32.totalorder %s45, 3
      %p339 = scmp.ne.s32.totalorder %s334, %s336
      %p340 = scmp.eq.s32.totalorder %s45, 0
      %p341 = por %p339, %p340
      %p342 = scmp.ne.s32.totalorder %s334, %s336
      %p343 = scmp.eq.s32.totalorder %s50, 3
      %p344 = por %p342, %p343
      %p345 = scmp.ne.s32.totalorder %s336, %s337
      %p346 = scmp.eq.s32.totalorder %s50, 0
      %p347 = por %p345, %p346
      %p348 = scmp.ne.s32.totalorder %s336, %s337
      %p349 = scmp.eq.s32.totalorder %s51, 3
      %p350 = por %p348, %p349
      %p352 = scmp.ne.s32.totalorder %s337, %s351
      %p353 = scmp.eq.s32.totalorder %s51, 0
      %p354 = por %p352, %p353
      %s356 = sadd.s32 %s355, 1
      %p359 = scmp.eq.s32.totalorder %s45, 3
      %p360 = scmp.ne.s32.totalorder %s355, %s357
      %p361 = scmp.eq.s32.totalorder %s45, 0
      %p362 = por %p360, %p361
      %p363 = scmp.ne.s32.totalorder %s355, %s357
      %p364 = scmp.eq.s32.totalorder %s50, 3
      %p365 = por %p363, %p364
      %p366 = scmp.ne.s32.totalorder %s357, %s358
      %p367 = scmp.eq.s32.totalorder %s50, 0
      %p368 = por %p366, %p367
      %p369 = scmp.ne.s32.totalorder %s357, %s358
      %p370 = scmp.eq.s32.totalorder %s51, 3
      %p371 = por %p369, %p370
      %p373 = scmp.ne.s32.totalorder %s358, %s372
      %p374 = scmp.eq.s32.totalorder %s51, 0
      %p375 = por %p373, %p374
      %s377 = sadd.s32 %s376, 1
      %p380 = scmp.eq.s32.totalorder %s45, 3
      %p381 = scmp.ne.s32.totalorder %s376, %s378
      %p382 = scmp.eq.s32.totalorder %s45, 0
      %p383 = por %p381, %p382
      %p384 = scmp.ne.s32.totalorder %s376, %s378
      %p385 = scmp.eq.s32.totalorder %s50, 3
      %p386 = por %p384, %p385
      %p387 = scmp.ne.s32.totalorder %s378, %s379
      %p388 = scmp.eq.s32.totalorder %s50, 0
      %p389 = por %p387, %p388
      %p390 = scmp.ne.s32.totalorder %s378, %s379
      %p391 = scmp.eq.s32.totalorder %s51, 3
      %p392 = por %p390, %p391
      %p394 = scmp.ne.s32.totalorder %s379, %s393
      %p395 = scmp.eq.s32.totalorder %s51, 0
      %p396 = por %p394, %p395
      %s398 = sadd.s32 %s397, 1
      %p401 = scmp.eq.s32.totalorder %s45, 3
      %p402 = scmp.ne.s32.totalorder %s397, %s399
      %p403 = scmp.eq.s32.totalorder %s45, 0
      %p404 = por %p402, %p403
      %p405 = scmp.ne.s32.totalorder %s397, %s399
      %p406 = scmp.eq.s32.totalorder %s50, 3
      %p407 = por %p405, %p406
      %p408 = scmp.ne.s32.totalorder %s399, %s400
      %p409 = scmp.eq.s32.totalorder %s50, 0
      %p410 = por %p408, %p409
      %p411 = scmp.ne.s32.totalorder %s399, %s400
      %p412 = scmp.eq.s32.totalorder %s51, 3
      %p413 = por %p411, %p412
      %p415 = scmp.ne.s32.totalorder %s400, %s414
      %p416 = scmp.eq.s32.totalorder %s51, 0
      %p417 = por %p415, %p416
      %s419 = sadd.s32 %s418, 1
      %p422 = scmp.eq.s32.totalorder %s45, 3
      %p423 = scmp.ne.s32.totalorder %s418, %s420
      %p424 = scmp.eq.s32.totalorder %s45, 0
      %p425 = por %p423, %p424
      %p426 = scmp.ne.s32.totalorder %s418, %s420
      %p427 = scmp.eq.s32.totalorder %s50, 3
      %p428 = por %p426, %p427
      %p429 = scmp.ne.s32.totalorder %s420, %s421
      %p430 = scmp.eq.s32.totalorder %s50, 0
      %p431 = por %p429, %p430
      %p432 = scmp.ne.s32.totalorder %s420, %s421
      %p433 = scmp.eq.s32.totalorder %s51, 3
      %p434 = por %p432, %p433
      %p436 = scmp.ne.s32.totalorder %s421, %s435
      %p437 = scmp.eq.s32.totalorder %s51, 0
      %p438 = por %p436, %p437
      %s440 = sadd.s32 %s439, 1
      %p443 = scmp.eq.s32.totalorder %s45, 3
      %p444 = scmp.ne.s32.totalorder %s439, %s441
      %p445 = scmp.eq.s32.totalorder %s45, 0
      %p446 = por %p444, %p445
      %p447 = scmp.ne.s32.totalorder %s439, %s441
      %p448 = scmp.eq.s32.totalorder %s50, 3
      %p449 = por %p447, %p448
      %p450 = scmp.ne.s32.totalorder %s441, %s442
      %p451 = scmp.eq.s32.totalorder %s50, 0
      %p452 = por %p450, %p451
      %p453 = scmp.ne.s32.totalorder %s441, %s442
      %p454 = scmp.eq.s32.totalorder %s51, 3
      %p455 = por %p453, %p454
      %p457 = scmp.ne.s32.totalorder %s442, %s456
      %p458 = scmp.eq.s32.totalorder %s51, 0
      %p459 = por %p457, %p458
      %s461 = sadd.s32 %s460, 1
      %p464 = scmp.eq.s32.totalorder %s45, 3
      %p465 = scmp.ne.s32.totalorder %s460, %s462
      %p466 = scmp.eq.s32.totalorder %s45, 0
      %p467 = por %p465, %p466
      %p468 = scmp.ne.s32.totalorder %s460, %s462
      %p469 = scmp.eq.s32.totalorder %s50, 3
      %p470 = por %p468, %p469
      %p471 = scmp.ne.s32.totalorder %s462, %s463
      %p472 = scmp.eq.s32.totalorder %s50, 0
      %p473 = por %p471, %p472
      %p474 = scmp.ne.s32.totalorder %s462, %s463
      %p475 = scmp.eq.s32.totalorder %s51, 3
      %p476 = por %p474, %p475
      %p478 = scmp.ne.s32.totalorder %s463, %s477
      %p479 = scmp.eq.s32.totalorder %s51, 0
      %p480 = por %p478, %p479
      %s482 = sadd.s32 %s481, 1
      %p485 = scmp.eq.s32.totalorder %s45, 3
      %p486 = scmp.ne.s32.totalorder %s481, %s483
      %p487 = scmp.eq.s32.totalorder %s45, 0
      %p488 = por %p486, %p487
      %p489 = scmp.ne.s32.totalorder %s481, %s483
      %p490 = scmp.eq.s32.totalorder %s50, 3
      %p491 = por %p489, %p490
      %p492 = scmp.ne.s32.totalorder %s483, %s484
      %p493 = scmp.eq.s32.totalorder %s50, 0
      %p494 = por %p492, %p493
      %p495 = scmp.ne.s32.totalorder %s483, %s484
      %p496 = scmp.eq.s32.totalorder %s51, 3
      %p497 = por %p495, %p496
      %p499 = scmp.ne.s32.totalorder %s484, %s498
      %p500 = scmp.eq.s32.totalorder %s51, 0
      %p501 = por %p499, %p500
      %s503 = sadd.s32 %s502, 1
      %p506 = scmp.eq.s32.totalorder %s45, 3
      %p507 = scmp.ne.s32.totalorder %s502, %s504
      %p508 = scmp.eq.s32.totalorder %s45, 0
      %p509 = por %p507, %p508
      %p510 = scmp.ne.s32.totalorder %s502, %s504
      %p511 = scmp.eq.s32.totalorder %s50, 3
      %p512 = por %p510, %p511
      %p513 = scmp.ne.s32.totalorder %s504, %s505
      %p514 = scmp.eq.s32.totalorder %s50, 0
      %p515 = por %p513, %p514
      %p516 = scmp.ne.s32.totalorder %s504, %s505
      %p517 = scmp.eq.s32.totalorder %s51, 3
      %p518 = por %p516, %p517
      %p520 = scmp.ne.s32.totalorder %s505, %s519
      %p521 = scmp.eq.s32.totalorder %s51, 0
      %p522 = por %p520, %p521
      %s523 = ssub.s32 %s52, %s64
      %s524 = ssub.s32 %s53, %s60
      %s525 = sor.u32 %s523, %s524
      %p526 = scmp.eq.s32.totalorder %s525, 0
      %s528 = sadd.s32 %s527, 1
      %s529 = scalar_select %p526, %s527, %s528
      %p532 = pneg %p526
      %p533 = scmp.eq.s32.totalorder %s45, 3
      %p534 = por %p532, %p533
      %p535 = scmp.ne.s32.totalorder %s527, %s530
      %p536 = scmp.eq.s32.totalorder %s45, 0
      %p537 = por %p535, %p536
      %p538 = scmp.ne.s32.totalorder %s527, %s530
      %p539 = scmp.eq.s32.totalorder %s50, 3
      %p540 = por %p538, %p539
      %p541 = scmp.ne.s32.totalorder %s530, %s531
      %p542 = scmp.eq.s32.totalorder %s50, 0
      %p543 = por %p541, %p542
      %p544 = scmp.ne.s32.totalorder %s530, %s531
      %p545 = scmp.eq.s32.totalorder %s51, 3
      %p546 = por %p544, %p545
      %p548 = scmp.ne.s32.totalorder %s531, %s547
      %p549 = scmp.eq.s32.totalorder %s51, 0
      %p550 = por %p548, %p549
      %p551 = scmp.le.s32.totalorder 1, %s45
      %p552 = scmp.lt.s32.totalorder %s45, 5
      %p553 = pnand %p551, %p552
      %p554 = pneg %p553
      // Predicated region
      $region9: #{tpu_custom_call.1} parent=5 // pred_check
        _
      $region10: #{tpu_custom_call.1} parent=5 // pred_check_branch
        %556 = sbr.rel (%p553) target = $region12
      $region11: #{tpu_custom_call.1} parent=5 // pred_region
        %s557 = ssub.s32 %s45, 1
        // Predicated region
        $region13: #{tpu_custom_call.1} parent=11 // pred_check
          %p558 = pneg %p158
        $region14: #{tpu_custom_call.1} parent=11 // pred_check_branch
          %560 = sbr.rel (%p558) target = $region16
        $region15: #{tpu_custom_call.1} parent=11 // pred_region
          %s562 = ssub.s32 2048, 2048
          %563 = vsyncadd [#allocation9], %s562
          %s564 = sshll.u32 [#allocation8], 4
          %s565 = int_to_ptr.vmem [resolvable:$true] %s564
          %570 = dma.hbm_to_vmem [thread:$0]  %s3, 2048, %s565, [#allocation9], 128, 128, 8
        $region16: #{tpu_custom_call.1} parent=11 // pred_fallthru
          _
        // Predicated region
        $region17: #{tpu_custom_call.1} parent=11 // pred_check
          %p571 = pneg %p179
        $region18: #{tpu_custom_call.1} parent=11 // pred_check_branch
          %573 = sbr.rel (%p571) target = $region20
        $region19: #{tpu_custom_call.1} parent=11 // pred_region
          %s575 = ssub.s32 64, 64
          %576 = vsyncadd [#allocation9], %s575
          %s577 = sshll.u32 [#allocation10], 4
          %s578 = int_to_ptr.vmem [resolvable:$true] %s577
          %583 = dma.hbm_to_vmem [thread:$0]  %s4, 64, %s578, [#allocation9], 16, 16, 1
        $region20: #{tpu_custom_call.1} parent=11 // pred_fallthru
          _
        // Predicated region
        $region21: #{tpu_custom_call.1} parent=11 // pred_check
          %p584 = pneg %p200
        $region22: #{tpu_custom_call.1} parent=11 // pred_check_branch
          %586 = sbr.rel (%p584) target = $region24
        $region23: #{tpu_custom_call.1} parent=11 // pred_region
          %s588 = ssub.s32 2048, 2048
          %589 = vsyncadd [#allocation12], %s588
          %s590 = sshll.u32 [#allocation11], 4
          %s591 = int_to_ptr.vmem [resolvable:$true] %s590
          %596 = dma.hbm_to_vmem [thread:$0]  %s5, 2048, %s591, [#allocation12], 128, 128, 8
        $region24: #{tpu_custom_call.1} parent=11 // pred_fallthru
          _
        // Predicated region
        $region25: #{tpu_custom_call.1} parent=11 // pred_check
          %p597 = pneg %p221
        $region26: #{tpu_custom_call.1} parent=11 // pred_check_branch
          %599 = sbr.rel (%p597) target = $region28
        $region27: #{tpu_custom_call.1} parent=11 // pred_region
          %s601 = ssub.s32 64, 64
          %602 = vsyncadd [#allocation12], %s601
          %s603 = sshll.u32 [#allocation13], 4
          %s604 = int_to_ptr.vmem [resolvable:$true] %s603
          %609 = dma.hbm_to_vmem [thread:$0]  %s6, 64, %s604, [#allocation12], 16, 16, 1
        $region28: #{tpu_custom_call.1} parent=11 // pred_fallthru
          _
        // Predicated region
        $region29: #{tpu_custom_call.1} parent=11 // pred_check
          %p610 = pneg %p242
        $region30: #{tpu_custom_call.1} parent=11 // pred_check_branch
          %612 = sbr.rel (%p610) target = $region32
        $region31: #{tpu_custom_call.1} parent=11 // pred_region
          %s614 = ssub.s32 2048, 2048
          %615 = vsyncadd [#allocation15], %s614
          %s616 = sshll.u32 [#allocation14], 4
          %s617 = int_to_ptr.vmem [resolvable:$true] %s616
          %622 = dma.hbm_to_vmem [thread:$0]  %s7, 2048, %s617, [#allocation15], 128, 128, 8
        $region32: #{tpu_custom_call.1} parent=11 // pred_fallthru
          _
        // Predicated region
        $region33: #{tpu_custom_call.1} parent=11 // pred_check
          %p623 = pneg %p263
        $region34: #{tpu_custom_call.1} parent=11 // pred_check_branch
          %625 = sbr.rel (%p623) target = $region36
        $region35: #{tpu_custom_call.1} parent=11 // pred_region
          %s627 = ssub.s32 64, 64
          %628 = vsyncadd [#allocation15], %s627
          %s629 = sshll.u32 [#allocation16], 4
          %s630 = int_to_ptr.vmem [resolvable:$true] %s629
          %635 = dma.hbm_to_vmem [thread:$0]  %s8, 64, %s630, [#allocation15], 16, 16, 1
        $region36: #{tpu_custom_call.1} parent=11 // pred_fallthru
          _
        // Predicated region
        $region37: #{tpu_custom_call.1} parent=11 // pred_check
          %p636 = pneg %p284
        $region38: #{tpu_custom_call.1} parent=11 // pred_check_branch
          %638 = sbr.rel (%p636) target = $region40
        $region39: #{tpu_custom_call.1} parent=11 // pred_region
          %s640 = ssub.s32 512, 512
          %641 = vsyncadd [#allocation18], %s640
          %s642 = sshll.u32 [#allocation17], 4
          %s643 = int_to_ptr.vmem [resolvable:$true] %s642
          %648 = dma.hbm_to_vmem [thread:$0]  %s9, 512, %s643, [#allocation18], 128, 128, 8
        $region40: #{tpu_custom_call.1} parent=11 // pred_fallthru
          _
        // Predicated region
        $region41: #{tpu_custom_call.1} parent=11 // pred_check
          %p649 = pneg %p305
        $region42: #{tpu_custom_call.1} parent=11 // pred_check_branch
          %651 = sbr.rel (%p649) target = $region44
        $region43: #{tpu_custom_call.1} parent=11 // pred_region
          %s653 = ssub.s32 16, 16
          %654 = vsyncadd [#allocation18], %s653
          %s656 = sshll.u32 [#allocation19], 4
          %s657 = int_to_ptr.vmem [resolvable:$true] %s656
          %659 = dma.hbm_to_vmem [thread:$0]  %s10, 16, %s657, [#allocation18]
        $region44: #{tpu_custom_call.1} parent=11 // pred_fallthru
          _
        // Predicated region
        $region45: #{tpu_custom_call.1} parent=11 // pred_check
          %p660 = pneg %p326
        $region46: #{tpu_custom_call.1} parent=11 // pred_check_branch
          %662 = sbr.rel (%p660) target = $region48
        $region47: #{tpu_custom_call.1} parent=11 // pred_region
          %s664 = ssub.s32 16, 16
          %665 = vsyncadd [#allocation21], %s664
          %s667 = sshll.u32 [#allocation20], 4
          %s668 = int_to_ptr.vmem [resolvable:$true] %s667
          %670 = dma.hbm_to_vmem [thread:$0]  %s11, 16, %s668, [#allocation21]
        $region48: #{tpu_custom_call.1} parent=11 // pred_fallthru
          _
        // Predicated region
        $region49: #{tpu_custom_call.1} parent=11 // pred_check
          %p671 = pneg %p347
        $region50: #{tpu_custom_call.1} parent=11 // pred_check_branch
          %673 = sbr.rel (%p671) target = $region52
        $region51: #{tpu_custom_call.1} parent=11 // pred_region
          %s675 = ssub.s32 16, 16
          %676 = vsyncadd [#allocation21], %s675
          %s678 = sshll.u32 [#allocation22], 4
          %s679 = int_to_ptr.vmem [resolvable:$true] %s678
          %681 = dma.hbm_to_vmem [thread:$0]  %s12, 16, %s679, [#allocation21]
        $region52: #{tpu_custom_call.1} parent=11 // pred_fallthru
          _
        // Predicated region
        $region53: #{tpu_custom_call.1} parent=11 // pred_check
          %p682 = pneg %p368
        $region54: #{tpu_custom_call.1} parent=11 // pred_check_branch
          %684 = sbr.rel (%p682) target = $region56
        $region55: #{tpu_custom_call.1} parent=11 // pred_region
          %s686 = ssub.s32 1024, 1024
          %687 = vsyncadd [#allocation24], %s686
          %s688 = sshll.u32 [#allocation23], 4
          %s689 = int_to_ptr.vmem [resolvable:$true] %s688
          %694 = dma.hbm_to_vmem [thread:$0]  %s13, 1024, %s689, [#allocation24], 128, 128, 8
        $region56: #{tpu_custom_call.1} parent=11 // pred_fallthru
          _
        // Predicated region
        $region57: #{tpu_custom_call.1} parent=11 // pred_check
          %p695 = pneg %p389
        $region58: #{tpu_custom_call.1} parent=11 // pred_check_branch
          %697 = sbr.rel (%p695) target = $region60
        $region59: #{tpu_custom_call.1} parent=11 // pred_region
          %s699 = ssub.s32 32, 32
          %700 = vsyncadd [#allocation24], %s699
          %s701 = sshll.u32 [#allocation25], 4
          %s702 = int_to_ptr.vmem [resolvable:$true] %s701
          %707 = dma.hbm_to_vmem [thread:$0]  %s14, 32, %s702, [#allocation24], 16, 16, 1
        $region60: #{tpu_custom_call.1} parent=11 // pred_fallthru
          _
        // Predicated region
        $region61: #{tpu_custom_call.1} parent=11 // pred_check
          %p708 = pneg %p410
        $region62: #{tpu_custom_call.1} parent=11 // pred_check_branch
          %710 = sbr.rel (%p708) target = $region64
        $region63: #{tpu_custom_call.1} parent=11 // pred_region
          %s712 = ssub.s32 1024, 1024
          %713 = vsyncadd [#allocation27], %s712
          %s714 = sshll.u32 [#allocation26], 4
          %s715 = int_to_ptr.vmem [resolvable:$true] %s714
          %720 = dma.hbm_to_vmem [thread:$0]  %s15, 1024, %s715, [#allocation27], 128, 128, 8
        $region64: #{tpu_custom_call.1} parent=11 // pred_fallthru
          _
        // Predicated region
        $region65: #{tpu_custom_call.1} parent=11 // pred_check
          %p721 = pneg %p431
        $region66: #{tpu_custom_call.1} parent=11 // pred_check_branch
          %723 = sbr.rel (%p721) target = $region68
        $region67: #{tpu_custom_call.1} parent=11 // pred_region
          %s725 = ssub.s32 16, 16
          %726 = vsyncadd [#allocation27], %s725
          %s728 = sshll.u32 [#allocation28], 4
          %s729 = int_to_ptr.vmem [resolvable:$true] %s728
          %731 = dma.hbm_to_vmem [thread:$0]  %s16, 16, %s729, [#allocation27]
        $region68: #{tpu_custom_call.1} parent=11 // pred_fallthru
          _
        // Predicated region
        $region69: #{tpu_custom_call.1} parent=11 // pred_check
          %p732 = pneg %p452
        $region70: #{tpu_custom_call.1} parent=11 // pred_check_branch
          %734 = sbr.rel (%p732) target = $region72
        $region71: #{tpu_custom_call.1} parent=11 // pred_region
          %s736 = ssub.s32 16, 16
          %737 = vsyncadd [#allocation30], %s736
          %s739 = sshll.u32 [#allocation29], 4
          %s740 = int_to_ptr.vmem [resolvable:$true] %s739
          %742 = dma.hbm_to_vmem [thread:$0]  %s17, 16, %s740, [#allocation30]
        $region72: #{tpu_custom_call.1} parent=11 // pred_fallthru
          _
        // Predicated region
        $region73: #{tpu_custom_call.1} parent=11 // pred_check
          %p743 = pneg %p473
        $region74: #{tpu_custom_call.1} parent=11 // pred_check_branch
          %745 = sbr.rel (%p743) target = $region76
        $region75: #{tpu_custom_call.1} parent=11 // pred_region
          %s747 = ssub.s32 16, 16
          %748 = vsyncadd [#allocation30], %s747
          %s750 = sshll.u32 [#allocation31], 4
          %s751 = int_to_ptr.vmem [resolvable:$true] %s750
          %753 = dma.hbm_to_vmem [thread:$0]  %s18, 16, %s751, [#allocation30]
        $region76: #{tpu_custom_call.1} parent=11 // pred_fallthru
          _
        // Predicated region
        $region77: #{tpu_custom_call.1} parent=11 // pred_check
          %p754 = pneg %p494
        $region78: #{tpu_custom_call.1} parent=11 // pred_check_branch
          %756 = sbr.rel (%p754) target = $region80
        $region79: #{tpu_custom_call.1} parent=11 // pred_region
          %s758 = ssub.s32 16, 16
          %759 = vsyncadd [#allocation33], %s758
          %s761 = sshll.u32 [#allocation32], 4
          %s762 = int_to_ptr.vmem [resolvable:$true] %s761
          %764 = dma.hbm_to_vmem [thread:$0]  %s19, 16, %s762, [#allocation33]
        $region80: #{tpu_custom_call.1} parent=11 // pred_fallthru
          _
        // Predicated region
        $region81: #{tpu_custom_call.1} parent=11 // pred_check
          %p765 = pneg %p515
        $region82: #{tpu_custom_call.1} parent=11 // pred_check_branch
          %767 = sbr.rel (%p765) target = $region84
        $region83: #{tpu_custom_call.1} parent=11 // pred_region
          %s769 = ssub.s32 16, 16
          %770 = vsyncadd [#allocation33], %s769
          %s772 = sshll.u32 [#allocation34], 4
          %s773 = int_to_ptr.vmem [resolvable:$true] %s772
          %775 = dma.hbm_to_vmem [thread:$0]  %s20, 16, %s773, [#allocation33]
        $region84: #{tpu_custom_call.1} parent=11 // pred_fallthru
          _
      $region12: #{tpu_custom_call.1} parent=5 // pred_fallthru
        _
      %p776 = scmp.lt.s32.totalorder %s45, 4
      // Predicated region
      $region85: #{tpu_custom_call.1} parent=5 // pred_check
        %p777 = pneg %p776
      $region86: #{tpu_custom_call.1} parent=5 // pred_check_branch
        %779 = sbr.rel (%p777) target = $region88
      $region87: #{tpu_custom_call.1} parent=5 // pred_region
        // Predicated region
        $region89: #{tpu_custom_call.1} parent=87 // pred_check
          %p780 = pneg %p79
        $region90: #{tpu_custom_call.1} parent=87 // pred_check_branch
          %782 = sbr.rel (%p780) target = $region92
        $region91: #{tpu_custom_call.1} parent=87 // pred_region
          %s783 = sand.u32 %s69, 1
          %s784 = scalar_lea.sflag [#allocation3], %s783
          %s785 = sand.u32 %s69, 1
          %s786 = smul.addr %s785, 8
          %s787 = scalar_lea.vmem [#allocation2], %s786
          %s789 = ssub.s32 128, 128
          %790 = vsyncadd %s784, %s789
          %s791 = smul.addr %s52, 2
          %s792 = sadd.s32 %s53, %s791
          %s793 = smul.addr %s792, 128
          %s794 = scalar_lea.hbm %s0, %s793
          %s796 = sshll.u32 %s787, 4
          %s797 = int_to_ptr.vmem [resolvable:$true] %s796
          %799 = dma.hbm_to_vmem [thread:$0]  %s794, 128, %s797, %s784
        $region92: #{tpu_custom_call.1} parent=87 // pred_fallthru
          _
        // Predicated region
        $region93: #{tpu_custom_call.1} parent=87 // pred_check
          %p800 = pneg %p105
        $region94: #{tpu_custom_call.1} parent=87 // pred_check_branch
          %802 = sbr.rel (%p800) target = $region96
        $region95: #{tpu_custom_call.1} parent=87 // pred_region
          %s803 = sand.u32 %s45, 1
          %s804 = scalar_lea.sflag [#allocation6], %s803
          %s805 = sand.u32 %s95, 1
          %s806 = smul.addr %s805, 16
          %s807 = scalar_lea.vmem [#allocation5], %s806
          %s809 = ssub.s32 256, 256
          %810 = vsyncadd %s804, %s809
          %s811 = smul.addr %s52, 2
          %s812 = smul.addr %s811, 128
          %s813 = scalar_lea.hbm %s1, %s812
          %s814 = sshll.u32 %s807, 4
          %s815 = int_to_ptr.vmem [resolvable:$true] %s814
          %820 = dma.hbm_to_vmem [thread:$0]  %s813, 256, %s815, %s804, 128, 128, 8
        $region96: #{tpu_custom_call.1} parent=87 // pred_fallthru
          _
        // Predicated region
        $region97: #{tpu_custom_call.1} parent=87 // pred_check
          %p821 = pneg %p131
        $region98: #{tpu_custom_call.1} parent=87 // pred_check_branch
          %823 = sbr.rel (%p821) target = $region100
        $region99: #{tpu_custom_call.1} parent=87 // pred_region
          %s824 = sand.u32 %s45, 1
          %s825 = scalar_lea.sflag [#allocation6], %s824
          %s826 = sand.u32 %s121, 1
          %s827 = smul.addr %s826, 8
          %s828 = scalar_lea.vmem [#allocation7], %s827
          %s830 = ssub.s32 128, 128
          %831 = vsyncadd %s825, %s830
          %s832 = smul.addr %s53, 128
          %s833 = scalar_lea.hbm %s2, %s832
          %s835 = sshll.u32 %s828, 4
          %s836 = int_to_ptr.vmem [resolvable:$true] %s835
          %838 = dma.hbm_to_vmem [thread:$0]  %s833, 128, %s836, %s825
        $region100: #{tpu_custom_call.1} parent=87 // pred_fallthru
          _
      $region88: #{tpu_custom_call.1} parent=5 // pred_fallthru
        _
      %p839 = scmp.le.s32.totalorder 1, %s45
      %p840 = scmp.lt.s32.totalorder %s45, 5
      %p841 = pnand %p839, %p840
      %p842 = pneg %p841
      // Predicated region
      $region101: #{tpu_custom_call.1} parent=5 // pred_check
        _
      $region102: #{tpu_custom_call.1} parent=5 // pred_check_branch
        %844 = sbr.rel (%p841) target = $region104
      $region103: #{tpu_custom_call.1} parent=5 // pred_region
        %s845 = ssub.s32 %s45, 1
        %s846 = sand.u32 %s72, 1
        %s847 = scalar_lea.sflag [#allocation3], %s846
        %s848 = sand.u32 %s72, 1
        %s849 = smul.addr %s848, 8
        %s850 = scalar_lea.vmem [#allocation2], %s849
        // Predicated region
        $region105: #{tpu_custom_call.1} parent=103 // pred_check
          %p851 = pneg %p85
        $region106: #{tpu_custom_call.1} parent=103 // pred_check_branch
          %853 = sbr.rel (%p851) target = $region108
        $region107: #{tpu_custom_call.1} parent=103 // pred_region
          %854 = dma.done %s847, 128
        $region108: #{tpu_custom_call.1} parent=103 // pred_fallthru
          _
        %s855 = sand.u32 %s50, 1
        %s856 = scalar_lea.sflag [#allocation6], %s855
        %s857 = sand.u32 %s98, 1
        %s858 = smul.addr %s857, 16
        %s859 = scalar_lea.vmem [#allocation5], %s858
        // Predicated region
        $region109: #{tpu_custom_call.1} parent=103 // pred_check
          %p860 = pneg %p111
        $region110: #{tpu_custom_call.1} parent=103 // pred_check_branch
          %862 = sbr.rel (%p860) target = $region112
        $region111: #{tpu_custom_call.1} parent=103 // pred_region
          %863 = dma.done %s856, 256
        $region112: #{tpu_custom_call.1} parent=103 // pred_fallthru
          _
        %s864 = sand.u32 %s50, 1
        %s865 = scalar_lea.sflag [#allocation6], %s864
        %s866 = sand.u32 %s124, 1
        %s867 = smul.addr %s866, 8
        %s868 = scalar_lea.vmem [#allocation7], %s867
        // Predicated region
        $region113: #{tpu_custom_call.1} parent=103 // pred_check
          %p869 = pneg %p137
        $region114: #{tpu_custom_call.1} parent=103 // pred_check_branch
          %871 = sbr.rel (%p869) target = $region116
        $region115: #{tpu_custom_call.1} parent=103 // pred_region
          %872 = dma.done %s865, 128
        $region116: #{tpu_custom_call.1} parent=103 // pred_fallthru
          _
        // Predicated region
        $region117: #{tpu_custom_call.1} parent=103 // pred_check
          %p873 = pneg %p158
        $region118: #{tpu_custom_call.1} parent=103 // pred_check_branch
          %875 = sbr.rel (%p873) target = $region120
        $region119: #{tpu_custom_call.1} parent=103 // pred_region
          %876 = dma.done [#allocation9], 2048
        $region120: #{tpu_custom_call.1} parent=103 // pred_fallthru
          _
        // Predicated region
        $region121: #{tpu_custom_call.1} parent=103 // pred_check
          %p877 = pneg %p179
        $region122: #{tpu_custom_call.1} parent=103 // pred_check_branch
          %879 = sbr.rel (%p877) target = $region124
        $region123: #{tpu_custom_call.1} parent=103 // pred_region
          %880 = dma.done [#allocation9], 64
        $region124: #{tpu_custom_call.1} parent=103 // pred_fallthru
          _
        // Predicated region
        $region125: #{tpu_custom_call.1} parent=103 // pred_check
          %p881 = pneg %p200
        $region126: #{tpu_custom_call.1} parent=103 // pred_check_branch
          %883 = sbr.rel (%p881) target = $region128
        $region127: #{tpu_custom_call.1} parent=103 // pred_region
          %884 = dma.done [#allocation12], 2048
        $region128: #{tpu_custom_call.1} parent=103 // pred_fallthru
          _
        // Predicated region
        $region129: #{tpu_custom_call.1} parent=103 // pred_check
          %p885 = pneg %p221
        $region130: #{tpu_custom_call.1} parent=103 // pred_check_branch
          %887 = sbr.rel (%p885) target = $region132
        $region131: #{tpu_custom_call.1} parent=103 // pred_region
          %888 = dma.done [#allocation12], 64
        $region132: #{tpu_custom_call.1} parent=103 // pred_fallthru
          _
        // Predicated region
        $region133: #{tpu_custom_call.1} parent=103 // pred_check
          %p889 = pneg %p242
        $region134: #{tpu_custom_call.1} parent=103 // pred_check_branch
          %891 = sbr.rel (%p889) target = $region136
        $region135: #{tpu_custom_call.1} parent=103 // pred_region
          %892 = dma.done [#allocation15], 2048
        $region136: #{tpu_custom_call.1} parent=103 // pred_fallthru
          _
        // Predicated region
        $region137: #{tpu_custom_call.1} parent=103 // pred_check
          %p893 = pneg %p263
        $region138: #{tpu_custom_call.1} parent=103 // pred_check_branch
          %895 = sbr.rel (%p893) target = $region140
        $region139: #{tpu_custom_call.1} parent=103 // pred_region
          %896 = dma.done [#allocation15], 64
        $region140: #{tpu_custom_call.1} parent=103 // pred_fallthru
          _
        // Predicated region
        $region141: #{tpu_custom_call.1} parent=103 // pred_check
          %p897 = pneg %p284
        $region142: #{tpu_custom_call.1} parent=103 // pred_check_branch
          %899 = sbr.rel (%p897) target = $region144
        $region143: #{tpu_custom_call.1} parent=103 // pred_region
          %900 = dma.done [#allocation18], 512
        $region144: #{tpu_custom_call.1} parent=103 // pred_fallthru
          _
        // Predicated region
        $region145: #{tpu_custom_call.1} parent=103 // pred_check
          %p901 = pneg %p305
        $region146: #{tpu_custom_call.1} parent=103 // pred_check_branch
          %903 = sbr.rel (%p901) target = $region148
        $region147: #{tpu_custom_call.1} parent=103 // pred_region
          %904 = dma.done [#allocation18], 16
        $region148: #{tpu_custom_call.1} parent=103 // pred_fallthru
          _
        // Predicated region
        $region149: #{tpu_custom_call.1} parent=103 // pred_check
          %p905 = pneg %p326
        $region150: #{tpu_custom_call.1} parent=103 // pred_check_branch
          %907 = sbr.rel (%p905) target = $region152
        $region151: #{tpu_custom_call.1} parent=103 // pred_region
          %908 = dma.done [#allocation21], 16
        $region152: #{tpu_custom_call.1} parent=103 // pred_fallthru
          _
        // Predicated region
        $region153: #{tpu_custom_call.1} parent=103 // pred_check
          %p909 = pneg %p347
        $region154: #{tpu_custom_call.1} parent=103 // pred_check_branch
          %911 = sbr.rel (%p909) target = $region156
        $region155: #{tpu_custom_call.1} parent=103 // pred_region
          %912 = dma.done [#allocation21], 16
        $region156: #{tpu_custom_call.1} parent=103 // pred_fallthru
          _
        // Predicated region
        $region157: #{tpu_custom_call.1} parent=103 // pred_check
          %p913 = pneg %p368
        $region158: #{tpu_custom_call.1} parent=103 // pred_check_branch
          %915 = sbr.rel (%p913) target = $region160
        $region159: #{tpu_custom_call.1} parent=103 // pred_region
          %916 = dma.done [#allocation24], 1024
        $region160: #{tpu_custom_call.1} parent=103 // pred_fallthru
          _
        // Predicated region
        $region161: #{tpu_custom_call.1} parent=103 // pred_check
          %p917 = pneg %p389
        $region162: #{tpu_custom_call.1} parent=103 // pred_check_branch
          %919 = sbr.rel (%p917) target = $region164
        $region163: #{tpu_custom_call.1} parent=103 // pred_region
          %920 = dma.done [#allocation24], 32
        $region164: #{tpu_custom_call.1} parent=103 // pred_fallthru
          _
        // Predicated region
        $region165: #{tpu_custom_call.1} parent=103 // pred_check
          %p921 = pneg %p410
        $region166: #{tpu_custom_call.1} parent=103 // pred_check_branch
          %923 = sbr.rel (%p921) target = $region168
        $region167: #{tpu_custom_call.1} parent=103 // pred_region
          %924 = dma.done [#allocation27], 1024
        $region168: #{tpu_custom_call.1} parent=103 // pred_fallthru
          _
        // Predicated region
        $region169: #{tpu_custom_call.1} parent=103 // pred_check
          %p925 = pneg %p431
        $region170: #{tpu_custom_call.1} parent=103 // pred_check_branch
          %927 = sbr.rel (%p925) target = $region172
        $region171: #{tpu_custom_call.1} parent=103 // pred_region
          %928 = dma.done [#allocation27], 16
        $region172: #{tpu_custom_call.1} parent=103 // pred_fallthru
          _
        // Predicated region
        $region173: #{tpu_custom_call.1} parent=103 // pred_check
          %p929 = pneg %p452
        $region174: #{tpu_custom_call.1} parent=103 // pred_check_branch
          %931 = sbr.rel (%p929) target = $region176
        $region175: #{tpu_custom_call.1} parent=103 // pred_region
          %932 = dma.done [#allocation30], 16
        $region176: #{tpu_custom_call.1} parent=103 // pred_fallthru
          _
        // Predicated region
        $region177: #{tpu_custom_call.1} parent=103 // pred_check
          %p933 = pneg %p473
        $region178: #{tpu_custom_call.1} parent=103 // pred_check_branch
          %935 = sbr.rel (%p933) target = $region180
        $region179: #{tpu_custom_call.1} parent=103 // pred_region
          %936 = dma.done [#allocation30], 16
        $region180: #{tpu_custom_call.1} parent=103 // pred_fallthru
          _
        // Predicated region
        $region181: #{tpu_custom_call.1} parent=103 // pred_check
          %p937 = pneg %p494
        $region182: #{tpu_custom_call.1} parent=103 // pred_check_branch
          %939 = sbr.rel (%p937) target = $region184
        $region183: #{tpu_custom_call.1} parent=103 // pred_region
          %940 = dma.done [#allocation33], 16
        $region184: #{tpu_custom_call.1} parent=103 // pred_fallthru
          _
        // Predicated region
        $region185: #{tpu_custom_call.1} parent=103 // pred_check
          %p941 = pneg %p515
        $region186: #{tpu_custom_call.1} parent=103 // pred_check_branch
          %943 = sbr.rel (%p941) target = $region188
        $region187: #{tpu_custom_call.1} parent=103 // pred_region
          %944 = dma.done [#allocation33], 16
        $region188: #{tpu_custom_call.1} parent=103 // pred_fallthru
          _
        %s945 = sand.u32 %s72, 1
        %s946 = scalar_lea.sflag [#allocation3], %s945
        %s947 = sand.u32 %s72, 1
        %s948 = smul.addr %s947, 8
        %s949 = scalar_lea.vmem [#allocation2], %s948
        %p950 = pneg %p85
        %p951 = pneg %p82
        %s952 = sand.u32 %s50, 1
        %s953 = scalar_lea.sflag [#allocation6], %s952
        %s954 = sand.u32 %s98, 1
        %s955 = smul.addr %s954, 16
        %s956 = scalar_lea.vmem [#allocation5], %s955
        %p957 = pneg %p111
        %p958 = pneg %p108
        %s959 = sand.u32 %s50, 1
        %s960 = scalar_lea.sflag [#allocation6], %s959
        %s961 = sand.u32 %s124, 1
        %s962 = smul.addr %s961, 8
        %s963 = scalar_lea.vmem [#allocation7], %s962
        %p964 = pneg %p137
        %p965 = pneg %p134
        %p966 = pneg %p158
        %p967 = pneg %p155
        %p968 = pneg %p179
        %p969 = pneg %p176
        %p970 = pneg %p200
        %p971 = pneg %p197
        %p972 = pneg %p221
        %p973 = pneg %p218
        %p974 = pneg %p242
        %p975 = pneg %p239
        %p976 = pneg %p263
        %p977 = pneg %p260
        %p978 = pneg %p284
        %p979 = pneg %p281
        %p980 = pneg %p305
        %p981 = pneg %p302
        %p982 = pneg %p326
        %p983 = pneg %p323
        %p984 = pneg %p347
        %p985 = pneg %p344
        %p986 = pneg %p368
        %p987 = pneg %p365
        %p988 = pneg %p389
        %p989 = pneg %p386
        %p990 = pneg %p410
        %p991 = pneg %p407
        %p992 = pneg %p431
        %p993 = pneg %p428
        %p994 = pneg %p452
        %p995 = pneg %p449
        %p996 = pneg %p473
        %p997 = pneg %p470
        %p998 = pneg %p494
        %p999 = pneg %p491
        %p1000 = pneg %p515
        %p1001 = pneg %p512
        %p1002 = pneg %p543
        %p1003 = pneg %p540
        %s1004 = sand.u32 %s530, 1
        %s1005 = scalar_lea.sflag [#allocation4], %s1004
        %s1006 = sand.u32 %s530, 1
        %s1007 = smul.addr %s1006, 8
        %s1008 = scalar_lea.vmem [#allocation35], %s1007
        %v1009 = vld [vmem:[%s850] sm:$0xff]
        %v1010 = vld [vmem:[%s859] sm:$0xff]
        %v1011 = vld [vmem:[%s859 + $0x8] sm:$0xff]
        %v1012 = vld [vmem:[%s868] sm:$0xff]
        %v1013 = vld [vmem:[#allocation8] sm:$0xff]
        %v1014 = vld [vmem:[#allocation8 + $0x8] sm:$0xff]
        %v1015 = vld [vmem:[#allocation8 + $0x10] sm:$0xff]
        %v1016 = vld [vmem:[#allocation8 + $0x18] sm:$0xff]
        %v1017 = vld [vmem:[#allocation10] sm:$0x1]
        %v1019 = vlaneseq
        %v1020 = vshrl.u32 %v1019, 7
        %v1021 = vsub.s32 0, %v1020
        %v1022 = vrot.slane %v1017, %v1021
        %vm1024 = vcmask 261120
        %v1026 = vsel %vm1024, %v1009, 0
        %1028 = vmatprep.subr.mxu0 0.0
        %1029 = vmatpush1.msra.mxu0 %v1013
        %1030 = vmatprep.subr.mxu0 0.0
        %1031 = vmatpush1.msra.mxu0 %v1014
        %1032 = vmatprep.subr.mxu0 0.0
        %1033 = vmatpush1.msra.mxu0 %v1015
        %1034 = vmatprep.subr.mxu0 0.0
        %1035 = vmatpush1.msra.mxu0 %v1016
        %1036 = vmatprep.subr.mxu0 0.0
        %1037 = vmatpush1.msra.mxu0 0.0
        %1038 = vmatprep.subr.mxu0 0.0
        %1039 = vmatpush1.msra.mxu0 0.0
        %1040 = vmatprep.subr.mxu0 0.0
        %1041 = vmatpush1.msra.mxu0 0.0
        %1042 = vmatprep.subr.mxu0 0.0
        %1043 = vmatpush1.msra.mxu0 0.0
        %1044 = vmatprep.subr.mxu0 0.0
        %1045 = vmatpush1.msra.mxu0 0.0
        %1046 = vmatprep.subr.mxu0 0.0
        %1047 = vmatpush1.msra.mxu0 0.0
        %1048 = vmatprep.subr.mxu0 0.0
        %1049 = vmatpush1.msra.mxu0 0.0
        %1050 = vmatprep.subr.mxu0 0.0
        %1051 = vmatpush1.msra.mxu0 0.0
        %1052 = vmatprep.subr.mxu0 0.0
        %1053 = vmatpush1.msra.mxu0 0.0
        %1054 = vmatprep.subr.mxu0 0.0
        %1055 = vmatpush1.msra.mxu0 0.0
        %1056 = vmatprep.subr.mxu0 0.0
        %1057 = vmatpush1.msra.mxu0 0.0
        %1058 = vmatprep.subr.mxu0 0.0
        %1059 = vmatpush1.msra.mxu0 0.0
        %1060 = vmatprep.subr.mxu0 0.0
        %1061 = vmatpush1.msra.mxu0 0.0
        %1062 = vmatprep.subr.mxu0 0.0
        %1063 = vmatpush1.msra.mxu0 0.0
        %1064 = vmatprep.subr.mxu0 0.0
        %1065 = vmatpush1.msra.mxu0 0.0
        %1066 = vmatprep.subr.mxu0 0.0
        %1067 = vmatpush1.msra.mxu0 0.0
        %1068 = vmatprep.subr.mxu0 0.0
        %1069 = vmatpush1.msra.mxu0 0.0
        %1070 = vmatprep.subr.mxu0 0.0
        %1071 = vmatpush1.msra.mxu0 0.0
        %1072 = vmatprep.subr.mxu0 0.0
        %1073 = vmatpush1.msra.mxu0 0.0
        %1074 = vmatprep.subr.mxu0 0.0
        %1075 = vmatpush1.msra.mxu0 0.0
        %1076 = vmatprep.subr.mxu0 0.0
        %1077 = vmatpush1.msra.mxu0 0.0
        %1078 = vmatprep.subr.mxu0 0.0
        %1079 = vmatpush1.msra.mxu0 0.0
        %1080 = vmatprep.subr.mxu0 0.0
        %1081 = vmatpush1.msra.mxu0 0.0
        %1082 = vmatprep.subr.mxu0 0.0
        %1083 = vmatpush1.msra.mxu0 0.0
        %1084 = vmatprep.subr.mxu0 0.0
        %1085 = vmatpush1.msra.mxu0 0.0
        %1086 = vmatprep.subr.mxu0 0.0
        %1087 = vmatpush1.msra.mxu0 0.0
        %1088 = vmatprep.subr.mxu0 0.0
        %1089 = vmatpush1.msra.mxu0 0.0
        %1090 = vmatprep.subr.mxu0 0.0
        %1091 = vmatpush1.msra.mxu0 0.0
        %1092 = vmatprep.mubr.f32.mxu0 0.0
        %1093 = vmatmul.mubr.f32.gmra.mrb[0].mxu0 %v1026
        %v1094 = vpop.f32.mrb[0].mxu0
        %v1095 = vadd.f32 %v1022, %v1094
        %v1096 = vpop.f32.mrb[0].mxu0
        %1097 = vdwg.mxu0
        %v1098 = vld [vmem:[#allocation11] sm:$0xff]
        %v1099 = vld [vmem:[#allocation11 + $0x8] sm:$0xff]
        %v1100 = vld [vmem:[#allocation11 + $0x10] sm:$0xff]
        %v1101 = vld [vmem:[#allocation11 + $0x18] sm:$0xff]
        %v1102 = vld [vmem:[#allocation13] sm:$0x1]
        %v1104 = vlaneseq
        %v1105 = vshrl.u32 %v1104, 7
        %v1106 = vsub.s32 0, %v1105
        %v1107 = vrot.slane %v1102, %v1106
        %v1110 = vsel %vm1024, %v1010, 0
        %v1113 = vsel %vm1024, %v1011, 0
        %1115 = vmatprep.subr.mxu0 0.0
        %1116 = vmatpush1.msra.mxu0 %v1098
        %1117 = vmatprep.subr.mxu0 0.0
        %1118 = vmatpush1.msra.mxu0 %v1099
        %1119 = vmatprep.subr.mxu0 0.0
        %1120 = vmatpush1.msra.mxu0 %v1100
        %1121 = vmatprep.subr.mxu0 0.0
        %1122 = vmatpush1.msra.mxu0 %v1101
        %1123 = vmatprep.subr.mxu0 0.0
        %1124 = vmatpush1.msra.mxu0 0.0
        %1125 = vmatprep.subr.mxu0 0.0
        %1126 = vmatpush1.msra.mxu0 0.0
        %1127 = vmatprep.subr.mxu0 0.0
        %1128 = vmatpush1.msra.mxu0 0.0
        %1129 = vmatprep.subr.mxu0 0.0
        %1130 = vmatpush1.msra.mxu0 0.0
        %1131 = vmatprep.subr.mxu0 0.0
        %1132 = vmatpush1.msra.mxu0 0.0
        %1133 = vmatprep.subr.mxu0 0.0
        %1134 = vmatpush1.msra.mxu0 0.0
        %1135 = vmatprep.subr.mxu0 0.0
        %1136 = vmatpush1.msra.mxu0 0.0
        %1137 = vmatprep.subr.mxu0 0.0
        %1138 = vmatpush1.msra.mxu0 0.0
        %1139 = vmatprep.subr.mxu0 0.0
        %1140 = vmatpush1.msra.mxu0 0.0
        %1141 = vmatprep.subr.mxu0 0.0
        %1142 = vmatpush1.msra.mxu0 0.0
        %1143 = vmatprep.subr.mxu0 0.0
        %1144 = vmatpush1.msra.mxu0 0.0
        %1145 = vmatprep.subr.mxu0 0.0
        %1146 = vmatpush1.msra.mxu0 0.0
        %1147 = vmatprep.subr.mxu0 0.0
        %1148 = vmatpush1.msra.mxu0 0.0
        %1149 = vmatprep.subr.mxu0 0.0
        %1150 = vmatpush1.msra.mxu0 0.0
        %1151 = vmatprep.subr.mxu0 0.0
        %1152 = vmatpush1.msra.mxu0 0.0
        %1153 = vmatprep.subr.mxu0 0.0
        %1154 = vmatpush1.msra.mxu0 0.0
        %1155 = vmatprep.subr.mxu0 0.0
        %1156 = vmatpush1.msra.mxu0 0.0
        %1157 = vmatprep.subr.mxu0 0.0
        %1158 = vmatpush1.msra.mxu0 0.0
        %1159 = vmatprep.subr.mxu0 0.0
        %1160 = vmatpush1.msra.mxu0 0.0
        %1161 = vmatprep.subr.mxu0 0.0
        %1162 = vmatpush1.msra.mxu0 0.0
        %1163 = vmatprep.subr.mxu0 0.0
        %1164 = vmatpush1.msra.mxu0 0.0
        %1165 = vmatprep.subr.mxu0 0.0
        %1166 = vmatpush1.msra.mxu0 0.0
        %1167 = vmatprep.subr.mxu0 0.0
        %1168 = vmatpush1.msra.mxu0 0.0
        %1169 = vmatprep.subr.mxu0 0.0
        %1170 = vmatpush1.msra.mxu0 0.0
        %1171 = vmatprep.subr.mxu0 0.0
        %1172 = vmatpush1.msra.mxu0 0.0
        %1173 = vmatprep.subr.mxu0 0.0
        %1174 = vmatpush1.msra.mxu0 0.0
        %1175 = vmatprep.subr.mxu0 0.0
        %1176 = vmatpush1.msra.mxu0 0.0
        %1177 = vmatprep.subr.mxu0 0.0
        %1178 = vmatpush1.msra.mxu0 0.0
        %1179 = vmatprep.mubr.f32.mxu0 0.0
        %1180 = vmatmul.mubr.f32.gmra.mrb[0].mxu0 %v1110
        %v1181 = vpop.f32.mrb[0].mxu0
        %v1182 = vadd.f32 %v1107, %v1181
        %v1183 = vpop.f32.mrb[0].mxu0
        %1184 = vmatprep.mubr.f32.mxu0 0.0
        %1185 = vmatmul.mubr.f32.gmra.mrb[0].mxu0 %v1113
        %v1186 = vpop.f32.mrb[0].mxu0
        %v1187 = vadd.f32 %v1107, %v1186
        %v1188 = vpop.f32.mrb[0].mxu0
        %1189 = vdwg.mxu0
        %v1190 = vld [vmem:[#allocation14] sm:$0xff]
        %v1191 = vld [vmem:[#allocation14 + $0x8] sm:$0xff]
        %v1192 = vld [vmem:[#allocation14 + $0x10] sm:$0xff]
        %v1193 = vld [vmem:[#allocation14 + $0x18] sm:$0xff]
        %v1194 = vld [vmem:[#allocation16] sm:$0x1]
        %v1196 = vlaneseq
        %v1197 = vshrl.u32 %v1196, 7
        %v1198 = vsub.s32 0, %v1197
        %v1199 = vrot.slane %v1194, %v1198
        %1201 = vmatprep.subr.mxu0 0.0
        %1202 = vmatpush1.msra.mxu0 %v1190
        %1203 = vmatprep.subr.mxu0 0.0
        %1204 = vmatpush1.msra.mxu0 %v1191
        %1205 = vmatprep.subr.mxu0 0.0
        %1206 = vmatpush1.msra.mxu0 %v1192
        %1207 = vmatprep.subr.mxu0 0.0
        %1208 = vmatpush1.msra.mxu0 %v1193
        %1209 = vmatprep.subr.mxu0 0.0
        %1210 = vmatpush1.msra.mxu0 0.0
        %1211 = vmatprep.subr.mxu0 0.0
        %1212 = vmatpush1.msra.mxu0 0.0
        %1213 = vmatprep.subr.mxu0 0.0
        %1214 = vmatpush1.msra.mxu0 0.0
        %1215 = vmatprep.subr.mxu0 0.0
        %1216 = vmatpush1.msra.mxu0 0.0
        %1217 = vmatprep.subr.mxu0 0.0
        %1218 = vmatpush1.msra.mxu0 0.0
        %1219 = vmatprep.subr.mxu0 0.0
        %1220 = vmatpush1.msra.mxu0 0.0
        %1221 = vmatprep.subr.mxu0 0.0
        %1222 = vmatpush1.msra.mxu0 0.0
        %1223 = vmatprep.subr.mxu0 0.0
        %1224 = vmatpush1.msra.mxu0 0.0
        %1225 = vmatprep.subr.mxu0 0.0
        %1226 = vmatpush1.msra.mxu0 0.0
        %1227 = vmatprep.subr.mxu0 0.0
        %1228 = vmatpush1.msra.mxu0 0.0
        %1229 = vmatprep.subr.mxu0 0.0
        %1230 = vmatpush1.msra.mxu0 0.0
        %1231 = vmatprep.subr.mxu0 0.0
        %1232 = vmatpush1.msra.mxu0 0.0
        %1233 = vmatprep.subr.mxu0 0.0
        %1234 = vmatpush1.msra.mxu0 0.0
        %1235 = vmatprep.subr.mxu0 0.0
        %1236 = vmatpush1.msra.mxu0 0.0
        %1237 = vmatprep.subr.mxu0 0.0
        %1238 = vmatpush1.msra.mxu0 0.0
        %1239 = vmatprep.subr.mxu0 0.0
        %1240 = vmatpush1.msra.mxu0 0.0
        %1241 = vmatprep.subr.mxu0 0.0
        %1242 = vmatpush1.msra.mxu0 0.0
        %1243 = vmatprep.subr.mxu0 0.0
        %1244 = vmatpush1.msra.mxu0 0.0
        %1245 = vmatprep.subr.mxu0 0.0
        %1246 = vmatpush1.msra.mxu0 0.0
        %1247 = vmatprep.subr.mxu0 0.0
        %1248 = vmatpush1.msra.mxu0 0.0
        %1249 = vmatprep.subr.mxu0 0.0
        %1250 = vmatpush1.msra.mxu0 0.0
        %1251 = vmatprep.subr.mxu0 0.0
        %1252 = vmatpush1.msra.mxu0 0.0
        %1253 = vmatprep.subr.mxu0 0.0
        %1254 = vmatpush1.msra.mxu0 0.0
        %1255 = vmatprep.subr.mxu0 0.0
        %1256 = vmatpush1.msra.mxu0 0.0
        %1257 = vmatprep.subr.mxu0 0.0
        %1258 = vmatpush1.msra.mxu0 0.0
        %1259 = vmatprep.subr.mxu0 0.0
        %1260 = vmatpush1.msra.mxu0 0.0
        %1261 = vmatprep.subr.mxu0 0.0
        %1262 = vmatpush1.msra.mxu0 0.0
        %1263 = vmatprep.subr.mxu0 0.0
        %1264 = vmatpush1.msra.mxu0 0.0
        %1265 = vmatprep.mubr.f32.mxu0 0.0
        %1266 = vmatmul.mubr.f32.gmra.mrb[0].mxu0 %v1110
        %v1267 = vpop.f32.mrb[0].mxu0
        %v1268 = vadd.f32 %v1199, %v1267
        %v1269 = vpop.f32.mrb[0].mxu0
        %1270 = vmatprep.mubr.f32.mxu0 0.0
        %1271 = vmatmul.mubr.f32.gmra.mrb[0].mxu0 %v1113
        %v1272 = vpop.f32.mrb[0].mxu0
        %v1273 = vadd.f32 %v1199, %v1272
        %v1274 = vpop.f32.mrb[0].mxu0
        %1275 = vdwg.mxu0
        %vm1276 = vcmask 64512
        %v1278 = vsel %vm1276, %v1095, 0
        %v1281 = vsel %vm1276, %v1182, 0
        %v1284 = vsel %vm1276, %v1187, 0
        %1286 = vmatprep.subr.mxu0 0.0
        %1287 = vmatpush1.xpose.msra.mxu0 %v1281
        %1288 = vmatprep.subr.mxu0 0.0
        %1289 = vmatpush1.xpose.msra.mxu0 %v1284
        %1290 = vmatprep.subr.mxu0 0.0
        %1291 = vmatpush1.xpose.msra.mxu0 0.0
        %1292 = vmatprep.subr.mxu0 0.0
        %1293 = vmatpush1.xpose.msra.mxu0 0.0
        %1294 = vmatprep.subr.mxu0 0.0
        %1295 = vmatpush1.xpose.msra.mxu0 0.0
        %1296 = vmatprep.subr.mxu0 0.0
        %1297 = vmatpush1.xpose.msra.mxu0 0.0
        %1298 = vmatprep.subr.mxu0 0.0
        %1299 = vmatpush1.xpose.msra.mxu0 0.0
        %1300 = vmatprep.subr.mxu0 0.0
        %1301 = vmatpush1.xpose.msra.mxu0 0.0
        %1302 = vmatprep.subr.mxu0 0.0
        %1303 = vmatpush1.xpose.msra.mxu0 0.0
        %1304 = vmatprep.subr.mxu0 0.0
        %1305 = vmatpush1.xpose.msra.mxu0 0.0
        %1306 = vmatprep.subr.mxu0 0.0
        %1307 = vmatpush1.xpose.msra.mxu0 0.0
        %1308 = vmatprep.subr.mxu0 0.0
        %1309 = vmatpush1.xpose.msra.mxu0 0.0
        %1310 = vmatprep.subr.mxu0 0.0
        %1311 = vmatpush1.xpose.msra.mxu0 0.0
        %1312 = vmatprep.subr.mxu0 0.0
        %1313 = vmatpush1.xpose.msra.mxu0 0.0
        %1314 = vmatprep.subr.mxu0 0.0
        %1315 = vmatpush1.xpose.msra.mxu0 0.0
        %1316 = vmatprep.subr.mxu0 0.0
        %1317 = vmatpush1.xpose.msra.mxu0 0.0
        %1318 = vmatprep.subr.mxu0 0.0
        %1319 = vmatpush1.xpose.msra.mxu0 0.0
        %1320 = vmatprep.subr.mxu0 0.0
        %1321 = vmatpush1.xpose.msra.mxu0 0.0
        %1322 = vmatprep.subr.mxu0 0.0
        %1323 = vmatpush1.xpose.msra.mxu0 0.0
        %1324 = vmatprep.subr.mxu0 0.0
        %1325 = vmatpush1.xpose.msra.mxu0 0.0
        %1326 = vmatprep.subr.mxu0 0.0
        %1327 = vmatpush1.xpose.msra.mxu0 0.0
        %1328 = vmatprep.subr.mxu0 0.0
        %1329 = vmatpush1.xpose.msra.mxu0 0.0
        %1330 = vmatprep.subr.mxu0 0.0
        %1331 = vmatpush1.xpose.msra.mxu0 0.0
        %1332 = vmatprep.subr.mxu0 0.0
        %1333 = vmatpush1.xpose.msra.mxu0 0.0
        %1334 = vmatprep.subr.mxu0 0.0
        %1335 = vmatpush1.xpose.msra.mxu0 0.0
        %1336 = vmatprep.subr.mxu0 0.0
        %1337 = vmatpush1.xpose.msra.mxu0 0.0
        %1338 = vmatprep.subr.mxu0 0.0
        %1339 = vmatpush1.xpose.msra.mxu0 0.0
        %1340 = vmatprep.subr.mxu0 0.0
        %1341 = vmatpush1.xpose.msra.mxu0 0.0
        %1342 = vmatprep.subr.mxu0 0.0
        %1343 = vmatpush1.xpose.msra.mxu0 0.0
        %1344 = vmatprep.subr.mxu0 0.0
        %1345 = vmatpush1.xpose.msra.mxu0 0.0
        %1346 = vmatprep.subr.mxu0 0.0
        %1347 = vmatpush1.xpose.msra.mxu0 0.0
        %1348 = vmatprep.subr.mxu0 0.0
        %1349 = vmatpush1.xpose.msra.mxu0 0.0
        %1350 = vmatprep.mubr.f32.mxu0 0.0
        %1351 = vmatmul.mubr.f32.gmra.mrb[0].mxu0 %v1278
        %v1352 = vpop.f32.mrb[0].mxu0
        %v1353 = vadd.f32 0.0, %v1352
        %v1354 = vpop.f32.mrb[0].mxu0
        %1355 = vdwg.mxu0
        %v1356 = vmul.f32 %v1353, 0.35355338
        %v1357 = vadd.f32 %v1356, %v1012
        %vm1358 = vcmask 130048
        %v1359 = vsel %vm1358, %v1357, -inf
        %1360 = vmax.xlane.f32.xlu0 %v1359
        %v1361 = vpop.xlane.xlu0 %1360
        %v1362 = vsub.f32 %v1357, %v1361
        %v1363 = vmul.f32 %v1362, 1.442695
        %v1364 = vpow.pop %v1363
        %v1365 = vsel %vm1358, %v1364, 0.0
        %1366 = vadd.xlane.f32.xlu0 %v1365
        %v1367 = vpop.xlane.xlu0 %1366
        %v1368 = vrcp.pop %v1367
        %v1369 = vmul.f32 %v1364, %v1368
        %v1371 = vsel %vm1358, %v1369, 0
        %1373 = vmatprep.subr.mxu0 0.0
        %1374 = vmatpush1.msra.mxu0 %v1268
        %1375 = vmatprep.subr.mxu0 0.0
        %1376 = vmatpush1.msra.mxu0 %v1273
        %1377 = vmatprep.subr.mxu0 0.0
        %1378 = vmatpush1.msra.mxu0 0.0
        %1379 = vmatprep.subr.mxu0 0.0
        %1380 = vmatpush1.msra.mxu0 0.0
        %1381 = vmatprep.subr.mxu0 0.0
        %1382 = vmatpush1.msra.mxu0 0.0
        %1383 = vmatprep.subr.mxu0 0.0
        %1384 = vmatpush1.msra.mxu0 0.0
        %1385 = vmatprep.subr.mxu0 0.0
        %1386 = vmatpush1.msra.mxu0 0.0
        %1387 = vmatprep.subr.mxu0 0.0
        %1388 = vmatpush1.msra.mxu0 0.0
        %1389 = vmatprep.subr.mxu0 0.0
        %1390 = vmatpush1.msra.mxu0 0.0
        %1391 = vmatprep.subr.mxu0 0.0
        %1392 = vmatpush1.msra.mxu0 0.0
        %1393 = vmatprep.subr.mxu0 0.0
        %1394 = vmatpush1.msra.mxu0 0.0
        %1395 = vmatprep.subr.mxu0 0.0
        %1396 = vmatpush1.msra.mxu0 0.0
        %1397 = vmatprep.subr.mxu0 0.0
        %1398 = vmatpush1.msra.mxu0 0.0
        %1399 = vmatprep.subr.mxu0 0.0
        %1400 = vmatpush1.msra.mxu0 0.0
        %1401 = vmatprep.subr.mxu0 0.0
        %1402 = vmatpush1.msra.mxu0 0.0
        %1403 = vmatprep.subr.mxu0 0.0
        %1404 = vmatpush1.msra.mxu0 0.0
        %1405 = vmatprep.subr.mxu0 0.0
        %1406 = vmatpush1.msra.mxu0 0.0
        %1407 = vmatprep.subr.mxu0 0.0
        %1408 = vmatpush1.msra.mxu0 0.0
        %1409 = vmatprep.subr.mxu0 0.0
        %1410 = vmatpush1.msra.mxu0 0.0
        %1411 = vmatprep.subr.mxu0 0.0
        %1412 = vmatpush1.msra.mxu0 0.0
        %1413 = vmatprep.subr.mxu0 0.0
        %1414 = vmatpush1.msra.mxu0 0.0
        %1415 = vmatprep.subr.mxu0 0.0
        %1416 = vmatpush1.msra.mxu0 0.0
        %1417 = vmatprep.subr.mxu0 0.0
        %1418 = vmatpush1.msra.mxu0 0.0
        %1419 = vmatprep.subr.mxu0 0.0
        %1420 = vmatpush1.msra.mxu0 0.0
        %1421 = vmatprep.subr.mxu0 0.0
        %1422 = vmatpush1.msra.mxu0 0.0
        %1423 = vmatprep.subr.mxu0 0.0
        %1424 = vmatpush1.msra.mxu0 0.0
        %1425 = vmatprep.subr.mxu0 0.0
        %1426 = vmatpush1.msra.mxu0 0.0
        %1427 = vmatprep.subr.mxu0 0.0
        %1428 = vmatpush1.msra.mxu0 0.0
        %1429 = vmatprep.subr.mxu0 0.0
        %1430 = vmatpush1.msra.mxu0 0.0
        %1431 = vmatprep.subr.mxu0 0.0
        %1432 = vmatpush1.msra.mxu0 0.0
        %1433 = vmatprep.subr.mxu0 0.0
        %1434 = vmatpush1.msra.mxu0 0.0
        %1435 = vmatprep.subr.mxu0 0.0
        %1436 = vmatpush1.msra.mxu0 0.0
        %1437 = vmatprep.mubr.f32.mxu0 0.0
        %1438 = vmatmul.mubr.f32.gmra.mrb[0].mxu0 %v1371
        %v1439 = vpop.f32.mrb[0].mxu0
        %v1440 = vadd.f32 0.0, %v1439
        %v1441 = vpop.f32.mrb[0].mxu0
        %1442 = vdwg.mxu0
        %v1443 = vld [vmem:[#allocation17] sm:$0xff]
        %s1444 = scalar_lea.vmem [#allocation8], 32
        %v1445 = vld [vmem:[%s1444] sm:$0xff]
        %v1446 = vld [vmem:[%s1444 + $0x8] sm:$0xff]
        %v1447 = vld [vmem:[%s1444 + $0x10] sm:$0xff]
        %v1448 = vld [vmem:[%s1444 + $0x18] sm:$0xff]
        %s1449 = scalar_lea.vmem [#allocation10], 1
        %v1450 = vld [vmem:[%s1449] sm:$0x1]
        %v1452 = vlaneseq
        %v1453 = vshrl.u32 %v1452, 7
        %v1454 = vsub.s32 0, %v1453
        %v1455 = vrot.slane %v1450, %v1454
        %1457 = vmatprep.subr.mxu0 0.0
        %1458 = vmatpush1.msra.mxu0 %v1445
        %1459 = vmatprep.subr.mxu0 0.0
        %1460 = vmatpush1.msra.mxu0 %v1446
        %1461 = vmatprep.subr.mxu0 0.0
        %1462 = vmatpush1.msra.mxu0 %v1447
        %1463 = vmatprep.subr.mxu0 0.0
        %1464 = vmatpush1.msra.mxu0 %v1448
        %1465 = vmatprep.subr.mxu0 0.0
        %1466 = vmatpush1.msra.mxu0 0.0
        %1467 = vmatprep.subr.mxu0 0.0
        %1468 = vmatpush1.msra.mxu0 0.0
        %1469 = vmatprep.subr.mxu0 0.0
        %1470 = vmatpush1.msra.mxu0 0.0
        %1471 = vmatprep.subr.mxu0 0.0
        %1472 = vmatpush1.msra.mxu0 0.0
        %1473 = vmatprep.subr.mxu0 0.0
        %1474 = vmatpush1.msra.mxu0 0.0
        %1475 = vmatprep.subr.mxu0 0.0
        %1476 = vmatpush1.msra.mxu0 0.0
        %1477 = vmatprep.subr.mxu0 0.0
        %1478 = vmatpush1.msra.mxu0 0.0
        %1479 = vmatprep.subr.mxu0 0.0
        %1480 = vmatpush1.msra.mxu0 0.0
        %1481 = vmatprep.subr.mxu0 0.0
        %1482 = vmatpush1.msra.mxu0 0.0
        %1483 = vmatprep.subr.mxu0 0.0
        %1484 = vmatpush1.msra.mxu0 0.0
        %1485 = vmatprep.subr.mxu0 0.0
        %1486 = vmatpush1.msra.mxu0 0.0
        %1487 = vmatprep.subr.mxu0 0.0
        %1488 = vmatpush1.msra.mxu0 0.0
        %1489 = vmatprep.subr.mxu0 0.0
        %1490 = vmatpush1.msra.mxu0 0.0
        %1491 = vmatprep.subr.mxu0 0.0
        %1492 = vmatpush1.msra.mxu0 0.0
        %1493 = vmatprep.subr.mxu0 0.0
        %1494 = vmatpush1.msra.mxu0 0.0
        %1495 = vmatprep.subr.mxu0 0.0
        %1496 = vmatpush1.msra.mxu0 0.0
        %1497 = vmatprep.subr.mxu0 0.0
        %1498 = vmatpush1.msra.mxu0 0.0
        %1499 = vmatprep.subr.mxu0 0.0
        %1500 = vmatpush1.msra.mxu0 0.0
        %1501 = vmatprep.subr.mxu0 0.0
        %1502 = vmatpush1.msra.mxu0 0.0
        %1503 = vmatprep.subr.mxu0 0.0
        %1504 = vmatpush1.msra.mxu0 0.0
        %1505 = vmatprep.subr.mxu0 0.0
        %1506 = vmatpush1.msra.mxu0 0.0
        %1507 = vmatprep.subr.mxu0 0.0
        %1508 = vmatpush1.msra.mxu0 0.0
        %1509 = vmatprep.subr.mxu0 0.0
        %1510 = vmatpush1.msra.mxu0 0.0
        %1511 = vmatprep.subr.mxu0 0.0
        %1512 = vmatpush1.msra.mxu0 0.0
        %1513 = vmatprep.subr.mxu0 0.0
        %1514 = vmatpush1.msra.mxu0 0.0
        %1515 = vmatprep.subr.mxu0 0.0
        %1516 = vmatpush1.msra.mxu0 0.0
        %1517 = vmatprep.subr.mxu0 0.0
        %1518 = vmatpush1.msra.mxu0 0.0
        %1519 = vmatprep.subr.mxu0 0.0
        %1520 = vmatpush1.msra.mxu0 0.0
        %1521 = vmatprep.mubr.f32.mxu0 0.0
        %1522 = vmatmul.mubr.f32.gmra.mrb[0].mxu0 %v1026
        %v1523 = vpop.f32.mrb[0].mxu0
        %v1524 = vadd.f32 %v1455, %v1523
        %v1525 = vpop.f32.mrb[0].mxu0
        %1526 = vdwg.mxu0
        %s1527 = scalar_lea.vmem [#allocation11], 32
        %v1528 = vld [vmem:[%s1527] sm:$0xff]
        %v1529 = vld [vmem:[%s1527 + $0x8] sm:$0xff]
        %v1530 = vld [vmem:[%s1527 + $0x10] sm:$0xff]
        %v1531 = vld [vmem:[%s1527 + $0x18] sm:$0xff]
        %s1532 = scalar_lea.vmem [#allocation13], 1
        %v1533 = vld [vmem:[%s1532] sm:$0x1]
        %v1535 = vlaneseq
        %v1536 = vshrl.u32 %v1535, 7
        %v1537 = vsub.s32 0, %v1536
        %v1538 = vrot.slane %v1533, %v1537
        %1540 = vmatprep.subr.mxu0 0.0
        %1541 = vmatpush1.msra.mxu0 %v1528
        %1542 = vmatprep.subr.mxu0 0.0
        %1543 = vmatpush1.msra.mxu0 %v1529
        %1544 = vmatprep.subr.mxu0 0.0
        %1545 = vmatpush1.msra.mxu0 %v1530
        %1546 = vmatprep.subr.mxu0 0.0
        %1547 = vmatpush1.msra.mxu0 %v1531
        %1548 = vmatprep.subr.mxu0 0.0
        %1549 = vmatpush1.msra.mxu0 0.0
        %1550 = vmatprep.subr.mxu0 0.0
        %1551 = vmatpush1.msra.mxu0 0.0
        %1552 = vmatprep.subr.mxu0 0.0
        %1553 = vmatpush1.msra.mxu0 0.0
        %1554 = vmatprep.subr.mxu0 0.0
        %1555 = vmatpush1.msra.mxu0 0.0
        %1556 = vmatprep.subr.mxu0 0.0
        %1557 = vmatpush1.msra.mxu0 0.0
        %1558 = vmatprep.subr.mxu0 0.0
        %1559 = vmatpush1.msra.mxu0 0.0
        %1560 = vmatprep.subr.mxu0 0.0
        %1561 = vmatpush1.msra.mxu0 0.0
        %1562 = vmatprep.subr.mxu0 0.0
        %1563 = vmatpush1.msra.mxu0 0.0
        %1564 = vmatprep.subr.mxu0 0.0
        %1565 = vmatpush1.msra.mxu0 0.0
        %1566 = vmatprep.subr.mxu0 0.0
        %1567 = vmatpush1.msra.mxu0 0.0
        %1568 = vmatprep.subr.mxu0 0.0
        %1569 = vmatpush1.msra.mxu0 0.0
        %1570 = vmatprep.subr.mxu0 0.0
        %1571 = vmatpush1.msra.mxu0 0.0
        %1572 = vmatprep.subr.mxu0 0.0
        %1573 = vmatpush1.msra.mxu0 0.0
        %1574 = vmatprep.subr.mxu0 0.0
        %1575 = vmatpush1.msra.mxu0 0.0
        %1576 = vmatprep.subr.mxu0 0.0
        %1577 = vmatpush1.msra.mxu0 0.0
        %1578 = vmatprep.subr.mxu0 0.0
        %1579 = vmatpush1.msra.mxu0 0.0
        %1580 = vmatprep.subr.mxu0 0.0
        %1581 = vmatpush1.msra.mxu0 0.0
        %1582 = vmatprep.subr.mxu0 0.0
        %1583 = vmatpush1.msra.mxu0 0.0
        %1584 = vmatprep.subr.mxu0 0.0
        %1585 = vmatpush1.msra.mxu0 0.0
        %1586 = vmatprep.subr.mxu0 0.0
        %1587 = vmatpush1.msra.mxu0 0.0
        %1588 = vmatprep.subr.mxu0 0.0
        %1589 = vmatpush1.msra.mxu0 0.0
        %1590 = vmatprep.subr.mxu0 0.0
        %1591 = vmatpush1.msra.mxu0 0.0
        %1592 = vmatprep.subr.mxu0 0.0
        %1593 = vmatpush1.msra.mxu0 0.0
        %1594 = vmatprep.subr.mxu0 0.0
        %1595 = vmatpush1.msra.mxu0 0.0
        %1596 = vmatprep.subr.mxu0 0.0
        %1597 = vmatpush1.msra.mxu0 0.0
        %1598 = vmatprep.subr.mxu0 0.0
        %1599 = vmatpush1.msra.mxu0 0.0
        %1600 = vmatprep.subr.mxu0 0.0
        %1601 = vmatpush1.msra.mxu0 0.0
        %1602 = vmatprep.subr.mxu0 0.0
        %1603 = vmatpush1.msra.mxu0 0.0
        %1604 = vmatprep.mubr.f32.mxu0 0.0
        %1605 = vmatmul.mubr.f32.gmra.mrb[0].mxu0 %v1110
        %v1606 = vpop.f32.mrb[0].mxu0
        %v1607 = vadd.f32 %v1538, %v1606
        %v1608 = vpop.f32.mrb[0].mxu0
        %1609 = vmatprep.mubr.f32.mxu0 0.0
        %1610 = vmatmul.mubr.f32.gmra.mrb[0].mxu0 %v1113
        %v1611 = vpop.f32.mrb[0].mxu0
        %v1612 = vadd.f32 %v1538, %v1611
        %v1613 = vpop.f32.mrb[0].mxu0
        %1614 = vdwg.mxu0
        %s1615 = scalar_lea.vmem [#allocation14], 32
        %v1616 = vld [vmem:[%s1615] sm:$0xff]
        %v1617 = vld [vmem:[%s1615 + $0x8] sm:$0xff]
        %v1618 = vld [vmem:[%s1615 + $0x10] sm:$0xff]
        %v1619 = vld [vmem:[%s1615 + $0x18] sm:$0xff]
        %s1620 = scalar_lea.vmem [#allocation16], 1
        %v1621 = vld [vmem:[%s1620] sm:$0x1]
        %v1623 = vlaneseq
        %v1624 = vshrl.u32 %v1623, 7
        %v1625 = vsub.s32 0, %v1624
        %v1626 = vrot.slane %v1621, %v1625
        %1628 = vmatprep.subr.mxu0 0.0
        %1629 = vmatpush1.msra.mxu0 %v1616
        %1630 = vmatprep.subr.mxu0 0.0
        %1631 = vmatpush1.msra.mxu0 %v1617
        %1632 = vmatprep.subr.mxu0 0.0
        %1633 = vmatpush1.msra.mxu0 %v1618
        %1634 = vmatprep.subr.mxu0 0.0
        %1635 = vmatpush1.msra.mxu0 %v1619
        %1636 = vmatprep.subr.mxu0 0.0
        %1637 = vmatpush1.msra.mxu0 0.0
        %1638 = vmatprep.subr.mxu0 0.0
        %1639 = vmatpush1.msra.mxu0 0.0
        %1640 = vmatprep.subr.mxu0 0.0
        %1641 = vmatpush1.msra.mxu0 0.0
        %1642 = vmatprep.subr.mxu0 0.0
        %1643 = vmatpush1.msra.mxu0 0.0
        %1644 = vmatprep.subr.mxu0 0.0
        %1645 = vmatpush1.msra.mxu0 0.0
        %1646 = vmatprep.subr.mxu0 0.0
        %1647 = vmatpush1.msra.mxu0 0.0
        %1648 = vmatprep.subr.mxu0 0.0
        %1649 = vmatpush1.msra.mxu0 0.0
        %1650 = vmatprep.subr.mxu0 0.0
        %1651 = vmatpush1.msra.mxu0 0.0
        %1652 = vmatprep.subr.mxu0 0.0
        %1653 = vmatpush1.msra.mxu0 0.0
        %1654 = vmatprep.subr.mxu0 0.0
        %1655 = vmatpush1.msra.mxu0 0.0
        %1656 = vmatprep.subr.mxu0 0.0
        %1657 = vmatpush1.msra.mxu0 0.0
        %1658 = vmatprep.subr.mxu0 0.0
        %1659 = vmatpush1.msra.mxu0 0.0
        %1660 = vmatprep.subr.mxu0 0.0
        %1661 = vmatpush1.msra.mxu0 0.0
        %1662 = vmatprep.subr.mxu0 0.0
        %1663 = vmatpush1.msra.mxu0 0.0
        %1664 = vmatprep.subr.mxu0 0.0
        %1665 = vmatpush1.msra.mxu0 0.0
        %1666 = vmatprep.subr.mxu0 0.0
        %1667 = vmatpush1.msra.mxu0 0.0
        %1668 = vmatprep.subr.mxu0 0.0
        %1669 = vmatpush1.msra.mxu0 0.0
        %1670 = vmatprep.subr.mxu0 0.0
        %1671 = vmatpush1.msra.mxu0 0.0
        %1672 = vmatprep.subr.mxu0 0.0
        %1673 = vmatpush1.msra.mxu0 0.0
        %1674 = vmatprep.subr.mxu0 0.0
        %1675 = vmatpush1.msra.mxu0 0.0
        %1676 = vmatprep.subr.mxu0 0.0
        %1677 = vmatpush1.msra.mxu0 0.0
        %1678 = vmatprep.subr.mxu0 0.0
        %1679 = vmatpush1.msra.mxu0 0.0
        %1680 = vmatprep.subr.mxu0 0.0
        %1681 = vmatpush1.msra.mxu0 0.0
        %1682 = vmatprep.subr.mxu0 0.0
        %1683 = vmatpush1.msra.mxu0 0.0
        %1684 = vmatprep.subr.mxu0 0.0
        %1685 = vmatpush1.msra.mxu0 0.0
        %1686 = vmatprep.subr.mxu0 0.0
        %1687 = vmatpush1.msra.mxu0 0.0
        %1688 = vmatprep.subr.mxu0 0.0
        %1689 = vmatpush1.msra.mxu0 0.0
        %1690 = vmatprep.subr.mxu0 0.0
        %1691 = vmatpush1.msra.mxu0 0.0
        %1692 = vmatprep.mubr.f32.mxu0 0.0
        %1693 = vmatmul.mubr.f32.gmra.mrb[0].mxu0 %v1110
        %v1694 = vpop.f32.mrb[0].mxu0
        %v1695 = vadd.f32 %v1626, %v1694
        %v1696 = vpop.f32.mrb[0].mxu0
        %1697 = vmatprep.mubr.f32.mxu0 0.0
        %1698 = vmatmul.mubr.f32.gmra.mrb[0].mxu0 %v1113
        %v1699 = vpop.f32.mrb[0].mxu0
        %v1700 = vadd.f32 %v1626, %v1699
        %v1701 = vpop.f32.mrb[0].mxu0
        %1702 = vdwg.mxu0
        %v1704 = vsel %vm1276, %v1524, 0
        %v1707 = vsel %vm1276, %v1607, 0
        %v1710 = vsel %vm1276, %v1612, 0
        %1712 = vmatprep.subr.mxu0 0.0
        %1713 = vmatpush1.xpose.msra.mxu0 %v1707
        %1714 = vmatprep.subr.mxu0 0.0
        %1715 = vmatpush1.xpose.msra.mxu0 %v1710
        %1716 = vmatprep.subr.mxu0 0.0
        %1717 = vmatpush1.xpose.msra.mxu0 0.0
        %1718 = vmatprep.subr.mxu0 0.0
        %1719 = vmatpush1.xpose.msra.mxu0 0.0
        %1720 = vmatprep.subr.mxu0 0.0
        %1721 = vmatpush1.xpose.msra.mxu0 0.0
        %1722 = vmatprep.subr.mxu0 0.0
        %1723 = vmatpush1.xpose.msra.mxu0 0.0
        %1724 = vmatprep.subr.mxu0 0.0
        %1725 = vmatpush1.xpose.msra.mxu0 0.0
        %1726 = vmatprep.subr.mxu0 0.0
        %1727 = vmatpush1.xpose.msra.mxu0 0.0
        %1728 = vmatprep.subr.mxu0 0.0
        %1729 = vmatpush1.xpose.msra.mxu0 0.0
        %1730 = vmatprep.subr.mxu0 0.0
        %1731 = vmatpush1.xpose.msra.mxu0 0.0
        %1732 = vmatprep.subr.mxu0 0.0
        %1733 = vmatpush1.xpose.msra.mxu0 0.0
        %1734 = vmatprep.subr.mxu0 0.0
        %1735 = vmatpush1.xpose.msra.mxu0 0.0
        %1736 = vmatprep.subr.mxu0 0.0
        %1737 = vmatpush1.xpose.msra.mxu0 0.0
        %1738 = vmatprep.subr.mxu0 0.0
        %1739 = vmatpush1.xpose.msra.mxu0 0.0
        %1740 = vmatprep.subr.mxu0 0.0
        %1741 = vmatpush1.xpose.msra.mxu0 0.0
        %1742 = vmatprep.subr.mxu0 0.0
        %1743 = vmatpush1.xpose.msra.mxu0 0.0
        %1744 = vmatprep.subr.mxu0 0.0
        %1745 = vmatpush1.xpose.msra.mxu0 0.0
        %1746 = vmatprep.subr.mxu0 0.0
        %1747 = vmatpush1.xpose.msra.mxu0 0.0
        %1748 = vmatprep.subr.mxu0 0.0
        %1749 = vmatpush1.xpose.msra.mxu0 0.0
        %1750 = vmatprep.subr.mxu0 0.0
        %1751 = vmatpush1.xpose.msra.mxu0 0.0
        %1752 = vmatprep.subr.mxu0 0.0
        %1753 = vmatpush1.xpose.msra.mxu0 0.0
        %1754 = vmatprep.subr.mxu0 0.0
        %1755 = vmatpush1.xpose.msra.mxu0 0.0
        %1756 = vmatprep.subr.mxu0 0.0
        %1757 = vmatpush1.xpose.msra.mxu0 0.0
        %1758 = vmatprep.subr.mxu0 0.0
        %1759 = vmatpush1.xpose.msra.mxu0 0.0
        %1760 = vmatprep.subr.mxu0 0.0
        %1761 = vmatpush1.xpose.msra.mxu0 0.0
        %1762 = vmatprep.subr.mxu0 0.0
        %1763 = vmatpush1.xpose.msra.mxu0 0.0
        %1764 = vmatprep.subr.mxu0 0.0
        %1765 = vmatpush1.xpose.msra.mxu0 0.0
        %1766 = vmatprep.subr.mxu0 0.0
        %1767 = vmatpush1.xpose.msra.mxu0 0.0
        %1768 = vmatprep.subr.mxu0 0.0
        %1769 = vmatpush1.xpose.msra.mxu0 0.0
        %1770 = vmatprep.subr.mxu0 0.0
        %1771 = vmatpush1.xpose.msra.mxu0 0.0
        %1772 = vmatprep.subr.mxu0 0.0
        %1773 = vmatpush1.xpose.msra.mxu0 0.0
        %1774 = vmatprep.subr.mxu0 0.0
        %1775 = vmatpush1.xpose.msra.mxu0 0.0
        %1776 = vmatprep.mubr.f32.mxu0 0.0
        %1777 = vmatmul.mubr.f32.gmra.mrb[0].mxu0 %v1704
        %v1778 = vpop.f32.mrb[0].mxu0
        %v1779 = vadd.f32 0.0, %v1778
        %v1780 = vpop.f32.mrb[0].mxu0
        %1781 = vdwg.mxu0
        %v1782 = vmul.f32 %v1779, 0.35355338
        %v1783 = vadd.f32 %v1782, %v1012
        %v1784 = vsel %vm1358, %v1783, -inf
        %1785 = vmax.xlane.f32.xlu0 %v1784
        %v1786 = vpop.xlane.xlu0 %1785
        %v1787 = vsub.f32 %v1783, %v1786
        %v1788 = vmul.f32 %v1787, 1.442695
        %v1789 = vpow.pop %v1788
        %v1790 = vsel %vm1358, %v1789, 0.0
        %1791 = vadd.xlane.f32.xlu0 %v1790
        %v1792 = vpop.xlane.xlu0 %1791
        %v1793 = vrcp.pop %v1792
        %v1794 = vmul.f32 %v1789, %v1793
        %v1796 = vsel %vm1358, %v1794, 0
        %1798 = vmatprep.subr.mxu0 0.0
        %1799 = vmatpush1.msra.mxu0 %v1695
        %1800 = vmatprep.subr.mxu0 0.0
        %1801 = vmatpush1.msra.mxu0 %v1700
        %1802 = vmatprep.subr.mxu0 0.0
        %1803 = vmatpush1.msra.mxu0 0.0
        %1804 = vmatprep.subr.mxu0 0.0
        %1805 = vmatpush1.msra.mxu0 0.0
        %1806 = vmatprep.subr.mxu0 0.0
        %1807 = vmatpush1.msra.mxu0 0.0
        %1808 = vmatprep.subr.mxu0 0.0
        %1809 = vmatpush1.msra.mxu0 0.0
        %1810 = vmatprep.subr.mxu0 0.0
        %1811 = vmatpush1.msra.mxu0 0.0
        %1812 = vmatprep.subr.mxu0 0.0
        %1813 = vmatpush1.msra.mxu0 0.0
        %1814 = vmatprep.subr.mxu0 0.0
        %1815 = vmatpush1.msra.mxu0 0.0
        %1816 = vmatprep.subr.mxu0 0.0
        %1817 = vmatpush1.msra.mxu0 0.0
        %1818 = vmatprep.subr.mxu0 0.0
        %1819 = vmatpush1.msra.mxu0 0.0
        %1820 = vmatprep.subr.mxu0 0.0
        %1821 = vmatpush1.msra.mxu0 0.0
        %1822 = vmatprep.subr.mxu0 0.0
        %1823 = vmatpush1.msra.mxu0 0.0
        %1824 = vmatprep.subr.mxu0 0.0
        %1825 = vmatpush1.msra.mxu0 0.0
        %1826 = vmatprep.subr.mxu0 0.0
        %1827 = vmatpush1.msra.mxu0 0.0
        %1828 = vmatprep.subr.mxu0 0.0
        %1829 = vmatpush1.msra.mxu0 0.0
        %1830 = vmatprep.subr.mxu0 0.0
        %1831 = vmatpush1.msra.mxu0 0.0
        %1832 = vmatprep.subr.mxu0 0.0
        %1833 = vmatpush1.msra.mxu0 0.0
        %1834 = vmatprep.subr.mxu0 0.0
        %1835 = vmatpush1.msra.mxu0 0.0
        %1836 = vmatprep.subr.mxu0 0.0
        %1837 = vmatpush1.msra.mxu0 0.0
        %1838 = vmatprep.subr.mxu0 0.0
        %1839 = vmatpush1.msra.mxu0 0.0
        %1840 = vmatprep.subr.mxu0 0.0
        %1841 = vmatpush1.msra.mxu0 0.0
        %1842 = vmatprep.subr.mxu0 0.0
        %1843 = vmatpush1.msra.mxu0 0.0
        %1844 = vmatprep.subr.mxu0 0.0
        %1845 = vmatpush1.msra.mxu0 0.0
        %1846 = vmatprep.subr.mxu0 0.0
        %1847 = vmatpush1.msra.mxu0 0.0
        %1848 = vmatprep.subr.mxu0 0.0
        %1849 = vmatpush1.msra.mxu0 0.0
        %1850 = vmatprep.subr.mxu0 0.0
        %1851 = vmatpush1.msra.mxu0 0.0
        %1852 = vmatprep.subr.mxu0 0.0
        %1853 = vmatpush1.msra.mxu0 0.0
        %1854 = vmatprep.subr.mxu0 0.0
        %1855 = vmatpush1.msra.mxu0 0.0
        %1856 = vmatprep.subr.mxu0 0.0
        %1857 = vmatpush1.msra.mxu0 0.0
        %1858 = vmatprep.subr.mxu0 0.0
        %1859 = vmatpush1.msra.mxu0 0.0
        %1860 = vmatprep.subr.mxu0 0.0
        %1861 = vmatpush1.msra.mxu0 0.0
        %1862 = vmatprep.mubr.f32.mxu0 0.0
        %1863 = vmatmul.mubr.f32.gmra.mrb[0].mxu0 %v1796
        %v1864 = vpop.f32.mrb[0].mxu0
        %v1865 = vadd.f32 0.0, %v1864
        %v1866 = vpop.f32.mrb[0].mxu0
        %1867 = vdwg.mxu0
        %s1868 = scalar_lea.vmem [#allocation17], 8
        %v1869 = vld [vmem:[%s1868] sm:$0xff]
        %v1871 = vsel %vm1276, %v1865, 0
        %1873 = vmatprep.subr.mxu0 0.0
        %1874 = vmatpush1.msra.mxu0 %v1869
        %1875 = vmatprep.subr.mxu0 0.0
        %1876 = vmatpush1.msra.mxu0 0.0
        %1877 = vmatprep.subr.mxu0 0.0
        %1878 = vmatpush1.msra.mxu0 0.0
        %1879 = vmatprep.subr.mxu0 0.0
        %1880 = vmatpush1.msra.mxu0 0.0
        %1881 = vmatprep.subr.mxu0 0.0
        %1882 = vmatpush1.msra.mxu0 0.0
        %1883 = vmatprep.subr.mxu0 0.0
        %1884 = vmatpush1.msra.mxu0 0.0
        %1885 = vmatprep.subr.mxu0 0.0
        %1886 = vmatpush1.msra.mxu0 0.0
        %1887 = vmatprep.subr.mxu0 0.0
        %1888 = vmatpush1.msra.mxu0 0.0
        %1889 = vmatprep.subr.mxu0 0.0
        %1890 = vmatpush1.msra.mxu0 0.0
        %1891 = vmatprep.subr.mxu0 0.0
        %1892 = vmatpush1.msra.mxu0 0.0
        %1893 = vmatprep.subr.mxu0 0.0
        %1894 = vmatpush1.msra.mxu0 0.0
        %1895 = vmatprep.subr.mxu0 0.0
        %1896 = vmatpush1.msra.mxu0 0.0
        %1897 = vmatprep.subr.mxu0 0.0
        %1898 = vmatpush1.msra.mxu0 0.0
        %1899 = vmatprep.subr.mxu0 0.0
        %1900 = vmatpush1.msra.mxu0 0.0
        %1901 = vmatprep.subr.mxu0 0.0
        %1902 = vmatpush1.msra.mxu0 0.0
        %1903 = vmatprep.subr.mxu0 0.0
        %1904 = vmatpush1.msra.mxu0 0.0
        %1905 = vmatprep.subr.mxu0 0.0
        %1906 = vmatpush1.msra.mxu0 0.0
        %1907 = vmatprep.subr.mxu0 0.0
        %1908 = vmatpush1.msra.mxu0 0.0
        %1909 = vmatprep.subr.mxu0 0.0
        %1910 = vmatpush1.msra.mxu0 0.0
        %1911 = vmatprep.subr.mxu0 0.0
        %1912 = vmatpush1.msra.mxu0 0.0
        %1913 = vmatprep.subr.mxu0 0.0
        %1914 = vmatpush1.msra.mxu0 0.0
        %1915 = vmatprep.subr.mxu0 0.0
        %1916 = vmatpush1.msra.mxu0 0.0
        %1917 = vmatprep.subr.mxu0 0.0
        %1918 = vmatpush1.msra.mxu0 0.0
        %1919 = vmatprep.subr.mxu0 0.0
        %1920 = vmatpush1.msra.mxu0 0.0
        %1921 = vmatprep.subr.mxu0 0.0
        %1922 = vmatpush1.msra.mxu0 0.0
        %1923 = vmatprep.subr.mxu0 0.0
        %1924 = vmatpush1.msra.mxu0 0.0
        %1925 = vmatprep.subr.mxu0 0.0
        %1926 = vmatpush1.msra.mxu0 0.0
        %1927 = vmatprep.subr.mxu0 0.0
        %1928 = vmatpush1.msra.mxu0 0.0
        %1929 = vmatprep.subr.mxu0 0.0
        %1930 = vmatpush1.msra.mxu0 0.0
        %1931 = vmatprep.subr.mxu0 0.0
        %1932 = vmatpush1.msra.mxu0 0.0
        %1933 = vmatprep.subr.mxu0 0.0
        %1934 = vmatpush1.msra.mxu0 0.0
        %1935 = vmatprep.subr.mxu0 0.0
        %1936 = vmatpush1.msra.mxu0 0.0
        %1937 = vmatprep.mubr.f32.mxu0 0.0
        %1938 = vmatmul.mubr.f32.gmra.mrb[0].mxu0 %v1871
        %v1939 = vpop.f32.mrb[0].mxu0
        %v1940 = vadd.f32 0.0, %v1939
        %v1941 = vpop.f32.mrb[0].mxu0
        %1942 = vdwg.mxu0
        %v1944 = vsel %vm1276, %v1440, 0
        %1946 = vmatprep.subr.mxu0 0.0
        %1947 = vmatpush1.msra.mxu0 %v1443
        %1948 = vmatprep.subr.mxu0 0.0
        %1949 = vmatpush1.msra.mxu0 0.0
        %1950 = vmatprep.subr.mxu0 0.0
        %1951 = vmatpush1.msra.mxu0 0.0
        %1952 = vmatprep.subr.mxu0 0.0
        %1953 = vmatpush1.msra.mxu0 0.0
        %1954 = vmatprep.subr.mxu0 0.0
        %1955 = vmatpush1.msra.mxu0 0.0
        %1956 = vmatprep.subr.mxu0 0.0
        %1957 = vmatpush1.msra.mxu0 0.0
        %1958 = vmatprep.subr.mxu0 0.0
        %1959 = vmatpush1.msra.mxu0 0.0
        %1960 = vmatprep.subr.mxu0 0.0
        %1961 = vmatpush1.msra.mxu0 0.0
        %1962 = vmatprep.subr.mxu0 0.0
        %1963 = vmatpush1.msra.mxu0 0.0
        %1964 = vmatprep.subr.mxu0 0.0
        %1965 = vmatpush1.msra.mxu0 0.0
        %1966 = vmatprep.subr.mxu0 0.0
        %1967 = vmatpush1.msra.mxu0 0.0
        %1968 = vmatprep.subr.mxu0 0.0
        %1969 = vmatpush1.msra.mxu0 0.0
        %1970 = vmatprep.subr.mxu0 0.0
        %1971 = vmatpush1.msra.mxu0 0.0
        %1972 = vmatprep.subr.mxu0 0.0
        %1973 = vmatpush1.msra.mxu0 0.0
        %1974 = vmatprep.subr.mxu0 0.0
        %1975 = vmatpush1.msra.mxu0 0.0
        %1976 = vmatprep.subr.mxu0 0.0
        %1977 = vmatpush1.msra.mxu0 0.0
        %1978 = vmatprep.subr.mxu0 0.0
        %1979 = vmatpush1.msra.mxu0 0.0
        %1980 = vmatprep.subr.mxu0 0.0
        %1981 = vmatpush1.msra.mxu0 0.0
        %1982 = vmatprep.subr.mxu0 0.0
        %1983 = vmatpush1.msra.mxu0 0.0
        %1984 = vmatprep.subr.mxu0 0.0
        %1985 = vmatpush1.msra.mxu0 0.0
        %1986 = vmatprep.subr.mxu0 0.0
        %1987 = vmatpush1.msra.mxu0 0.0
        %1988 = vmatprep.subr.mxu0 0.0
        %1989 = vmatpush1.msra.mxu0 0.0
        %1990 = vmatprep.subr.mxu0 0.0
        %1991 = vmatpush1.msra.mxu0 0.0
        %1992 = vmatprep.subr.mxu0 0.0
        %1993 = vmatpush1.msra.mxu0 0.0
        %1994 = vmatprep.subr.mxu0 0.0
        %1995 = vmatpush1.msra.mxu0 0.0
        %1996 = vmatprep.subr.mxu0 0.0
        %1997 = vmatpush1.msra.mxu0 0.0
        %1998 = vmatprep.subr.mxu0 0.0
        %1999 = vmatpush1.msra.mxu0 0.0
        %2000 = vmatprep.subr.mxu0 0.0
        %2001 = vmatpush1.msra.mxu0 0.0
        %2002 = vmatprep.subr.mxu0 0.0
        %2003 = vmatpush1.msra.mxu0 0.0
        %2004 = vmatprep.subr.mxu0 0.0
        %2005 = vmatpush1.msra.mxu0 0.0
        %2006 = vmatprep.subr.mxu0 0.0
        %2007 = vmatpush1.msra.mxu0 0.0
        %2008 = vmatprep.subr.mxu0 0.0
        %2009 = vmatpush1.msra.mxu0 0.0
        %2010 = vmatprep.mubr.f32.mxu0 0.0
        %2011 = vmatmul.mubr.f32.gmra.mrb[0].mxu0 %v1944
        %v2012 = vpop.f32.mrb[0].mxu0
        %v2013 = vadd.f32 %v1940, %v2012
        %v2014 = vpop.f32.mrb[0].mxu0
        %2015 = vdwg.mxu0
        %s2016 = scalar_lea.vmem [#allocation8], 64
        %v2017 = vld [vmem:[%s2016] sm:$0xff]
        %v2018 = vld [vmem:[%s2016 + $0x8] sm:$0xff]
        %v2019 = vld [vmem:[%s2016 + $0x10] sm:$0xff]
        %v2020 = vld [vmem:[%s2016 + $0x18] sm:$0xff]
        %s2021 = scalar_lea.vmem [#allocation10], 2
        %v2022 = vld [vmem:[%s2021] sm:$0x1]
        %v2024 = vlaneseq
        %v2025 = vshrl.u32 %v2024, 7
        %v2026 = vsub.s32 0, %v2025
        %v2027 = vrot.slane %v2022, %v2026
        %2029 = vmatprep.subr.mxu0 0.0
        %2030 = vmatpush1.msra.mxu0 %v2017
        %2031 = vmatprep.subr.mxu0 0.0
        %2032 = vmatpush1.msra.mxu0 %v2018
        %2033 = vmatprep.subr.mxu0 0.0
        %2034 = vmatpush1.msra.mxu0 %v2019
        %2035 = vmatprep.subr.mxu0 0.0
        %2036 = vmatpush1.msra.mxu0 %v2020
        %2037 = vmatprep.subr.mxu0 0.0
        %2038 = vmatpush1.msra.mxu0 0.0
        %2039 = vmatprep.subr.mxu0 0.0
        %2040 = vmatpush1.msra.mxu0 0.0
        %2041 = vmatprep.subr.mxu0 0.0
        %2042 = vmatpush1.msra.mxu0 0.0
        %2043 = vmatprep.subr.mxu0 0.0
        %2044 = vmatpush1.msra.mxu0 0.0
        %2045 = vmatprep.subr.mxu0 0.0
        %2046 = vmatpush1.msra.mxu0 0.0
        %2047 = vmatprep.subr.mxu0 0.0
        %2048 = vmatpush1.msra.mxu0 0.0
        %2049 = vmatprep.subr.mxu0 0.0
        %2050 = vmatpush1.msra.mxu0 0.0
        %2051 = vmatprep.subr.mxu0 0.0
        %2052 = vmatpush1.msra.mxu0 0.0
        %2053 = vmatprep.subr.mxu0 0.0
        %2054 = vmatpush1.msra.mxu0 0.0
        %2055 = vmatprep.subr.mxu0 0.0
        %2056 = vmatpush1.msra.mxu0 0.0
        %2057 = vmatprep.subr.mxu0 0.0
        %2058 = vmatpush1.msra.mxu0 0.0
        %2059 = vmatprep.subr.mxu0 0.0
        %2060 = vmatpush1.msra.mxu0 0.0
        %2061 = vmatprep.subr.mxu0 0.0
        %2062 = vmatpush1.msra.mxu0 0.0
        %2063 = vmatprep.subr.mxu0 0.0
        %2064 = vmatpush1.msra.mxu0 0.0
        %2065 = vmatprep.subr.mxu0 0.0
        %2066 = vmatpush1.msra.mxu0 0.0
        %2067 = vmatprep.subr.mxu0 0.0
        %2068 = vmatpush1.msra.mxu0 0.0
        %2069 = vmatprep.subr.mxu0 0.0
        %2070 = vmatpush1.msra.mxu0 0.0
        %2071 = vmatprep.subr.mxu0 0.0
        %2072 = vmatpush1.msra.mxu0 0.0
        %2073 = vmatprep.subr.mxu0 0.0
        %2074 = vmatpush1.msra.mxu0 0.0
        %2075 = vmatprep.subr.mxu0 0.0
        %2076 = vmatpush1.msra.mxu0 0.0
        %2077 = vmatprep.subr.mxu0 0.0
        %2078 = vmatpush1.msra.mxu0 0.0
        %2079 = vmatprep.subr.mxu0 0.0
        %2080 = vmatpush1.msra.mxu0 0.0
        %2081 = vmatprep.subr.mxu0 0.0
        %2082 = vmatpush1.msra.mxu0 0.0
        %2083 = vmatprep.subr.mxu0 0.0
        %2084 = vmatpush1.msra.mxu0 0.0
        %2085 = vmatprep.subr.mxu0 0.0
        %2086 = vmatpush1.msra.mxu0 0.0
        %2087 = vmatprep.subr.mxu0 0.0
        %2088 = vmatpush1.msra.mxu0 0.0
        %2089 = vmatprep.subr.mxu0 0.0
        %2090 = vmatpush1.msra.mxu0 0.0
        %2091 = vmatprep.subr.mxu0 0.0
        %2092 = vmatpush1.msra.mxu0 0.0
        %2093 = vmatprep.mubr.f32.mxu0 0.0
        %2094 = vmatmul.mubr.f32.gmra.mrb[0].mxu0 %v1026
        %v2095 = vpop.f32.mrb[0].mxu0
        %v2096 = vadd.f32 %v2027, %v2095
        %v2097 = vpop.f32.mrb[0].mxu0
        %2098 = vdwg.mxu0
        %s2099 = scalar_lea.vmem [#allocation11], 64
        %v2100 = vld [vmem:[%s2099] sm:$0xff]
        %v2101 = vld [vmem:[%s2099 + $0x8] sm:$0xff]
        %v2102 = vld [vmem:[%s2099 + $0x10] sm:$0xff]
        %v2103 = vld [vmem:[%s2099 + $0x18] sm:$0xff]
        %s2104 = scalar_lea.vmem [#allocation13], 2
        %v2105 = vld [vmem:[%s2104] sm:$0x1]
        %v2107 = vlaneseq
        %v2108 = vshrl.u32 %v2107, 7
        %v2109 = vsub.s32 0, %v2108
        %v2110 = vrot.slane %v2105, %v2109
        %2112 = vmatprep.subr.mxu0 0.0
        %2113 = vmatpush1.msra.mxu0 %v2100
        %2114 = vmatprep.subr.mxu0 0.0
        %2115 = vmatpush1.msra.mxu0 %v2101
        %2116 = vmatprep.subr.mxu0 0.0
        %2117 = vmatpush1.msra.mxu0 %v2102
        %2118 = vmatprep.subr.mxu0 0.0
        %2119 = vmatpush1.msra.mxu0 %v2103
        %2120 = vmatprep.subr.mxu0 0.0
        %2121 = vmatpush1.msra.mxu0 0.0
        %2122 = vmatprep.subr.mxu0 0.0
        %2123 = vmatpush1.msra.mxu0 0.0
        %2124 = vmatprep.subr.mxu0 0.0
        %2125 = vmatpush1.msra.mxu0 0.0
        %2126 = vmatprep.subr.mxu0 0.0
        %2127 = vmatpush1.msra.mxu0 0.0
        %2128 = vmatprep.subr.mxu0 0.0
        %2129 = vmatpush1.msra.mxu0 0.0
        %2130 = vmatprep.subr.mxu0 0.0
        %2131 = vmatpush1.msra.mxu0 0.0
        %2132 = vmatprep.subr.mxu0 0.0
        %2133 = vmatpush1.msra.mxu0 0.0
        %2134 = vmatprep.subr.mxu0 0.0
        %2135 = vmatpush1.msra.mxu0 0.0
        %2136 = vmatprep.subr.mxu0 0.0
        %2137 = vmatpush1.msra.mxu0 0.0
        %2138 = vmatprep.subr.mxu0 0.0
        %2139 = vmatpush1.msra.mxu0 0.0
        %2140 = vmatprep.subr.mxu0 0.0
        %2141 = vmatpush1.msra.mxu0 0.0
        %2142 = vmatprep.subr.mxu0 0.0
        %2143 = vmatpush1.msra.mxu0 0.0
        %2144 = vmatprep.subr.mxu0 0.0
        %2145 = vmatpush1.msra.mxu0 0.0
        %2146 = vmatprep.subr.mxu0 0.0
        %2147 = vmatpush1.msra.mxu0 0.0
        %2148 = vmatprep.subr.mxu0 0.0
        %2149 = vmatpush1.msra.mxu0 0.0
        %2150 = vmatprep.subr.mxu0 0.0
        %2151 = vmatpush1.msra.mxu0 0.0
        %2152 = vmatprep.subr.mxu0 0.0
        %2153 = vmatpush1.msra.mxu0 0.0
        %2154 = vmatprep.subr.mxu0 0.0
        %2155 = vmatpush1.msra.mxu0 0.0
        %2156 = vmatprep.subr.mxu0 0.0
        %2157 = vmatpush1.msra.mxu0 0.0
        %2158 = vmatprep.subr.mxu0 0.0
        %2159 = vmatpush1.msra.mxu0 0.0
        %2160 = vmatprep.subr.mxu0 0.0
        %2161 = vmatpush1.msra.mxu0 0.0
        %2162 = vmatprep.subr.mxu0 0.0
        %2163 = vmatpush1.msra.mxu0 0.0
        %2164 = vmatprep.subr.mxu0 0.0
        %2165 = vmatpush1.msra.mxu0 0.0
        %2166 = vmatprep.subr.mxu0 0.0
        %2167 = vmatpush1.msra.mxu0 0.0
        %2168 = vmatprep.subr.mxu0 0.0
        %2169 = vmatpush1.msra.mxu0 0.0
        %2170 = vmatprep.subr.mxu0 0.0
        %2171 = vmatpush1.msra.mxu0 0.0
        %2172 = vmatprep.subr.mxu0 0.0
        %2173 = vmatpush1.msra.mxu0 0.0
        %2174 = vmatprep.subr.mxu0 0.0
        %2175 = vmatpush1.msra.mxu0 0.0
        %2176 = vmatprep.mubr.f32.mxu0 0.0
        %2177 = vmatmul.mubr.f32.gmra.mrb[0].mxu0 %v1110
        %v2178 = vpop.f32.mrb[0].mxu0
        %v2179 = vadd.f32 %v2110, %v2178
        %v2180 = vpop.f32.mrb[0].mxu0
        %2181 = vmatprep.mubr.f32.mxu0 0.0
        %2182 = vmatmul.mubr.f32.gmra.mrb[0].mxu0 %v1113
        %v2183 = vpop.f32.mrb[0].mxu0
        %v2184 = vadd.f32 %v2110, %v2183
        %v2185 = vpop.f32.mrb[0].mxu0
        %2186 = vdwg.mxu0
        %s2187 = scalar_lea.vmem [#allocation14], 64
        %v2188 = vld [vmem:[%s2187] sm:$0xff]
        %v2189 = vld [vmem:[%s2187 + $0x8] sm:$0xff]
        %v2190 = vld [vmem:[%s2187 + $0x10] sm:$0xff]
        %v2191 = vld [vmem:[%s2187 + $0x18] sm:$0xff]
        %s2192 = scalar_lea.vmem [#allocation16], 2
        %v2193 = vld [vmem:[%s2192] sm:$0x1]
        %v2195 = vlaneseq
        %v2196 = vshrl.u32 %v2195, 7
        %v2197 = vsub.s32 0, %v2196
        %v2198 = vrot.slane %v2193, %v2197
        %2200 = vmatprep.subr.mxu0 0.0
        %2201 = vmatpush1.msra.mxu0 %v2188
        %2202 = vmatprep.subr.mxu0 0.0
        %2203 = vmatpush1.msra.mxu0 %v2189
        %2204 = vmatprep.subr.mxu0 0.0
        %2205 = vmatpush1.msra.mxu0 %v2190
        %2206 = vmatprep.subr.mxu0 0.0
        %2207 = vmatpush1.msra.mxu0 %v2191
        %2208 = vmatprep.subr.mxu0 0.0
        %2209 = vmatpush1.msra.mxu0 0.0
        %2210 = vmatprep.subr.mxu0 0.0
        %2211 = vmatpush1.msra.mxu0 0.0
        %2212 = vmatprep.subr.mxu0 0.0
        %2213 = vmatpush1.msra.mxu0 0.0
        %2214 = vmatprep.subr.mxu0 0.0
        %2215 = vmatpush1.msra.mxu0 0.0
        %2216 = vmatprep.subr.mxu0 0.0
        %2217 = vmatpush1.msra.mxu0 0.0
        %2218 = vmatprep.subr.mxu0 0.0
        %2219 = vmatpush1.msra.mxu0 0.0
        %2220 = vmatprep.subr.mxu0 0.0
        %2221 = vmatpush1.msra.mxu0 0.0
        %2222 = vmatprep.subr.mxu0 0.0
        %2223 = vmatpush1.msra.mxu0 0.0
        %2224 = vmatprep.subr.mxu0 0.0
        %2225 = vmatpush1.msra.mxu0 0.0
        %2226 = vmatprep.subr.mxu0 0.0
        %2227 = vmatpush1.msra.mxu0 0.0
        %2228 = vmatprep.subr.mxu0 0.0
        %2229 = vmatpush1.msra.mxu0 0.0
        %2230 = vmatprep.subr.mxu0 0.0
        %2231 = vmatpush1.msra.mxu0 0.0
        %2232 = vmatprep.subr.mxu0 0.0
        %2233 = vmatpush1.msra.mxu0 0.0
        %2234 = vmatprep.subr.mxu0 0.0
        %2235 = vmatpush1.msra.mxu0 0.0
        %2236 = vmatprep.subr.mxu0 0.0
        %2237 = vmatpush1.msra.mxu0 0.0
        %2238 = vmatprep.subr.mxu0 0.0
        %2239 = vmatpush1.msra.mxu0 0.0
        %2240 = vmatprep.subr.mxu0 0.0
        %2241 = vmatpush1.msra.mxu0 0.0
        %2242 = vmatprep.subr.mxu0 0.0
        %2243 = vmatpush1.msra.mxu0 0.0
        %2244 = vmatprep.subr.mxu0 0.0
        %2245 = vmatpush1.msra.mxu0 0.0
        %2246 = vmatprep.subr.mxu0 0.0
        %2247 = vmatpush1.msra.mxu0 0.0
        %2248 = vmatprep.subr.mxu0 0.0
        %2249 = vmatpush1.msra.mxu0 0.0
        %2250 = vmatprep.subr.mxu0 0.0
        %2251 = vmatpush1.msra.mxu0 0.0
        %2252 = vmatprep.subr.mxu0 0.0
        %2253 = vmatpush1.msra.mxu0 0.0
        %2254 = vmatprep.subr.mxu0 0.0
        %2255 = vmatpush1.msra.mxu0 0.0
        %2256 = vmatprep.subr.mxu0 0.0
        %2257 = vmatpush1.msra.mxu0 0.0
        %2258 = vmatprep.subr.mxu0 0.0
        %2259 = vmatpush1.msra.mxu0 0.0
        %2260 = vmatprep.subr.mxu0 0.0
        %2261 = vmatpush1.msra.mxu0 0.0
        %2262 = vmatprep.subr.mxu0 0.0
        %2263 = vmatpush1.msra.mxu0 0.0
        %2264 = vmatprep.mubr.f32.mxu0 0.0
        %2265 = vmatmul.mubr.f32.gmra.mrb[0].mxu0 %v1110
        %v2266 = vpop.f32.mrb[0].mxu0
        %v2267 = vadd.f32 %v2198, %v2266
        %v2268 = vpop.f32.mrb[0].mxu0
        %2269 = vmatprep.mubr.f32.mxu0 0.0
        %2270 = vmatmul.mubr.f32.gmra.mrb[0].mxu0 %v1113
        %v2271 = vpop.f32.mrb[0].mxu0
        %v2272 = vadd.f32 %v2198, %v2271
        %v2273 = vpop.f32.mrb[0].mxu0
        %2274 = vdwg.mxu0
        %v2276 = vsel %vm1276, %v2096, 0
        %v2279 = vsel %vm1276, %v2179, 0
        %v2282 = vsel %vm1276, %v2184, 0
        %2284 = vmatprep.subr.mxu0 0.0
        %2285 = vmatpush1.xpose.msra.mxu0 %v2279
        %2286 = vmatprep.subr.mxu0 0.0
        %2287 = vmatpush1.xpose.msra.mxu0 %v2282
        %2288 = vmatprep.subr.mxu0 0.0
        %2289 = vmatpush1.xpose.msra.mxu0 0.0
        %2290 = vmatprep.subr.mxu0 0.0
        %2291 = vmatpush1.xpose.msra.mxu0 0.0
        %2292 = vmatprep.subr.mxu0 0.0
        %2293 = vmatpush1.xpose.msra.mxu0 0.0
        %2294 = vmatprep.subr.mxu0 0.0
        %2295 = vmatpush1.xpose.msra.mxu0 0.0
        %2296 = vmatprep.subr.mxu0 0.0
        %2297 = vmatpush1.xpose.msra.mxu0 0.0
        %2298 = vmatprep.subr.mxu0 0.0
        %2299 = vmatpush1.xpose.msra.mxu0 0.0
        %2300 = vmatprep.subr.mxu0 0.0
        %2301 = vmatpush1.xpose.msra.mxu0 0.0
        %2302 = vmatprep.subr.mxu0 0.0
        %2303 = vmatpush1.xpose.msra.mxu0 0.0
        %2304 = vmatprep.subr.mxu0 0.0
        %2305 = vmatpush1.xpose.msra.mxu0 0.0
        %2306 = vmatprep.subr.mxu0 0.0
        %2307 = vmatpush1.xpose.msra.mxu0 0.0
        %2308 = vmatprep.subr.mxu0 0.0
        %2309 = vmatpush1.xpose.msra.mxu0 0.0
        %2310 = vmatprep.subr.mxu0 0.0
        %2311 = vmatpush1.xpose.msra.mxu0 0.0
        %2312 = vmatprep.subr.mxu0 0.0
        %2313 = vmatpush1.xpose.msra.mxu0 0.0
        %2314 = vmatprep.subr.mxu0 0.0
        %2315 = vmatpush1.xpose.msra.mxu0 0.0
        %2316 = vmatprep.subr.mxu0 0.0
        %2317 = vmatpush1.xpose.msra.mxu0 0.0
        %2318 = vmatprep.subr.mxu0 0.0
        %2319 = vmatpush1.xpose.msra.mxu0 0.0
        %2320 = vmatprep.subr.mxu0 0.0
        %2321 = vmatpush1.xpose.msra.mxu0 0.0
        %2322 = vmatprep.subr.mxu0 0.0
        %2323 = vmatpush1.xpose.msra.mxu0 0.0
        %2324 = vmatprep.subr.mxu0 0.0
        %2325 = vmatpush1.xpose.msra.mxu0 0.0
        %2326 = vmatprep.subr.mxu0 0.0
        %2327 = vmatpush1.xpose.msra.mxu0 0.0
        %2328 = vmatprep.subr.mxu0 0.0
        %2329 = vmatpush1.xpose.msra.mxu0 0.0
        %2330 = vmatprep.subr.mxu0 0.0
        %2331 = vmatpush1.xpose.msra.mxu0 0.0
        %2332 = vmatprep.subr.mxu0 0.0
        %2333 = vmatpush1.xpose.msra.mxu0 0.0
        %2334 = vmatprep.subr.mxu0 0.0
        %2335 = vmatpush1.xpose.msra.mxu0 0.0
        %2336 = vmatprep.subr.mxu0 0.0
        %2337 = vmatpush1.xpose.msra.mxu0 0.0
        %2338 = vmatprep.subr.mxu0 0.0
        %2339 = vmatpush1.xpose.msra.mxu0 0.0
        %2340 = vmatprep.subr.mxu0 0.0
        %2341 = vmatpush1.xpose.msra.mxu0 0.0
        %2342 = vmatprep.subr.mxu0 0.0
        %2343 = vmatpush1.xpose.msra.mxu0 0.0
        %2344 = vmatprep.subr.mxu0 0.0
        %2345 = vmatpush1.xpose.msra.mxu0 0.0
        %2346 = vmatprep.subr.mxu0 0.0
        %2347 = vmatpush1.xpose.msra.mxu0 0.0
        %2348 = vmatprep.mubr.f32.mxu0 0.0
        %2349 = vmatmul.mubr.f32.gmra.mrb[0].mxu0 %v2276
        %v2350 = vpop.f32.mrb[0].mxu0
        %v2351 = vadd.f32 0.0, %v2350
        %v2352 = vpop.f32.mrb[0].mxu0
        %2353 = vdwg.mxu0
        %v2354 = vmul.f32 %v2351, 0.35355338
        %v2355 = vadd.f32 %v2354, %v1012
        %v2356 = vsel %vm1358, %v2355, -inf
        %2357 = vmax.xlane.f32.xlu0 %v2356
        %v2358 = vpop.xlane.xlu0 %2357
        %v2359 = vsub.f32 %v2355, %v2358
        %v2360 = vmul.f32 %v2359, 1.442695
        %v2361 = vpow.pop %v2360
        %v2362 = vsel %vm1358, %v2361, 0.0
        %2363 = vadd.xlane.f32.xlu0 %v2362
        %v2364 = vpop.xlane.xlu0 %2363
        %v2365 = vrcp.pop %v2364
        %v2366 = vmul.f32 %v2361, %v2365
        %v2368 = vsel %vm1358, %v2366, 0
        %2370 = vmatprep.subr.mxu0 0.0
        %2371 = vmatpush1.msra.mxu0 %v2267
        %2372 = vmatprep.subr.mxu0 0.0
        %2373 = vmatpush1.msra.mxu0 %v2272
        %2374 = vmatprep.subr.mxu0 0.0
        %2375 = vmatpush1.msra.mxu0 0.0
        %2376 = vmatprep.subr.mxu0 0.0
        %2377 = vmatpush1.msra.mxu0 0.0
        %2378 = vmatprep.subr.mxu0 0.0
        %2379 = vmatpush1.msra.mxu0 0.0
        %2380 = vmatprep.subr.mxu0 0.0
        %2381 = vmatpush1.msra.mxu0 0.0
        %2382 = vmatprep.subr.mxu0 0.0
        %2383 = vmatpush1.msra.mxu0 0.0
        %2384 = vmatprep.subr.mxu0 0.0
        %2385 = vmatpush1.msra.mxu0 0.0
        %2386 = vmatprep.subr.mxu0 0.0
        %2387 = vmatpush1.msra.mxu0 0.0
        %2388 = vmatprep.subr.mxu0 0.0
        %2389 = vmatpush1.msra.mxu0 0.0
        %2390 = vmatprep.subr.mxu0 0.0
        %2391 = vmatpush1.msra.mxu0 0.0
        %2392 = vmatprep.subr.mxu0 0.0
        %2393 = vmatpush1.msra.mxu0 0.0
        %2394 = vmatprep.subr.mxu0 0.0
        %2395 = vmatpush1.msra.mxu0 0.0
        %2396 = vmatprep.subr.mxu0 0.0
        %2397 = vmatpush1.msra.mxu0 0.0
        %2398 = vmatprep.subr.mxu0 0.0
        %2399 = vmatpush1.msra.mxu0 0.0
        %2400 = vmatprep.subr.mxu0 0.0
        %2401 = vmatpush1.msra.mxu0 0.0
        %2402 = vmatprep.subr.mxu0 0.0
        %2403 = vmatpush1.msra.mxu0 0.0
        %2404 = vmatprep.subr.mxu0 0.0
        %2405 = vmatpush1.msra.mxu0 0.0
        %2406 = vmatprep.subr.mxu0 0.0
        %2407 = vmatpush1.msra.mxu0 0.0
        %2408 = vmatprep.subr.mxu0 0.0
        %2409 = vmatpush1.msra.mxu0 0.0
        %2410 = vmatprep.subr.mxu0 0.0
        %2411 = vmatpush1.msra.mxu0 0.0
        %2412 = vmatprep.subr.mxu0 0.0
        %2413 = vmatpush1.msra.mxu0 0.0
        %2414 = vmatprep.subr.mxu0 0.0
        %2415 = vmatpush1.msra.mxu0 0.0
        %2416 = vmatprep.subr.mxu0 0.0
        %2417 = vmatpush1.msra.mxu0 0.0
        %2418 = vmatprep.subr.mxu0 0.0
        %2419 = vmatpush1.msra.mxu0 0.0
        %2420 = vmatprep.subr.mxu0 0.0
        %2421 = vmatpush1.msra.mxu0 0.0
        %2422 = vmatprep.subr.mxu0 0.0
        %2423 = vmatpush1.msra.mxu0 0.0
        %2424 = vmatprep.subr.mxu0 0.0
        %2425 = vmatpush1.msra.mxu0 0.0
        %2426 = vmatprep.subr.mxu0 0.0
        %2427 = vmatpush1.msra.mxu0 0.0
        %2428 = vmatprep.subr.mxu0 0.0
        %2429 = vmatpush1.msra.mxu0 0.0
        %2430 = vmatprep.subr.mxu0 0.0
        %2431 = vmatpush1.msra.mxu0 0.0
        %2432 = vmatprep.subr.mxu0 0.0
        %2433 = vmatpush1.msra.mxu0 0.0
        %2434 = vmatprep.mubr.f32.mxu0 0.0
        %2435 = vmatmul.mubr.f32.gmra.mrb[0].mxu0 %v2368
        %v2436 = vpop.f32.mrb[0].mxu0
        %v2437 = vadd.f32 0.0, %v2436
        %v2438 = vpop.f32.mrb[0].mxu0
        %2439 = vdwg.mxu0
        %s2440 = scalar_lea.vmem [#allocation17], 16
        %v2441 = vld [vmem:[%s2440] sm:$0xff]
        %v2443 = vsel %vm1276, %v2437, 0
        %2445 = vmatprep.subr.mxu0 0.0
        %2446 = vmatpush1.msra.mxu0 %v2441
        %2447 = vmatprep.subr.mxu0 0.0
        %2448 = vmatpush1.msra.mxu0 0.0
        %2449 = vmatprep.subr.mxu0 0.0
        %2450 = vmatpush1.msra.mxu0 0.0
        %2451 = vmatprep.subr.mxu0 0.0
        %2452 = vmatpush1.msra.mxu0 0.0
        %2453 = vmatprep.subr.mxu0 0.0
        %2454 = vmatpush1.msra.mxu0 0.0
        %2455 = vmatprep.subr.mxu0 0.0
        %2456 = vmatpush1.msra.mxu0 0.0
        %2457 = vmatprep.subr.mxu0 0.0
        %2458 = vmatpush1.msra.mxu0 0.0
        %2459 = vmatprep.subr.mxu0 0.0
        %2460 = vmatpush1.msra.mxu0 0.0
        %2461 = vmatprep.subr.mxu0 0.0
        %2462 = vmatpush1.msra.mxu0 0.0
        %2463 = vmatprep.subr.mxu0 0.0
        %2464 = vmatpush1.msra.mxu0 0.0
        %2465 = vmatprep.subr.mxu0 0.0
        %2466 = vmatpush1.msra.mxu0 0.0
        %2467 = vmatprep.subr.mxu0 0.0
        %2468 = vmatpush1.msra.mxu0 0.0
        %2469 = vmatprep.subr.mxu0 0.0
        %2470 = vmatpush1.msra.mxu0 0.0
        %2471 = vmatprep.subr.mxu0 0.0
        %2472 = vmatpush1.msra.mxu0 0.0
        %2473 = vmatprep.subr.mxu0 0.0
        %2474 = vmatpush1.msra.mxu0 0.0
        %2475 = vmatprep.subr.mxu0 0.0
        %2476 = vmatpush1.msra.mxu0 0.0
        %2477 = vmatprep.subr.mxu0 0.0
        %2478 = vmatpush1.msra.mxu0 0.0
        %2479 = vmatprep.subr.mxu0 0.0
        %2480 = vmatpush1.msra.mxu0 0.0
        %2481 = vmatprep.subr.mxu0 0.0
        %2482 = vmatpush1.msra.mxu0 0.0
        %2483 = vmatprep.subr.mxu0 0.0
        %2484 = vmatpush1.msra.mxu0 0.0
        %2485 = vmatprep.subr.mxu0 0.0
        %2486 = vmatpush1.msra.mxu0 0.0
        %2487 = vmatprep.subr.mxu0 0.0
        %2488 = vmatpush1.msra.mxu0 0.0
        %2489 = vmatprep.subr.mxu0 0.0
        %2490 = vmatpush1.msra.mxu0 0.0
        %2491 = vmatprep.subr.mxu0 0.0
        %2492 = vmatpush1.msra.mxu0 0.0
        %2493 = vmatprep.subr.mxu0 0.0
        %2494 = vmatpush1.msra.mxu0 0.0
        %2495 = vmatprep.subr.mxu0 0.0
        %2496 = vmatpush1.msra.mxu0 0.0
        %2497 = vmatprep.subr.mxu0 0.0
        %2498 = vmatpush1.msra.mxu0 0.0
        %2499 = vmatprep.subr.mxu0 0.0
        %2500 = vmatpush1.msra.mxu0 0.0
        %2501 = vmatprep.subr.mxu0 0.0
        %2502 = vmatpush1.msra.mxu0 0.0
        %2503 = vmatprep.subr.mxu0 0.0
        %2504 = vmatpush1.msra.mxu0 0.0
        %2505 = vmatprep.subr.mxu0 0.0
        %2506 = vmatpush1.msra.mxu0 0.0
        %2507 = vmatprep.subr.mxu0 0.0
        %2508 = vmatpush1.msra.mxu0 0.0
        %2509 = vmatprep.mubr.f32.mxu0 0.0
        %2510 = vmatmul.mubr.f32.gmra.mrb[0].mxu0 %v2443
        %v2511 = vpop.f32.mrb[0].mxu0
        %v2512 = vadd.f32 0.0, %v2511
        %v2513 = vpop.f32.mrb[0].mxu0
        %2514 = vdwg.mxu0
        %v2515 = vadd.f32 %v2013, %v2512
        %s2516 = scalar_lea.vmem [#allocation8], 96
        %v2517 = vld [vmem:[%s2516] sm:$0xff]
        %v2518 = vld [vmem:[%s2516 + $0x8] sm:$0xff]
        %v2519 = vld [vmem:[%s2516 + $0x10] sm:$0xff]
        %v2520 = vld [vmem:[%s2516 + $0x18] sm:$0xff]
        %s2521 = scalar_lea.vmem [#allocation10], 3
        %v2522 = vld [vmem:[%s2521] sm:$0x1]
        %v2524 = vlaneseq
        %v2525 = vshrl.u32 %v2524, 7
        %v2526 = vsub.s32 0, %v2525
        %v2527 = vrot.slane %v2522, %v2526
        %2529 = vmatprep.subr.mxu0 0.0
        %2530 = vmatpush1.msra.mxu0 %v2517
        %2531 = vmatprep.subr.mxu0 0.0
        %2532 = vmatpush1.msra.mxu0 %v2518
        %2533 = vmatprep.subr.mxu0 0.0
        %2534 = vmatpush1.msra.mxu0 %v2519
        %2535 = vmatprep.subr.mxu0 0.0
        %2536 = vmatpush1.msra.mxu0 %v2520
        %2537 = vmatprep.subr.mxu0 0.0
        %2538 = vmatpush1.msra.mxu0 0.0
        %2539 = vmatprep.subr.mxu0 0.0
        %2540 = vmatpush1.msra.mxu0 0.0
        %2541 = vmatprep.subr.mxu0 0.0
        %2542 = vmatpush1.msra.mxu0 0.0
        %2543 = vmatprep.subr.mxu0 0.0
        %2544 = vmatpush1.msra.mxu0 0.0
        %2545 = vmatprep.subr.mxu0 0.0
        %2546 = vmatpush1.msra.mxu0 0.0
        %2547 = vmatprep.subr.mxu0 0.0
        %2548 = vmatpush1.msra.mxu0 0.0
        %2549 = vmatprep.subr.mxu0 0.0
        %2550 = vmatpush1.msra.mxu0 0.0
        %2551 = vmatprep.subr.mxu0 0.0
        %2552 = vmatpush1.msra.mxu0 0.0
        %2553 = vmatprep.subr.mxu0 0.0
        %2554 = vmatpush1.msra.mxu0 0.0
        %2555 = vmatprep.subr.mxu0 0.0
        %2556 = vmatpush1.msra.mxu0 0.0
        %2557 = vmatprep.subr.mxu0 0.0
        %2558 = vmatpush1.msra.mxu0 0.0
        %2559 = vmatprep.subr.mxu0 0.0
        %2560 = vmatpush1.msra.mxu0 0.0
        %2561 = vmatprep.subr.mxu0 0.0
        %2562 = vmatpush1.msra.mxu0 0.0
        %2563 = vmatprep.subr.mxu0 0.0
        %2564 = vmatpush1.msra.mxu0 0.0
        %2565 = vmatprep.subr.mxu0 0.0
        %2566 = vmatpush1.msra.mxu0 0.0
        %2567 = vmatprep.subr.mxu0 0.0
        %2568 = vmatpush1.msra.mxu0 0.0
        %2569 = vmatprep.subr.mxu0 0.0
        %2570 = vmatpush1.msra.mxu0 0.0
        %2571 = vmatprep.subr.mxu0 0.0
        %2572 = vmatpush1.msra.mxu0 0.0
        %2573 = vmatprep.subr.mxu0 0.0
        %2574 = vmatpush1.msra.mxu0 0.0
        %2575 = vmatprep.subr.mxu0 0.0
        %2576 = vmatpush1.msra.mxu0 0.0
        %2577 = vmatprep.subr.mxu0 0.0
        %2578 = vmatpush1.msra.mxu0 0.0
        %2579 = vmatprep.subr.mxu0 0.0
        %2580 = vmatpush1.msra.mxu0 0.0
        %2581 = vmatprep.subr.mxu0 0.0
        %2582 = vmatpush1.msra.mxu0 0.0
        %2583 = vmatprep.subr.mxu0 0.0
        %2584 = vmatpush1.msra.mxu0 0.0
        %2585 = vmatprep.subr.mxu0 0.0
        %2586 = vmatpush1.msra.mxu0 0.0
        %2587 = vmatprep.subr.mxu0 0.0
        %2588 = vmatpush1.msra.mxu0 0.0
        %2589 = vmatprep.subr.mxu0 0.0
        %2590 = vmatpush1.msra.mxu0 0.0
        %2591 = vmatprep.subr.mxu0 0.0
        %2592 = vmatpush1.msra.mxu0 0.0
        %2593 = vmatprep.mubr.f32.mxu0 0.0
        %2594 = vmatmul.mubr.f32.gmra.mrb[0].mxu0 %v1026
        %v2595 = vpop.f32.mrb[0].mxu0
        %v2596 = vadd.f32 %v2527, %v2595
        %v2597 = vpop.f32.mrb[0].mxu0
        %2598 = vdwg.mxu0
        %s2599 = scalar_lea.vmem [#allocation11], 96
        %v2600 = vld [vmem:[%s2599] sm:$0xff]
        %v2601 = vld [vmem:[%s2599 + $0x8] sm:$0xff]
        %v2602 = vld [vmem:[%s2599 + $0x10] sm:$0xff]
        %v2603 = vld [vmem:[%s2599 + $0x18] sm:$0xff]
        %s2604 = scalar_lea.vmem [#allocation13], 3
        %v2605 = vld [vmem:[%s2604] sm:$0x1]
        %v2607 = vlaneseq
        %v2608 = vshrl.u32 %v2607, 7
        %v2609 = vsub.s32 0, %v2608
        %v2610 = vrot.slane %v2605, %v2609
        %2612 = vmatprep.subr.mxu0 0.0
        %2613 = vmatpush1.msra.mxu0 %v2600
        %2614 = vmatprep.subr.mxu0 0.0
        %2615 = vmatpush1.msra.mxu0 %v2601
        %2616 = vmatprep.subr.mxu0 0.0
        %2617 = vmatpush1.msra.mxu0 %v2602
        %2618 = vmatprep.subr.mxu0 0.0
        %2619 = vmatpush1.msra.mxu0 %v2603
        %2620 = vmatprep.subr.mxu0 0.0
        %2621 = vmatpush1.msra.mxu0 0.0
        %2622 = vmatprep.subr.mxu0 0.0
        %2623 = vmatpush1.msra.mxu0 0.0
        %2624 = vmatprep.subr.mxu0 0.0
        %2625 = vmatpush1.msra.mxu0 0.0
        %2626 = vmatprep.subr.mxu0 0.0
        %2627 = vmatpush1.msra.mxu0 0.0
        %2628 = vmatprep.subr.mxu0 0.0
        %2629 = vmatpush1.msra.mxu0 0.0
        %2630 = vmatprep.subr.mxu0 0.0
        %2631 = vmatpush1.msra.mxu0 0.0
        %2632 = vmatprep.subr.mxu0 0.0
        %2633 = vmatpush1.msra.mxu0 0.0
        %2634 = vmatprep.subr.mxu0 0.0
        %2635 = vmatpush1.msra.mxu0 0.0
        %2636 = vmatprep.subr.mxu0 0.0
        %2637 = vmatpush1.msra.mxu0 0.0
        %2638 = vmatprep.subr.mxu0 0.0
        %2639 = vmatpush1.msra.mxu0 0.0
        %2640 = vmatprep.subr.mxu0 0.0
        %2641 = vmatpush1.msra.mxu0 0.0
        %2642 = vmatprep.subr.mxu0 0.0
        %2643 = vmatpush1.msra.mxu0 0.0
        %2644 = vmatprep.subr.mxu0 0.0
        %2645 = vmatpush1.msra.mxu0 0.0
        %2646 = vmatprep.subr.mxu0 0.0
        %2647 = vmatpush1.msra.mxu0 0.0
        %2648 = vmatprep.subr.mxu0 0.0
        %2649 = vmatpush1.msra.mxu0 0.0
        %2650 = vmatprep.subr.mxu0 0.0
        %2651 = vmatpush1.msra.mxu0 0.0
        %2652 = vmatprep.subr.mxu0 0.0
        %2653 = vmatpush1.msra.mxu0 0.0
        %2654 = vmatprep.subr.mxu0 0.0
        %2655 = vmatpush1.msra.mxu0 0.0
        %2656 = vmatprep.subr.mxu0 0.0
        %2657 = vmatpush1.msra.mxu0 0.0
        %2658 = vmatprep.subr.mxu0 0.0
        %2659 = vmatpush1.msra.mxu0 0.0
        %2660 = vmatprep.subr.mxu0 0.0
        %2661 = vmatpush1.msra.mxu0 0.0
        %2662 = vmatprep.subr.mxu0 0.0
        %2663 = vmatpush1.msra.mxu0 0.0
        %2664 = vmatprep.subr.mxu0 0.0
        %2665 = vmatpush1.msra.mxu0 0.0
        %2666 = vmatprep.subr.mxu0 0.0
        %2667 = vmatpush1.msra.mxu0 0.0
        %2668 = vmatprep.subr.mxu0 0.0
        %2669 = vmatpush1.msra.mxu0 0.0
        %2670 = vmatprep.subr.mxu0 0.0
        %2671 = vmatpush1.msra.mxu0 0.0
        %2672 = vmatprep.subr.mxu0 0.0
        %2673 = vmatpush1.msra.mxu0 0.0
        %2674 = vmatprep.subr.mxu0 0.0
        %2675 = vmatpush1.msra.mxu0 0.0
        %2676 = vmatprep.mubr.f32.mxu0 0.0
        %2677 = vmatmul.mubr.f32.gmra.mrb[0].mxu0 %v1110
        %v2678 = vpop.f32.mrb[0].mxu0
        %v2679 = vadd.f32 %v2610, %v2678
        %v2680 = vpop.f32.mrb[0].mxu0
        %2681 = vmatprep.mubr.f32.mxu0 0.0
        %2682 = vmatmul.mubr.f32.gmra.mrb[0].mxu0 %v1113
        %v2683 = vpop.f32.mrb[0].mxu0
        %v2684 = vadd.f32 %v2610, %v2683
        %v2685 = vpop.f32.mrb[0].mxu0
        %2686 = vdwg.mxu0
        %s2687 = scalar_lea.vmem [#allocation14], 96
        %v2688 = vld [vmem:[%s2687] sm:$0xff]
        %v2689 = vld [vmem:[%s2687 + $0x8] sm:$0xff]
        %v2690 = vld [vmem:[%s2687 + $0x10] sm:$0xff]
        %v2691 = vld [vmem:[%s2687 + $0x18] sm:$0xff]
        %s2692 = scalar_lea.vmem [#allocation16], 3
        %v2693 = vld [vmem:[%s2692] sm:$0x1]
        %v2695 = vlaneseq
        %v2696 = vshrl.u32 %v2695, 7
        %v2697 = vsub.s32 0, %v2696
        %v2698 = vrot.slane %v2693, %v2697
        %2700 = vmatprep.subr.mxu0 0.0
        %2701 = vmatpush1.msra.mxu0 %v2688
        %2702 = vmatprep.subr.mxu0 0.0
        %2703 = vmatpush1.msra.mxu0 %v2689
        %2704 = vmatprep.subr.mxu0 0.0
        %2705 = vmatpush1.msra.mxu0 %v2690
        %2706 = vmatprep.subr.mxu0 0.0
        %2707 = vmatpush1.msra.mxu0 %v2691
        %2708 = vmatprep.subr.mxu0 0.0
        %2709 = vmatpush1.msra.mxu0 0.0
        %2710 = vmatprep.subr.mxu0 0.0
        %2711 = vmatpush1.msra.mxu0 0.0
        %2712 = vmatprep.subr.mxu0 0.0
        %2713 = vmatpush1.msra.mxu0 0.0
        %2714 = vmatprep.subr.mxu0 0.0
        %2715 = vmatpush1.msra.mxu0 0.0
        %2716 = vmatprep.subr.mxu0 0.0
        %2717 = vmatpush1.msra.mxu0 0.0
        %2718 = vmatprep.subr.mxu0 0.0
        %2719 = vmatpush1.msra.mxu0 0.0
        %2720 = vmatprep.subr.mxu0 0.0
        %2721 = vmatpush1.msra.mxu0 0.0
        %2722 = vmatprep.subr.mxu0 0.0
        %2723 = vmatpush1.msra.mxu0 0.0
        %2724 = vmatprep.subr.mxu0 0.0
        %2725 = vmatpush1.msra.mxu0 0.0
        %2726 = vmatprep.subr.mxu0 0.0
        %2727 = vmatpush1.msra.mxu0 0.0
        %2728 = vmatprep.subr.mxu0 0.0
        %2729 = vmatpush1.msra.mxu0 0.0
        %2730 = vmatprep.subr.mxu0 0.0
        %2731 = vmatpush1.msra.mxu0 0.0
        %2732 = vmatprep.subr.mxu0 0.0
        %2733 = vmatpush1.msra.mxu0 0.0
        %2734 = vmatprep.subr.mxu0 0.0
        %2735 = vmatpush1.msra.mxu0 0.0
        %2736 = vmatprep.subr.mxu0 0.0
        %2737 = vmatpush1.msra.mxu0 0.0
        %2738 = vmatprep.subr.mxu0 0.0
        %2739 = vmatpush1.msra.mxu0 0.0
        %2740 = vmatprep.subr.mxu0 0.0
        %2741 = vmatpush1.msra.mxu0 0.0
        %2742 = vmatprep.subr.mxu0 0.0
        %2743 = vmatpush1.msra.mxu0 0.0
        %2744 = vmatprep.subr.mxu0 0.0
        %2745 = vmatpush1.msra.mxu0 0.0
        %2746 = vmatprep.subr.mxu0 0.0
        %2747 = vmatpush1.msra.mxu0 0.0
        %2748 = vmatprep.subr.mxu0 0.0
        %2749 = vmatpush1.msra.mxu0 0.0
        %2750 = vmatprep.subr.mxu0 0.0
        %2751 = vmatpush1.msra.mxu0 0.0
        %2752 = vmatprep.subr.mxu0 0.0
        %2753 = vmatpush1.msra.mxu0 0.0
        %2754 = vmatprep.subr.mxu0 0.0
        %2755 = vmatpush1.msra.mxu0 0.0
        %2756 = vmatprep.subr.mxu0 0.0
        %2757 = vmatpush1.msra.mxu0 0.0
        %2758 = vmatprep.subr.mxu0 0.0
        %2759 = vmatpush1.msra.mxu0 0.0
        %2760 = vmatprep.subr.mxu0 0.0
        %2761 = vmatpush1.msra.mxu0 0.0
        %2762 = vmatprep.subr.mxu0 0.0
        %2763 = vmatpush1.msra.mxu0 0.0
        %2764 = vmatprep.mubr.f32.mxu0 0.0
        %2765 = vmatmul.mubr.f32.gmra.mrb[0].mxu0 %v1110
        %v2766 = vpop.f32.mrb[0].mxu0
        %v2767 = vadd.f32 %v2698, %v2766
        %v2768 = vpop.f32.mrb[0].mxu0
        %2769 = vmatprep.mubr.f32.mxu0 0.0
        %2770 = vmatmul.mubr.f32.gmra.mrb[0].mxu0 %v1113
        %v2771 = vpop.f32.mrb[0].mxu0
        %v2772 = vadd.f32 %v2698, %v2771
        %v2773 = vpop.f32.mrb[0].mxu0
        %2774 = vdwg.mxu0
        %v2776 = vsel %vm1276, %v2596, 0
        %v2779 = vsel %vm1276, %v2679, 0
        %v2782 = vsel %vm1276, %v2684, 0
        %2784 = vmatprep.subr.mxu0 0.0
        %2785 = vmatpush1.xpose.msra.mxu0 %v2779
        %2786 = vmatprep.subr.mxu0 0.0
        %2787 = vmatpush1.xpose.msra.mxu0 %v2782
        %2788 = vmatprep.subr.mxu0 0.0
        %2789 = vmatpush1.xpose.msra.mxu0 0.0
        %2790 = vmatprep.subr.mxu0 0.0
        %2791 = vmatpush1.xpose.msra.mxu0 0.0
        %2792 = vmatprep.subr.mxu0 0.0
        %2793 = vmatpush1.xpose.msra.mxu0 0.0
        %2794 = vmatprep.subr.mxu0 0.0
        %2795 = vmatpush1.xpose.msra.mxu0 0.0
        %2796 = vmatprep.subr.mxu0 0.0
        %2797 = vmatpush1.xpose.msra.mxu0 0.0
        %2798 = vmatprep.subr.mxu0 0.0
        %2799 = vmatpush1.xpose.msra.mxu0 0.0
        %2800 = vmatprep.subr.mxu0 0.0
        %2801 = vmatpush1.xpose.msra.mxu0 0.0
        %2802 = vmatprep.subr.mxu0 0.0
        %2803 = vmatpush1.xpose.msra.mxu0 0.0
        %2804 = vmatprep.subr.mxu0 0.0
        %2805 = vmatpush1.xpose.msra.mxu0 0.0
        %2806 = vmatprep.subr.mxu0 0.0
        %2807 = vmatpush1.xpose.msra.mxu0 0.0
        %2808 = vmatprep.subr.mxu0 0.0
        %2809 = vmatpush1.xpose.msra.mxu0 0.0
        %2810 = vmatprep.subr.mxu0 0.0
        %2811 = vmatpush1.xpose.msra.mxu0 0.0
        %2812 = vmatprep.subr.mxu0 0.0
        %2813 = vmatpush1.xpose.msra.mxu0 0.0
        %2814 = vmatprep.subr.mxu0 0.0
        %2815 = vmatpush1.xpose.msra.mxu0 0.0
        %2816 = vmatprep.subr.mxu0 0.0
        %2817 = vmatpush1.xpose.msra.mxu0 0.0
        %2818 = vmatprep.subr.mxu0 0.0
        %2819 = vmatpush1.xpose.msra.mxu0 0.0
        %2820 = vmatprep.subr.mxu0 0.0
        %2821 = vmatpush1.xpose.msra.mxu0 0.0
        %2822 = vmatprep.subr.mxu0 0.0
        %2823 = vmatpush1.xpose.msra.mxu0 0.0
        %2824 = vmatprep.subr.mxu0 0.0
        %2825 = vmatpush1.xpose.msra.mxu0 0.0
        %2826 = vmatprep.subr.mxu0 0.0
        %2827 = vmatpush1.xpose.msra.mxu0 0.0
        %2828 = vmatprep.subr.mxu0 0.0
        %2829 = vmatpush1.xpose.msra.mxu0 0.0
        %2830 = vmatprep.subr.mxu0 0.0
        %2831 = vmatpush1.xpose.msra.mxu0 0.0
        %2832 = vmatprep.subr.mxu0 0.0
        %2833 = vmatpush1.xpose.msra.mxu0 0.0
        %2834 = vmatprep.subr.mxu0 0.0
        %2835 = vmatpush1.xpose.msra.mxu0 0.0
        %2836 = vmatprep.subr.mxu0 0.0
        %2837 = vmatpush1.xpose.msra.mxu0 0.0
        %2838 = vmatprep.subr.mxu0 0.0
        %2839 = vmatpush1.xpose.msra.mxu0 0.0
        %2840 = vmatprep.subr.mxu0 0.0
        %2841 = vmatpush1.xpose.msra.mxu0 0.0
        %2842 = vmatprep.subr.mxu0 0.0
        %2843 = vmatpush1.xpose.msra.mxu0 0.0
        %2844 = vmatprep.subr.mxu0 0.0
        %2845 = vmatpush1.xpose.msra.mxu0 0.0
        %2846 = vmatprep.subr.mxu0 0.0
        %2847 = vmatpush1.xpose.msra.mxu0 0.0
        %2848 = vmatprep.mubr.f32.mxu0 0.0
        %2849 = vmatmul.mubr.f32.gmra.mrb[0].mxu0 %v2776
        %v2850 = vpop.f32.mrb[0].mxu0
        %v2851 = vadd.f32 0.0, %v2850
        %v2852 = vpop.f32.mrb[0].mxu0
        %2853 = vdwg.mxu0
        %v2854 = vmul.f32 %v2851, 0.35355338
        %v2855 = vadd.f32 %v2854, %v1012
        %v2856 = vsel %vm1358, %v2855, -inf
        %2857 = vmax.xlane.f32.xlu0 %v2856
        %v2858 = vpop.xlane.xlu0 %2857
        %v2859 = vsub.f32 %v2855, %v2858
        %v2860 = vmul.f32 %v2859, 1.442695
        %v2861 = vpow.pop %v2860
        %v2862 = vsel %vm1358, %v2861, 0.0
        %2863 = vadd.xlane.f32.xlu0 %v2862
        %v2864 = vpop.xlane.xlu0 %2863
        %v2865 = vrcp.pop %v2864
        %v2866 = vmul.f32 %v2861, %v2865
        %v2868 = vsel %vm1358, %v2866, 0
        %2870 = vmatprep.subr.mxu0 0.0
        %2871 = vmatpush1.msra.mxu0 %v2767
        %2872 = vmatprep.subr.mxu0 0.0
        %2873 = vmatpush1.msra.mxu0 %v2772
        %2874 = vmatprep.subr.mxu0 0.0
        %2875 = vmatpush1.msra.mxu0 0.0
        %2876 = vmatprep.subr.mxu0 0.0
        %2877 = vmatpush1.msra.mxu0 0.0
        %2878 = vmatprep.subr.mxu0 0.0
        %2879 = vmatpush1.msra.mxu0 0.0
        %2880 = vmatprep.subr.mxu0 0.0
        %2881 = vmatpush1.msra.mxu0 0.0
        %2882 = vmatprep.subr.mxu0 0.0
        %2883 = vmatpush1.msra.mxu0 0.0
        %2884 = vmatprep.subr.mxu0 0.0
        %2885 = vmatpush1.msra.mxu0 0.0
        %2886 = vmatprep.subr.mxu0 0.0
        %2887 = vmatpush1.msra.mxu0 0.0
        %2888 = vmatprep.subr.mxu0 0.0
        %2889 = vmatpush1.msra.mxu0 0.0
        %2890 = vmatprep.subr.mxu0 0.0
        %2891 = vmatpush1.msra.mxu0 0.0
        %2892 = vmatprep.subr.mxu0 0.0
        %2893 = vmatpush1.msra.mxu0 0.0
        %2894 = vmatprep.subr.mxu0 0.0
        %2895 = vmatpush1.msra.mxu0 0.0
        %2896 = vmatprep.subr.mxu0 0.0
        %2897 = vmatpush1.msra.mxu0 0.0
        %2898 = vmatprep.subr.mxu0 0.0
        %2899 = vmatpush1.msra.mxu0 0.0
        %2900 = vmatprep.subr.mxu0 0.0
        %2901 = vmatpush1.msra.mxu0 0.0
        %2902 = vmatprep.subr.mxu0 0.0
        %2903 = vmatpush1.msra.mxu0 0.0
        %2904 = vmatprep.subr.mxu0 0.0
        %2905 = vmatpush1.msra.mxu0 0.0
        %2906 = vmatprep.subr.mxu0 0.0
        %2907 = vmatpush1.msra.mxu0 0.0
        %2908 = vmatprep.subr.mxu0 0.0
        %2909 = vmatpush1.msra.mxu0 0.0
        %2910 = vmatprep.subr.mxu0 0.0
        %2911 = vmatpush1.msra.mxu0 0.0
        %2912 = vmatprep.subr.mxu0 0.0
        %2913 = vmatpush1.msra.mxu0 0.0
        %2914 = vmatprep.subr.mxu0 0.0
        %2915 = vmatpush1.msra.mxu0 0.0
        %2916 = vmatprep.subr.mxu0 0.0
        %2917 = vmatpush1.msra.mxu0 0.0
        %2918 = vmatprep.subr.mxu0 0.0
        %2919 = vmatpush1.msra.mxu0 0.0
        %2920 = vmatprep.subr.mxu0 0.0
        %2921 = vmatpush1.msra.mxu0 0.0
        %2922 = vmatprep.subr.mxu0 0.0
        %2923 = vmatpush1.msra.mxu0 0.0
        %2924 = vmatprep.subr.mxu0 0.0
        %2925 = vmatpush1.msra.mxu0 0.0
        %2926 = vmatprep.subr.mxu0 0.0
        %2927 = vmatpush1.msra.mxu0 0.0
        %2928 = vmatprep.subr.mxu0 0.0
        %2929 = vmatpush1.msra.mxu0 0.0
        %2930 = vmatprep.subr.mxu0 0.0
        %2931 = vmatpush1.msra.mxu0 0.0
        %2932 = vmatprep.subr.mxu0 0.0
        %2933 = vmatpush1.msra.mxu0 0.0
        %2934 = vmatprep.mubr.f32.mxu0 0.0
        %2935 = vmatmul.mubr.f32.gmra.mrb[0].mxu0 %v2868
        %v2936 = vpop.f32.mrb[0].mxu0
        %v2937 = vadd.f32 0.0, %v2936
        %v2938 = vpop.f32.mrb[0].mxu0
        %2939 = vdwg.mxu0
        %s2940 = scalar_lea.vmem [#allocation17], 24
        %v2941 = vld [vmem:[%s2940] sm:$0xff]
        %v2943 = vsel %vm1276, %v2937, 0
        %2945 = vmatprep.subr.mxu0 0.0
        %2946 = vmatpush1.msra.mxu0 %v2941
        %2947 = vmatprep.subr.mxu0 0.0
        %2948 = vmatpush1.msra.mxu0 0.0
        %2949 = vmatprep.subr.mxu0 0.0
        %2950 = vmatpush1.msra.mxu0 0.0
        %2951 = vmatprep.subr.mxu0 0.0
        %2952 = vmatpush1.msra.mxu0 0.0
        %2953 = vmatprep.subr.mxu0 0.0
        %2954 = vmatpush1.msra.mxu0 0.0
        %2955 = vmatprep.subr.mxu0 0.0
        %2956 = vmatpush1.msra.mxu0 0.0
        %2957 = vmatprep.subr.mxu0 0.0
        %2958 = vmatpush1.msra.mxu0 0.0
        %2959 = vmatprep.subr.mxu0 0.0
        %2960 = vmatpush1.msra.mxu0 0.0
        %2961 = vmatprep.subr.mxu0 0.0
        %2962 = vmatpush1.msra.mxu0 0.0
        %2963 = vmatprep.subr.mxu0 0.0
        %2964 = vmatpush1.msra.mxu0 0.0
        %2965 = vmatprep.subr.mxu0 0.0
        %2966 = vmatpush1.msra.mxu0 0.0
        %2967 = vmatprep.subr.mxu0 0.0
        %2968 = vmatpush1.msra.mxu0 0.0
        %2969 = vmatprep.subr.mxu0 0.0
        %2970 = vmatpush1.msra.mxu0 0.0
        %2971 = vmatprep.subr.mxu0 0.0
        %2972 = vmatpush1.msra.mxu0 0.0
        %2973 = vmatprep.subr.mxu0 0.0
        %2974 = vmatpush1.msra.mxu0 0.0
        %2975 = vmatprep.subr.mxu0 0.0
        %2976 = vmatpush1.msra.mxu0 0.0
        %2977 = vmatprep.subr.mxu0 0.0
        %2978 = vmatpush1.msra.mxu0 0.0
        %2979 = vmatprep.subr.mxu0 0.0
        %2980 = vmatpush1.msra.mxu0 0.0
        %2981 = vmatprep.subr.mxu0 0.0
        %2982 = vmatpush1.msra.mxu0 0.0
        %2983 = vmatprep.subr.mxu0 0.0
        %2984 = vmatpush1.msra.mxu0 0.0
        %2985 = vmatprep.subr.mxu0 0.0
        %2986 = vmatpush1.msra.mxu0 0.0
        %2987 = vmatprep.subr.mxu0 0.0
        %2988 = vmatpush1.msra.mxu0 0.0
        %2989 = vmatprep.subr.mxu0 0.0
        %2990 = vmatpush1.msra.mxu0 0.0
        %2991 = vmatprep.subr.mxu0 0.0
        %2992 = vmatpush1.msra.mxu0 0.0
        %2993 = vmatprep.subr.mxu0 0.0
        %2994 = vmatpush1.msra.mxu0 0.0
        %2995 = vmatprep.subr.mxu0 0.0
        %2996 = vmatpush1.msra.mxu0 0.0
        %2997 = vmatprep.subr.mxu0 0.0
        %2998 = vmatpush1.msra.mxu0 0.0
        %2999 = vmatprep.subr.mxu0 0.0
        %3000 = vmatpush1.msra.mxu0 0.0
        %3001 = vmatprep.subr.mxu0 0.0
        %3002 = vmatpush1.msra.mxu0 0.0
        %3003 = vmatprep.subr.mxu0 0.0
        %3004 = vmatpush1.msra.mxu0 0.0
        %3005 = vmatprep.subr.mxu0 0.0
        %3006 = vmatpush1.msra.mxu0 0.0
        %3007 = vmatprep.subr.mxu0 0.0
        %3008 = vmatpush1.msra.mxu0 0.0
        %3009 = vmatprep.mubr.f32.mxu0 0.0
        %3010 = vmatmul.mubr.f32.gmra.mrb[0].mxu0 %v2943
        %v3011 = vpop.f32.mrb[0].mxu0
        %v3012 = vadd.f32 0.0, %v3011
        %v3013 = vpop.f32.mrb[0].mxu0
        %3014 = vdwg.mxu0
        %v3015 = vadd.f32 %v2515, %v3012
        %v3016 = vadd.f32 %v1009, %v3015
        %v3017 = vld [vmem:[#allocation19] sm:$0x1]
        %v3019 = vlaneseq
        %v3020 = vshrl.u32 %v3019, 7
        %v3021 = vsub.s32 0, %v3020
        %v3022 = vrot.slane %v3017, %v3021
        %v3024 = vadd.f32 %v3016, %v3022
        %v3025 = vsel %vm1024, %v3024, 0.0
        %3026 = vadd.xlane.f32.xlu0 %v3025
        %v3027 = vpop.xlane.xlu0 %3026
        %v3028 = vrcp.pop 32.0
        %v3029 = vmul.f32 %v3027, %v3028
        %v3030 = vsub.f32 %v3024, %v3029
        %v3031 = vmul.f32 %v3030, %v3030
        %v3032 = vsel %vm1024, %v3031, 0.0
        %3033 = vadd.xlane.f32.xlu0 %v3032
        %v3034 = vpop.xlane.xlu0 %3033
        %v3035 = vmul.f32 %v3034, 0.032258064
        %v3036 = vrsqrt.pop %v3035
        %v3037 = vmul.f32 %v3035, %v3036
        %vm3038 = vcmp.eq.f32.partialorder %v3035, inf
        %v3039 = vsel %vm3038, %v3035, %v3037
        %vm3040 = vcmp.eq.f32.partialorder %v3035, 0.0
        %v3041 = vand.u32 %v3035, 2147483648
        %v3042 = vsel %vm3040, %v3041, %v3039
        %v3043 = vadd.f32 %v3042, 1e-05
        %v3044 = vrcp.pop %v3043
        %v3045 = vld [vmem:[#allocation20] sm:$0x1]
        %v3046 = vmul.f32 %v3030, %v3044
        %v3048 = vlaneseq
        %v3049 = vshrl.u32 %v3048, 7
        %v3050 = vsub.s32 0, %v3049
        %v3051 = vrot.slane %v3045, %v3050
        %v3053 = vmul.f32 %v3051, %v3046
        %v3054 = vld [vmem:[#allocation22] sm:$0x1]
        %v3056 = vlaneseq
        %v3057 = vshrl.u32 %v3056, 7
        %v3058 = vsub.s32 0, %v3057
        %v3059 = vrot.slane %v3054, %v3058
        %v3061 = vadd.f32 %v3053, %v3059
        %v3062 = vld [vmem:[#allocation23] sm:$0xff]
        %v3063 = vld [vmem:[#allocation23 + $0x8] sm:$0xff]
        %v3064 = vld [vmem:[#allocation23 + $0x10] sm:$0xff]
        %v3065 = vld [vmem:[#allocation23 + $0x18] sm:$0xff]
        %v3066 = vld [vmem:[#allocation25] sm:$0x1]
        %v3068 = vlaneseq
        %v3069 = vshrl.u32 %v3068, 7
        %v3070 = vsub.s32 0, %v3069
        %v3071 = vrot.slane %v3066, %v3070
        %v3074 = vsel %vm1024, %v3061, 0
        %3076 = vmatprep.subr.mxu0 0.0
        %3077 = vmatpush1.msra.mxu0 %v3062
        %3078 = vmatprep.subr.mxu0 0.0
        %3079 = vmatpush1.msra.mxu0 %v3063
        %3080 = vmatprep.subr.mxu0 0.0
        %3081 = vmatpush1.msra.mxu0 %v3064
        %3082 = vmatprep.subr.mxu0 0.0
        %3083 = vmatpush1.msra.mxu0 %v3065
        %3084 = vmatprep.subr.mxu0 0.0
        %3085 = vmatpush1.msra.mxu0 0.0
        %3086 = vmatprep.subr.mxu0 0.0
        %3087 = vmatpush1.msra.mxu0 0.0
        %3088 = vmatprep.subr.mxu0 0.0
        %3089 = vmatpush1.msra.mxu0 0.0
        %3090 = vmatprep.subr.mxu0 0.0
        %3091 = vmatpush1.msra.mxu0 0.0
        %3092 = vmatprep.subr.mxu0 0.0
        %3093 = vmatpush1.msra.mxu0 0.0
        %3094 = vmatprep.subr.mxu0 0.0
        %3095 = vmatpush1.msra.mxu0 0.0
        %3096 = vmatprep.subr.mxu0 0.0
        %3097 = vmatpush1.msra.mxu0 0.0
        %3098 = vmatprep.subr.mxu0 0.0
        %3099 = vmatpush1.msra.mxu0 0.0
        %3100 = vmatprep.subr.mxu0 0.0
        %3101 = vmatpush1.msra.mxu0 0.0
        %3102 = vmatprep.subr.mxu0 0.0
        %3103 = vmatpush1.msra.mxu0 0.0
        %3104 = vmatprep.subr.mxu0 0.0
        %3105 = vmatpush1.msra.mxu0 0.0
        %3106 = vmatprep.subr.mxu0 0.0
        %3107 = vmatpush1.msra.mxu0 0.0
        %3108 = vmatprep.subr.mxu0 0.0
        %3109 = vmatpush1.msra.mxu0 0.0
        %3110 = vmatprep.subr.mxu0 0.0
        %3111 = vmatpush1.msra.mxu0 0.0
        %3112 = vmatprep.subr.mxu0 0.0
        %3113 = vmatpush1.msra.mxu0 0.0
        %3114 = vmatprep.subr.mxu0 0.0
        %3115 = vmatpush1.msra.mxu0 0.0
        %3116 = vmatprep.subr.mxu0 0.0
        %3117 = vmatpush1.msra.mxu0 0.0
        %3118 = vmatprep.subr.mxu0 0.0
        %3119 = vmatpush1.msra.mxu0 0.0
        %3120 = vmatprep.subr.mxu0 0.0
        %3121 = vmatpush1.msra.mxu0 0.0
        %3122 = vmatprep.subr.mxu0 0.0
        %3123 = vmatpush1.msra.mxu0 0.0
        %3124 = vmatprep.subr.mxu0 0.0
        %3125 = vmatpush1.msra.mxu0 0.0
        %3126 = vmatprep.subr.mxu0 0.0
        %3127 = vmatpush1.msra.mxu0 0.0
        %3128 = vmatprep.subr.mxu0 0.0
        %3129 = vmatpush1.msra.mxu0 0.0
        %3130 = vmatprep.subr.mxu0 0.0
        %3131 = vmatpush1.msra.mxu0 0.0
        %3132 = vmatprep.subr.mxu0 0.0
        %3133 = vmatpush1.msra.mxu0 0.0
        %3134 = vmatprep.subr.mxu0 0.0
        %3135 = vmatpush1.msra.mxu0 0.0
        %3136 = vmatprep.subr.mxu0 0.0
        %3137 = vmatpush1.msra.mxu0 0.0
        %3138 = vmatprep.subr.mxu0 0.0
        %3139 = vmatpush1.msra.mxu0 0.0
        %3140 = vmatprep.mubr.f32.mxu0 0.0
        %3141 = vmatmul.mubr.f32.gmra.mrb[0].mxu0 %v3074
        %v3142 = vpop.f32.mrb[0].mxu0
        %v3143 = vadd.f32 %v3071, %v3142
        %v3144 = vpop.f32.mrb[0].mxu0
        %3145 = vdwg.mxu0
        %v3146 = vmax.f32 %v3143, 0.0
        %v3147 = vld [vmem:[#allocation26] sm:$0xff]
        %v3148 = vld [vmem:[#allocation26 + $0x8] sm:$0xff]
        %v3149 = vld [vmem:[#allocation26 + $0x10] sm:$0xff]
        %v3150 = vld [vmem:[#allocation26 + $0x18] sm:$0xff]
        %s3151 = scalar_lea.vmem [#allocation23], 32
        %v3152 = vld [vmem:[%s3151] sm:$0xff]
        %v3153 = vld [vmem:[%s3151 + $0x8] sm:$0xff]
        %v3154 = vld [vmem:[%s3151 + $0x10] sm:$0xff]
        %v3155 = vld [vmem:[%s3151 + $0x18] sm:$0xff]
        %s3156 = scalar_lea.vmem [#allocation25], 1
        %v3157 = vld [vmem:[%s3156] sm:$0x1]
        %v3159 = vlaneseq
        %v3160 = vshrl.u32 %v3159, 7
        %v3161 = vsub.s32 0, %v3160
        %v3162 = vrot.slane %v3157, %v3161
        %3164 = vmatprep.subr.mxu0 0.0
        %3165 = vmatpush1.msra.mxu0 %v3152
        %3166 = vmatprep.subr.mxu0 0.0
        %3167 = vmatpush1.msra.mxu0 %v3153
        %3168 = vmatprep.subr.mxu0 0.0
        %3169 = vmatpush1.msra.mxu0 %v3154
        %3170 = vmatprep.subr.mxu0 0.0
        %3171 = vmatpush1.msra.mxu0 %v3155
        %3172 = vmatprep.subr.mxu0 0.0
        %3173 = vmatpush1.msra.mxu0 0.0
        %3174 = vmatprep.subr.mxu0 0.0
        %3175 = vmatpush1.msra.mxu0 0.0
        %3176 = vmatprep.subr.mxu0 0.0
        %3177 = vmatpush1.msra.mxu0 0.0
        %3178 = vmatprep.subr.mxu0 0.0
        %3179 = vmatpush1.msra.mxu0 0.0
        %3180 = vmatprep.subr.mxu0 0.0
        %3181 = vmatpush1.msra.mxu0 0.0
        %3182 = vmatprep.subr.mxu0 0.0
        %3183 = vmatpush1.msra.mxu0 0.0
        %3184 = vmatprep.subr.mxu0 0.0
        %3185 = vmatpush1.msra.mxu0 0.0
        %3186 = vmatprep.subr.mxu0 0.0
        %3187 = vmatpush1.msra.mxu0 0.0
        %3188 = vmatprep.subr.mxu0 0.0
        %3189 = vmatpush1.msra.mxu0 0.0
        %3190 = vmatprep.subr.mxu0 0.0
        %3191 = vmatpush1.msra.mxu0 0.0
        %3192 = vmatprep.subr.mxu0 0.0
        %3193 = vmatpush1.msra.mxu0 0.0
        %3194 = vmatprep.subr.mxu0 0.0
        %3195 = vmatpush1.msra.mxu0 0.0
        %3196 = vmatprep.subr.mxu0 0.0
        %3197 = vmatpush1.msra.mxu0 0.0
        %3198 = vmatprep.subr.mxu0 0.0
        %3199 = vmatpush1.msra.mxu0 0.0
        %3200 = vmatprep.subr.mxu0 0.0
        %3201 = vmatpush1.msra.mxu0 0.0
        %3202 = vmatprep.subr.mxu0 0.0
        %3203 = vmatpush1.msra.mxu0 0.0
        %3204 = vmatprep.subr.mxu0 0.0
        %3205 = vmatpush1.msra.mxu0 0.0
        %3206 = vmatprep.subr.mxu0 0.0
        %3207 = vmatpush1.msra.mxu0 0.0
        %3208 = vmatprep.subr.mxu0 0.0
        %3209 = vmatpush1.msra.mxu0 0.0
        %3210 = vmatprep.subr.mxu0 0.0
        %3211 = vmatpush1.msra.mxu0 0.0
        %3212 = vmatprep.subr.mxu0 0.0
        %3213 = vmatpush1.msra.mxu0 0.0
        %3214 = vmatprep.subr.mxu0 0.0
        %3215 = vmatpush1.msra.mxu0 0.0
        %3216 = vmatprep.subr.mxu0 0.0
        %3217 = vmatpush1.msra.mxu0 0.0
        %3218 = vmatprep.subr.mxu0 0.0
        %3219 = vmatpush1.msra.mxu0 0.0
        %3220 = vmatprep.subr.mxu0 0.0
        %3221 = vmatpush1.msra.mxu0 0.0
        %3222 = vmatprep.subr.mxu0 0.0
        %3223 = vmatpush1.msra.mxu0 0.0
        %3224 = vmatprep.subr.mxu0 0.0
        %3225 = vmatpush1.msra.mxu0 0.0
        %3226 = vmatprep.subr.mxu0 0.0
        %3227 = vmatpush1.msra.mxu0 0.0
        %3228 = vmatprep.mubr.f32.mxu0 0.0
        %3229 = vmatmul.mubr.f32.gmra.mrb[0].mxu0 %v3074
        %v3230 = vpop.f32.mrb[0].mxu0
        %v3231 = vadd.f32 %v3162, %v3230
        %v3232 = vpop.f32.mrb[0].mxu0
        %3233 = vdwg.mxu0
        %v3234 = vmax.f32 %v3231, 0.0
        %s3235 = scalar_lea.vmem [#allocation26], 32
        %v3236 = vld [vmem:[%s3235] sm:$0xff]
        %v3237 = vld [vmem:[%s3235 + $0x8] sm:$0xff]
        %v3238 = vld [vmem:[%s3235 + $0x10] sm:$0xff]
        %v3239 = vld [vmem:[%s3235 + $0x18] sm:$0xff]
        %v3241 = vsel %vm1024, %v3234, 0
        %3243 = vmatprep.subr.mxu0 0.0
        %3244 = vmatpush1.msra.mxu0 %v3236
        %3245 = vmatprep.subr.mxu0 0.0
        %3246 = vmatpush1.msra.mxu0 %v3237
        %3247 = vmatprep.subr.mxu0 0.0
        %3248 = vmatpush1.msra.mxu0 %v3238
        %3249 = vmatprep.subr.mxu0 0.0
        %3250 = vmatpush1.msra.mxu0 %v3239
        %3251 = vmatprep.subr.mxu0 0.0
        %3252 = vmatpush1.msra.mxu0 0.0
        %3253 = vmatprep.subr.mxu0 0.0
        %3254 = vmatpush1.msra.mxu0 0.0
        %3255 = vmatprep.subr.mxu0 0.0
        %3256 = vmatpush1.msra.mxu0 0.0
        %3257 = vmatprep.subr.mxu0 0.0
        %3258 = vmatpush1.msra.mxu0 0.0
        %3259 = vmatprep.subr.mxu0 0.0
        %3260 = vmatpush1.msra.mxu0 0.0
        %3261 = vmatprep.subr.mxu0 0.0
        %3262 = vmatpush1.msra.mxu0 0.0
        %3263 = vmatprep.subr.mxu0 0.0
        %3264 = vmatpush1.msra.mxu0 0.0
        %3265 = vmatprep.subr.mxu0 0.0
        %3266 = vmatpush1.msra.mxu0 0.0
        %3267 = vmatprep.subr.mxu0 0.0
        %3268 = vmatpush1.msra.mxu0 0.0
        %3269 = vmatprep.subr.mxu0 0.0
        %3270 = vmatpush1.msra.mxu0 0.0
        %3271 = vmatprep.subr.mxu0 0.0
        %3272 = vmatpush1.msra.mxu0 0.0
        %3273 = vmatprep.subr.mxu0 0.0
        %3274 = vmatpush1.msra.mxu0 0.0
        %3275 = vmatprep.subr.mxu0 0.0
        %3276 = vmatpush1.msra.mxu0 0.0
        %3277 = vmatprep.subr.mxu0 0.0
        %3278 = vmatpush1.msra.mxu0 0.0
        %3279 = vmatprep.subr.mxu0 0.0
        %3280 = vmatpush1.msra.mxu0 0.0
        %3281 = vmatprep.subr.mxu0 0.0
        %3282 = vmatpush1.msra.mxu0 0.0
        %3283 = vmatprep.subr.mxu0 0.0
        %3284 = vmatpush1.msra.mxu0 0.0
        %3285 = vmatprep.subr.mxu0 0.0
        %3286 = vmatpush1.msra.mxu0 0.0
        %3287 = vmatprep.subr.mxu0 0.0
        %3288 = vmatpush1.msra.mxu0 0.0
        %3289 = vmatprep.subr.mxu0 0.0
        %3290 = vmatpush1.msra.mxu0 0.0
        %3291 = vmatprep.subr.mxu0 0.0
        %3292 = vmatpush1.msra.mxu0 0.0
        %3293 = vmatprep.subr.mxu0 0.0
        %3294 = vmatpush1.msra.mxu0 0.0
        %3295 = vmatprep.subr.mxu0 0.0
        %3296 = vmatpush1.msra.mxu0 0.0
        %3297 = vmatprep.subr.mxu0 0.0
        %3298 = vmatpush1.msra.mxu0 0.0
        %3299 = vmatprep.subr.mxu0 0.0
        %3300 = vmatpush1.msra.mxu0 0.0
        %3301 = vmatprep.subr.mxu0 0.0
        %3302 = vmatpush1.msra.mxu0 0.0
        %3303 = vmatprep.subr.mxu0 0.0
        %3304 = vmatpush1.msra.mxu0 0.0
        %3305 = vmatprep.subr.mxu0 0.0
        %3306 = vmatpush1.msra.mxu0 0.0
        %3307 = vmatprep.mubr.f32.mxu0 0.0
        %3308 = vmatmul.mubr.f32.gmra.mrb[0].mxu0 %v3241
        %v3309 = vpop.f32.mrb[0].mxu0
        %v3310 = vadd.f32 0.0, %v3309
        %v3311 = vpop.f32.mrb[0].mxu0
        %3312 = vdwg.mxu0
        %v3314 = vsel %vm1024, %v3146, 0
        %3316 = vmatprep.subr.mxu0 0.0
        %3317 = vmatpush1.msra.mxu0 %v3147
        %3318 = vmatprep.subr.mxu0 0.0
        %3319 = vmatpush1.msra.mxu0 %v3148
        %3320 = vmatprep.subr.mxu0 0.0
        %3321 = vmatpush1.msra.mxu0 %v3149
        %3322 = vmatprep.subr.mxu0 0.0
        %3323 = vmatpush1.msra.mxu0 %v3150
        %3324 = vmatprep.subr.mxu0 0.0
        %3325 = vmatpush1.msra.mxu0 0.0
        %3326 = vmatprep.subr.mxu0 0.0
        %3327 = vmatpush1.msra.mxu0 0.0
        %3328 = vmatprep.subr.mxu0 0.0
        %3329 = vmatpush1.msra.mxu0 0.0
        %3330 = vmatprep.subr.mxu0 0.0
        %3331 = vmatpush1.msra.mxu0 0.0
        %3332 = vmatprep.subr.mxu0 0.0
        %3333 = vmatpush1.msra.mxu0 0.0
        %3334 = vmatprep.subr.mxu0 0.0
        %3335 = vmatpush1.msra.mxu0 0.0
        %3336 = vmatprep.subr.mxu0 0.0
        %3337 = vmatpush1.msra.mxu0 0.0
        %3338 = vmatprep.subr.mxu0 0.0
        %3339 = vmatpush1.msra.mxu0 0.0
        %3340 = vmatprep.subr.mxu0 0.0
        %3341 = vmatpush1.msra.mxu0 0.0
        %3342 = vmatprep.subr.mxu0 0.0
        %3343 = vmatpush1.msra.mxu0 0.0
        %3344 = vmatprep.subr.mxu0 0.0
        %3345 = vmatpush1.msra.mxu0 0.0
        %3346 = vmatprep.subr.mxu0 0.0
        %3347 = vmatpush1.msra.mxu0 0.0
        %3348 = vmatprep.subr.mxu0 0.0
        %3349 = vmatpush1.msra.mxu0 0.0
        %3350 = vmatprep.subr.mxu0 0.0
        %3351 = vmatpush1.msra.mxu0 0.0
        %3352 = vmatprep.subr.mxu0 0.0
        %3353 = vmatpush1.msra.mxu0 0.0
        %3354 = vmatprep.subr.mxu0 0.0
        %3355 = vmatpush1.msra.mxu0 0.0
        %3356 = vmatprep.subr.mxu0 0.0
        %3357 = vmatpush1.msra.mxu0 0.0
        %3358 = vmatprep.subr.mxu0 0.0
        %3359 = vmatpush1.msra.mxu0 0.0
        %3360 = vmatprep.subr.mxu0 0.0
        %3361 = vmatpush1.msra.mxu0 0.0
        %3362 = vmatprep.subr.mxu0 0.0
        %3363 = vmatpush1.msra.mxu0 0.0
        %3364 = vmatprep.subr.mxu0 0.0
        %3365 = vmatpush1.msra.mxu0 0.0
        %3366 = vmatprep.subr.mxu0 0.0
        %3367 = vmatpush1.msra.mxu0 0.0
        %3368 = vmatprep.subr.mxu0 0.0
        %3369 = vmatpush1.msra.mxu0 0.0
        %3370 = vmatprep.subr.mxu0 0.0
        %3371 = vmatpush1.msra.mxu0 0.0
        %3372 = vmatprep.subr.mxu0 0.0
        %3373 = vmatpush1.msra.mxu0 0.0
        %3374 = vmatprep.subr.mxu0 0.0
        %3375 = vmatpush1.msra.mxu0 0.0
        %3376 = vmatprep.subr.mxu0 0.0
        %3377 = vmatpush1.msra.mxu0 0.0
        %3378 = vmatprep.subr.mxu0 0.0
        %3379 = vmatpush1.msra.mxu0 0.0
        %3380 = vmatprep.mubr.f32.mxu0 0.0
        %3381 = vmatmul.mubr.f32.gmra.mrb[0].mxu0 %v3314
        %v3382 = vpop.f32.mrb[0].mxu0
        %v3383 = vadd.f32 %v3310, %v3382
        %v3384 = vpop.f32.mrb[0].mxu0
        %3385 = vdwg.mxu0
        %v3386 = vadd.f32 %v3061, %v3383
        %v3387 = vld [vmem:[#allocation28] sm:$0x1]
        %v3389 = vlaneseq
        %v3390 = vshrl.u32 %v3389, 7
        %v3391 = vsub.s32 0, %v3390
        %v3392 = vrot.slane %v3387, %v3391
        %v3394 = vadd.f32 %v3386, %v3392
        %v3395 = vsel %vm1024, %v3394, 0.0
        %3396 = vadd.xlane.f32.xlu0 %v3395
        %v3397 = vpop.xlane.xlu0 %3396
        %v3398 = vmul.f32 %v3397, %v3028
        %v3399 = vsub.f32 %v3394, %v3398
        %v3400 = vmul.f32 %v3399, %v3399
        %v3401 = vsel %vm1024, %v3400, 0.0
        %3402 = vadd.xlane.f32.xlu0 %v3401
        %v3403 = vpop.xlane.xlu0 %3402
        %v3404 = vmul.f32 %v3403, 0.032258064
        %v3405 = vrsqrt.pop %v3404
        %v3406 = vmul.f32 %v3404, %v3405
        %vm3407 = vcmp.eq.f32.partialorder %v3404, inf
        %v3408 = vsel %vm3407, %v3404, %v3406
        %vm3409 = vcmp.eq.f32.partialorder %v3404, 0.0
        %v3410 = vand.u32 %v3404, 2147483648
        %v3411 = vsel %vm3409, %v3410, %v3408
        %v3412 = vadd.f32 %v3411, 1e-05
        %v3413 = vrcp.pop %v3412
        %v3414 = vld [vmem:[#allocation29] sm:$0x1]
        %v3415 = vmul.f32 %v3399, %v3413
        %v3417 = vlaneseq
        %v3418 = vshrl.u32 %v3417, 7
        %v3419 = vsub.s32 0, %v3418
        %v3420 = vrot.slane %v3414, %v3419
        %v3422 = vmul.f32 %v3420, %v3415
        %v3423 = vld [vmem:[#allocation31] sm:$0x1]
        %v3425 = vlaneseq
        %v3426 = vshrl.u32 %v3425, 7
        %v3427 = vsub.s32 0, %v3426
        %v3428 = vrot.slane %v3423, %v3427
        %v3430 = vadd.f32 %v3422, %v3428
        %3431 = vst.msk [vmem:[%s1008] sm:$0xff] %vm1024, %v3430
        %s3432 = sand.u32 %s530, 1
        %s3433 = scalar_lea.sflag [#allocation4], %s3432
        %s3434 = sand.u32 %s530, 1
        %s3435 = smul.addr %s3434, 8
        %s3436 = scalar_lea.vmem [#allocation35], %s3435
        // Predicated region
        $region189: #{tpu_custom_call.1} parent=103 // pred_check
          %p3437 = pneg %p540
        $region190: #{tpu_custom_call.1} parent=103 // pred_check_branch
          %3439 = sbr.rel (%p3437) target = $region192
        $region191: #{tpu_custom_call.1} parent=103 // pred_region
          %s3441 = ssub.s32 128, 128
          %3442 = vsyncadd %s3433, %s3441
          %s3443 = smul.addr %s54, 2
          %s3444 = sadd.s32 %s55, %s3443
          %s3445 = smul.addr %s3444, 128
          %s3446 = scalar_lea.hbm %s21, %s3445
          %s3448 = sshll.u32 %s3436, 4
          %s3449 = int_to_ptr.vmem [resolvable:$true] %s3448
          %3451 = dma.vmem_to_hbm [thread:$0]  %s3449, 128, %s3446, %s3433
        $region192: #{tpu_custom_call.1} parent=103 // pred_fallthru
          _
      $region104: #{tpu_custom_call.1} parent=5 // pred_fallthru
        _
      %p3452 = scmp.le.s32.totalorder 2, %s45
      // Predicated region
      $region193: #{tpu_custom_call.1} parent=5 // pred_check
        %p3453 = pneg %p3452
      $region194: #{tpu_custom_call.1} parent=5 // pred_check_branch
        %3455 = sbr.rel (%p3453) target = $region196
      $region195: #{tpu_custom_call.1} parent=5 // pred_region
        %s3456 = ssub.s32 %s45, 2
        // Predicated region
        $region197: #{tpu_custom_call.1} parent=195 // pred_check
          %p3457 = pneg %p546
        $region198: #{tpu_custom_call.1} parent=195 // pred_check_branch
          %3459 = sbr.rel (%p3457) target = $region200
        $region199: #{tpu_custom_call.1} parent=195 // pred_region
          %s3460 = sand.u32 %s531, 1
          %s3461 = scalar_lea.sflag [#allocation4], %s3460
          %s3462 = sand.u32 %s531, 1
          %s3463 = smul.addr %s3462, 8
          %s3464 = scalar_lea.vmem [#allocation35], %s3463
          %3465 = dma.done %s3461, 128
        $region200: #{tpu_custom_call.1} parent=195 // pred_fallthru
          _
      $region196: #{tpu_custom_call.1} parent=5 // pred_fallthru
        _
    $region6: #{tpu_custom_call.1} parent=1 // loop_footer
      %s49 = sadd.s32 1, %s45
    $region7: #{tpu_custom_call.1} parent=1 // loop_footer_branch
      %44 = sbr.rel target = $region3
    $region8: #{tpu_custom_call.1} parent=1 // loop_exit
      _
    %3466 = vsyncpa [#allocation3], 1
    %s3467 = scalar_lea.sflag [#allocation3], 1
    %3468 = vsyncpa %s3467, 1
    %3469 = vsyncpa [#allocation6], 1
    %s3470 = scalar_lea.sflag [#allocation6], 1
    %3471 = vsyncpa %s3470, 1
    %3472 = vsyncpa [#allocation9], 1
    %3473 = vsyncpa [#allocation12], 1
    %3474 = vsyncpa [#allocation15], 1
    %3475 = vsyncpa [#allocation18], 1
    %3476 = vsyncpa [#allocation21], 1
    %3477 = vsyncpa [#allocation24], 1
    %3478 = vsyncpa [#allocation27], 1
    %3479 = vsyncpa [#allocation30], 1
    %3480 = vsyncpa [#allocation33], 1
    %3481 = vsyncpa [#allocation4], 1
    %s3482 = scalar_lea.sflag [#allocation4], 1
    %3483 = vsyncpa %s3482, 1

// kernel: tpu_custom_call.1
$region0: #{tpu_custom_call.1}
  #allocation0 [shape = 'u32[]', space=smem, size = 0x4, offset = 0x4, fixed_abs, tag = 'smem constant byte address 0x4 - core index']
  #allocation1 [shape = 'u32[144,128]{1,0:T(1,128)}', space=vmem, size = 0x12000, scoped, tag = 'internal scratch']
  %s0 = inlined_call_operand.vmem [shape: f32[2,16,32], index: 0, kind: input, shape index: {}]
  %s1 = inlined_call_operand.vmem [shape: f32[2,16,32], index: 1, kind: input, shape index: {}]
  %s2 = inlined_call_operand.vmem [shape: f32[16,16], index: 2, kind: input, shape index: {}]
  %s3 = inlined_call_operand.vmem [shape: f32[4,32,8], index: 3, kind: input, shape index: {}]
  %s4 = inlined_call_operand.vmem [shape: f32[4,1,8], index: 4, kind: input, shape index: {}]
  %s5 = inlined_call_operand.vmem [shape: f32[4,32,8], index: 5, kind: input, shape index: {}]
  %s6 = inlined_call_operand.vmem [shape: f32[4,1,8], index: 6, kind: input, shape index: {}]
  %s7 = inlined_call_operand.vmem [shape: f32[4,32,8], index: 7, kind: input, shape index: {}]
  %s8 = inlined_call_operand.vmem [shape: f32[4,1,8], index: 8, kind: input, shape index: {}]
  %s9 = inlined_call_operand.vmem [shape: f32[4,8,32], index: 9, kind: input, shape index: {}]
  %s10 = inlined_call_operand.vmem [shape: f32[1,32], index: 10, kind: input, shape index: {}]
  %s11 = inlined_call_operand.vmem [shape: f32[1,32], index: 11, kind: input, shape index: {}]
  %s12 = inlined_call_operand.vmem [shape: f32[1,32], index: 12, kind: input, shape index: {}]
  %s13 = inlined_call_operand.vmem [shape: f32[2,32,32], index: 13, kind: input, shape index: {}]
  %s14 = inlined_call_operand.vmem [shape: f32[2,1,32], index: 14, kind: input, shape index: {}]
  %s15 = inlined_call_operand.vmem [shape: f32[2,32,32], index: 15, kind: input, shape index: {}]
  %s16 = inlined_call_operand.vmem [shape: f32[1,32], index: 16, kind: input, shape index: {}]
  %s17 = inlined_call_operand.vmem [shape: f32[1,32], index: 17, kind: input, shape index: {}]
  %s18 = inlined_call_operand.vmem [shape: f32[1,32], index: 18, kind: input, shape index: {}]
  %s19 = inlined_call_operand.vmem [shape: f32[1,32], index: 19, kind: input, shape index: {}]
  %s20 = inlined_call_operand.vmem [shape: f32[1,32], index: 20, kind: input, shape index: {}]
  %s21 = inlined_call_operand.hbm [shape: f32[2,16,32], index: 21, kind: output, shape index: {}]
  %s22 = sld [smem:[#allocation0]]
  $region117: #{tpu_custom_call.1} parent=0
    _
  %s24 = ssub.s32 1, %s22
  %s25 = scalar_select 0, %s24, %s22
  $region1: #{tpu_custom_call.1} parent=0
    #allocation2 [shape = 'u8[8192]{0}', space=vmem, size = 0x2000, scoped, tag = 'output window, operand 0']
    #allocation3 [shape = 's32[2]{0}', space=sflag, size = 0x8, scoped, tag = 'scoped memory for tpu_custom_call.1']
    %26 = vsyncpa [#allocation3], 0
    %s27 = scalar_lea.sflag [#allocation3], 1
    %28 = vsyncpa %s27, 0
    loop: start=0, step=1, limit=6
    $region2: #{tpu_custom_call.1} parent=1 // loop_pre_header
      _
    $region3: #{tpu_custom_call.1} parent=1 // loop_header
      %s30 = sphi 0, %s34
      %p31 = scmp.ge.s32.totalorder %s30, 6
      %s37 = sphi 0, %s49
      %s38 = sphi 0, %s45
      %s39 = sphi 0, %s37
      %s40 = sphi 0, %s38
      %s41 = sphi 0, %s39
      %s42 = sphi 0, %s40
      %s54 = sphi 0, %s56
      %s57 = sphi 0, %s54
      %s58 = sphi 0, %s57
      %s74 = sphi 0, %s58
      %s80 = sphi 0, %s82
      %s83 = sphi 0, %s80
      %s84 = sphi 0, %s83
      %s100 = sphi 0, %s84
      %s106 = sphi 0, %s108
      %s109 = sphi 0, %s106
      %s110 = sphi 0, %s109
      %s126 = sphi 0, %s110
      %s130 = sphi 0, %s130
      %s132 = sphi 0, %s130
      %s133 = sphi 0, %s132
      %s147 = sphi 0, %s133
      %s151 = sphi 0, %s151
      %s153 = sphi 0, %s151
      %s154 = sphi 0, %s153
      %s168 = sphi 0, %s154
      %s172 = sphi 0, %s172
      %s174 = sphi 0, %s172
      %s175 = sphi 0, %s174
      %s189 = sphi 0, %s175
      %s193 = sphi 0, %s193
      %s195 = sphi 0, %s193
      %s196 = sphi 0, %s195
      %s210 = sphi 0, %s196
      %s214 = sphi 0, %s214
      %s216 = sphi 0, %s214
      %s217 = sphi 0, %s216
      %s231 = sphi 0, %s217
      %s235 = sphi 0, %s235
      %s237 = sphi 0, %s235
      %s238 = sphi 0, %s237
      %s252 = sphi 0, %s238
      %s256 = sphi 0, %s256
      %s258 = sphi 0, %s256
      %s259 = sphi 0, %s258
      %s273 = sphi 0, %s259
      %s277 = sphi 0, %s277
      %s279 = sphi 0, %s277
      %s280 = sphi 0, %s279
      %s294 = sphi 0, %s280
      %s298 = sphi 0, %s298
      %s300 = sphi 0, %s298
      %s301 = sphi 0, %s300
      %s315 = sphi 0, %s301
      %s319 = sphi 0, %s319
      %s321 = sphi 0, %s319
      %s322 = sphi 0, %s321
      %s336 = sphi 0, %s322
      %s340 = sphi 0, %s340
      %s342 = sphi 0, %s340
      %s343 = sphi 0, %s342
      %s357 = sphi 0, %s343
      %s361 = sphi 0, %s361
      %s363 = sphi 0, %s361
      %s364 = sphi 0, %s363
      %s378 = sphi 0, %s364
      %s382 = sphi 0, %s382
      %s384 = sphi 0, %s382
      %s385 = sphi 0, %s384
      %s399 = sphi 0, %s385
      %s403 = sphi 0, %s403
      %s405 = sphi 0, %s403
      %s406 = sphi 0, %s405
      %s420 = sphi 0, %s406
      %s424 = sphi 0, %s424
      %s426 = sphi 0, %s424
      %s427 = sphi 0, %s426
      %s441 = sphi 0, %s427
      %s445 = sphi 0, %s445
      %s447 = sphi 0, %s445
      %s448 = sphi 0, %s447
      %s462 = sphi 0, %s448
      %s466 = sphi 0, %s466
      %s468 = sphi 0, %s466
      %s469 = sphi 0, %s468
      %s483 = sphi 0, %s469
      %s487 = sphi 0, %s487
      %s489 = sphi 0, %s487
      %s490 = sphi 0, %s489
      %s504 = sphi 0, %s490
      %s512 = sphi 0, %s514
      %s515 = sphi 0, %s512
      %s516 = sphi 0, %s515
      %s532 = sphi 0, %s516
    $region4: #{tpu_custom_call.1} parent=1 // loop_header_branch
      %33 = sbr.rel (%p31) target = $region8
    $region5: #{tpu_custom_call.1} parent=1 // loop_body
      %s35 = ssub.s32 %s30, 1
      %s36 = ssub.s32 %s30, 2
      %s43 = sadd.s32 1, %s38
      %p44 = scmp.ge.s32.totalorder %s43, 2
      %s45 = scalar_select %p44, 0, %s43
      %s46 = sadd.s32 1, %s37
      %s47 = scalar_select %p44, %s46, %s37
      %p48 = scmp.ge.s32.totalorder %s47, 2
      %s49 = scalar_select %p48, 0, %s47
      %s50 = ssub.s32 %s37, %s49
      %s51 = ssub.s32 %s38, %s45
      %s52 = sor.u32 %s50, %s51
      %p53 = scmp.eq.s32.totalorder %s52, 0
      %s55 = sadd.s32 %s54, 1
      %s56 = scalar_select %p53, %s54, %s55
      %p59 = pneg %p53
      %p60 = scmp.eq.s32.totalorder %s30, 3
      %p61 = por %p59, %p60
      %p62 = scmp.ne.s32.totalorder %s54, %s57
      %p63 = scmp.eq.s32.totalorder %s30, 0
      %p64 = por %p62, %p63
      %p65 = scmp.ne.s32.totalorder %s54, %s57
      %p66 = scmp.eq.s32.totalorder %s35, 3
      %p67 = por %p65, %p66
      %p68 = scmp.ne.s32.totalorder %s57, %s58
      %p69 = scmp.eq.s32.totalorder %s35, 0
      %p70 = por %p68, %p69
      %p71 = scmp.ne.s32.totalorder %s57, %s58
      %p72 = scmp.eq.s32.totalorder %s36, 3
      %p73 = por %p71, %p72
      %p75 = scmp.ne.s32.totalorder %s58, %s74
      %p76 = scmp.eq.s32.totalorder %s36, 0
      %p77 = por %p75, %p76
      %s78 = ssub.s32 %s37, %s49
      %p79 = scmp.eq.s32.totalorder %s78, 0
      %s81 = sadd.s32 %s80, 1
      %s82 = scalar_select %p79, %s80, %s81
      %p85 = pneg %p79
      %p86 = scmp.eq.s32.totalorder %s30, 3
      %p87 = por %p85, %p86
      %p88 = scmp.ne.s32.totalorder %s80, %s83
      %p89 = scmp.eq.s32.totalorder %s30, 0
      %p90 = por %p88, %p89
      %p91 = scmp.ne.s32.totalorder %s80, %s83
      %p92 = scmp.eq.s32.totalorder %s35, 3
      %p93 = por %p91, %p92
      %p94 = scmp.ne.s32.totalorder %s83, %s84
      %p95 = scmp.eq.s32.totalorder %s35, 0
      %p96 = por %p94, %p95
      %p97 = scmp.ne.s32.totalorder %s83, %s84
      %p98 = scmp.eq.s32.totalorder %s36, 3
      %p99 = por %p97, %p98
      %p101 = scmp.ne.s32.totalorder %s84, %s100
      %p102 = scmp.eq.s32.totalorder %s36, 0
      %p103 = por %p101, %p102
      %s104 = ssub.s32 %s38, %s45
      %p105 = scmp.eq.s32.totalorder %s104, 0
      %s107 = sadd.s32 %s106, 1
      %s108 = scalar_select %p105, %s106, %s107
      %p111 = pneg %p105
      %p112 = scmp.eq.s32.totalorder %s30, 3
      %p113 = por %p111, %p112
      %p114 = scmp.ne.s32.totalorder %s106, %s109
      %p115 = scmp.eq.s32.totalorder %s30, 0
      %p116 = por %p114, %p115
      %p117 = scmp.ne.s32.totalorder %s106, %s109
      %p118 = scmp.eq.s32.totalorder %s35, 3
      %p119 = por %p117, %p118
      %p120 = scmp.ne.s32.totalorder %s109, %s110
      %p121 = scmp.eq.s32.totalorder %s35, 0
      %p122 = por %p120, %p121
      %p123 = scmp.ne.s32.totalorder %s109, %s110
      %p124 = scmp.eq.s32.totalorder %s36, 3
      %p125 = por %p123, %p124
      %p127 = scmp.ne.s32.totalorder %s110, %s126
      %p128 = scmp.eq.s32.totalorder %s36, 0
      %p129 = por %p127, %p128
      %s131 = sadd.s32 %s130, 1
      %p134 = scmp.eq.s32.totalorder %s30, 3
      %p135 = scmp.ne.s32.totalorder %s130, %s132
      %p136 = scmp.eq.s32.totalorder %s30, 0
      %p137 = por %p135, %p136
      %p138 = scmp.ne.s32.totalorder %s130, %s132
      %p139 = scmp.eq.s32.totalorder %s35, 3
      %p140 = por %p138, %p139
      %p141 = scmp.ne.s32.totalorder %s132, %s133
      %p142 = scmp.eq.s32.totalorder %s35, 0
      %p143 = por %p141, %p142
      %p144 = scmp.ne.s32.totalorder %s132, %s133
      %p145 = scmp.eq.s32.totalorder %s36, 3
      %p146 = por %p144, %p145
      %p148 = scmp.ne.s32.totalorder %s133, %s147
      %p149 = scmp.eq.s32.totalorder %s36, 0
      %p150 = por %p148, %p149
      %s152 = sadd.s32 %s151, 1
      %p155 = scmp.eq.s32.totalorder %s30, 3
      %p156 = scmp.ne.s32.totalorder %s151, %s153
      %p157 = scmp.eq.s32.totalorder %s30, 0
      %p158 = por %p156, %p157
      %p159 = scmp.ne.s32.totalorder %s151, %s153
      %p160 = scmp.eq.s32.totalorder %s35, 3
      %p161 = por %p159, %p160
      %p162 = scmp.ne.s32.totalorder %s153, %s154
      %p163 = scmp.eq.s32.totalorder %s35, 0
      %p164 = por %p162, %p163
      %p165 = scmp.ne.s32.totalorder %s153, %s154
      %p166 = scmp.eq.s32.totalorder %s36, 3
      %p167 = por %p165, %p166
      %p169 = scmp.ne.s32.totalorder %s154, %s168
      %p170 = scmp.eq.s32.totalorder %s36, 0
      %p171 = por %p169, %p170
      %s173 = sadd.s32 %s172, 1
      %p176 = scmp.eq.s32.totalorder %s30, 3
      %p177 = scmp.ne.s32.totalorder %s172, %s174
      %p178 = scmp.eq.s32.totalorder %s30, 0
      %p179 = por %p177, %p178
      %p180 = scmp.ne.s32.totalorder %s172, %s174
      %p181 = scmp.eq.s32.totalorder %s35, 3
      %p182 = por %p180, %p181
      %p183 = scmp.ne.s32.totalorder %s174, %s175
      %p184 = scmp.eq.s32.totalorder %s35, 0
      %p185 = por %p183, %p184
      %p186 = scmp.ne.s32.totalorder %s174, %s175
      %p187 = scmp.eq.s32.totalorder %s36, 3
      %p188 = por %p186, %p187
      %p190 = scmp.ne.s32.totalorder %s175, %s189
      %p191 = scmp.eq.s32.totalorder %s36, 0
      %p192 = por %p190, %p191
      %s194 = sadd.s32 %s193, 1
      %p197 = scmp.eq.s32.totalorder %s30, 3
      %p198 = scmp.ne.s32.totalorder %s193, %s195
      %p199 = scmp.eq.s32.totalorder %s30, 0
      %p200 = por %p198, %p199
      %p201 = scmp.ne.s32.totalorder %s193, %s195
      %p202 = scmp.eq.s32.totalorder %s35, 3
      %p203 = por %p201, %p202
      %p204 = scmp.ne.s32.totalorder %s195, %s196
      %p205 = scmp.eq.s32.totalorder %s35, 0
      %p206 = por %p204, %p205
      %p207 = scmp.ne.s32.totalorder %s195, %s196
      %p208 = scmp.eq.s32.totalorder %s36, 3
      %p209 = por %p207, %p208
      %p211 = scmp.ne.s32.totalorder %s196, %s210
      %p212 = scmp.eq.s32.totalorder %s36, 0
      %p213 = por %p211, %p212
      %s215 = sadd.s32 %s214, 1
      %p218 = scmp.eq.s32.totalorder %s30, 3
      %p219 = scmp.ne.s32.totalorder %s214, %s216
      %p220 = scmp.eq.s32.totalorder %s30, 0
      %p221 = por %p219, %p220
      %p222 = scmp.ne.s32.totalorder %s214, %s216
      %p223 = scmp.eq.s32.totalorder %s35, 3
      %p224 = por %p222, %p223
      %p225 = scmp.ne.s32.totalorder %s216, %s217
      %p226 = scmp.eq.s32.totalorder %s35, 0
      %p227 = por %p225, %p226
      %p228 = scmp.ne.s32.totalorder %s216, %s217
      %p229 = scmp.eq.s32.totalorder %s36, 3
      %p230 = por %p228, %p229
      %p232 = scmp.ne.s32.totalorder %s217, %s231
      %p233 = scmp.eq.s32.totalorder %s36, 0
      %p234 = por %p232, %p233
      %s236 = sadd.s32 %s235, 1
      %p239 = scmp.eq.s32.totalorder %s30, 3
      %p240 = scmp.ne.s32.totalorder %s235, %s237
      %p241 = scmp.eq.s32.totalorder %s30, 0
      %p242 = por %p240, %p241
      %p243 = scmp.ne.s32.totalorder %s235, %s237
      %p244 = scmp.eq.s32.totalorder %s35, 3
      %p245 = por %p243, %p244
      %p246 = scmp.ne.s32.totalorder %s237, %s238
      %p247 = scmp.eq.s32.totalorder %s35, 0
      %p248 = por %p246, %p247
      %p249 = scmp.ne.s32.totalorder %s237, %s238
      %p250 = scmp.eq.s32.totalorder %s36, 3
      %p251 = por %p249, %p250
      %p253 = scmp.ne.s32.totalorder %s238, %s252
      %p254 = scmp.eq.s32.totalorder %s36, 0
      %p255 = por %p253, %p254
      %s257 = sadd.s32 %s256, 1
      %p260 = scmp.eq.s32.totalorder %s30, 3
      %p261 = scmp.ne.s32.totalorder %s256, %s258
      %p262 = scmp.eq.s32.totalorder %s30, 0
      %p263 = por %p261, %p262
      %p264 = scmp.ne.s32.totalorder %s256, %s258
      %p265 = scmp.eq.s32.totalorder %s35, 3
      %p266 = por %p264, %p265
      %p267 = scmp.ne.s32.totalorder %s258, %s259
      %p268 = scmp.eq.s32.totalorder %s35, 0
      %p269 = por %p267, %p268
      %p270 = scmp.ne.s32.totalorder %s258, %s259
      %p271 = scmp.eq.s32.totalorder %s36, 3
      %p272 = por %p270, %p271
      %p274 = scmp.ne.s32.totalorder %s259, %s273
      %p275 = scmp.eq.s32.totalorder %s36, 0
      %p276 = por %p274, %p275
      %s278 = sadd.s32 %s277, 1
      %p281 = scmp.eq.s32.totalorder %s30, 3
      %p282 = scmp.ne.s32.totalorder %s277, %s279
      %p283 = scmp.eq.s32.totalorder %s30, 0
      %p284 = por %p282, %p283
      %p285 = scmp.ne.s32.totalorder %s277, %s279
      %p286 = scmp.eq.s32.totalorder %s35, 3
      %p287 = por %p285, %p286
      %p288 = scmp.ne.s32.totalorder %s279, %s280
      %p289 = scmp.eq.s32.totalorder %s35, 0
      %p290 = por %p288, %p289
      %p291 = scmp.ne.s32.totalorder %s279, %s280
      %p292 = scmp.eq.s32.totalorder %s36, 3
      %p293 = por %p291, %p292
      %p295 = scmp.ne.s32.totalorder %s280, %s294
      %p296 = scmp.eq.s32.totalorder %s36, 0
      %p297 = por %p295, %p296
      %s299 = sadd.s32 %s298, 1
      %p302 = scmp.eq.s32.totalorder %s30, 3
      %p303 = scmp.ne.s32.totalorder %s298, %s300
      %p304 = scmp.eq.s32.totalorder %s30, 0
      %p305 = por %p303, %p304
      %p306 = scmp.ne.s32.totalorder %s298, %s300
      %p307 = scmp.eq.s32.totalorder %s35, 3
      %p308 = por %p306, %p307
      %p309 = scmp.ne.s32.totalorder %s300, %s301
      %p310 = scmp.eq.s32.totalorder %s35, 0
      %p311 = por %p309, %p310
      %p312 = scmp.ne.s32.totalorder %s300, %s301
      %p313 = scmp.eq.s32.totalorder %s36, 3
      %p314 = por %p312, %p313
      %p316 = scmp.ne.s32.totalorder %s301, %s315
      %p317 = scmp.eq.s32.totalorder %s36, 0
      %p318 = por %p316, %p317
      %s320 = sadd.s32 %s319, 1
      %p323 = scmp.eq.s32.totalorder %s30, 3
      %p324 = scmp.ne.s32.totalorder %s319, %s321
      %p325 = scmp.eq.s32.totalorder %s30, 0
      %p326 = por %p324, %p325
      %p327 = scmp.ne.s32.totalorder %s319, %s321
      %p328 = scmp.eq.s32.totalorder %s35, 3
      %p329 = por %p327, %p328
      %p330 = scmp.ne.s32.totalorder %s321, %s322
      %p331 = scmp.eq.s32.totalorder %s35, 0
      %p332 = por %p330, %p331
      %p333 = scmp.ne.s32.totalorder %s321, %s322
      %p334 = scmp.eq.s32.totalorder %s36, 3
      %p335 = por %p333, %p334
      %p337 = scmp.ne.s32.totalorder %s322, %s336
      %p338 = scmp.eq.s32.totalorder %s36, 0
      %p339 = por %p337, %p338
      %s341 = sadd.s32 %s340, 1
      %p344 = scmp.eq.s32.totalorder %s30, 3
      %p345 = scmp.ne.s32.totalorder %s340, %s342
      %p346 = scmp.eq.s32.totalorder %s30, 0
      %p347 = por %p345, %p346
      %p348 = scmp.ne.s32.totalorder %s340, %s342
      %p349 = scmp.eq.s32.totalorder %s35, 3
      %p350 = por %p348, %p349
      %p351 = scmp.ne.s32.totalorder %s342, %s343
      %p352 = scmp.eq.s32.totalorder %s35, 0
      %p353 = por %p351, %p352
      %p354 = scmp.ne.s32.totalorder %s342, %s343
      %p355 = scmp.eq.s32.totalorder %s36, 3
      %p356 = por %p354, %p355
      %p358 = scmp.ne.s32.totalorder %s343, %s357
      %p359 = scmp.eq.s32.totalorder %s36, 0
      %p360 = por %p358, %p359
      %s362 = sadd.s32 %s361, 1
      %p365 = scmp.eq.s32.totalorder %s30, 3
      %p366 = scmp.ne.s32.totalorder %s361, %s363
      %p367 = scmp.eq.s32.totalorder %s30, 0
      %p368 = por %p366, %p367
      %p369 = scmp.ne.s32.totalorder %s361, %s363
      %p370 = scmp.eq.s32.totalorder %s35, 3
      %p371 = por %p369, %p370
      %p372 = scmp.ne.s32.totalorder %s363, %s364
      %p373 = scmp.eq.s32.totalorder %s35, 0
      %p374 = por %p372, %p373
      %p375 = scmp.ne.s32.totalorder %s363, %s364
      %p376 = scmp.eq.s32.totalorder %s36, 3
      %p377 = por %p375, %p376
      %p379 = scmp.ne.s32.totalorder %s364, %s378
      %p380 = scmp.eq.s32.totalorder %s36, 0
      %p381 = por %p379, %p380
      %s383 = sadd.s32 %s382, 1
      %p386 = scmp.eq.s32.totalorder %s30, 3
      %p387 = scmp.ne.s32.totalorder %s382, %s384
      %p388 = scmp.eq.s32.totalorder %s30, 0
      %p389 = por %p387, %p388
      %p390 = scmp.ne.s32.totalorder %s382, %s384
      %p391 = scmp.eq.s32.totalorder %s35, 3
      %p392 = por %p390, %p391
      %p393 = scmp.ne.s32.totalorder %s384, %s385
      %p394 = scmp.eq.s32.totalorder %s35, 0
      %p395 = por %p393, %p394
      %p396 = scmp.ne.s32.totalorder %s384, %s385
      %p397 = scmp.eq.s32.totalorder %s36, 3
      %p398 = por %p396, %p397
      %p400 = scmp.ne.s32.totalorder %s385, %s399
      %p401 = scmp.eq.s32.totalorder %s36, 0
      %p402 = por %p400, %p401
      %s404 = sadd.s32 %s403, 1
      %p407 = scmp.eq.s32.totalorder %s30, 3
      %p408 = scmp.ne.s32.totalorder %s403, %s405
      %p409 = scmp.eq.s32.totalorder %s30, 0
      %p410 = por %p408, %p409
      %p411 = scmp.ne.s32.totalorder %s403, %s405
      %p412 = scmp.eq.s32.totalorder %s35, 3
      %p413 = por %p411, %p412
      %p414 = scmp.ne.s32.totalorder %s405, %s406
      %p415 = scmp.eq.s32.totalorder %s35, 0
      %p416 = por %p414, %p415
      %p417 = scmp.ne.s32.totalorder %s405, %s406
      %p418 = scmp.eq.s32.totalorder %s36, 3
      %p419 = por %p417, %p418
      %p421 = scmp.ne.s32.totalorder %s406, %s420
      %p422 = scmp.eq.s32.totalorder %s36, 0
      %p423 = por %p421, %p422
      %s425 = sadd.s32 %s424, 1
      %p428 = scmp.eq.s32.totalorder %s30, 3
      %p429 = scmp.ne.s32.totalorder %s424, %s426
      %p430 = scmp.eq.s32.totalorder %s30, 0
      %p431 = por %p429, %p430
      %p432 = scmp.ne.s32.totalorder %s424, %s426
      %p433 = scmp.eq.s32.totalorder %s35, 3
      %p434 = por %p432, %p433
      %p435 = scmp.ne.s32.totalorder %s426, %s427
      %p436 = scmp.eq.s32.totalorder %s35, 0
      %p437 = por %p435, %p436
      %p438 = scmp.ne.s32.totalorder %s426, %s427
      %p439 = scmp.eq.s32.totalorder %s36, 3
      %p440 = por %p438, %p439
      %p442 = scmp.ne.s32.totalorder %s427, %s441
      %p443 = scmp.eq.s32.totalorder %s36, 0
      %p444 = por %p442, %p443
      %s446 = sadd.s32 %s445, 1
      %p449 = scmp.eq.s32.totalorder %s30, 3
      %p450 = scmp.ne.s32.totalorder %s445, %s447
      %p451 = scmp.eq.s32.totalorder %s30, 0
      %p452 = por %p450, %p451
      %p453 = scmp.ne.s32.totalorder %s445, %s447
      %p454 = scmp.eq.s32.totalorder %s35, 3
      %p455 = por %p453, %p454
      %p456 = scmp.ne.s32.totalorder %s447, %s448
      %p457 = scmp.eq.s32.totalorder %s35, 0
      %p458 = por %p456, %p457
      %p459 = scmp.ne.s32.totalorder %s447, %s448
      %p460 = scmp.eq.s32.totalorder %s36, 3
      %p461 = por %p459, %p460
      %p463 = scmp.ne.s32.totalorder %s448, %s462
      %p464 = scmp.eq.s32.totalorder %s36, 0
      %p465 = por %p463, %p464
      %s467 = sadd.s32 %s466, 1
      %p470 = scmp.eq.s32.totalorder %s30, 3
      %p471 = scmp.ne.s32.totalorder %s466, %s468
      %p472 = scmp.eq.s32.totalorder %s30, 0
      %p473 = por %p471, %p472
      %p474 = scmp.ne.s32.totalorder %s466, %s468
      %p475 = scmp.eq.s32.totalorder %s35, 3
      %p476 = por %p474, %p475
      %p477 = scmp.ne.s32.totalorder %s468, %s469
      %p478 = scmp.eq.s32.totalorder %s35, 0
      %p479 = por %p477, %p478
      %p480 = scmp.ne.s32.totalorder %s468, %s469
      %p481 = scmp.eq.s32.totalorder %s36, 3
      %p482 = por %p480, %p481
      %p484 = scmp.ne.s32.totalorder %s469, %s483
      %p485 = scmp.eq.s32.totalorder %s36, 0
      %p486 = por %p484, %p485
      %s488 = sadd.s32 %s487, 1
      %p491 = scmp.eq.s32.totalorder %s30, 3
      %p492 = scmp.ne.s32.totalorder %s487, %s489
      %p493 = scmp.eq.s32.totalorder %s30, 0
      %p494 = por %p492, %p493
      %p495 = scmp.ne.s32.totalorder %s487, %s489
      %p496 = scmp.eq.s32.totalorder %s35, 3
      %p497 = por %p495, %p496
      %p498 = scmp.ne.s32.totalorder %s489, %s490
      %p499 = scmp.eq.s32.totalorder %s35, 0
      %p500 = por %p498, %p499
      %p501 = scmp.ne.s32.totalorder %s489, %s490
      %p502 = scmp.eq.s32.totalorder %s36, 3
      %p503 = por %p501, %p502
      %p505 = scmp.ne.s32.totalorder %s490, %s504
      %p506 = scmp.eq.s32.totalorder %s36, 0
      %p507 = por %p505, %p506
      %s508 = ssub.s32 %s37, %s49
      %s509 = ssub.s32 %s38, %s45
      %s510 = sor.u32 %s508, %s509
      %p511 = scmp.eq.s32.totalorder %s510, 0
      %s513 = sadd.s32 %s512, 1
      %s514 = scalar_select %p511, %s512, %s513
      %p517 = pneg %p511
      %p518 = scmp.eq.s32.totalorder %s30, 3
      %p519 = por %p517, %p518
      %p520 = scmp.ne.s32.totalorder %s512, %s515
      %p521 = scmp.eq.s32.totalorder %s30, 0
      %p522 = por %p520, %p521
      %p523 = scmp.ne.s32.totalorder %s512, %s515
      %p524 = scmp.eq.s32.totalorder %s35, 3
      %p525 = por %p523, %p524
      %p526 = scmp.ne.s32.totalorder %s515, %s516
      %p527 = scmp.eq.s32.totalorder %s35, 0
      %p528 = por %p526, %p527
      %p529 = scmp.ne.s32.totalorder %s515, %s516
      %p530 = scmp.eq.s32.totalorder %s36, 3
      %p531 = por %p529, %p530
      %p533 = scmp.ne.s32.totalorder %s516, %s532
      %p534 = scmp.eq.s32.totalorder %s36, 0
      %p535 = por %p533, %p534
      %p536 = scmp.le.s32.totalorder 1, %s30
      %p537 = scmp.lt.s32.totalorder %s30, 5
      %p538 = pnand %p536, %p537
      %p539 = pneg %p538
      // Predicated region
      $region9: #{tpu_custom_call.1} parent=5 // pred_check
        _
      $region10: #{tpu_custom_call.1} parent=5 // pred_check_branch
        %541 = sbr.rel (%p538) target = $region12
      $region11: #{tpu_custom_call.1} parent=5 // pred_region
        %s542 = ssub.s32 %s30, 1
        // Predicated region
        $region13: #{tpu_custom_call.1} parent=11 // pred_check
          %p543 = pneg %p143
        $region14: #{tpu_custom_call.1} parent=11 // pred_check_branch
          %545 = sbr.rel (%p543) target = $region16
        $region15: #{tpu_custom_call.1} parent=11 // pred_region
          _
        $region16: #{tpu_custom_call.1} parent=11 // pred_fallthru
          _
        // Predicated region
        $region17: #{tpu_custom_call.1} parent=11 // pred_check
          %p546 = pneg %p164
        $region18: #{tpu_custom_call.1} parent=11 // pred_check_branch
          %548 = sbr.rel (%p546) target = $region20
        $region19: #{tpu_custom_call.1} parent=11 // pred_region
          _
        $region20: #{tpu_custom_call.1} parent=11 // pred_fallthru
          _
        // Predicated region
        $region21: #{tpu_custom_call.1} parent=11 // pred_check
          %p549 = pneg %p185
        $region22: #{tpu_custom_call.1} parent=11 // pred_check_branch
          %551 = sbr.rel (%p549) target = $region24
        $region23: #{tpu_custom_call.1} parent=11 // pred_region
          _
        $region24: #{tpu_custom_call.1} parent=11 // pred_fallthru
          _
        // Predicated region
        $region25: #{tpu_custom_call.1} parent=11 // pred_check
          %p552 = pneg %p206
        $region26: #{tpu_custom_call.1} parent=11 // pred_check_branch
          %554 = sbr.rel (%p552) target = $region28
        $region27: #{tpu_custom_call.1} parent=11 // pred_region
          _
        $region28: #{tpu_custom_call.1} parent=11 // pred_fallthru
          _
        // Predicated region
        $region29: #{tpu_custom_call.1} parent=11 // pred_check
          %p555 = pneg %p227
        $region30: #{tpu_custom_call.1} parent=11 // pred_check_branch
          %557 = sbr.rel (%p555) target = $region32
        $region31: #{tpu_custom_call.1} parent=11 // pred_region
          _
        $region32: #{tpu_custom_call.1} parent=11 // pred_fallthru
          _
        // Predicated region
        $region33: #{tpu_custom_call.1} parent=11 // pred_check
          %p558 = pneg %p248
        $region34: #{tpu_custom_call.1} parent=11 // pred_check_branch
          %560 = sbr.rel (%p558) target = $region36
        $region35: #{tpu_custom_call.1} parent=11 // pred_region
          _
        $region36: #{tpu_custom_call.1} parent=11 // pred_fallthru
          _
        // Predicated region
        $region37: #{tpu_custom_call.1} parent=11 // pred_check
          %p561 = pneg %p269
        $region38: #{tpu_custom_call.1} parent=11 // pred_check_branch
          %563 = sbr.rel (%p561) target = $region40
        $region39: #{tpu_custom_call.1} parent=11 // pred_region
          _
        $region40: #{tpu_custom_call.1} parent=11 // pred_fallthru
          _
        // Predicated region
        $region41: #{tpu_custom_call.1} parent=11 // pred_check
          %p564 = pneg %p290
        $region42: #{tpu_custom_call.1} parent=11 // pred_check_branch
          %566 = sbr.rel (%p564) target = $region44
        $region43: #{tpu_custom_call.1} parent=11 // pred_region
          _
        $region44: #{tpu_custom_call.1} parent=11 // pred_fallthru
          _
        // Predicated region
        $region45: #{tpu_custom_call.1} parent=11 // pred_check
          %p567 = pneg %p311
        $region46: #{tpu_custom_call.1} parent=11 // pred_check_branch
          %569 = sbr.rel (%p567) target = $region48
        $region47: #{tpu_custom_call.1} parent=11 // pred_region
          _
        $region48: #{tpu_custom_call.1} parent=11 // pred_fallthru
          _
        // Predicated region
        $region49: #{tpu_custom_call.1} parent=11 // pred_check
          %p570 = pneg %p332
        $region50: #{tpu_custom_call.1} parent=11 // pred_check_branch
          %572 = sbr.rel (%p570) target = $region52
        $region51: #{tpu_custom_call.1} parent=11 // pred_region
          _
        $region52: #{tpu_custom_call.1} parent=11 // pred_fallthru
          _
        // Predicated region
        $region53: #{tpu_custom_call.1} parent=11 // pred_check
          %p573 = pneg %p353
        $region54: #{tpu_custom_call.1} parent=11 // pred_check_branch
          %575 = sbr.rel (%p573) target = $region56
        $region55: #{tpu_custom_call.1} parent=11 // pred_region
          _
        $region56: #{tpu_custom_call.1} parent=11 // pred_fallthru
          _
        // Predicated region
        $region57: #{tpu_custom_call.1} parent=11 // pred_check
          %p576 = pneg %p374
        $region58: #{tpu_custom_call.1} parent=11 // pred_check_branch
          %578 = sbr.rel (%p576) target = $region60
        $region59: #{tpu_custom_call.1} parent=11 // pred_region
          _
        $region60: #{tpu_custom_call.1} parent=11 // pred_fallthru
          _
        // Predicated region
        $region61: #{tpu_custom_call.1} parent=11 // pred_check
          %p579 = pneg %p395
        $region62: #{tpu_custom_call.1} parent=11 // pred_check_branch
          %581 = sbr.rel (%p579) target = $region64
        $region63: #{tpu_custom_call.1} parent=11 // pred_region
          _
        $region64: #{tpu_custom_call.1} parent=11 // pred_fallthru
          _
        // Predicated region
        $region65: #{tpu_custom_call.1} parent=11 // pred_check
          %p582 = pneg %p416
        $region66: #{tpu_custom_call.1} parent=11 // pred_check_branch
          %584 = sbr.rel (%p582) target = $region68
        $region67: #{tpu_custom_call.1} parent=11 // pred_region
          _
        $region68: #{tpu_custom_call.1} parent=11 // pred_fallthru
          _
        // Predicated region
        $region69: #{tpu_custom_call.1} parent=11 // pred_check
          %p585 = pneg %p437
        $region70: #{tpu_custom_call.1} parent=11 // pred_check_branch
          %587 = sbr.rel (%p585) target = $region72
        $region71: #{tpu_custom_call.1} parent=11 // pred_region
          _
        $region72: #{tpu_custom_call.1} parent=11 // pred_fallthru
          _
        // Predicated region
        $region73: #{tpu_custom_call.1} parent=11 // pred_check
          %p588 = pneg %p458
        $region74: #{tpu_custom_call.1} parent=11 // pred_check_branch
          %590 = sbr.rel (%p588) target = $region76
        $region75: #{tpu_custom_call.1} parent=11 // pred_region
          _
        $region76: #{tpu_custom_call.1} parent=11 // pred_fallthru
          _
        // Predicated region
        $region77: #{tpu_custom_call.1} parent=11 // pred_check
          %p591 = pneg %p479
        $region78: #{tpu_custom_call.1} parent=11 // pred_check_branch
          %593 = sbr.rel (%p591) target = $region80
        $region79: #{tpu_custom_call.1} parent=11 // pred_region
          _
        $region80: #{tpu_custom_call.1} parent=11 // pred_fallthru
          _
        // Predicated region
        $region81: #{tpu_custom_call.1} parent=11 // pred_check
          %p594 = pneg %p500
        $region82: #{tpu_custom_call.1} parent=11 // pred_check_branch
          %596 = sbr.rel (%p594) target = $region84
        $region83: #{tpu_custom_call.1} parent=11 // pred_region
          _
        $region84: #{tpu_custom_call.1} parent=11 // pred_fallthru
          _
      $region12: #{tpu_custom_call.1} parent=5 // pred_fallthru
        _
      %p597 = scmp.lt.s32.totalorder %s30, 4
      // Predicated region
      $region85: #{tpu_custom_call.1} parent=5 // pred_check
        %p598 = pneg %p597
      $region86: #{tpu_custom_call.1} parent=5 // pred_check_branch
        %600 = sbr.rel (%p598) target = $region88
      $region87: #{tpu_custom_call.1} parent=5 // pred_region
        // Predicated region
        $region89: #{tpu_custom_call.1} parent=87 // pred_check
          %p601 = pneg %p64
        $region90: #{tpu_custom_call.1} parent=87 // pred_check_branch
          %603 = sbr.rel (%p601) target = $region92
        $region91: #{tpu_custom_call.1} parent=87 // pred_region
          %p604 = scmp.lt.s32.totalorder %s37, 1
          %s605 = scalar_select %p604, %s37, 1
          %p606 = scmp.lt.s32.totalorder %s38, 1
          %s607 = scalar_select %p606, %s38, 1
          %s608 = smul.addr %s605, 2
          %s609 = sadd.s32 %s607, %s608
          %s610 = smul.addr %s609, 8
          %s611 = scalar_lea.vmem %s0, %s610
        $region92: #{tpu_custom_call.1} parent=87 // pred_fallthru
          _
        // Predicated region
        $region93: #{tpu_custom_call.1} parent=87 // pred_check
          %p612 = pneg %p90
        $region94: #{tpu_custom_call.1} parent=87 // pred_check_branch
          %614 = sbr.rel (%p612) target = $region96
        $region95: #{tpu_custom_call.1} parent=87 // pred_region
          %p615 = scmp.lt.s32.totalorder %s37, 1
          %s616 = scalar_select %p615, %s37, 1
          %s617 = smul.addr %s616, 2
          %s618 = smul.addr %s617, 8
          %s619 = scalar_lea.vmem %s1, %s618
        $region96: #{tpu_custom_call.1} parent=87 // pred_fallthru
          _
        // Predicated region
        $region97: #{tpu_custom_call.1} parent=87 // pred_check
          %p620 = pneg %p116
        $region98: #{tpu_custom_call.1} parent=87 // pred_check_branch
          %622 = sbr.rel (%p620) target = $region100
        $region99: #{tpu_custom_call.1} parent=87 // pred_region
          %p623 = scmp.lt.s32.totalorder %s38, 1
          %s624 = scalar_select %p623, %s38, 1
          %s625 = smul.addr %s624, 8
          %s626 = scalar_lea.vmem %s2, %s625
        $region100: #{tpu_custom_call.1} parent=87 // pred_fallthru
          _
      $region88: #{tpu_custom_call.1} parent=5 // pred_fallthru
        _
      %p627 = scmp.le.s32.totalorder 1, %s30
      %p628 = scmp.lt.s32.totalorder %s30, 5
      %p629 = pnand %p627, %p628
      %p630 = pneg %p629
      // Predicated region
      $region101: #{tpu_custom_call.1} parent=5 // pred_check
        _
      $region102: #{tpu_custom_call.1} parent=5 // pred_check_branch
        %632 = sbr.rel (%p629) target = $region104
      $region103: #{tpu_custom_call.1} parent=5 // pred_region
        %s633 = ssub.s32 %s30, 1
        %p634 = scmp.lt.s32.totalorder %s39, 1
        %s635 = scalar_select %p634, %s39, 1
        %p636 = scmp.lt.s32.totalorder %s40, 1
        %s637 = scalar_select %p636, %s40, 1
        %s638 = smul.addr %s635, 2
        %s639 = sadd.s32 %s637, %s638
        %s640 = smul.addr %s639, 8
        %s641 = scalar_lea.vmem %s0, %s640
        %p642 = pneg %p70
        %p643 = pneg %p67
        %p644 = scmp.lt.s32.totalorder %s39, 1
        %s645 = scalar_select %p644, %s39, 1
        %s646 = smul.addr %s645, 2
        %s647 = smul.addr %s646, 8
        %s648 = scalar_lea.vmem %s1, %s647
        %p649 = pneg %p96
        %p650 = pneg %p93
        %p651 = scmp.lt.s32.totalorder %s40, 1
        %s652 = scalar_select %p651, %s40, 1
        %s653 = smul.addr %s652, 8
        %s654 = scalar_lea.vmem %s2, %s653
        %p655 = pneg %p122
        %p656 = pneg %p119
        %p657 = pneg %p143
        %p658 = pneg %p140
        %p659 = pneg %p164
        %p660 = pneg %p161
        %p661 = pneg %p185
        %p662 = pneg %p182
        %p663 = pneg %p206
        %p664 = pneg %p203
        %p665 = pneg %p227
        %p666 = pneg %p224
        %p667 = pneg %p248
        %p668 = pneg %p245
        %p669 = pneg %p269
        %p670 = pneg %p266
        %p671 = pneg %p290
        %p672 = pneg %p287
        %p673 = pneg %p311
        %p674 = pneg %p308
        %p675 = pneg %p332
        %p676 = pneg %p329
        %p677 = pneg %p353
        %p678 = pneg %p350
        %p679 = pneg %p374
        %p680 = pneg %p371
        %p681 = pneg %p395
        %p682 = pneg %p392
        %p683 = pneg %p416
        %p684 = pneg %p413
        %p685 = pneg %p437
        %p686 = pneg %p434
        %p687 = pneg %p458
        %p688 = pneg %p455
        %p689 = pneg %p479
        %p690 = pneg %p476
        %p691 = pneg %p500
        %p692 = pneg %p497
        %p693 = pneg %p528
        %p694 = pneg %p525
        %s695 = sand.u32 %s515, 1
        %s696 = scalar_lea.sflag [#allocation3], %s695
        %s697 = sand.u32 %s515, 1
        %s698 = smul.addr %s697, 8
        %s699 = scalar_lea.vmem [#allocation2], %s698
        %p700 = scmp.lt.s32.totalorder %s39, 1
        %s701 = scalar_select %p700, %s39, 1
        %p702 = scmp.lt.s32.totalorder %s40, 1
        %s703 = scalar_select %p702, %s40, 1
        %s704 = smul.addr %s701, 2
        %s705 = sadd.s32 %s703, %s704
        %s706 = smul.addr %s705, 8
        %s707 = scalar_lea.vmem %s0, %s706
        %p708 = scmp.lt.s32.totalorder %s39, 1
        %s709 = scalar_select %p708, %s39, 1
        %s710 = smul.addr %s709, 2
        %s711 = smul.addr %s710, 8
        %s712 = scalar_lea.vmem %s1, %s711
        %p713 = scmp.lt.s32.totalorder %s40, 1
        %s714 = scalar_select %p713, %s40, 1
        %s715 = smul.addr %s714, 8
        %s716 = scalar_lea.vmem %s2, %s715
        %v717 = vld [vmem:[%s707] sm:$0xff]
        %v718 = vld [vmem:[%s712] sm:$0xff]
        %v719 = vld [vmem:[%s712 + $0x8] sm:$0xff]
        %v720 = vld [vmem:[%s716] sm:$0xff]
        %v721 = vld [vmem:[%s3] sm:$0xff]
        %v722 = vld [vmem:[%s3 + $0x8] sm:$0xff]
        %v723 = vld [vmem:[%s3 + $0x10] sm:$0xff]
        %v724 = vld [vmem:[%s3 + $0x18] sm:$0xff]
        %v725 = vld [vmem:[%s4] sm:$0x1]
        %v727 = vlaneseq
        %v728 = vshrl.u32 %v727, 7
        %v729 = vsub.s32 0, %v728
        %v730 = vrot.slane %v725, %v729
        %vm732 = vcmask 261120
        %v734 = vsel %vm732, %v717, 0
        %736 = vmatprep.subr.mxu0 0.0
        %737 = vmatpush1.msra.mxu0 %v721
        %738 = vmatprep.subr.mxu0 0.0
        %739 = vmatpush1.msra.mxu0 %v722
        %740 = vmatprep.subr.mxu0 0.0
        %741 = vmatpush1.msra.mxu0 %v723
        %742 = vmatprep.subr.mxu0 0.0
        %743 = vmatpush1.msra.mxu0 %v724
        %744 = vmatprep.subr.mxu0 0.0
        %745 = vmatpush1.msra.mxu0 0.0
        %746 = vmatprep.subr.mxu0 0.0
        %747 = vmatpush1.msra.mxu0 0.0
        %748 = vmatprep.subr.mxu0 0.0
        %749 = vmatpush1.msra.mxu0 0.0
        %750 = vmatprep.subr.mxu0 0.0
        %751 = vmatpush1.msra.mxu0 0.0
        %752 = vmatprep.subr.mxu0 0.0
        %753 = vmatpush1.msra.mxu0 0.0
        %754 = vmatprep.subr.mxu0 0.0
        %755 = vmatpush1.msra.mxu0 0.0
        %756 = vmatprep.subr.mxu0 0.0
        %757 = vmatpush1.msra.mxu0 0.0
        %758 = vmatprep.subr.mxu0 0.0
        %759 = vmatpush1.msra.mxu0 0.0
        %760 = vmatprep.subr.mxu0 0.0
        %761 = vmatpush1.msra.mxu0 0.0
        %762 = vmatprep.subr.mxu0 0.0
        %763 = vmatpush1.msra.mxu0 0.0
        %764 = vmatprep.subr.mxu0 0.0
        %765 = vmatpush1.msra.mxu0 0.0
        %766 = vmatprep.subr.mxu0 0.0
        %767 = vmatpush1.msra.mxu0 0.0
        %768 = vmatprep.subr.mxu0 0.0
        %769 = vmatpush1.msra.mxu0 0.0
        %770 = vmatprep.subr.mxu0 0.0
        %771 = vmatpush1.msra.mxu0 0.0
        %772 = vmatprep.subr.mxu0 0.0
        %773 = vmatpush1.msra.mxu0 0.0
        %774 = vmatprep.subr.mxu0 0.0
        %775 = vmatpush1.msra.mxu0 0.0
        %776 = vmatprep.subr.mxu0 0.0
        %777 = vmatpush1.msra.mxu0 0.0
        %778 = vmatprep.subr.mxu0 0.0
        %779 = vmatpush1.msra.mxu0 0.0
        %780 = vmatprep.subr.mxu0 0.0
        %781 = vmatpush1.msra.mxu0 0.0
        %782 = vmatprep.subr.mxu0 0.0
        %783 = vmatpush1.msra.mxu0 0.0
        %784 = vmatprep.subr.mxu0 0.0
        %785 = vmatpush1.msra.mxu0 0.0
        %786 = vmatprep.subr.mxu0 0.0
        %787 = vmatpush1.msra.mxu0 0.0
        %788 = vmatprep.subr.mxu0 0.0
        %789 = vmatpush1.msra.mxu0 0.0
        %790 = vmatprep.subr.mxu0 0.0
        %791 = vmatpush1.msra.mxu0 0.0
        %792 = vmatprep.subr.mxu0 0.0
        %793 = vmatpush1.msra.mxu0 0.0
        %794 = vmatprep.subr.mxu0 0.0
        %795 = vmatpush1.msra.mxu0 0.0
        %796 = vmatprep.subr.mxu0 0.0
        %797 = vmatpush1.msra.mxu0 0.0
        %798 = vmatprep.subr.mxu0 0.0
        %799 = vmatpush1.msra.mxu0 0.0
        %800 = vmatprep.mubr.f32.mxu0 0.0
        %801 = vmatmul.mubr.f32.gmra.mrb[0].mxu0 %v734
        %v802 = vpop.f32.mrb[0].mxu0
        %v803 = vadd.f32 %v730, %v802
        %v804 = vpop.f32.mrb[0].mxu0
        %805 = vdwg.mxu0
        %v806 = vld [vmem:[%s5] sm:$0xff]
        %v807 = vld [vmem:[%s5 + $0x8] sm:$0xff]
        %v808 = vld [vmem:[%s5 + $0x10] sm:$0xff]
        %v809 = vld [vmem:[%s5 + $0x18] sm:$0xff]
        %v810 = vld [vmem:[%s6] sm:$0x1]
        %v812 = vlaneseq
        %v813 = vshrl.u32 %v812, 7
        %v814 = vsub.s32 0, %v813
        %v815 = vrot.slane %v810, %v814
        %v818 = vsel %vm732, %v718, 0
        %v821 = vsel %vm732, %v719, 0
        %823 = vmatprep.subr.mxu0 0.0
        %824 = vmatpush1.msra.mxu0 %v806
        %825 = vmatprep.subr.mxu0 0.0
        %826 = vmatpush1.msra.mxu0 %v807
        %827 = vmatprep.subr.mxu0 0.0
        %828 = vmatpush1.msra.mxu0 %v808
        %829 = vmatprep.subr.mxu0 0.0
        %830 = vmatpush1.msra.mxu0 %v809
        %831 = vmatprep.subr.mxu0 0.0
        %832 = vmatpush1.msra.mxu0 0.0
        %833 = vmatprep.subr.mxu0 0.0
        %834 = vmatpush1.msra.mxu0 0.0
        %835 = vmatprep.subr.mxu0 0.0
        %836 = vmatpush1.msra.mxu0 0.0
        %837 = vmatprep.subr.mxu0 0.0
        %838 = vmatpush1.msra.mxu0 0.0
        %839 = vmatprep.subr.mxu0 0.0
        %840 = vmatpush1.msra.mxu0 0.0
        %841 = vmatprep.subr.mxu0 0.0
        %842 = vmatpush1.msra.mxu0 0.0
        %843 = vmatprep.subr.mxu0 0.0
        %844 = vmatpush1.msra.mxu0 0.0
        %845 = vmatprep.subr.mxu0 0.0
        %846 = vmatpush1.msra.mxu0 0.0
        %847 = vmatprep.subr.mxu0 0.0
        %848 = vmatpush1.msra.mxu0 0.0
        %849 = vmatprep.subr.mxu0 0.0
        %850 = vmatpush1.msra.mxu0 0.0
        %851 = vmatprep.subr.mxu0 0.0
        %852 = vmatpush1.msra.mxu0 0.0
        %853 = vmatprep.subr.mxu0 0.0
        %854 = vmatpush1.msra.mxu0 0.0
        %855 = vmatprep.subr.mxu0 0.0
        %856 = vmatpush1.msra.mxu0 0.0
        %857 = vmatprep.subr.mxu0 0.0
        %858 = vmatpush1.msra.mxu0 0.0
        %859 = vmatprep.subr.mxu0 0.0
        %860 = vmatpush1.msra.mxu0 0.0
        %861 = vmatprep.subr.mxu0 0.0
        %862 = vmatpush1.msra.mxu0 0.0
        %863 = vmatprep.subr.mxu0 0.0
        %864 = vmatpush1.msra.mxu0 0.0
        %865 = vmatprep.subr.mxu0 0.0
        %866 = vmatpush1.msra.mxu0 0.0
        %867 = vmatprep.subr.mxu0 0.0
        %868 = vmatpush1.msra.mxu0 0.0
        %869 = vmatprep.subr.mxu0 0.0
        %870 = vmatpush1.msra.mxu0 0.0
        %871 = vmatprep.subr.mxu0 0.0
        %872 = vmatpush1.msra.mxu0 0.0
        %873 = vmatprep.subr.mxu0 0.0
        %874 = vmatpush1.msra.mxu0 0.0
        %875 = vmatprep.subr.mxu0 0.0
        %876 = vmatpush1.msra.mxu0 0.0
        %877 = vmatprep.subr.mxu0 0.0
        %878 = vmatpush1.msra.mxu0 0.0
        %879 = vmatprep.subr.mxu0 0.0
        %880 = vmatpush1.msra.mxu0 0.0
        %881 = vmatprep.subr.mxu0 0.0
        %882 = vmatpush1.msra.mxu0 0.0
        %883 = vmatprep.subr.mxu0 0.0
        %884 = vmatpush1.msra.mxu0 0.0
        %885 = vmatprep.subr.mxu0 0.0
        %886 = vmatpush1.msra.mxu0 0.0
        %887 = vmatprep.mubr.f32.mxu0 0.0
        %888 = vmatmul.mubr.f32.gmra.mrb[0].mxu0 %v818
        %v889 = vpop.f32.mrb[0].mxu0
        %v890 = vadd.f32 %v815, %v889
        %v891 = vpop.f32.mrb[0].mxu0
        %892 = vmatprep.mubr.f32.mxu0 0.0
        %893 = vmatmul.mubr.f32.gmra.mrb[0].mxu0 %v821
        %v894 = vpop.f32.mrb[0].mxu0
        %v895 = vadd.f32 %v815, %v894
        %v896 = vpop.f32.mrb[0].mxu0
        %897 = vdwg.mxu0
        %v898 = vld [vmem:[%s7] sm:$0xff]
        %v899 = vld [vmem:[%s7 + $0x8] sm:$0xff]
        %v900 = vld [vmem:[%s7 + $0x10] sm:$0xff]
        %v901 = vld [vmem:[%s7 + $0x18] sm:$0xff]
        %v902 = vld [vmem:[%s8] sm:$0x1]
        %v904 = vlaneseq
        %v905 = vshrl.u32 %v904, 7
        %v906 = vsub.s32 0, %v905
        %v907 = vrot.slane %v902, %v906
        %909 = vmatprep.subr.mxu0 0.0
        %910 = vmatpush1.msra.mxu0 %v898
        %911 = vmatprep.subr.mxu0 0.0
        %912 = vmatpush1.msra.mxu0 %v899
        %913 = vmatprep.subr.mxu0 0.0
        %914 = vmatpush1.msra.mxu0 %v900
        %915 = vmatprep.subr.mxu0 0.0
        %916 = vmatpush1.msra.mxu0 %v901
        %917 = vmatprep.subr.mxu0 0.0
        %918 = vmatpush1.msra.mxu0 0.0
        %919 = vmatprep.subr.mxu0 0.0
        %920 = vmatpush1.msra.mxu0 0.0
        %921 = vmatprep.subr.mxu0 0.0
        %922 = vmatpush1.msra.mxu0 0.0
        %923 = vmatprep.subr.mxu0 0.0
        %924 = vmatpush1.msra.mxu0 0.0
        %925 = vmatprep.subr.mxu0 0.0
        %926 = vmatpush1.msra.mxu0 0.0
        %927 = vmatprep.subr.mxu0 0.0
        %928 = vmatpush1.msra.mxu0 0.0
        %929 = vmatprep.subr.mxu0 0.0
        %930 = vmatpush1.msra.mxu0 0.0
        %931 = vmatprep.subr.mxu0 0.0
        %932 = vmatpush1.msra.mxu0 0.0
        %933 = vmatprep.subr.mxu0 0.0
        %934 = vmatpush1.msra.mxu0 0.0
        %935 = vmatprep.subr.mxu0 0.0
        %936 = vmatpush1.msra.mxu0 0.0
        %937 = vmatprep.subr.mxu0 0.0
        %938 = vmatpush1.msra.mxu0 0.0
        %939 = vmatprep.subr.mxu0 0.0
        %940 = vmatpush1.msra.mxu0 0.0
        %941 = vmatprep.subr.mxu0 0.0
        %942 = vmatpush1.msra.mxu0 0.0
        %943 = vmatprep.subr.mxu0 0.0
        %944 = vmatpush1.msra.mxu0 0.0
        %945 = vmatprep.subr.mxu0 0.0
        %946 = vmatpush1.msra.mxu0 0.0
        %947 = vmatprep.subr.mxu0 0.0
        %948 = vmatpush1.msra.mxu0 0.0
        %949 = vmatprep.subr.mxu0 0.0
        %950 = vmatpush1.msra.mxu0 0.0
        %951 = vmatprep.subr.mxu0 0.0
        %952 = vmatpush1.msra.mxu0 0.0
        %953 = vmatprep.subr.mxu0 0.0
        %954 = vmatpush1.msra.mxu0 0.0
        %955 = vmatprep.subr.mxu0 0.0
        %956 = vmatpush1.msra.mxu0 0.0
        %957 = vmatprep.subr.mxu0 0.0
        %958 = vmatpush1.msra.mxu0 0.0
        %959 = vmatprep.subr.mxu0 0.0
        %960 = vmatpush1.msra.mxu0 0.0
        %961 = vmatprep.subr.mxu0 0.0
        %962 = vmatpush1.msra.mxu0 0.0
        %963 = vmatprep.subr.mxu0 0.0
        %964 = vmatpush1.msra.mxu0 0.0
        %965 = vmatprep.subr.mxu0 0.0
        %966 = vmatpush1.msra.mxu0 0.0
        %967 = vmatprep.subr.mxu0 0.0
        %968 = vmatpush1.msra.mxu0 0.0
        %969 = vmatprep.subr.mxu0 0.0
        %970 = vmatpush1.msra.mxu0 0.0
        %971 = vmatprep.subr.mxu0 0.0
        %972 = vmatpush1.msra.mxu0 0.0
        %973 = vmatprep.mubr.f32.mxu0 0.0
        %974 = vmatmul.mubr.f32.gmra.mrb[0].mxu0 %v818
        %v975 = vpop.f32.mrb[0].mxu0
        %v976 = vadd.f32 %v907, %v975
        %v977 = vpop.f32.mrb[0].mxu0
        %978 = vmatprep.mubr.f32.mxu0 0.0
        %979 = vmatmul.mubr.f32.gmra.mrb[0].mxu0 %v821
        %v980 = vpop.f32.mrb[0].mxu0
        %v981 = vadd.f32 %v907, %v980
        %v982 = vpop.f32.mrb[0].mxu0
        %983 = vdwg.mxu0
        %vm984 = vcmask 64512
        %v986 = vsel %vm984, %v803, 0
        %v989 = vsel %vm984, %v890, 0
        %v992 = vsel %vm984, %v895, 0
        %994 = vmatprep.subr.mxu0 0.0
        %995 = vmatpush1.xpose.msra.mxu0 %v989
        %996 = vmatprep.subr.mxu0 0.0
        %997 = vmatpush1.xpose.msra.mxu0 %v992
        %998 = vmatprep.subr.mxu0 0.0
        %999 = vmatpush1.xpose.msra.mxu0 0.0
        %1000 = vmatprep.subr.mxu0 0.0
        %1001 = vmatpush1.xpose.msra.mxu0 0.0
        %1002 = vmatprep.subr.mxu0 0.0
        %1003 = vmatpush1.xpose.msra.mxu0 0.0
        %1004 = vmatprep.subr.mxu0 0.0
        %1005 = vmatpush1.xpose.msra.mxu0 0.0
        %1006 = vmatprep.subr.mxu0 0.0
        %1007 = vmatpush1.xpose.msra.mxu0 0.0
        %1008 = vmatprep.subr.mxu0 0.0
        %1009 = vmatpush1.xpose.msra.mxu0 0.0
        %1010 = vmatprep.subr.mxu0 0.0
        %1011 = vmatpush1.xpose.msra.mxu0 0.0
        %1012 = vmatprep.subr.mxu0 0.0
        %1013 = vmatpush1.xpose.msra.mxu0 0.0
        %1014 = vmatprep.subr.mxu0 0.0
        %1015 = vmatpush1.xpose.msra.mxu0 0.0
        %1016 = vmatprep.subr.mxu0 0.0
        %1017 = vmatpush1.xpose.msra.mxu0 0.0
        %1018 = vmatprep.subr.mxu0 0.0
        %1019 = vmatpush1.xpose.msra.mxu0 0.0
        %1020 = vmatprep.subr.mxu0 0.0
        %1021 = vmatpush1.xpose.msra.mxu0 0.0
        %1022 = vmatprep.subr.mxu0 0.0
        %1023 = vmatpush1.xpose.msra.mxu0 0.0
        %1024 = vmatprep.subr.mxu0 0.0
        %1025 = vmatpush1.xpose.msra.mxu0 0.0
        %1026 = vmatprep.subr.mxu0 0.0
        %1027 = vmatpush1.xpose.msra.mxu0 0.0
        %1028 = vmatprep.subr.mxu0 0.0
        %1029 = vmatpush1.xpose.msra.mxu0 0.0
        %1030 = vmatprep.subr.mxu0 0.0
        %1031 = vmatpush1.xpose.msra.mxu0 0.0
        %1032 = vmatprep.subr.mxu0 0.0
        %1033 = vmatpush1.xpose.msra.mxu0 0.0
        %1034 = vmatprep.subr.mxu0 0.0
        %1035 = vmatpush1.xpose.msra.mxu0 0.0
        %1036 = vmatprep.subr.mxu0 0.0
        %1037 = vmatpush1.xpose.msra.mxu0 0.0
        %1038 = vmatprep.subr.mxu0 0.0
        %1039 = vmatpush1.xpose.msra.mxu0 0.0
        %1040 = vmatprep.subr.mxu0 0.0
        %1041 = vmatpush1.xpose.msra.mxu0 0.0
        %1042 = vmatprep.subr.mxu0 0.0
        %1043 = vmatpush1.xpose.msra.mxu0 0.0
        %1044 = vmatprep.subr.mxu0 0.0
        %1045 = vmatpush1.xpose.msra.mxu0 0.0
        %1046 = vmatprep.subr.mxu0 0.0
        %1047 = vmatpush1.xpose.msra.mxu0 0.0
        %1048 = vmatprep.subr.mxu0 0.0
        %1049 = vmatpush1.xpose.msra.mxu0 0.0
        %1050 = vmatprep.subr.mxu0 0.0
        %1051 = vmatpush1.xpose.msra.mxu0 0.0
        %1052 = vmatprep.subr.mxu0 0.0
        %1053 = vmatpush1.xpose.msra.mxu0 0.0
        %1054 = vmatprep.subr.mxu0 0.0
        %1055 = vmatpush1.xpose.msra.mxu0 0.0
        %1056 = vmatprep.subr.mxu0 0.0
        %1057 = vmatpush1.xpose.msra.mxu0 0.0
        %1058 = vmatprep.mubr.f32.mxu0 0.0
        %1059 = vmatmul.mubr.f32.gmra.mrb[0].mxu0 %v986
        %v1060 = vpop.f32.mrb[0].mxu0
        %v1061 = vadd.f32 0.0, %v1060
        %v1062 = vpop.f32.mrb[0].mxu0
        %1063 = vdwg.mxu0
        %v1064 = vmul.f32 %v1061, 0.35355338
        %v1065 = vadd.f32 %v1064, %v720
        %vm1066 = vcmask 130048
        %v1067 = vsel %vm1066, %v1065, -inf
        %1068 = vmax.xlane.f32.xlu0 %v1067
        %v1069 = vpop.xlane.xlu0 %1068
        %v1070 = vsub.f32 %v1065, %v1069
        %v1071 = vmul.f32 %v1070, 1.442695
        %v1072 = vpow.pop %v1071
        %v1073 = vsel %vm1066, %v1072, 0.0
        %1074 = vadd.xlane.f32.xlu0 %v1073
        %v1075 = vpop.xlane.xlu0 %1074
        %v1076 = vrcp.pop %v1075
        %v1077 = vmul.f32 %v1072, %v1076
        %v1079 = vsel %vm1066, %v1077, 0
        %1081 = vmatprep.subr.mxu0 0.0
        %1082 = vmatpush1.msra.mxu0 %v976
        %1083 = vmatprep.subr.mxu0 0.0
        %1084 = vmatpush1.msra.mxu0 %v981
        %1085 = vmatprep.subr.mxu0 0.0
        %1086 = vmatpush1.msra.mxu0 0.0
        %1087 = vmatprep.subr.mxu0 0.0
        %1088 = vmatpush1.msra.mxu0 0.0
        %1089 = vmatprep.subr.mxu0 0.0
        %1090 = vmatpush1.msra.mxu0 0.0
        %1091 = vmatprep.subr.mxu0 0.0
        %1092 = vmatpush1.msra.mxu0 0.0
        %1093 = vmatprep.subr.mxu0 0.0
        %1094 = vmatpush1.msra.mxu0 0.0
        %1095 = vmatprep.subr.mxu0 0.0
        %1096 = vmatpush1.msra.mxu0 0.0
        %1097 = vmatprep.subr.mxu0 0.0
        %1098 = vmatpush1.msra.mxu0 0.0
        %1099 = vmatprep.subr.mxu0 0.0
        %1100 = vmatpush1.msra.mxu0 0.0
        %1101 = vmatprep.subr.mxu0 0.0
        %1102 = vmatpush1.msra.mxu0 0.0
        %1103 = vmatprep.subr.mxu0 0.0
        %1104 = vmatpush1.msra.mxu0 0.0
        %1105 = vmatprep.subr.mxu0 0.0
        %1106 = vmatpush1.msra.mxu0 0.0
        %1107 = vmatprep.subr.mxu0 0.0
        %1108 = vmatpush1.msra.mxu0 0.0
        %1109 = vmatprep.subr.mxu0 0.0
        %1110 = vmatpush1.msra.mxu0 0.0
        %1111 = vmatprep.subr.mxu0 0.0
        %1112 = vmatpush1.msra.mxu0 0.0
        %1113 = vmatprep.subr.mxu0 0.0
        %1114 = vmatpush1.msra.mxu0 0.0
        %1115 = vmatprep.subr.mxu0 0.0
        %1116 = vmatpush1.msra.mxu0 0.0
        %1117 = vmatprep.subr.mxu0 0.0
        %1118 = vmatpush1.msra.mxu0 0.0
        %1119 = vmatprep.subr.mxu0 0.0
        %1120 = vmatpush1.msra.mxu0 0.0
        %1121 = vmatprep.subr.mxu0 0.0
        %1122 = vmatpush1.msra.mxu0 0.0
        %1123 = vmatprep.subr.mxu0 0.0
        %1124 = vmatpush1.msra.mxu0 0.0
        %1125 = vmatprep.subr.mxu0 0.0
        %1126 = vmatpush1.msra.mxu0 0.0
        %1127 = vmatprep.subr.mxu0 0.0
        %1128 = vmatpush1.msra.mxu0 0.0
        %1129 = vmatprep.subr.mxu0 0.0
        %1130 = vmatpush1.msra.mxu0 0.0
        %1131 = vmatprep.subr.mxu0 0.0
        %1132 = vmatpush1.msra.mxu0 0.0
        %1133 = vmatprep.subr.mxu0 0.0
        %1134 = vmatpush1.msra.mxu0 0.0
        %1135 = vmatprep.subr.mxu0 0.0
        %1136 = vmatpush1.msra.mxu0 0.0
        %1137 = vmatprep.subr.mxu0 0.0
        %1138 = vmatpush1.msra.mxu0 0.0
        %1139 = vmatprep.subr.mxu0 0.0
        %1140 = vmatpush1.msra.mxu0 0.0
        %1141 = vmatprep.subr.mxu0 0.0
        %1142 = vmatpush1.msra.mxu0 0.0
        %1143 = vmatprep.subr.mxu0 0.0
        %1144 = vmatpush1.msra.mxu0 0.0
        %1145 = vmatprep.mubr.f32.mxu0 0.0
        %1146 = vmatmul.mubr.f32.gmra.mrb[0].mxu0 %v1079
        %v1147 = vpop.f32.mrb[0].mxu0
        %v1148 = vadd.f32 0.0, %v1147
        %v1149 = vpop.f32.mrb[0].mxu0
        %1150 = vdwg.mxu0
        %v1151 = vld [vmem:[%s9] sm:$0xff]
        %s1152 = scalar_lea.vmem %s3, 32
        %v1153 = vld [vmem:[%s1152] sm:$0xff]
        %v1154 = vld [vmem:[%s1152 + $0x8] sm:$0xff]
        %v1155 = vld [vmem:[%s1152 + $0x10] sm:$0xff]
        %v1156 = vld [vmem:[%s1152 + $0x18] sm:$0xff]
        %s1157 = scalar_lea.vmem %s4, 1
        %v1158 = vld [vmem:[%s1157] sm:$0x1]
        %v1160 = vlaneseq
        %v1161 = vshrl.u32 %v1160, 7
        %v1162 = vsub.s32 0, %v1161
        %v1163 = vrot.slane %v1158, %v1162
        %1165 = vmatprep.subr.mxu0 0.0
        %1166 = vmatpush1.msra.mxu0 %v1153
        %1167 = vmatprep.subr.mxu0 0.0
        %1168 = vmatpush1.msra.mxu0 %v1154
        %1169 = vmatprep.subr.mxu0 0.0
        %1170 = vmatpush1.msra.mxu0 %v1155
        %1171 = vmatprep.subr.mxu0 0.0
        %1172 = vmatpush1.msra.mxu0 %v1156
        %1173 = vmatprep.subr.mxu0 0.0
        %1174 = vmatpush1.msra.mxu0 0.0
        %1175 = vmatprep.subr.mxu0 0.0
        %1176 = vmatpush1.msra.mxu0 0.0
        %1177 = vmatprep.subr.mxu0 0.0
        %1178 = vmatpush1.msra.mxu0 0.0
        %1179 = vmatprep.subr.mxu0 0.0
        %1180 = vmatpush1.msra.mxu0 0.0
        %1181 = vmatprep.subr.mxu0 0.0
        %1182 = vmatpush1.msra.mxu0 0.0
        %1183 = vmatprep.subr.mxu0 0.0
        %1184 = vmatpush1.msra.mxu0 0.0
        %1185 = vmatprep.subr.mxu0 0.0
        %1186 = vmatpush1.msra.mxu0 0.0
        %1187 = vmatprep.subr.mxu0 0.0
        %1188 = vmatpush1.msra.mxu0 0.0
        %1189 = vmatprep.subr.mxu0 0.0
        %1190 = vmatpush1.msra.mxu0 0.0
        %1191 = vmatprep.subr.mxu0 0.0
        %1192 = vmatpush1.msra.mxu0 0.0
        %1193 = vmatprep.subr.mxu0 0.0
        %1194 = vmatpush1.msra.mxu0 0.0
        %1195 = vmatprep.subr.mxu0 0.0
        %1196 = vmatpush1.msra.mxu0 0.0
        %1197 = vmatprep.subr.mxu0 0.0
        %1198 = vmatpush1.msra.mxu0 0.0
        %1199 = vmatprep.subr.mxu0 0.0
        %1200 = vmatpush1.msra.mxu0 0.0
        %1201 = vmatprep.subr.mxu0 0.0
        %1202 = vmatpush1.msra.mxu0 0.0
        %1203 = vmatprep.subr.mxu0 0.0
        %1204 = vmatpush1.msra.mxu0 0.0
        %1205 = vmatprep.subr.mxu0 0.0
        %1206 = vmatpush1.msra.mxu0 0.0
        %1207 = vmatprep.subr.mxu0 0.0
        %1208 = vmatpush1.msra.mxu0 0.0
        %1209 = vmatprep.subr.mxu0 0.0
        %1210 = vmatpush1.msra.mxu0 0.0
        %1211 = vmatprep.subr.mxu0 0.0
        %1212 = vmatpush1.msra.mxu0 0.0
        %1213 = vmatprep.subr.mxu0 0.0
        %1214 = vmatpush1.msra.mxu0 0.0
        %1215 = vmatprep.subr.mxu0 0.0
        %1216 = vmatpush1.msra.mxu0 0.0
        %1217 = vmatprep.subr.mxu0 0.0
        %1218 = vmatpush1.msra.mxu0 0.0
        %1219 = vmatprep.subr.mxu0 0.0
        %1220 = vmatpush1.msra.mxu0 0.0
        %1221 = vmatprep.subr.mxu0 0.0
        %1222 = vmatpush1.msra.mxu0 0.0
        %1223 = vmatprep.subr.mxu0 0.0
        %1224 = vmatpush1.msra.mxu0 0.0
        %1225 = vmatprep.subr.mxu0 0.0
        %1226 = vmatpush1.msra.mxu0 0.0
        %1227 = vmatprep.subr.mxu0 0.0
        %1228 = vmatpush1.msra.mxu0 0.0
        %1229 = vmatprep.mubr.f32.mxu0 0.0
        %1230 = vmatmul.mubr.f32.gmra.mrb[0].mxu0 %v734
        %v1231 = vpop.f32.mrb[0].mxu0
        %v1232 = vadd.f32 %v1163, %v1231
        %v1233 = vpop.f32.mrb[0].mxu0
        %1234 = vdwg.mxu0
        %s1235 = scalar_lea.vmem %s5, 32
        %v1236 = vld [vmem:[%s1235] sm:$0xff]
        %v1237 = vld [vmem:[%s1235 + $0x8] sm:$0xff]
        %v1238 = vld [vmem:[%s1235 + $0x10] sm:$0xff]
        %v1239 = vld [vmem:[%s1235 + $0x18] sm:$0xff]
        %s1240 = scalar_lea.vmem %s6, 1
        %v1241 = vld [vmem:[%s1240] sm:$0x1]
        %v1243 = vlaneseq
        %v1244 = vshrl.u32 %v1243, 7
        %v1245 = vsub.s32 0, %v1244
        %v1246 = vrot.slane %v1241, %v1245
        %1248 = vmatprep.subr.mxu0 0.0
        %1249 = vmatpush1.msra.mxu0 %v1236
        %1250 = vmatprep.subr.mxu0 0.0
        %1251 = vmatpush1.msra.mxu0 %v1237
        %1252 = vmatprep.subr.mxu0 0.0
        %1253 = vmatpush1.msra.mxu0 %v1238
        %1254 = vmatprep.subr.mxu0 0.0
        %1255 = vmatpush1.msra.mxu0 %v1239
        %1256 = vmatprep.subr.mxu0 0.0
        %1257 = vmatpush1.msra.mxu0 0.0
        %1258 = vmatprep.subr.mxu0 0.0
        %1259 = vmatpush1.msra.mxu0 0.0
        %1260 = vmatprep.subr.mxu0 0.0
        %1261 = vmatpush1.msra.mxu0 0.0
        %1262 = vmatprep.subr.mxu0 0.0
        %1263 = vmatpush1.msra.mxu0 0.0
        %1264 = vmatprep.subr.mxu0 0.0
        %1265 = vmatpush1.msra.mxu0 0.0
        %1266 = vmatprep.subr.mxu0 0.0
        %1267 = vmatpush1.msra.mxu0 0.0
        %1268 = vmatprep.subr.mxu0 0.0
        %1269 = vmatpush1.msra.mxu0 0.0
        %1270 = vmatprep.subr.mxu0 0.0
        %1271 = vmatpush1.msra.mxu0 0.0
        %1272 = vmatprep.subr.mxu0 0.0
        %1273 = vmatpush1.msra.mxu0 0.0
        %1274 = vmatprep.subr.mxu0 0.0
        %1275 = vmatpush1.msra.mxu0 0.0
        %1276 = vmatprep.subr.mxu0 0.0
        %1277 = vmatpush1.msra.mxu0 0.0
        %1278 = vmatprep.subr.mxu0 0.0
        %1279 = vmatpush1.msra.mxu0 0.0
        %1280 = vmatprep.subr.mxu0 0.0
        %1281 = vmatpush1.msra.mxu0 0.0
        %1282 = vmatprep.subr.mxu0 0.0
        %1283 = vmatpush1.msra.mxu0 0.0
        %1284 = vmatprep.subr.mxu0 0.0
        %1285 = vmatpush1.msra.mxu0 0.0
        %1286 = vmatprep.subr.mxu0 0.0
        %1287 = vmatpush1.msra.mxu0 0.0
        %1288 = vmatprep.subr.mxu0 0.0
        %1289 = vmatpush1.msra.mxu0 0.0
        %1290 = vmatprep.subr.mxu0 0.0
        %1291 = vmatpush1.msra.mxu0 0.0
        %1292 = vmatprep.subr.mxu0 0.0
        %1293 = vmatpush1.msra.mxu0 0.0
        %1294 = vmatprep.subr.mxu0 0.0
        %1295 = vmatpush1.msra.mxu0 0.0
        %1296 = vmatprep.subr.mxu0 0.0
        %1297 = vmatpush1.msra.mxu0 0.0
        %1298 = vmatprep.subr.mxu0 0.0
        %1299 = vmatpush1.msra.mxu0 0.0
        %1300 = vmatprep.subr.mxu0 0.0
        %1301 = vmatpush1.msra.mxu0 0.0
        %1302 = vmatprep.subr.mxu0 0.0
        %1303 = vmatpush1.msra.mxu0 0.0
        %1304 = vmatprep.subr.mxu0 0.0
        %1305 = vmatpush1.msra.mxu0 0.0
        %1306 = vmatprep.subr.mxu0 0.0
        %1307 = vmatpush1.msra.mxu0 0.0
        %1308 = vmatprep.subr.mxu0 0.0
        %1309 = vmatpush1.msra.mxu0 0.0
        %1310 = vmatprep.subr.mxu0 0.0
        %1311 = vmatpush1.msra.mxu0 0.0
        %1312 = vmatprep.mubr.f32.mxu0 0.0
        %1313 = vmatmul.mubr.f32.gmra.mrb[0].mxu0 %v818
        %v1314 = vpop.f32.mrb[0].mxu0
        %v1315 = vadd.f32 %v1246, %v1314
        %v1316 = vpop.f32.mrb[0].mxu0
        %1317 = vmatprep.mubr.f32.mxu0 0.0
        %1318 = vmatmul.mubr.f32.gmra.mrb[0].mxu0 %v821
        %v1319 = vpop.f32.mrb[0].mxu0
        %v1320 = vadd.f32 %v1246, %v1319
        %v1321 = vpop.f32.mrb[0].mxu0
        %1322 = vdwg.mxu0
        %s1323 = scalar_lea.vmem %s7, 32
        %v1324 = vld [vmem:[%s1323] sm:$0xff]
        %v1325 = vld [vmem:[%s1323 + $0x8] sm:$0xff]
        %v1326 = vld [vmem:[%s1323 + $0x10] sm:$0xff]
        %v1327 = vld [vmem:[%s1323 + $0x18] sm:$0xff]
        %s1328 = scalar_lea.vmem %s8, 1
        %v1329 = vld [vmem:[%s1328] sm:$0x1]
        %v1331 = vlaneseq
        %v1332 = vshrl.u32 %v1331, 7
        %v1333 = vsub.s32 0, %v1332
        %v1334 = vrot.slane %v1329, %v1333
        %1336 = vmatprep.subr.mxu0 0.0
        %1337 = vmatpush1.msra.mxu0 %v1324
        %1338 = vmatprep.subr.mxu0 0.0
        %1339 = vmatpush1.msra.mxu0 %v1325
        %1340 = vmatprep.subr.mxu0 0.0
        %1341 = vmatpush1.msra.mxu0 %v1326
        %1342 = vmatprep.subr.mxu0 0.0
        %1343 = vmatpush1.msra.mxu0 %v1327
        %1344 = vmatprep.subr.mxu0 0.0
        %1345 = vmatpush1.msra.mxu0 0.0
        %1346 = vmatprep.subr.mxu0 0.0
        %1347 = vmatpush1.msra.mxu0 0.0
        %1348 = vmatprep.subr.mxu0 0.0
        %1349 = vmatpush1.msra.mxu0 0.0
        %1350 = vmatprep.subr.mxu0 0.0
        %1351 = vmatpush1.msra.mxu0 0.0
        %1352 = vmatprep.subr.mxu0 0.0
        %1353 = vmatpush1.msra.mxu0 0.0
        %1354 = vmatprep.subr.mxu0 0.0
        %1355 = vmatpush1.msra.mxu0 0.0
        %1356 = vmatprep.subr.mxu0 0.0
        %1357 = vmatpush1.msra.mxu0 0.0
        %1358 = vmatprep.subr.mxu0 0.0
        %1359 = vmatpush1.msra.mxu0 0.0
        %1360 = vmatprep.subr.mxu0 0.0
        %1361 = vmatpush1.msra.mxu0 0.0
        %1362 = vmatprep.subr.mxu0 0.0
        %1363 = vmatpush1.msra.mxu0 0.0
        %1364 = vmatprep.subr.mxu0 0.0
        %1365 = vmatpush1.msra.mxu0 0.0
        %1366 = vmatprep.subr.mxu0 0.0
        %1367 = vmatpush1.msra.mxu0 0.0
        %1368 = vmatprep.subr.mxu0 0.0
        %1369 = vmatpush1.msra.mxu0 0.0
        %1370 = vmatprep.subr.mxu0 0.0
        %1371 = vmatpush1.msra.mxu0 0.0
        %1372 = vmatprep.subr.mxu0 0.0
        %1373 = vmatpush1.msra.mxu0 0.0
        %1374 = vmatprep.subr.mxu0 0.0
        %1375 = vmatpush1.msra.mxu0 0.0
        %1376 = vmatprep.subr.mxu0 0.0
        %1377 = vmatpush1.msra.mxu0 0.0
        %1378 = vmatprep.subr.mxu0 0.0
        %1379 = vmatpush1.msra.mxu0 0.0
        %1380 = vmatprep.subr.mxu0 0.0
        %1381 = vmatpush1.msra.mxu0 0.0
        %1382 = vmatprep.subr.mxu0 0.0
        %1383 = vmatpush1.msra.mxu0 0.0
        %1384 = vmatprep.subr.mxu0 0.0
        %1385 = vmatpush1.msra.mxu0 0.0
        %1386 = vmatprep.subr.mxu0 0.0
        %1387 = vmatpush1.msra.mxu0 0.0
        %1388 = vmatprep.subr.mxu0 0.0
        %1389 = vmatpush1.msra.mxu0 0.0
        %1390 = vmatprep.subr.mxu0 0.0
        %1391 = vmatpush1.msra.mxu0 0.0
        %1392 = vmatprep.subr.mxu0 0.0
        %1393 = vmatpush1.msra.mxu0 0.0
        %1394 = vmatprep.subr.mxu0 0.0
        %1395 = vmatpush1.msra.mxu0 0.0
        %1396 = vmatprep.subr.mxu0 0.0
        %1397 = vmatpush1.msra.mxu0 0.0
        %1398 = vmatprep.subr.mxu0 0.0
        %1399 = vmatpush1.msra.mxu0 0.0
        %1400 = vmatprep.mubr.f32.mxu0 0.0
        %1401 = vmatmul.mubr.f32.gmra.mrb[0].mxu0 %v818
        %v1402 = vpop.f32.mrb[0].mxu0
        %v1403 = vadd.f32 %v1334, %v1402
        %v1404 = vpop.f32.mrb[0].mxu0
        %1405 = vmatprep.mubr.f32.mxu0 0.0
        %1406 = vmatmul.mubr.f32.gmra.mrb[0].mxu0 %v821
        %v1407 = vpop.f32.mrb[0].mxu0
        %v1408 = vadd.f32 %v1334, %v1407
        %v1409 = vpop.f32.mrb[0].mxu0
        %1410 = vdwg.mxu0
        %v1412 = vsel %vm984, %v1232, 0
        %v1415 = vsel %vm984, %v1315, 0
        %v1418 = vsel %vm984, %v1320, 0
        %1420 = vmatprep.subr.mxu0 0.0
        %1421 = vmatpush1.xpose.msra.mxu0 %v1415
        %1422 = vmatprep.subr.mxu0 0.0
        %1423 = vmatpush1.xpose.msra.mxu0 %v1418
        %1424 = vmatprep.subr.mxu0 0.0
        %1425 = vmatpush1.xpose.msra.mxu0 0.0
        %1426 = vmatprep.subr.mxu0 0.0
        %1427 = vmatpush1.xpose.msra.mxu0 0.0
        %1428 = vmatprep.subr.mxu0 0.0
        %1429 = vmatpush1.xpose.msra.mxu0 0.0
        %1430 = vmatprep.subr.mxu0 0.0
        %1431 = vmatpush1.xpose.msra.mxu0 0.0
        %1432 = vmatprep.subr.mxu0 0.0
        %1433 = vmatpush1.xpose.msra.mxu0 0.0
        %1434 = vmatprep.subr.mxu0 0.0
        %1435 = vmatpush1.xpose.msra.mxu0 0.0
        %1436 = vmatprep.subr.mxu0 0.0
        %1437 = vmatpush1.xpose.msra.mxu0 0.0
        %1438 = vmatprep.subr.mxu0 0.0
        %1439 = vmatpush1.xpose.msra.mxu0 0.0
        %1440 = vmatprep.subr.mxu0 0.0
        %1441 = vmatpush1.xpose.msra.mxu0 0.0
        %1442 = vmatprep.subr.mxu0 0.0
        %1443 = vmatpush1.xpose.msra.mxu0 0.0
        %1444 = vmatprep.subr.mxu0 0.0
        %1445 = vmatpush1.xpose.msra.mxu0 0.0
        %1446 = vmatprep.subr.mxu0 0.0
        %1447 = vmatpush1.xpose.msra.mxu0 0.0
        %1448 = vmatprep.subr.mxu0 0.0
        %1449 = vmatpush1.xpose.msra.mxu0 0.0
        %1450 = vmatprep.subr.mxu0 0.0
        %1451 = vmatpush1.xpose.msra.mxu0 0.0
        %1452 = vmatprep.subr.mxu0 0.0
        %1453 = vmatpush1.xpose.msra.mxu0 0.0
        %1454 = vmatprep.subr.mxu0 0.0
        %1455 = vmatpush1.xpose.msra.mxu0 0.0
        %1456 = vmatprep.subr.mxu0 0.0
        %1457 = vmatpush1.xpose.msra.mxu0 0.0
        %1458 = vmatprep.subr.mxu0 0.0
        %1459 = vmatpush1.xpose.msra.mxu0 0.0
        %1460 = vmatprep.subr.mxu0 0.0
        %1461 = vmatpush1.xpose.msra.mxu0 0.0
        %1462 = vmatprep.subr.mxu0 0.0
        %1463 = vmatpush1.xpose.msra.mxu0 0.0
        %1464 = vmatprep.subr.mxu0 0.0
        %1465 = vmatpush1.xpose.msra.mxu0 0.0
        %1466 = vmatprep.subr.mxu0 0.0
        %1467 = vmatpush1.xpose.msra.mxu0 0.0
        %1468 = vmatprep.subr.mxu0 0.0
        %1469 = vmatpush1.xpose.msra.mxu0 0.0
        %1470 = vmatprep.subr.mxu0 0.0
        %1471 = vmatpush1.xpose.msra.mxu0 0.0
        %1472 = vmatprep.subr.mxu0 0.0
        %1473 = vmatpush1.xpose.msra.mxu0 0.0
        %1474 = vmatprep.subr.mxu0 0.0
        %1475 = vmatpush1.xpose.msra.mxu0 0.0
        %1476 = vmatprep.subr.mxu0 0.0
        %1477 = vmatpush1.xpose.msra.mxu0 0.0
        %1478 = vmatprep.subr.mxu0 0.0
        %1479 = vmatpush1.xpose.msra.mxu0 0.0
        %1480 = vmatprep.subr.mxu0 0.0
        %1481 = vmatpush1.xpose.msra.mxu0 0.0
        %1482 = vmatprep.subr.mxu0 0.0
        %1483 = vmatpush1.xpose.msra.mxu0 0.0
        %1484 = vmatprep.mubr.f32.mxu0 0.0
        %1485 = vmatmul.mubr.f32.gmra.mrb[0].mxu0 %v1412
        %v1486 = vpop.f32.mrb[0].mxu0
        %v1487 = vadd.f32 0.0, %v1486
        %v1488 = vpop.f32.mrb[0].mxu0
        %1489 = vdwg.mxu0
        %v1490 = vmul.f32 %v1487, 0.35355338
        %v1491 = vadd.f32 %v1490, %v720
        %v1492 = vsel %vm1066, %v1491, -inf
        %1493 = vmax.xlane.f32.xlu0 %v1492
        %v1494 = vpop.xlane.xlu0 %1493
        %v1495 = vsub.f32 %v1491, %v1494
        %v1496 = vmul.f32 %v1495, 1.442695
        %v1497 = vpow.pop %v1496
        %v1498 = vsel %vm1066, %v1497, 0.0
        %1499 = vadd.xlane.f32.xlu0 %v1498
        %v1500 = vpop.xlane.xlu0 %1499
        %v1501 = vrcp.pop %v1500
        %v1502 = vmul.f32 %v1497, %v1501
        %v1504 = vsel %vm1066, %v1502, 0
        %1506 = vmatprep.subr.mxu0 0.0
        %1507 = vmatpush1.msra.mxu0 %v1403
        %1508 = vmatprep.subr.mxu0 0.0
        %1509 = vmatpush1.msra.mxu0 %v1408
        %1510 = vmatprep.subr.mxu0 0.0
        %1511 = vmatpush1.msra.mxu0 0.0
        %1512 = vmatprep.subr.mxu0 0.0
        %1513 = vmatpush1.msra.mxu0 0.0
        %1514 = vmatprep.subr.mxu0 0.0
        %1515 = vmatpush1.msra.mxu0 0.0
        %1516 = vmatprep.subr.mxu0 0.0
        %1517 = vmatpush1.msra.mxu0 0.0
        %1518 = vmatprep.subr.mxu0 0.0
        %1519 = vmatpush1.msra.mxu0 0.0
        %1520 = vmatprep.subr.mxu0 0.0
        %1521 = vmatpush1.msra.mxu0 0.0
        %1522 = vmatprep.subr.mxu0 0.0
        %1523 = vmatpush1.msra.mxu0 0.0
        %1524 = vmatprep.subr.mxu0 0.0
        %1525 = vmatpush1.msra.mxu0 0.0
        %1526 = vmatprep.subr.mxu0 0.0
        %1527 = vmatpush1.msra.mxu0 0.0
        %1528 = vmatprep.subr.mxu0 0.0
        %1529 = vmatpush1.msra.mxu0 0.0
        %1530 = vmatprep.subr.mxu0 0.0
        %1531 = vmatpush1.msra.mxu0 0.0
        %1532 = vmatprep.subr.mxu0 0.0
        %1533 = vmatpush1.msra.mxu0 0.0
        %1534 = vmatprep.subr.mxu0 0.0
        %1535 = vmatpush1.msra.mxu0 0.0
        %1536 = vmatprep.subr.mxu0 0.0
        %1537 = vmatpush1.msra.mxu0 0.0
        %1538 = vmatprep.subr.mxu0 0.0
        %1539 = vmatpush1.msra.mxu0 0.0
        %1540 = vmatprep.subr.mxu0 0.0
        %1541 = vmatpush1.msra.mxu0 0.0
        %1542 = vmatprep.subr.mxu0 0.0
        %1543 = vmatpush1.msra.mxu0 0.0
        %1544 = vmatprep.subr.mxu0 0.0
        %1545 = vmatpush1.msra.mxu0 0.0
        %1546 = vmatprep.subr.mxu0 0.0
        %1547 = vmatpush1.msra.mxu0 0.0
        %1548 = vmatprep.subr.mxu0 0.0
        %1549 = vmatpush1.msra.mxu0 0.0
        %1550 = vmatprep.subr.mxu0 0.0
        %1551 = vmatpush1.msra.mxu0 0.0
        %1552 = vmatprep.subr.mxu0 0.0
        %1553 = vmatpush1.msra.mxu0 0.0
        %1554 = vmatprep.subr.mxu0 0.0
        %1555 = vmatpush1.msra.mxu0 0.0
        %1556 = vmatprep.subr.mxu0 0.0
        %1557 = vmatpush1.msra.mxu0 0.0
        %1558 = vmatprep.subr.mxu0 0.0
        %1559 = vmatpush1.msra.mxu0 0.0
        %1560 = vmatprep.subr.mxu0 0.0
        %1561 = vmatpush1.msra.mxu0 0.0
        %1562 = vmatprep.subr.mxu0 0.0
        %1563 = vmatpush1.msra.mxu0 0.0
        %1564 = vmatprep.subr.mxu0 0.0
        %1565 = vmatpush1.msra.mxu0 0.0
        %1566 = vmatprep.subr.mxu0 0.0
        %1567 = vmatpush1.msra.mxu0 0.0
        %1568 = vmatprep.subr.mxu0 0.0
        %1569 = vmatpush1.msra.mxu0 0.0
        %1570 = vmatprep.mubr.f32.mxu0 0.0
        %1571 = vmatmul.mubr.f32.gmra.mrb[0].mxu0 %v1504
        %v1572 = vpop.f32.mrb[0].mxu0
        %v1573 = vadd.f32 0.0, %v1572
        %v1574 = vpop.f32.mrb[0].mxu0
        %1575 = vdwg.mxu0
        %s1576 = scalar_lea.vmem %s9, 8
        %v1577 = vld [vmem:[%s1576] sm:$0xff]
        %v1579 = vsel %vm984, %v1573, 0
        %1581 = vmatprep.subr.mxu0 0.0
        %1582 = vmatpush1.msra.mxu0 %v1577
        %1583 = vmatprep.subr.mxu0 0.0
        %1584 = vmatpush1.msra.mxu0 0.0
        %1585 = vmatprep.subr.mxu0 0.0
        %1586 = vmatpush1.msra.mxu0 0.0
        %1587 = vmatprep.subr.mxu0 0.0
        %1588 = vmatpush1.msra.mxu0 0.0
        %1589 = vmatprep.subr.mxu0 0.0
        %1590 = vmatpush1.msra.mxu0 0.0
        %1591 = vmatprep.subr.mxu0 0.0
        %1592 = vmatpush1.msra.mxu0 0.0
        %1593 = vmatprep.subr.mxu0 0.0
        %1594 = vmatpush1.msra.mxu0 0.0
        %1595 = vmatprep.subr.mxu0 0.0
        %1596 = vmatpush1.msra.mxu0 0.0
        %1597 = vmatprep.subr.mxu0 0.0
        %1598 = vmatpush1.msra.mxu0 0.0
        %1599 = vmatprep.subr.mxu0 0.0
        %1600 = vmatpush1.msra.mxu0 0.0
        %1601 = vmatprep.subr.mxu0 0.0
        %1602 = vmatpush1.msra.mxu0 0.0
        %1603 = vmatprep.subr.mxu0 0.0
        %1604 = vmatpush1.msra.mxu0 0.0
        %1605 = vmatprep.subr.mxu0 0.0
        %1606 = vmatpush1.msra.mxu0 0.0
        %1607 = vmatprep.subr.mxu0 0.0
        %1608 = vmatpush1.msra.mxu0 0.0
        %1609 = vmatprep.subr.mxu0 0.0
        %1610 = vmatpush1.msra.mxu0 0.0
        %1611 = vmatprep.subr.mxu0 0.0
        %1612 = vmatpush1.msra.mxu0 0.0
        %1613 = vmatprep.subr.mxu0 0.0
        %1614 = vmatpush1.msra.mxu0 0.0
        %1615 = vmatprep.subr.mxu0 0.0
        %1616 = vmatpush1.msra.mxu0 0.0
        %1617 = vmatprep.subr.mxu0 0.0
        %1618 = vmatpush1.msra.mxu0 0.0
        %1619 = vmatprep.subr.mxu0 0.0
        %1620 = vmatpush1.msra.mxu0 0.0
        %1621 = vmatprep.subr.mxu0 0.0
        %1622 = vmatpush1.msra.mxu0 0.0
        %1623 = vmatprep.subr.mxu0 0.0
        %1624 = vmatpush1.msra.mxu0 0.0
        %1625 = vmatprep.subr.mxu0 0.0
        %1626 = vmatpush1.msra.mxu0 0.0
        %1627 = vmatprep.subr.mxu0 0.0
        %1628 = vmatpush1.msra.mxu0 0.0
        %1629 = vmatprep.subr.mxu0 0.0
        %1630 = vmatpush1.msra.mxu0 0.0
        %1631 = vmatprep.subr.mxu0 0.0
        %1632 = vmatpush1.msra.mxu0 0.0
        %1633 = vmatprep.subr.mxu0 0.0
        %1634 = vmatpush1.msra.mxu0 0.0
        %1635 = vmatprep.subr.mxu0 0.0
        %1636 = vmatpush1.msra.mxu0 0.0
        %1637 = vmatprep.subr.mxu0 0.0
        %1638 = vmatpush1.msra.mxu0 0.0
        %1639 = vmatprep.subr.mxu0 0.0
        %1640 = vmatpush1.msra.mxu0 0.0
        %1641 = vmatprep.subr.mxu0 0.0
        %1642 = vmatpush1.msra.mxu0 0.0
        %1643 = vmatprep.subr.mxu0 0.0
        %1644 = vmatpush1.msra.mxu0 0.0
        %1645 = vmatprep.mubr.f32.mxu0 0.0
        %1646 = vmatmul.mubr.f32.gmra.mrb[0].mxu0 %v1579
        %v1647 = vpop.f32.mrb[0].mxu0
        %v1648 = vadd.f32 0.0, %v1647
        %v1649 = vpop.f32.mrb[0].mxu0
        %1650 = vdwg.mxu0
        %v1652 = vsel %vm984, %v1148, 0
        %1654 = vmatprep.subr.mxu0 0.0
        %1655 = vmatpush1.msra.mxu0 %v1151
        %1656 = vmatprep.subr.mxu0 0.0
        %1657 = vmatpush1.msra.mxu0 0.0
        %1658 = vmatprep.subr.mxu0 0.0
        %1659 = vmatpush1.msra.mxu0 0.0
        %1660 = vmatprep.subr.mxu0 0.0
        %1661 = vmatpush1.msra.mxu0 0.0
        %1662 = vmatprep.subr.mxu0 0.0
        %1663 = vmatpush1.msra.mxu0 0.0
        %1664 = vmatprep.subr.mxu0 0.0
        %1665 = vmatpush1.msra.mxu0 0.0
        %1666 = vmatprep.subr.mxu0 0.0
        %1667 = vmatpush1.msra.mxu0 0.0
        %1668 = vmatprep.subr.mxu0 0.0
        %1669 = vmatpush1.msra.mxu0 0.0
        %1670 = vmatprep.subr.mxu0 0.0
        %1671 = vmatpush1.msra.mxu0 0.0
        %1672 = vmatprep.subr.mxu0 0.0
        %1673 = vmatpush1.msra.mxu0 0.0
        %1674 = vmatprep.subr.mxu0 0.0
        %1675 = vmatpush1.msra.mxu0 0.0
        %1676 = vmatprep.subr.mxu0 0.0
        %1677 = vmatpush1.msra.mxu0 0.0
        %1678 = vmatprep.subr.mxu0 0.0
        %1679 = vmatpush1.msra.mxu0 0.0
        %1680 = vmatprep.subr.mxu0 0.0
        %1681 = vmatpush1.msra.mxu0 0.0
        %1682 = vmatprep.subr.mxu0 0.0
        %1683 = vmatpush1.msra.mxu0 0.0
        %1684 = vmatprep.subr.mxu0 0.0
        %1685 = vmatpush1.msra.mxu0 0.0
        %1686 = vmatprep.subr.mxu0 0.0
        %1687 = vmatpush1.msra.mxu0 0.0
        %1688 = vmatprep.subr.mxu0 0.0
        %1689 = vmatpush1.msra.mxu0 0.0
        %1690 = vmatprep.subr.mxu0 0.0
        %1691 = vmatpush1.msra.mxu0 0.0
        %1692 = vmatprep.subr.mxu0 0.0
        %1693 = vmatpush1.msra.mxu0 0.0
        %1694 = vmatprep.subr.mxu0 0.0
        %1695 = vmatpush1.msra.mxu0 0.0
        %1696 = vmatprep.subr.mxu0 0.0
        %1697 = vmatpush1.msra.mxu0 0.0
        %1698 = vmatprep.subr.mxu0 0.0
        %1699 = vmatpush1.msra.mxu0 0.0
        %1700 = vmatprep.subr.mxu0 0.0
        %1701 = vmatpush1.msra.mxu0 0.0
        %1702 = vmatprep.subr.mxu0 0.0
        %1703 = vmatpush1.msra.mxu0 0.0
        %1704 = vmatprep.subr.mxu0 0.0
        %1705 = vmatpush1.msra.mxu0 0.0
        %1706 = vmatprep.subr.mxu0 0.0
        %1707 = vmatpush1.msra.mxu0 0.0
        %1708 = vmatprep.subr.mxu0 0.0
        %1709 = vmatpush1.msra.mxu0 0.0
        %1710 = vmatprep.subr.mxu0 0.0
        %1711 = vmatpush1.msra.mxu0 0.0
        %1712 = vmatprep.subr.mxu0 0.0
        %1713 = vmatpush1.msra.mxu0 0.0
        %1714 = vmatprep.subr.mxu0 0.0
        %1715 = vmatpush1.msra.mxu0 0.0
        %1716 = vmatprep.subr.mxu0 0.0
        %1717 = vmatpush1.msra.mxu0 0.0
        %1718 = vmatprep.mubr.f32.mxu0 0.0
        %1719 = vmatmul.mubr.f32.gmra.mrb[0].mxu0 %v1652
        %v1720 = vpop.f32.mrb[0].mxu0
        %v1721 = vadd.f32 %v1648, %v1720
        %v1722 = vpop.f32.mrb[0].mxu0
        %1723 = vdwg.mxu0
        %s1724 = scalar_lea.vmem %s3, 64
        %v1725 = vld [vmem:[%s1724] sm:$0xff]
        %v1726 = vld [vmem:[%s1724 + $0x8] sm:$0xff]
        %v1727 = vld [vmem:[%s1724 + $0x10] sm:$0xff]
        %v1728 = vld [vmem:[%s1724 + $0x18] sm:$0xff]
        %s1729 = scalar_lea.vmem %s4, 2
        %v1730 = vld [vmem:[%s1729] sm:$0x1]
        %v1732 = vlaneseq
        %v1733 = vshrl.u32 %v1732, 7
        %v1734 = vsub.s32 0, %v1733
        %v1735 = vrot.slane %v1730, %v1734
        %1737 = vmatprep.subr.mxu0 0.0
        %1738 = vmatpush1.msra.mxu0 %v1725
        %1739 = vmatprep.subr.mxu0 0.0
        %1740 = vmatpush1.msra.mxu0 %v1726
        %1741 = vmatprep.subr.mxu0 0.0
        %1742 = vmatpush1.msra.mxu0 %v1727
        %1743 = vmatprep.subr.mxu0 0.0
        %1744 = vmatpush1.msra.mxu0 %v1728
        %1745 = vmatprep.subr.mxu0 0.0
        %1746 = vmatpush1.msra.mxu0 0.0
        %1747 = vmatprep.subr.mxu0 0.0
        %1748 = vmatpush1.msra.mxu0 0.0
        %1749 = vmatprep.subr.mxu0 0.0
        %1750 = vmatpush1.msra.mxu0 0.0
        %1751 = vmatprep.subr.mxu0 0.0
        %1752 = vmatpush1.msra.mxu0 0.0
        %1753 = vmatprep.subr.mxu0 0.0
        %1754 = vmatpush1.msra.mxu0 0.0
        %1755 = vmatprep.subr.mxu0 0.0
        %1756 = vmatpush1.msra.mxu0 0.0
        %1757 = vmatprep.subr.mxu0 0.0
        %1758 = vmatpush1.msra.mxu0 0.0
        %1759 = vmatprep.subr.mxu0 0.0
        %1760 = vmatpush1.msra.mxu0 0.0
        %1761 = vmatprep.subr.mxu0 0.0
        %1762 = vmatpush1.msra.mxu0 0.0
        %1763 = vmatprep.subr.mxu0 0.0
        %1764 = vmatpush1.msra.mxu0 0.0
        %1765 = vmatprep.subr.mxu0 0.0
        %1766 = vmatpush1.msra.mxu0 0.0
        %1767 = vmatprep.subr.mxu0 0.0
        %1768 = vmatpush1.msra.mxu0 0.0
        %1769 = vmatprep.subr.mxu0 0.0
        %1770 = vmatpush1.msra.mxu0 0.0
        %1771 = vmatprep.subr.mxu0 0.0
        %1772 = vmatpush1.msra.mxu0 0.0
        %1773 = vmatprep.subr.mxu0 0.0
        %1774 = vmatpush1.msra.mxu0 0.0
        %1775 = vmatprep.subr.mxu0 0.0
        %1776 = vmatpush1.msra.mxu0 0.0
        %1777 = vmatprep.subr.mxu0 0.0
        %1778 = vmatpush1.msra.mxu0 0.0
        %1779 = vmatprep.subr.mxu0 0.0
        %1780 = vmatpush1.msra.mxu0 0.0
        %1781 = vmatprep.subr.mxu0 0.0
        %1782 = vmatpush1.msra.mxu0 0.0
        %1783 = vmatprep.subr.mxu0 0.0
        %1784 = vmatpush1.msra.mxu0 0.0
        %1785 = vmatprep.subr.mxu0 0.0
        %1786 = vmatpush1.msra.mxu0 0.0
        %1787 = vmatprep.subr.mxu0 0.0
        %1788 = vmatpush1.msra.mxu0 0.0
        %1789 = vmatprep.subr.mxu0 0.0
        %1790 = vmatpush1.msra.mxu0 0.0
        %1791 = vmatprep.subr.mxu0 0.0
        %1792 = vmatpush1.msra.mxu0 0.0
        %1793 = vmatprep.subr.mxu0 0.0
        %1794 = vmatpush1.msra.mxu0 0.0
        %1795 = vmatprep.subr.mxu0 0.0
        %1796 = vmatpush1.msra.mxu0 0.0
        %1797 = vmatprep.subr.mxu0 0.0
        %1798 = vmatpush1.msra.mxu0 0.0
        %1799 = vmatprep.subr.mxu0 0.0
        %1800 = vmatpush1.msra.mxu0 0.0
        %1801 = vmatprep.mubr.f32.mxu0 0.0
        %1802 = vmatmul.mubr.f32.gmra.mrb[0].mxu0 %v734
        %v1803 = vpop.f32.mrb[0].mxu0
        %v1804 = vadd.f32 %v1735, %v1803
        %v1805 = vpop.f32.mrb[0].mxu0
        %1806 = vdwg.mxu0
        %s1807 = scalar_lea.vmem %s5, 64
        %v1808 = vld [vmem:[%s1807] sm:$0xff]
        %v1809 = vld [vmem:[%s1807 + $0x8] sm:$0xff]
        %v1810 = vld [vmem:[%s1807 + $0x10] sm:$0xff]
        %v1811 = vld [vmem:[%s1807 + $0x18] sm:$0xff]
        %s1812 = scalar_lea.vmem %s6, 2
        %v1813 = vld [vmem:[%s1812] sm:$0x1]
        %v1815 = vlaneseq
        %v1816 = vshrl.u32 %v1815, 7
        %v1817 = vsub.s32 0, %v1816
        %v1818 = vrot.slane %v1813, %v1817
        %1820 = vmatprep.subr.mxu0 0.0
        %1821 = vmatpush1.msra.mxu0 %v1808
        %1822 = vmatprep.subr.mxu0 0.0
        %1823 = vmatpush1.msra.mxu0 %v1809
        %1824 = vmatprep.subr.mxu0 0.0
        %1825 = vmatpush1.msra.mxu0 %v1810
        %1826 = vmatprep.subr.mxu0 0.0
        %1827 = vmatpush1.msra.mxu0 %v1811
        %1828 = vmatprep.subr.mxu0 0.0
        %1829 = vmatpush1.msra.mxu0 0.0
        %1830 = vmatprep.subr.mxu0 0.0
        %1831 = vmatpush1.msra.mxu0 0.0
        %1832 = vmatprep.subr.mxu0 0.0
        %1833 = vmatpush1.msra.mxu0 0.0
        %1834 = vmatprep.subr.mxu0 0.0
        %1835 = vmatpush1.msra.mxu0 0.0
        %1836 = vmatprep.subr.mxu0 0.0
        %1837 = vmatpush1.msra.mxu0 0.0
        %1838 = vmatprep.subr.mxu0 0.0
        %1839 = vmatpush1.msra.mxu0 0.0
        %1840 = vmatprep.subr.mxu0 0.0
        %1841 = vmatpush1.msra.mxu0 0.0
        %1842 = vmatprep.subr.mxu0 0.0
        %1843 = vmatpush1.msra.mxu0 0.0
        %1844 = vmatprep.subr.mxu0 0.0
        %1845 = vmatpush1.msra.mxu0 0.0
        %1846 = vmatprep.subr.mxu0 0.0
        %1847 = vmatpush1.msra.mxu0 0.0
        %1848 = vmatprep.subr.mxu0 0.0
        %1849 = vmatpush1.msra.mxu0 0.0
        %1850 = vmatprep.subr.mxu0 0.0
        %1851 = vmatpush1.msra.mxu0 0.0
        %1852 = vmatprep.subr.mxu0 0.0
        %1853 = vmatpush1.msra.mxu0 0.0
        %1854 = vmatprep.subr.mxu0 0.0
        %1855 = vmatpush1.msra.mxu0 0.0
        %1856 = vmatprep.subr.mxu0 0.0
        %1857 = vmatpush1.msra.mxu0 0.0
        %1858 = vmatprep.subr.mxu0 0.0
        %1859 = vmatpush1.msra.mxu0 0.0
        %1860 = vmatprep.subr.mxu0 0.0
        %1861 = vmatpush1.msra.mxu0 0.0
        %1862 = vmatprep.subr.mxu0 0.0
        %1863 = vmatpush1.msra.mxu0 0.0
        %1864 = vmatprep.subr.mxu0 0.0
        %1865 = vmatpush1.msra.mxu0 0.0
        %1866 = vmatprep.subr.mxu0 0.0
        %1867 = vmatpush1.msra.mxu0 0.0
        %1868 = vmatprep.subr.mxu0 0.0
        %1869 = vmatpush1.msra.mxu0 0.0
        %1870 = vmatprep.subr.mxu0 0.0
        %1871 = vmatpush1.msra.mxu0 0.0
        %1872 = vmatprep.subr.mxu0 0.0
        %1873 = vmatpush1.msra.mxu0 0.0
        %1874 = vmatprep.subr.mxu0 0.0
        %1875 = vmatpush1.msra.mxu0 0.0
        %1876 = vmatprep.subr.mxu0 0.0
        %1877 = vmatpush1.msra.mxu0 0.0
        %1878 = vmatprep.subr.mxu0 0.0
        %1879 = vmatpush1.msra.mxu0 0.0
        %1880 = vmatprep.subr.mxu0 0.0
        %1881 = vmatpush1.msra.mxu0 0.0
        %1882 = vmatprep.subr.mxu0 0.0
        %1883 = vmatpush1.msra.mxu0 0.0
        %1884 = vmatprep.mubr.f32.mxu0 0.0
        %1885 = vmatmul.mubr.f32.gmra.mrb[0].mxu0 %v818
        %v1886 = vpop.f32.mrb[0].mxu0
        %v1887 = vadd.f32 %v1818, %v1886
        %v1888 = vpop.f32.mrb[0].mxu0
        %1889 = vmatprep.mubr.f32.mxu0 0.0
        %1890 = vmatmul.mubr.f32.gmra.mrb[0].mxu0 %v821
        %v1891 = vpop.f32.mrb[0].mxu0
        %v1892 = vadd.f32 %v1818, %v1891
        %v1893 = vpop.f32.mrb[0].mxu0
        %1894 = vdwg.mxu0
        %s1895 = scalar_lea.vmem %s7, 64
        %v1896 = vld [vmem:[%s1895] sm:$0xff]
        %v1897 = vld [vmem:[%s1895 + $0x8] sm:$0xff]
        %v1898 = vld [vmem:[%s1895 + $0x10] sm:$0xff]
        %v1899 = vld [vmem:[%s1895 + $0x18] sm:$0xff]
        %s1900 = scalar_lea.vmem %s8, 2
        %v1901 = vld [vmem:[%s1900] sm:$0x1]
        %v1903 = vlaneseq
        %v1904 = vshrl.u32 %v1903, 7
        %v1905 = vsub.s32 0, %v1904
        %v1906 = vrot.slane %v1901, %v1905
        %1908 = vmatprep.subr.mxu0 0.0
        %1909 = vmatpush1.msra.mxu0 %v1896
        %1910 = vmatprep.subr.mxu0 0.0
        %1911 = vmatpush1.msra.mxu0 %v1897
        %1912 = vmatprep.subr.mxu0 0.0
        %1913 = vmatpush1.msra.mxu0 %v1898
        %1914 = vmatprep.subr.mxu0 0.0
        %1915 = vmatpush1.msra.mxu0 %v1899
        %1916 = vmatprep.subr.mxu0 0.0
        %1917 = vmatpush1.msra.mxu0 0.0
        %1918 = vmatprep.subr.mxu0 0.0
        %1919 = vmatpush1.msra.mxu0 0.0
        %1920 = vmatprep.subr.mxu0 0.0
        %1921 = vmatpush1.msra.mxu0 0.0
        %1922 = vmatprep.subr.mxu0 0.0
        %1923 = vmatpush1.msra.mxu0 0.0
        %1924 = vmatprep.subr.mxu0 0.0
        %1925 = vmatpush1.msra.mxu0 0.0
        %1926 = vmatprep.subr.mxu0 0.0
        %1927 = vmatpush1.msra.mxu0 0.0
        %1928 = vmatprep.subr.mxu0 0.0
        %1929 = vmatpush1.msra.mxu0 0.0
        %1930 = vmatprep.subr.mxu0 0.0
        %1931 = vmatpush1.msra.mxu0 0.0
        %1932 = vmatprep.subr.mxu0 0.0
        %1933 = vmatpush1.msra.mxu0 0.0
        %1934 = vmatprep.subr.mxu0 0.0
        %1935 = vmatpush1.msra.mxu0 0.0
        %1936 = vmatprep.subr.mxu0 0.0
        %1937 = vmatpush1.msra.mxu0 0.0
        %1938 = vmatprep.subr.mxu0 0.0
        %1939 = vmatpush1.msra.mxu0 0.0
        %1940 = vmatprep.subr.mxu0 0.0
        %1941 = vmatpush1.msra.mxu0 0.0
        %1942 = vmatprep.subr.mxu0 0.0
        %1943 = vmatpush1.msra.mxu0 0.0
        %1944 = vmatprep.subr.mxu0 0.0
        %1945 = vmatpush1.msra.mxu0 0.0
        %1946 = vmatprep.subr.mxu0 0.0
        %1947 = vmatpush1.msra.mxu0 0.0
        %1948 = vmatprep.subr.mxu0 0.0
        %1949 = vmatpush1.msra.mxu0 0.0
        %1950 = vmatprep.subr.mxu0 0.0
        %1951 = vmatpush1.msra.mxu0 0.0
        %1952 = vmatprep.subr.mxu0 0.0
        %1953 = vmatpush1.msra.mxu0 0.0
        %1954 = vmatprep.subr.mxu0 0.0
        %1955 = vmatpush1.msra.mxu0 0.0
        %1956 = vmatprep.subr.mxu0 0.0
        %1957 = vmatpush1.msra.mxu0 0.0
        %1958 = vmatprep.subr.mxu0 0.0
        %1959 = vmatpush1.msra.mxu0 0.0
        %1960 = vmatprep.subr.mxu0 0.0
        %1961 = vmatpush1.msra.mxu0 0.0
        %1962 = vmatprep.subr.mxu0 0.0
        %1963 = vmatpush1.msra.mxu0 0.0
        %1964 = vmatprep.subr.mxu0 0.0
        %1965 = vmatpush1.msra.mxu0 0.0
        %1966 = vmatprep.subr.mxu0 0.0
        %1967 = vmatpush1.msra.mxu0 0.0
        %1968 = vmatprep.subr.mxu0 0.0
        %1969 = vmatpush1.msra.mxu0 0.0
        %1970 = vmatprep.subr.mxu0 0.0
        %1971 = vmatpush1.msra.mxu0 0.0
        %1972 = vmatprep.mubr.f32.mxu0 0.0
        %1973 = vmatmul.mubr.f32.gmra.mrb[0].mxu0 %v818
        %v1974 = vpop.f32.mrb[0].mxu0
        %v1975 = vadd.f32 %v1906, %v1974
        %v1976 = vpop.f32.mrb[0].mxu0
        %1977 = vmatprep.mubr.f32.mxu0 0.0
        %1978 = vmatmul.mubr.f32.gmra.mrb[0].mxu0 %v821
        %v1979 = vpop.f32.mrb[0].mxu0
        %v1980 = vadd.f32 %v1906, %v1979
        %v1981 = vpop.f32.mrb[0].mxu0
        %1982 = vdwg.mxu0
        %v1984 = vsel %vm984, %v1804, 0
        %v1987 = vsel %vm984, %v1887, 0
        %v1990 = vsel %vm984, %v1892, 0
        %1992 = vmatprep.subr.mxu0 0.0
        %1993 = vmatpush1.xpose.msra.mxu0 %v1987
        %1994 = vmatprep.subr.mxu0 0.0
        %1995 = vmatpush1.xpose.msra.mxu0 %v1990
        %1996 = vmatprep.subr.mxu0 0.0
        %1997 = vmatpush1.xpose.msra.mxu0 0.0
        %1998 = vmatprep.subr.mxu0 0.0
        %1999 = vmatpush1.xpose.msra.mxu0 0.0
        %2000 = vmatprep.subr.mxu0 0.0
        %2001 = vmatpush1.xpose.msra.mxu0 0.0
        %2002 = vmatprep.subr.mxu0 0.0
        %2003 = vmatpush1.xpose.msra.mxu0 0.0
        %2004 = vmatprep.subr.mxu0 0.0
        %2005 = vmatpush1.xpose.msra.mxu0 0.0
        %2006 = vmatprep.subr.mxu0 0.0
        %2007 = vmatpush1.xpose.msra.mxu0 0.0
        %2008 = vmatprep.subr.mxu0 0.0
        %2009 = vmatpush1.xpose.msra.mxu0 0.0
        %2010 = vmatprep.subr.mxu0 0.0
        %2011 = vmatpush1.xpose.msra.mxu0 0.0
        %2012 = vmatprep.subr.mxu0 0.0
        %2013 = vmatpush1.xpose.msra.mxu0 0.0
        %2014 = vmatprep.subr.mxu0 0.0
        %2015 = vmatpush1.xpose.msra.mxu0 0.0
        %2016 = vmatprep.subr.mxu0 0.0
        %2017 = vmatpush1.xpose.msra.mxu0 0.0
        %2018 = vmatprep.subr.mxu0 0.0
        %2019 = vmatpush1.xpose.msra.mxu0 0.0
        %2020 = vmatprep.subr.mxu0 0.0
        %2021 = vmatpush1.xpose.msra.mxu0 0.0
        %2022 = vmatprep.subr.mxu0 0.0
        %2023 = vmatpush1.xpose.msra.mxu0 0.0
        %2024 = vmatprep.subr.mxu0 0.0
        %2025 = vmatpush1.xpose.msra.mxu0 0.0
        %2026 = vmatprep.subr.mxu0 0.0
        %2027 = vmatpush1.xpose.msra.mxu0 0.0
        %2028 = vmatprep.subr.mxu0 0.0
        %2029 = vmatpush1.xpose.msra.mxu0 0.0
        %2030 = vmatprep.subr.mxu0 0.0
        %2031 = vmatpush1.xpose.msra.mxu0 0.0
        %2032 = vmatprep.subr.mxu0 0.0
        %2033 = vmatpush1.xpose.msra.mxu0 0.0
        %2034 = vmatprep.subr.mxu0 0.0
        %2035 = vmatpush1.xpose.msra.mxu0 0.0
        %2036 = vmatprep.subr.mxu0 0.0
        %2037 = vmatpush1.xpose.msra.mxu0 0.0
        %2038 = vmatprep.subr.mxu0 0.0
        %2039 = vmatpush1.xpose.msra.mxu0 0.0
        %2040 = vmatprep.subr.mxu0 0.0
        %2041 = vmatpush1.xpose.msra.mxu0 0.0
        %2042 = vmatprep.subr.mxu0 0.0
        %2043 = vmatpush1.xpose.msra.mxu0 0.0
        %2044 = vmatprep.subr.mxu0 0.0
        %2045 = vmatpush1.xpose.msra.mxu0 0.0
        %2046 = vmatprep.subr.mxu0 0.0
        %2047 = vmatpush1.xpose.msra.mxu0 0.0
        %2048 = vmatprep.subr.mxu0 0.0
        %2049 = vmatpush1.xpose.msra.mxu0 0.0
        %2050 = vmatprep.subr.mxu0 0.0
        %2051 = vmatpush1.xpose.msra.mxu0 0.0
        %2052 = vmatprep.subr.mxu0 0.0
        %2053 = vmatpush1.xpose.msra.mxu0 0.0
        %2054 = vmatprep.subr.mxu0 0.0
        %2055 = vmatpush1.xpose.msra.mxu0 0.0
        %2056 = vmatprep.mubr.f32.mxu0 0.0
        %2057 = vmatmul.mubr.f32.gmra.mrb[0].mxu0 %v1984
        %v2058 = vpop.f32.mrb[0].mxu0
        %v2059 = vadd.f32 0.0, %v2058
        %v2060 = vpop.f32.mrb[0].mxu0
        %2061 = vdwg.mxu0
        %v2062 = vmul.f32 %v2059, 0.35355338
        %v2063 = vadd.f32 %v2062, %v720
        %v2064 = vsel %vm1066, %v2063, -inf
        %2065 = vmax.xlane.f32.xlu0 %v2064
        %v2066 = vpop.xlane.xlu0 %2065
        %v2067 = vsub.f32 %v2063, %v2066
        %v2068 = vmul.f32 %v2067, 1.442695
        %v2069 = vpow.pop %v2068
        %v2070 = vsel %vm1066, %v2069, 0.0
        %2071 = vadd.xlane.f32.xlu0 %v2070
        %v2072 = vpop.xlane.xlu0 %2071
        %v2073 = vrcp.pop %v2072
        %v2074 = vmul.f32 %v2069, %v2073
        %v2076 = vsel %vm1066, %v2074, 0
        %2078 = vmatprep.subr.mxu0 0.0
        %2079 = vmatpush1.msra.mxu0 %v1975
        %2080 = vmatprep.subr.mxu0 0.0
        %2081 = vmatpush1.msra.mxu0 %v1980
        %2082 = vmatprep.subr.mxu0 0.0
        %2083 = vmatpush1.msra.mxu0 0.0
        %2084 = vmatprep.subr.mxu0 0.0
        %2085 = vmatpush1.msra.mxu0 0.0
        %2086 = vmatprep.subr.mxu0 0.0
        %2087 = vmatpush1.msra.mxu0 0.0
        %2088 = vmatprep.subr.mxu0 0.0
        %2089 = vmatpush1.msra.mxu0 0.0
        %2090 = vmatprep.subr.mxu0 0.0
        %2091 = vmatpush1.msra.mxu0 0.0
        %2092 = vmatprep.subr.mxu0 0.0
        %2093 = vmatpush1.msra.mxu0 0.0
        %2094 = vmatprep.subr.mxu0 0.0
        %2095 = vmatpush1.msra.mxu0 0.0
        %2096 = vmatprep.subr.mxu0 0.0
        %2097 = vmatpush1.msra.mxu0 0.0
        %2098 = vmatprep.subr.mxu0 0.0
        %2099 = vmatpush1.msra.mxu0 0.0
        %2100 = vmatprep.subr.mxu0 0.0
        %2101 = vmatpush1.msra.mxu0 0.0
        %2102 = vmatprep.subr.mxu0 0.0
        %2103 = vmatpush1.msra.mxu0 0.0
        %2104 = vmatprep.subr.mxu0 0.0
        %2105 = vmatpush1.msra.mxu0 0.0
        %2106 = vmatprep.subr.mxu0 0.0
        %2107 = vmatpush1.msra.mxu0 0.0
        %2108 = vmatprep.subr.mxu0 0.0
        %2109 = vmatpush1.msra.mxu0 0.0
        %2110 = vmatprep.subr.mxu0 0.0
        %2111 = vmatpush1.msra.mxu0 0.0
        %2112 = vmatprep.subr.mxu0 0.0
        %2113 = vmatpush1.msra.mxu0 0.0
        %2114 = vmatprep.subr.mxu0 0.0
        %2115 = vmatpush1.msra.mxu0 0.0
        %2116 = vmatprep.subr.mxu0 0.0
        %2117 = vmatpush1.msra.mxu0 0.0
        %2118 = vmatprep.subr.mxu0 0.0
        %2119 = vmatpush1.msra.mxu0 0.0
        %2120 = vmatprep.subr.mxu0 0.0
        %2121 = vmatpush1.msra.mxu0 0.0
        %2122 = vmatprep.subr.mxu0 0.0
        %2123 = vmatpush1.msra.mxu0 0.0
        %2124 = vmatprep.subr.mxu0 0.0
        %2125 = vmatpush1.msra.mxu0 0.0
        %2126 = vmatprep.subr.mxu0 0.0
        %2127 = vmatpush1.msra.mxu0 0.0
        %2128 = vmatprep.subr.mxu0 0.0
        %2129 = vmatpush1.msra.mxu0 0.0
        %2130 = vmatprep.subr.mxu0 0.0
        %2131 = vmatpush1.msra.mxu0 0.0
        %2132 = vmatprep.subr.mxu0 0.0
        %2133 = vmatpush1.msra.mxu0 0.0
        %2134 = vmatprep.subr.mxu0 0.0
        %2135 = vmatpush1.msra.mxu0 0.0
        %2136 = vmatprep.subr.mxu0 0.0
        %2137 = vmatpush1.msra.mxu0 0.0
        %2138 = vmatprep.subr.mxu0 0.0
        %2139 = vmatpush1.msra.mxu0 0.0
        %2140 = vmatprep.subr.mxu0 0.0
        %2141 = vmatpush1.msra.mxu0 0.0
        %2142 = vmatprep.mubr.f32.mxu0 0.0
        %2143 = vmatmul.mubr.f32.gmra.mrb[0].mxu0 %v2076
        %v2144 = vpop.f32.mrb[0].mxu0
        %v2145 = vadd.f32 0.0, %v2144
        %v2146 = vpop.f32.mrb[0].mxu0
        %2147 = vdwg.mxu0
        %s2148 = scalar_lea.vmem %s9, 16
        %v2149 = vld [vmem:[%s2148] sm:$0xff]
        %v2151 = vsel %vm984, %v2145, 0
        %2153 = vmatprep.subr.mxu0 0.0
        %2154 = vmatpush1.msra.mxu0 %v2149
        %2155 = vmatprep.subr.mxu0 0.0
        %2156 = vmatpush1.msra.mxu0 0.0
        %2157 = vmatprep.subr.mxu0 0.0
        %2158 = vmatpush1.msra.mxu0 0.0
        %2159 = vmatprep.subr.mxu0 0.0
        %2160 = vmatpush1.msra.mxu0 0.0
        %2161 = vmatprep.subr.mxu0 0.0
        %2162 = vmatpush1.msra.mxu0 0.0
        %2163 = vmatprep.subr.mxu0 0.0
        %2164 = vmatpush1.msra.mxu0 0.0
        %2165 = vmatprep.subr.mxu0 0.0
        %2166 = vmatpush1.msra.mxu0 0.0
        %2167 = vmatprep.subr.mxu0 0.0
        %2168 = vmatpush1.msra.mxu0 0.0
        %2169 = vmatprep.subr.mxu0 0.0
        %2170 = vmatpush1.msra.mxu0 0.0
        %2171 = vmatprep.subr.mxu0 0.0
        %2172 = vmatpush1.msra.mxu0 0.0
        %2173 = vmatprep.subr.mxu0 0.0
        %2174 = vmatpush1.msra.mxu0 0.0
        %2175 = vmatprep.subr.mxu0 0.0
        %2176 = vmatpush1.msra.mxu0 0.0
        %2177 = vmatprep.subr.mxu0 0.0
        %2178 = vmatpush1.msra.mxu0 0.0
        %2179 = vmatprep.subr.mxu0 0.0
        %2180 = vmatpush1.msra.mxu0 0.0
        %2181 = vmatprep.subr.mxu0 0.0
        %2182 = vmatpush1.msra.mxu0 0.0
        %2183 = vmatprep.subr.mxu0 0.0
        %2184 = vmatpush1.msra.mxu0 0.0
        %2185 = vmatprep.subr.mxu0 0.0
        %2186 = vmatpush1.msra.mxu0 0.0
        %2187 = vmatprep.subr.mxu0 0.0
        %2188 = vmatpush1.msra.mxu0 0.0
        %2189 = vmatprep.subr.mxu0 0.0
        %2190 = vmatpush1.msra.mxu0 0.0
        %2191 = vmatprep.subr.mxu0 0.0
        %2192 = vmatpush1.msra.mxu0 0.0
        %2193 = vmatprep.subr.mxu0 0.0
        %2194 = vmatpush1.msra.mxu0 0.0
        %2195 = vmatprep.subr.mxu0 0.0
        %2196 = vmatpush1.msra.mxu0 0.0
        %2197 = vmatprep.subr.mxu0 0.0
        %2198 = vmatpush1.msra.mxu0 0.0
        %2199 = vmatprep.subr.mxu0 0.0
        %2200 = vmatpush1.msra.mxu0 0.0
        %2201 = vmatprep.subr.mxu0 0.0
        %2202 = vmatpush1.msra.mxu0 0.0
        %2203 = vmatprep.subr.mxu0 0.0
        %2204 = vmatpush1.msra.mxu0 0.0
        %2205 = vmatprep.subr.mxu0 0.0
        %2206 = vmatpush1.msra.mxu0 0.0
        %2207 = vmatprep.subr.mxu0 0.0
        %2208 = vmatpush1.msra.mxu0 0.0
        %2209 = vmatprep.subr.mxu0 0.0
        %2210 = vmatpush1.msra.mxu0 0.0
        %2211 = vmatprep.subr.mxu0 0.0
        %2212 = vmatpush1.msra.mxu0 0.0
        %2213 = vmatprep.subr.mxu0 0.0
        %2214 = vmatpush1.msra.mxu0 0.0
        %2215 = vmatprep.subr.mxu0 0.0
        %2216 = vmatpush1.msra.mxu0 0.0
        %2217 = vmatprep.mubr.f32.mxu0 0.0
        %2218 = vmatmul.mubr.f32.gmra.mrb[0].mxu0 %v2151
        %v2219 = vpop.f32.mrb[0].mxu0
        %v2220 = vadd.f32 0.0, %v2219
        %v2221 = vpop.f32.mrb[0].mxu0
        %2222 = vdwg.mxu0
        %v2223 = vadd.f32 %v1721, %v2220
        %s2224 = scalar_lea.vmem %s3, 96
        %v2225 = vld [vmem:[%s2224] sm:$0xff]
        %v2226 = vld [vmem:[%s2224 + $0x8] sm:$0xff]
        %v2227 = vld [vmem:[%s2224 + $0x10] sm:$0xff]
        %v2228 = vld [vmem:[%s2224 + $0x18] sm:$0xff]
        %s2229 = scalar_lea.vmem %s4, 3
        %v2230 = vld [vmem:[%s2229] sm:$0x1]
        %v2232 = vlaneseq
        %v2233 = vshrl.u32 %v2232, 7
        %v2234 = vsub.s32 0, %v2233
        %v2235 = vrot.slane %v2230, %v2234
        %2237 = vmatprep.subr.mxu0 0.0
        %2238 = vmatpush1.msra.mxu0 %v2225
        %2239 = vmatprep.subr.mxu0 0.0
        %2240 = vmatpush1.msra.mxu0 %v2226
        %2241 = vmatprep.subr.mxu0 0.0
        %2242 = vmatpush1.msra.mxu0 %v2227
        %2243 = vmatprep.subr.mxu0 0.0
        %2244 = vmatpush1.msra.mxu0 %v2228
        %2245 = vmatprep.subr.mxu0 0.0
        %2246 = vmatpush1.msra.mxu0 0.0
        %2247 = vmatprep.subr.mxu0 0.0
        %2248 = vmatpush1.msra.mxu0 0.0
        %2249 = vmatprep.subr.mxu0 0.0
        %2250 = vmatpush1.msra.mxu0 0.0
        %2251 = vmatprep.subr.mxu0 0.0
        %2252 = vmatpush1.msra.mxu0 0.0
        %2253 = vmatprep.subr.mxu0 0.0
        %2254 = vmatpush1.msra.mxu0 0.0
        %2255 = vmatprep.subr.mxu0 0.0
        %2256 = vmatpush1.msra.mxu0 0.0
        %2257 = vmatprep.subr.mxu0 0.0
        %2258 = vmatpush1.msra.mxu0 0.0
        %2259 = vmatprep.subr.mxu0 0.0
        %2260 = vmatpush1.msra.mxu0 0.0
        %2261 = vmatprep.subr.mxu0 0.0
        %2262 = vmatpush1.msra.mxu0 0.0
        %2263 = vmatprep.subr.mxu0 0.0
        %2264 = vmatpush1.msra.mxu0 0.0
        %2265 = vmatprep.subr.mxu0 0.0
        %2266 = vmatpush1.msra.mxu0 0.0
        %2267 = vmatprep.subr.mxu0 0.0
        %2268 = vmatpush1.msra.mxu0 0.0
        %2269 = vmatprep.subr.mxu0 0.0
        %2270 = vmatpush1.msra.mxu0 0.0
        %2271 = vmatprep.subr.mxu0 0.0
        %2272 = vmatpush1.msra.mxu0 0.0
        %2273 = vmatprep.subr.mxu0 0.0
        %2274 = vmatpush1.msra.mxu0 0.0
        %2275 = vmatprep.subr.mxu0 0.0
        %2276 = vmatpush1.msra.mxu0 0.0
        %2277 = vmatprep.subr.mxu0 0.0
        %2278 = vmatpush1.msra.mxu0 0.0
        %2279 = vmatprep.subr.mxu0 0.0
        %2280 = vmatpush1.msra.mxu0 0.0
        %2281 = vmatprep.subr.mxu0 0.0
        %2282 = vmatpush1.msra.mxu0 0.0
        %2283 = vmatprep.subr.mxu0 0.0
        %2284 = vmatpush1.msra.mxu0 0.0
        %2285 = vmatprep.subr.mxu0 0.0
        %2286 = vmatpush1.msra.mxu0 0.0
        %2287 = vmatprep.subr.mxu0 0.0
        %2288 = vmatpush1.msra.mxu0 0.0
        %2289 = vmatprep.subr.mxu0 0.0
        %2290 = vmatpush1.msra.mxu0 0.0
        %2291 = vmatprep.subr.mxu0 0.0
        %2292 = vmatpush1.msra.mxu0 0.0
        %2293 = vmatprep.subr.mxu0 0.0
        %2294 = vmatpush1.msra.mxu0 0.0
        %2295 = vmatprep.subr.mxu0 0.0
        %2296 = vmatpush1.msra.mxu0 0.0
        %2297 = vmatprep.subr.mxu0 0.0
        %2298 = vmatpush1.msra.mxu0 0.0
        %2299 = vmatprep.subr.mxu0 0.0
        %2300 = vmatpush1.msra.mxu0 0.0
        %2301 = vmatprep.mubr.f32.mxu0 0.0
        %2302 = vmatmul.mubr.f32.gmra.mrb[0].mxu0 %v734
        %v2303 = vpop.f32.mrb[0].mxu0
        %v2304 = vadd.f32 %v2235, %v2303
        %v2305 = vpop.f32.mrb[0].mxu0
        %2306 = vdwg.mxu0
        %s2307 = scalar_lea.vmem %s5, 96
        %v2308 = vld [vmem:[%s2307] sm:$0xff]
        %v2309 = vld [vmem:[%s2307 + $0x8] sm:$0xff]
        %v2310 = vld [vmem:[%s2307 + $0x10] sm:$0xff]
        %v2311 = vld [vmem:[%s2307 + $0x18] sm:$0xff]
        %s2312 = scalar_lea.vmem %s6, 3
        %v2313 = vld [vmem:[%s2312] sm:$0x1]
        %v2315 = vlaneseq
        %v2316 = vshrl.u32 %v2315, 7
        %v2317 = vsub.s32 0, %v2316
        %v2318 = vrot.slane %v2313, %v2317
        %2320 = vmatprep.subr.mxu0 0.0
        %2321 = vmatpush1.msra.mxu0 %v2308
        %2322 = vmatprep.subr.mxu0 0.0
        %2323 = vmatpush1.msra.mxu0 %v2309
        %2324 = vmatprep.subr.mxu0 0.0
        %2325 = vmatpush1.msra.mxu0 %v2310
        %2326 = vmatprep.subr.mxu0 0.0
        %2327 = vmatpush1.msra.mxu0 %v2311
        %2328 = vmatprep.subr.mxu0 0.0
        %2329 = vmatpush1.msra.mxu0 0.0
        %2330 = vmatprep.subr.mxu0 0.0
        %2331 = vmatpush1.msra.mxu0 0.0
        %2332 = vmatprep.subr.mxu0 0.0
        %2333 = vmatpush1.msra.mxu0 0.0
        %2334 = vmatprep.subr.mxu0 0.0
        %2335 = vmatpush1.msra.mxu0 0.0
        %2336 = vmatprep.subr.mxu0 0.0
        %2337 = vmatpush1.msra.mxu0 0.0
        %2338 = vmatprep.subr.mxu0 0.0
        %2339 = vmatpush1.msra.mxu0 0.0
        %2340 = vmatprep.subr.mxu0 0.0
        %2341 = vmatpush1.msra.mxu0 0.0
        %2342 = vmatprep.subr.mxu0 0.0
        %2343 = vmatpush1.msra.mxu0 0.0
        %2344 = vmatprep.subr.mxu0 0.0
        %2345 = vmatpush1.msra.mxu0 0.0
        %2346 = vmatprep.subr.mxu0 0.0
        %2347 = vmatpush1.msra.mxu0 0.0
        %2348 = vmatprep.subr.mxu0 0.0
        %2349 = vmatpush1.msra.mxu0 0.0
        %2350 = vmatprep.subr.mxu0 0.0
        %2351 = vmatpush1.msra.mxu0 0.0
        %2352 = vmatprep.subr.mxu0 0.0
        %2353 = vmatpush1.msra.mxu0 0.0
        %2354 = vmatprep.subr.mxu0 0.0
        %2355 = vmatpush1.msra.mxu0 0.0
        %2356 = vmatprep.subr.mxu0 0.0
        %2357 = vmatpush1.msra.mxu0 0.0
        %2358 = vmatprep.subr.mxu0 0.0
        %2359 = vmatpush1.msra.mxu0 0.0
        %2360 = vmatprep.subr.mxu0 0.0
        %2361 = vmatpush1.msra.mxu0 0.0
        %2362 = vmatprep.subr.mxu0 0.0
        %2363 = vmatpush1.msra.mxu0 0.0
        %2364 = vmatprep.subr.mxu0 0.0
        %2365 = vmatpush1.msra.mxu0 0.0
        %2366 = vmatprep.subr.mxu0 0.0
        %2367 = vmatpush1.msra.mxu0 0.0
        %2368 = vmatprep.subr.mxu0 0.0
        %2369 = vmatpush1.msra.mxu0 0.0
        %2370 = vmatprep.subr.mxu0 0.0
        %2371 = vmatpush1.msra.mxu0 0.0
        %2372 = vmatprep.subr.mxu0 0.0
        %2373 = vmatpush1.msra.mxu0 0.0
        %2374 = vmatprep.subr.mxu0 0.0
        %2375 = vmatpush1.msra.mxu0 0.0
        %2376 = vmatprep.subr.mxu0 0.0
        %2377 = vmatpush1.msra.mxu0 0.0
        %2378 = vmatprep.subr.mxu0 0.0
        %2379 = vmatpush1.msra.mxu0 0.0
        %2380 = vmatprep.subr.mxu0 0.0
        %2381 = vmatpush1.msra.mxu0 0.0
        %2382 = vmatprep.subr.mxu0 0.0
        %2383 = vmatpush1.msra.mxu0 0.0
        %2384 = vmatprep.mubr.f32.mxu0 0.0
        %2385 = vmatmul.mubr.f32.gmra.mrb[0].mxu0 %v818
        %v2386 = vpop.f32.mrb[0].mxu0
        %v2387 = vadd.f32 %v2318, %v2386
        %v2388 = vpop.f32.mrb[0].mxu0
        %2389 = vmatprep.mubr.f32.mxu0 0.0
        %2390 = vmatmul.mubr.f32.gmra.mrb[0].mxu0 %v821
        %v2391 = vpop.f32.mrb[0].mxu0
        %v2392 = vadd.f32 %v2318, %v2391
        %v2393 = vpop.f32.mrb[0].mxu0
        %2394 = vdwg.mxu0
        %s2395 = scalar_lea.vmem %s7, 96
        %v2396 = vld [vmem:[%s2395] sm:$0xff]
        %v2397 = vld [vmem:[%s2395 + $0x8] sm:$0xff]
        %v2398 = vld [vmem:[%s2395 + $0x10] sm:$0xff]
        %v2399 = vld [vmem:[%s2395 + $0x18] sm:$0xff]
        %s2400 = scalar_lea.vmem %s8, 3
        %v2401 = vld [vmem:[%s2400] sm:$0x1]
        %v2403 = vlaneseq
        %v2404 = vshrl.u32 %v2403, 7
        %v2405 = vsub.s32 0, %v2404
        %v2406 = vrot.slane %v2401, %v2405
        %2408 = vmatprep.subr.mxu0 0.0
        %2409 = vmatpush1.msra.mxu0 %v2396
        %2410 = vmatprep.subr.mxu0 0.0
        %2411 = vmatpush1.msra.mxu0 %v2397
        %2412 = vmatprep.subr.mxu0 0.0
        %2413 = vmatpush1.msra.mxu0 %v2398
        %2414 = vmatprep.subr.mxu0 0.0
        %2415 = vmatpush1.msra.mxu0 %v2399
        %2416 = vmatprep.subr.mxu0 0.0
        %2417 = vmatpush1.msra.mxu0 0.0
        %2418 = vmatprep.subr.mxu0 0.0
        %2419 = vmatpush1.msra.mxu0 0.0
        %2420 = vmatprep.subr.mxu0 0.0
        %2421 = vmatpush1.msra.mxu0 0.0
        %2422 = vmatprep.subr.mxu0 0.0
        %2423 = vmatpush1.msra.mxu0 0.0
        %2424 = vmatprep.subr.mxu0 0.0
        %2425 = vmatpush1.msra.mxu0 0.0
        %2426 = vmatprep.subr.mxu0 0.0
        %2427 = vmatpush1.msra.mxu0 0.0
        %2428 = vmatprep.subr.mxu0 0.0
        %2429 = vmatpush1.msra.mxu0 0.0
        %2430 = vmatprep.subr.mxu0 0.0
        %2431 = vmatpush1.msra.mxu0 0.0
        %2432 = vmatprep.subr.mxu0 0.0
        %2433 = vmatpush1.msra.mxu0 0.0
        %2434 = vmatprep.subr.mxu0 0.0
        %2435 = vmatpush1.msra.mxu0 0.0
        %2436 = vmatprep.subr.mxu0 0.0
        %2437 = vmatpush1.msra.mxu0 0.0
        %2438 = vmatprep.subr.mxu0 0.0
        %2439 = vmatpush1.msra.mxu0 0.0
        %2440 = vmatprep.subr.mxu0 0.0
        %2441 = vmatpush1.msra.mxu0 0.0
        %2442 = vmatprep.subr.mxu0 0.0
        %2443 = vmatpush1.msra.mxu0 0.0
        %2444 = vmatprep.subr.mxu0 0.0
        %2445 = vmatpush1.msra.mxu0 0.0
        %2446 = vmatprep.subr.mxu0 0.0
        %2447 = vmatpush1.msra.mxu0 0.0
        %2448 = vmatprep.subr.mxu0 0.0
        %2449 = vmatpush1.msra.mxu0 0.0
        %2450 = vmatprep.subr.mxu0 0.0
        %2451 = vmatpush1.msra.mxu0 0.0
        %2452 = vmatprep.subr.mxu0 0.0
        %2453 = vmatpush1.msra.mxu0 0.0
        %2454 = vmatprep.subr.mxu0 0.0
        %2455 = vmatpush1.msra.mxu0 0.0
        %2456 = vmatprep.subr.mxu0 0.0
        %2457 = vmatpush1.msra.mxu0 0.0
        %2458 = vmatprep.subr.mxu0 0.0
        %2459 = vmatpush1.msra.mxu0 0.0
        %2460 = vmatprep.subr.mxu0 0.0
        %2461 = vmatpush1.msra.mxu0 0.0
        %2462 = vmatprep.subr.mxu0 0.0
        %2463 = vmatpush1.msra.mxu0 0.0
        %2464 = vmatprep.subr.mxu0 0.0
        %2465 = vmatpush1.msra.mxu0 0.0
        %2466 = vmatprep.subr.mxu0 0.0
        %2467 = vmatpush1.msra.mxu0 0.0
        %2468 = vmatprep.subr.mxu0 0.0
        %2469 = vmatpush1.msra.mxu0 0.0
        %2470 = vmatprep.subr.mxu0 0.0
        %2471 = vmatpush1.msra.mxu0 0.0
        %2472 = vmatprep.mubr.f32.mxu0 0.0
        %2473 = vmatmul.mubr.f32.gmra.mrb[0].mxu0 %v818
        %v2474 = vpop.f32.mrb[0].mxu0
        %v2475 = vadd.f32 %v2406, %v2474
        %v2476 = vpop.f32.mrb[0].mxu0
        %2477 = vmatprep.mubr.f32.mxu0 0.0
        %2478 = vmatmul.mubr.f32.gmra.mrb[0].mxu0 %v821
        %v2479 = vpop.f32.mrb[0].mxu0
        %v2480 = vadd.f32 %v2406, %v2479
        %v2481 = vpop.f32.mrb[0].mxu0
        %2482 = vdwg.mxu0
        %v2484 = vsel %vm984, %v2304, 0
        %v2487 = vsel %vm984, %v2387, 0
        %v2490 = vsel %vm984, %v2392, 0
        %2492 = vmatprep.subr.mxu0 0.0
        %2493 = vmatpush1.xpose.msra.mxu0 %v2487
        %2494 = vmatprep.subr.mxu0 0.0
        %2495 = vmatpush1.xpose.msra.mxu0 %v2490
        %2496 = vmatprep.subr.mxu0 0.0
        %2497 = vmatpush1.xpose.msra.mxu0 0.0
        %2498 = vmatprep.subr.mxu0 0.0
        %2499 = vmatpush1.xpose.msra.mxu0 0.0
        %2500 = vmatprep.subr.mxu0 0.0
        %2501 = vmatpush1.xpose.msra.mxu0 0.0
        %2502 = vmatprep.subr.mxu0 0.0
        %2503 = vmatpush1.xpose.msra.mxu0 0.0
        %2504 = vmatprep.subr.mxu0 0.0
        %2505 = vmatpush1.xpose.msra.mxu0 0.0
        %2506 = vmatprep.subr.mxu0 0.0
        %2507 = vmatpush1.xpose.msra.mxu0 0.0
        %2508 = vmatprep.subr.mxu0 0.0
        %2509 = vmatpush1.xpose.msra.mxu0 0.0
        %2510 = vmatprep.subr.mxu0 0.0
        %2511 = vmatpush1.xpose.msra.mxu0 0.0
        %2512 = vmatprep.subr.mxu0 0.0
        %2513 = vmatpush1.xpose.msra.mxu0 0.0
        %2514 = vmatprep.subr.mxu0 0.0
        %2515 = vmatpush1.xpose.msra.mxu0 0.0
        %2516 = vmatprep.subr.mxu0 0.0
        %2517 = vmatpush1.xpose.msra.mxu0 0.0
        %2518 = vmatprep.subr.mxu0 0.0
        %2519 = vmatpush1.xpose.msra.mxu0 0.0
        %2520 = vmatprep.subr.mxu0 0.0
        %2521 = vmatpush1.xpose.msra.mxu0 0.0
        %2522 = vmatprep.subr.mxu0 0.0
        %2523 = vmatpush1.xpose.msra.mxu0 0.0
        %2524 = vmatprep.subr.mxu0 0.0
        %2525 = vmatpush1.xpose.msra.mxu0 0.0
        %2526 = vmatprep.subr.mxu0 0.0
        %2527 = vmatpush1.xpose.msra.mxu0 0.0
        %2528 = vmatprep.subr.mxu0 0.0
        %2529 = vmatpush1.xpose.msra.mxu0 0.0
        %2530 = vmatprep.subr.mxu0 0.0
        %2531 = vmatpush1.xpose.msra.mxu0 0.0
        %2532 = vmatprep.subr.mxu0 0.0
        %2533 = vmatpush1.xpose.msra.mxu0 0.0
        %2534 = vmatprep.subr.mxu0 0.0
        %2535 = vmatpush1.xpose.msra.mxu0 0.0
        %2536 = vmatprep.subr.mxu0 0.0
        %2537 = vmatpush1.xpose.msra.mxu0 0.0
        %2538 = vmatprep.subr.mxu0 0.0
        %2539 = vmatpush1.xpose.msra.mxu0 0.0
        %2540 = vmatprep.subr.mxu0 0.0
        %2541 = vmatpush1.xpose.msra.mxu0 0.0
        %2542 = vmatprep.subr.mxu0 0.0
        %2543 = vmatpush1.xpose.msra.mxu0 0.0
        %2544 = vmatprep.subr.mxu0 0.0
        %2545 = vmatpush1.xpose.msra.mxu0 0.0
        %2546 = vmatprep.subr.mxu0 0.0
        %2547 = vmatpush1.xpose.msra.mxu0 0.0
        %2548 = vmatprep.subr.mxu0 0.0
        %2549 = vmatpush1.xpose.msra.mxu0 0.0
        %2550 = vmatprep.subr.mxu0 0.0
        %2551 = vmatpush1.xpose.msra.mxu0 0.0
        %2552 = vmatprep.subr.mxu0 0.0
        %2553 = vmatpush1.xpose.msra.mxu0 0.0
        %2554 = vmatprep.subr.mxu0 0.0
        %2555 = vmatpush1.xpose.msra.mxu0 0.0
        %2556 = vmatprep.mubr.f32.mxu0 0.0
        %2557 = vmatmul.mubr.f32.gmra.mrb[0].mxu0 %v2484
        %v2558 = vpop.f32.mrb[0].mxu0
        %v2559 = vadd.f32 0.0, %v2558
        %v2560 = vpop.f32.mrb[0].mxu0
        %2561 = vdwg.mxu0
        %v2562 = vmul.f32 %v2559, 0.35355338
        %v2563 = vadd.f32 %v2562, %v720
        %v2564 = vsel %vm1066, %v2563, -inf
        %2565 = vmax.xlane.f32.xlu0 %v2564
        %v2566 = vpop.xlane.xlu0 %2565
        %v2567 = vsub.f32 %v2563, %v2566
        %v2568 = vmul.f32 %v2567, 1.442695
        %v2569 = vpow.pop %v2568
        %v2570 = vsel %vm1066, %v2569, 0.0
        %2571 = vadd.xlane.f32.xlu0 %v2570
        %v2572 = vpop.xlane.xlu0 %2571
        %v2573 = vrcp.pop %v2572
        %v2574 = vmul.f32 %v2569, %v2573
        %v2576 = vsel %vm1066, %v2574, 0
        %2578 = vmatprep.subr.mxu0 0.0
        %2579 = vmatpush1.msra.mxu0 %v2475
        %2580 = vmatprep.subr.mxu0 0.0
        %2581 = vmatpush1.msra.mxu0 %v2480
        %2582 = vmatprep.subr.mxu0 0.0
        %2583 = vmatpush1.msra.mxu0 0.0
        %2584 = vmatprep.subr.mxu0 0.0
        %2585 = vmatpush1.msra.mxu0 0.0
        %2586 = vmatprep.subr.mxu0 0.0
        %2587 = vmatpush1.msra.mxu0 0.0
        %2588 = vmatprep.subr.mxu0 0.0
        %2589 = vmatpush1.msra.mxu0 0.0
        %2590 = vmatprep.subr.mxu0 0.0
        %2591 = vmatpush1.msra.mxu0 0.0
        %2592 = vmatprep.subr.mxu0 0.0
        %2593 = vmatpush1.msra.mxu0 0.0
        %2594 = vmatprep.subr.mxu0 0.0
        %2595 = vmatpush1.msra.mxu0 0.0
        %2596 = vmatprep.subr.mxu0 0.0
        %2597 = vmatpush1.msra.mxu0 0.0
        %2598 = vmatprep.subr.mxu0 0.0
        %2599 = vmatpush1.msra.mxu0 0.0
        %2600 = vmatprep.subr.mxu0 0.0
        %2601 = vmatpush1.msra.mxu0 0.0
        %2602 = vmatprep.subr.mxu0 0.0
        %2603 = vmatpush1.msra.mxu0 0.0
        %2604 = vmatprep.subr.mxu0 0.0
        %2605 = vmatpush1.msra.mxu0 0.0
        %2606 = vmatprep.subr.mxu0 0.0
        %2607 = vmatpush1.msra.mxu0 0.0
        %2608 = vmatprep.subr.mxu0 0.0
        %2609 = vmatpush1.msra.mxu0 0.0
        %2610 = vmatprep.subr.mxu0 0.0
        %2611 = vmatpush1.msra.mxu0 0.0
        %2612 = vmatprep.subr.mxu0 0.0
        %2613 = vmatpush1.msra.mxu0 0.0
        %2614 = vmatprep.subr.mxu0 0.0
        %2615 = vmatpush1.msra.mxu0 0.0
        %2616 = vmatprep.subr.mxu0 0.0
        %2617 = vmatpush1.msra.mxu0 0.0
        %2618 = vmatprep.subr.mxu0 0.0
        %2619 = vmatpush1.msra.mxu0 0.0
        %2620 = vmatprep.subr.mxu0 0.0
        %2621 = vmatpush1.msra.mxu0 0.0
        %2622 = vmatprep.subr.mxu0 0.0
        %2623 = vmatpush1.msra.mxu0 0.0
        %2624 = vmatprep.subr.mxu0 0.0
        %2625 = vmatpush1.msra.mxu0 0.0
        %2626 = vmatprep.subr.mxu0 0.0
        %2627 = vmatpush1.msra.mxu0 0.0
        %2628 = vmatprep.subr.mxu0 0.0
        %2629 = vmatpush1.msra.mxu0 0.0
        %2630 = vmatprep.subr.mxu0 0.0
        %2631 = vmatpush1.msra.mxu0 0.0
        %2632 = vmatprep.subr.mxu0 0.0
        %2633 = vmatpush1.msra.mxu0 0.0
        %2634 = vmatprep.subr.mxu0 0.0
        %2635 = vmatpush1.msra.mxu0 0.0
        %2636 = vmatprep.subr.mxu0 0.0
        %2637 = vmatpush1.msra.mxu0 0.0
        %2638 = vmatprep.subr.mxu0 0.0
        %2639 = vmatpush1.msra.mxu0 0.0
        %2640 = vmatprep.subr.mxu0 0.0
        %2641 = vmatpush1.msra.mxu0 0.0
        %2642 = vmatprep.mubr.f32.mxu0 0.0
        %2643 = vmatmul.mubr.f32.gmra.mrb[0].mxu0 %v2576
        %v2644 = vpop.f32.mrb[0].mxu0
        %v2645 = vadd.f32 0.0, %v2644
        %v2646 = vpop.f32.mrb[0].mxu0
        %2647 = vdwg.mxu0
        %s2648 = scalar_lea.vmem %s9, 24
        %v2649 = vld [vmem:[%s2648] sm:$0xff]
        %v2651 = vsel %vm984, %v2645, 0
        %2653 = vmatprep.subr.mxu0 0.0
        %2654 = vmatpush1.msra.mxu0 %v2649
        %2655 = vmatprep.subr.mxu0 0.0
        %2656 = vmatpush1.msra.mxu0 0.0
        %2657 = vmatprep.subr.mxu0 0.0
        %2658 = vmatpush1.msra.mxu0 0.0
        %2659 = vmatprep.subr.mxu0 0.0
        %2660 = vmatpush1.msra.mxu0 0.0
        %2661 = vmatprep.subr.mxu0 0.0
        %2662 = vmatpush1.msra.mxu0 0.0
        %2663 = vmatprep.subr.mxu0 0.0
        %2664 = vmatpush1.msra.mxu0 0.0
        %2665 = vmatprep.subr.mxu0 0.0
        %2666 = vmatpush1.msra.mxu0 0.0
        %2667 = vmatprep.subr.mxu0 0.0
        %2668 = vmatpush1.msra.mxu0 0.0
        %2669 = vmatprep.subr.mxu0 0.0
        %2670 = vmatpush1.msra.mxu0 0.0
        %2671 = vmatprep.subr.mxu0 0.0
        %2672 = vmatpush1.msra.mxu0 0.0
        %2673 = vmatprep.subr.mxu0 0.0
        %2674 = vmatpush1.msra.mxu0 0.0
        %2675 = vmatprep.subr.mxu0 0.0
        %2676 = vmatpush1.msra.mxu0 0.0
        %2677 = vmatprep.subr.mxu0 0.0
        %2678 = vmatpush1.msra.mxu0 0.0
        %2679 = vmatprep.subr.mxu0 0.0
        %2680 = vmatpush1.msra.mxu0 0.0
        %2681 = vmatprep.subr.mxu0 0.0
        %2682 = vmatpush1.msra.mxu0 0.0
        %2683 = vmatprep.subr.mxu0 0.0
        %2684 = vmatpush1.msra.mxu0 0.0
        %2685 = vmatprep.subr.mxu0 0.0
        %2686 = vmatpush1.msra.mxu0 0.0
        %2687 = vmatprep.subr.mxu0 0.0
        %2688 = vmatpush1.msra.mxu0 0.0
        %2689 = vmatprep.subr.mxu0 0.0
        %2690 = vmatpush1.msra.mxu0 0.0
        %2691 = vmatprep.subr.mxu0 0.0
        %2692 = vmatpush1.msra.mxu0 0.0
        %2693 = vmatprep.subr.mxu0 0.0
        %2694 = vmatpush1.msra.mxu0 0.0
        %2695 = vmatprep.subr.mxu0 0.0
        %2696 = vmatpush1.msra.mxu0 0.0
        %2697 = vmatprep.subr.mxu0 0.0
        %2698 = vmatpush1.msra.mxu0 0.0
        %2699 = vmatprep.subr.mxu0 0.0
        %2700 = vmatpush1.msra.mxu0 0.0
        %2701 = vmatprep.subr.mxu0 0.0
        %2702 = vmatpush1.msra.mxu0 0.0
        %2703 = vmatprep.subr.mxu0 0.0
        %2704 = vmatpush1.msra.mxu0 0.0
        %2705 = vmatprep.subr.mxu0 0.0
        %2706 = vmatpush1.msra.mxu0 0.0
        %2707 = vmatprep.subr.mxu0 0.0
        %2708 = vmatpush1.msra.mxu0 0.0
        %2709 = vmatprep.subr.mxu0 0.0
        %2710 = vmatpush1.msra.mxu0 0.0
        %2711 = vmatprep.subr.mxu0 0.0
        %2712 = vmatpush1.msra.mxu0 0.0
        %2713 = vmatprep.subr.mxu0 0.0
        %2714 = vmatpush1.msra.mxu0 0.0
        %2715 = vmatprep.subr.mxu0 0.0
        %2716 = vmatpush1.msra.mxu0 0.0
        %2717 = vmatprep.mubr.f32.mxu0 0.0
        %2718 = vmatmul.mubr.f32.gmra.mrb[0].mxu0 %v2651
        %v2719 = vpop.f32.mrb[0].mxu0
        %v2720 = vadd.f32 0.0, %v2719
        %v2721 = vpop.f32.mrb[0].mxu0
        %2722 = vdwg.mxu0
        %v2723 = vadd.f32 %v2223, %v2720
        %v2724 = vadd.f32 %v717, %v2723
        %v2725 = vld [vmem:[%s10] sm:$0x1]
        %v2727 = vlaneseq
        %v2728 = vshrl.u32 %v2727, 7
        %v2729 = vsub.s32 0, %v2728
        %v2730 = vrot.slane %v2725, %v2729
        %v2732 = vadd.f32 %v2724, %v2730
        %v2733 = vsel %vm732, %v2732, 0.0
        %2734 = vadd.xlane.f32.xlu0 %v2733
        %v2735 = vpop.xlane.xlu0 %2734
        %v2736 = vrcp.pop 32.0
        %v2737 = vmul.f32 %v2735, %v2736
        %v2738 = vsub.f32 %v2732, %v2737
        %v2739 = vmul.f32 %v2738, %v2738
        %v2740 = vsel %vm732, %v2739, 0.0
        %2741 = vadd.xlane.f32.xlu0 %v2740
        %v2742 = vpop.xlane.xlu0 %2741
        %v2743 = vmul.f32 %v2742, 0.032258064
        %v2744 = vrsqrt.pop %v2743
        %v2745 = vmul.f32 %v2743, %v2744
        %vm2746 = vcmp.eq.f32.partialorder %v2743, inf
        %v2747 = vsel %vm2746, %v2743, %v2745
        %vm2748 = vcmp.eq.f32.partialorder %v2743, 0.0
        %v2749 = vand.u32 %v2743, 2147483648
        %v2750 = vsel %vm2748, %v2749, %v2747
        %v2751 = vadd.f32 %v2750, 1e-05
        %v2752 = vrcp.pop %v2751
        %v2753 = vld [vmem:[%s11] sm:$0x1]
        %v2754 = vmul.f32 %v2738, %v2752
        %v2756 = vlaneseq
        %v2757 = vshrl.u32 %v2756, 7
        %v2758 = vsub.s32 0, %v2757
        %v2759 = vrot.slane %v2753, %v2758
        %v2761 = vmul.f32 %v2759, %v2754
        %v2762 = vld [vmem:[%s12] sm:$0x1]
        %v2764 = vlaneseq
        %v2765 = vshrl.u32 %v2764, 7
        %v2766 = vsub.s32 0, %v2765
        %v2767 = vrot.slane %v2762, %v2766
        %v2769 = vadd.f32 %v2761, %v2767
        %v2770 = vld [vmem:[%s13] sm:$0xff]
        %v2771 = vld [vmem:[%s13 + $0x8] sm:$0xff]
        %v2772 = vld [vmem:[%s13 + $0x10] sm:$0xff]
        %v2773 = vld [vmem:[%s13 + $0x18] sm:$0xff]
        %v2774 = vld [vmem:[%s14] sm:$0x1]
        %v2776 = vlaneseq
        %v2777 = vshrl.u32 %v2776, 7
        %v2778 = vsub.s32 0, %v2777
        %v2779 = vrot.slane %v2774, %v2778
        %v2782 = vsel %vm732, %v2769, 0
        %2784 = vmatprep.subr.mxu0 0.0
        %2785 = vmatpush1.msra.mxu0 %v2770
        %2786 = vmatprep.subr.mxu0 0.0
        %2787 = vmatpush1.msra.mxu0 %v2771
        %2788 = vmatprep.subr.mxu0 0.0
        %2789 = vmatpush1.msra.mxu0 %v2772
        %2790 = vmatprep.subr.mxu0 0.0
        %2791 = vmatpush1.msra.mxu0 %v2773
        %2792 = vmatprep.subr.mxu0 0.0
        %2793 = vmatpush1.msra.mxu0 0.0
        %2794 = vmatprep.subr.mxu0 0.0
        %2795 = vmatpush1.msra.mxu0 0.0
        %2796 = vmatprep.subr.mxu0 0.0
        %2797 = vmatpush1.msra.mxu0 0.0
        %2798 = vmatprep.subr.mxu0 0.0
        %2799 = vmatpush1.msra.mxu0 0.0
        %2800 = vmatprep.subr.mxu0 0.0
        %2801 = vmatpush1.msra.mxu0 0.0
        %2802 = vmatprep.subr.mxu0 0.0
        %2803 = vmatpush1.msra.mxu0 0.0
        %2804 = vmatprep.subr.mxu0 0.0
        %2805 = vmatpush1.msra.mxu0 0.0
        %2806 = vmatprep.subr.mxu0 0.0
        %2807 = vmatpush1.msra.mxu0 0.0
        %2808 = vmatprep.subr.mxu0 0.0
        %2809 = vmatpush1.msra.mxu0 0.0
        %2810 = vmatprep.subr.mxu0 0.0
        %2811 = vmatpush1.msra.mxu0 0.0
        %2812 = vmatprep.subr.mxu0 0.0
        %2813 = vmatpush1.msra.mxu0 0.0
        %2814 = vmatprep.subr.mxu0 0.0
        %2815 = vmatpush1.msra.mxu0 0.0
        %2816 = vmatprep.subr.mxu0 0.0
        %2817 = vmatpush1.msra.mxu0 0.0
        %2818 = vmatprep.subr.mxu0 0.0
        %2819 = vmatpush1.msra.mxu0 0.0
        %2820 = vmatprep.subr.mxu0 0.0
        %2821 = vmatpush1.msra.mxu0 0.0
        %2822 = vmatprep.subr.mxu0 0.0
        %2823 = vmatpush1.msra.mxu0 0.0
        %2824 = vmatprep.subr.mxu0 0.0
        %2825 = vmatpush1.msra.mxu0 0.0
        %2826 = vmatprep.subr.mxu0 0.0
        %2827 = vmatpush1.msra.mxu0 0.0
        %2828 = vmatprep.subr.mxu0 0.0
        %2829 = vmatpush1.msra.mxu0 0.0
        %2830 = vmatprep.subr.mxu0 0.0
        %2831 = vmatpush1.msra.mxu0 0.0
        %2832 = vmatprep.subr.mxu0 0.0
        %2833 = vmatpush1.msra.mxu0 0.0
        %2834 = vmatprep.subr.mxu0 0.0
        %2835 = vmatpush1.msra.mxu0 0.0
        %2836 = vmatprep.subr.mxu0 0.0
        %2837 = vmatpush1.msra.mxu0 0.0
        %2838 = vmatprep.subr.mxu0 0.0
        %2839 = vmatpush1.msra.mxu0 0.0
        %2840 = vmatprep.subr.mxu0 0.0
        %2841 = vmatpush1.msra.mxu0 0.0
        %2842 = vmatprep.subr.mxu0 0.0
        %2843 = vmatpush1.msra.mxu0 0.0
        %2844 = vmatprep.subr.mxu0 0.0
        %2845 = vmatpush1.msra.mxu0 0.0
        %2846 = vmatprep.subr.mxu0 0.0
        %2847 = vmatpush1.msra.mxu0 0.0
        %2848 = vmatprep.mubr.f32.mxu0 0.0
        %2849 = vmatmul.mubr.f32.gmra.mrb[0].mxu0 %v2782
        %v2850 = vpop.f32.mrb[0].mxu0
        %v2851 = vadd.f32 %v2779, %v2850
        %v2852 = vpop.f32.mrb[0].mxu0
        %2853 = vdwg.mxu0
        %v2854 = vmax.f32 %v2851, 0.0
        %v2855 = vld [vmem:[%s15] sm:$0xff]
        %v2856 = vld [vmem:[%s15 + $0x8] sm:$0xff]
        %v2857 = vld [vmem:[%s15 + $0x10] sm:$0xff]
        %v2858 = vld [vmem:[%s15 + $0x18] sm:$0xff]
        %s2859 = scalar_lea.vmem %s13, 32
        %v2860 = vld [vmem:[%s2859] sm:$0xff]
        %v2861 = vld [vmem:[%s2859 + $0x8] sm:$0xff]
        %v2862 = vld [vmem:[%s2859 + $0x10] sm:$0xff]
        %v2863 = vld [vmem:[%s2859 + $0x18] sm:$0xff]
        %s2864 = scalar_lea.vmem %s14, 1
        %v2865 = vld [vmem:[%s2864] sm:$0x1]
        %v2867 = vlaneseq
        %v2868 = vshrl.u32 %v2867, 7
        %v2869 = vsub.s32 0, %v2868
        %v2870 = vrot.slane %v2865, %v2869
        %2872 = vmatprep.subr.mxu0 0.0
        %2873 = vmatpush1.msra.mxu0 %v2860
        %2874 = vmatprep.subr.mxu0 0.0
        %2875 = vmatpush1.msra.mxu0 %v2861
        %2876 = vmatprep.subr.mxu0 0.0
        %2877 = vmatpush1.msra.mxu0 %v2862
        %2878 = vmatprep.subr.mxu0 0.0
        %2879 = vmatpush1.msra.mxu0 %v2863
        %2880 = vmatprep.subr.mxu0 0.0
        %2881 = vmatpush1.msra.mxu0 0.0
        %2882 = vmatprep.subr.mxu0 0.0
        %2883 = vmatpush1.msra.mxu0 0.0
        %2884 = vmatprep.subr.mxu0 0.0
        %2885 = vmatpush1.msra.mxu0 0.0
        %2886 = vmatprep.subr.mxu0 0.0
        %2887 = vmatpush1.msra.mxu0 0.0
        %2888 = vmatprep.subr.mxu0 0.0
        %2889 = vmatpush1.msra.mxu0 0.0
        %2890 = vmatprep.subr.mxu0 0.0
        %2891 = vmatpush1.msra.mxu0 0.0
        %2892 = vmatprep.subr.mxu0 0.0
        %2893 = vmatpush1.msra.mxu0 0.0
        %2894 = vmatprep.subr.mxu0 0.0
        %2895 = vmatpush1.msra.mxu0 0.0
        %2896 = vmatprep.subr.mxu0 0.0
        %2897 = vmatpush1.msra.mxu0 0.0
        %2898 = vmatprep.subr.mxu0 0.0
        %2899 = vmatpush1.msra.mxu0 0.0
        %2900 = vmatprep.subr.mxu0 0.0
        %2901 = vmatpush1.msra.mxu0 0.0
        %2902 = vmatprep.subr.mxu0 0.0
        %2903 = vmatpush1.msra.mxu0 0.0
        %2904 = vmatprep.subr.mxu0 0.0
        %2905 = vmatpush1.msra.mxu0 0.0
        %2906 = vmatprep.subr.mxu0 0.0
        %2907 = vmatpush1.msra.mxu0 0.0
        %2908 = vmatprep.subr.mxu0 0.0
        %2909 = vmatpush1.msra.mxu0 0.0
        %2910 = vmatprep.subr.mxu0 0.0
        %2911 = vmatpush1.msra.mxu0 0.0
        %2912 = vmatprep.subr.mxu0 0.0
        %2913 = vmatpush1.msra.mxu0 0.0
        %2914 = vmatprep.subr.mxu0 0.0
        %2915 = vmatpush1.msra.mxu0 0.0
        %2916 = vmatprep.subr.mxu0 0.0
        %2917 = vmatpush1.msra.mxu0 0.0
        %2918 = vmatprep.subr.mxu0 0.0
        %2919 = vmatpush1.msra.mxu0 0.0
        %2920 = vmatprep.subr.mxu0 0.0
        %2921 = vmatpush1.msra.mxu0 0.0
        %2922 = vmatprep.subr.mxu0 0.0
        %2923 = vmatpush1.msra.mxu0 0.0
        %2924 = vmatprep.subr.mxu0 0.0
        %2925 = vmatpush1.msra.mxu0 0.0
        %2926 = vmatprep.subr.mxu0 0.0
        %2927 = vmatpush1.msra.mxu0 0.0
        %2928 = vmatprep.subr.mxu0 0.0
        %2929 = vmatpush1.msra.mxu0 0.0
        %2930 = vmatprep.subr.mxu0 0.0
        %2931 = vmatpush1.msra.mxu0 0.0
        %2932 = vmatprep.subr.mxu0 0.0
        %2933 = vmatpush1.msra.mxu0 0.0
        %2934 = vmatprep.subr.mxu0 0.0
        %2935 = vmatpush1.msra.mxu0 0.0
        %2936 = vmatprep.mubr.f32.mxu0 0.0
        %2937 = vmatmul.mubr.f32.gmra.mrb[0].mxu0 %v2782
        %v2938 = vpop.f32.mrb[0].mxu0
        %v2939 = vadd.f32 %v2870, %v2938
        %v2940 = vpop.f32.mrb[0].mxu0
        %2941 = vdwg.mxu0
        %v2942 = vmax.f32 %v2939, 0.0
        %s2943 = scalar_lea.vmem %s15, 32
        %v2944 = vld [vmem:[%s2943] sm:$0xff]
        %v2945 = vld [vmem:[%s2943 + $0x8] sm:$0xff]
        %v2946 = vld [vmem:[%s2943 + $0x10] sm:$0xff]
        %v2947 = vld [vmem:[%s2943 + $0x18] sm:$0xff]
        %v2949 = vsel %vm732, %v2942, 0
        %2951 = vmatprep.subr.mxu0 0.0
        %2952 = vmatpush1.msra.mxu0 %v2944
        %2953 = vmatprep.subr.mxu0 0.0
        %2954 = vmatpush1.msra.mxu0 %v2945
        %2955 = vmatprep.subr.mxu0 0.0
        %2956 = vmatpush1.msra.mxu0 %v2946
        %2957 = vmatprep.subr.mxu0 0.0
        %2958 = vmatpush1.msra.mxu0 %v2947
        %2959 = vmatprep.subr.mxu0 0.0
        %2960 = vmatpush1.msra.mxu0 0.0
        %2961 = vmatprep.subr.mxu0 0.0
        %2962 = vmatpush1.msra.mxu0 0.0
        %2963 = vmatprep.subr.mxu0 0.0
        %2964 = vmatpush1.msra.mxu0 0.0
        %2965 = vmatprep.subr.mxu0 0.0
        %2966 = vmatpush1.msra.mxu0 0.0
        %2967 = vmatprep.subr.mxu0 0.0
        %2968 = vmatpush1.msra.mxu0 0.0
        %2969 = vmatprep.subr.mxu0 0.0
        %2970 = vmatpush1.msra.mxu0 0.0
        %2971 = vmatprep.subr.mxu0 0.0
        %2972 = vmatpush1.msra.mxu0 0.0
        %2973 = vmatprep.subr.mxu0 0.0
        %2974 = vmatpush1.msra.mxu0 0.0
        %2975 = vmatprep.subr.mxu0 0.0
        %2976 = vmatpush1.msra.mxu0 0.0
        %2977 = vmatprep.subr.mxu0 0.0
        %2978 = vmatpush1.msra.mxu0 0.0
        %2979 = vmatprep.subr.mxu0 0.0
        %2980 = vmatpush1.msra.mxu0 0.0
        %2981 = vmatprep.subr.mxu0 0.0
        %2982 = vmatpush1.msra.mxu0 0.0
        %2983 = vmatprep.subr.mxu0 0.0
        %2984 = vmatpush1.msra.mxu0 0.0
        %2985 = vmatprep.subr.mxu0 0.0
        %2986 = vmatpush1.msra.mxu0 0.0
        %2987 = vmatprep.subr.mxu0 0.0
        %2988 = vmatpush1.msra.mxu0 0.0
        %2989 = vmatprep.subr.mxu0 0.0
        %2990 = vmatpush1.msra.mxu0 0.0
        %2991 = vmatprep.subr.mxu0 0.0
        %2992 = vmatpush1.msra.mxu0 0.0
        %2993 = vmatprep.subr.mxu0 0.0
        %2994 = vmatpush1.msra.mxu0 0.0
        %2995 = vmatprep.subr.mxu0 0.0
        %2996 = vmatpush1.msra.mxu0 0.0
        %2997 = vmatprep.subr.mxu0 0.0
        %2998 = vmatpush1.msra.mxu0 0.0
        %2999 = vmatprep.subr.mxu0 0.0
        %3000 = vmatpush1.msra.mxu0 0.0
        %3001 = vmatprep.subr.mxu0 0.0
        %3002 = vmatpush1.msra.mxu0 0.0
        %3003 = vmatprep.subr.mxu0 0.0
        %3004 = vmatpush1.msra.mxu0 0.0
        %3005 = vmatprep.subr.mxu0 0.0
        %3006 = vmatpush1.msra.mxu0 0.0
        %3007 = vmatprep.subr.mxu0 0.0
        %3008 = vmatpush1.msra.mxu0 0.0
        %3009 = vmatprep.subr.mxu0 0.0
        %3010 = vmatpush1.msra.mxu0 0.0
        %3011 = vmatprep.subr.mxu0 0.0
        %3012 = vmatpush1.msra.mxu0 0.0
        %3013 = vmatprep.subr.mxu0 0.0
        %3014 = vmatpush1.msra.mxu0 0.0
        %3015 = vmatprep.mubr.f32.mxu0 0.0
        %3016 = vmatmul.mubr.f32.gmra.mrb[0].mxu0 %v2949
        %v3017 = vpop.f32.mrb[0].mxu0
        %v3018 = vadd.f32 0.0, %v3017
        %v3019 = vpop.f32.mrb[0].mxu0
        %3020 = vdwg.mxu0
        %v3022 = vsel %vm732, %v2854, 0
        %3024 = vmatprep.subr.mxu0 0.0
        %3025 = vmatpush1.msra.mxu0 %v2855
        %3026 = vmatprep.subr.mxu0 0.0
        %3027 = vmatpush1.msra.mxu0 %v2856
        %3028 = vmatprep.subr.mxu0 0.0
        %3029 = vmatpush1.msra.mxu0 %v2857
        %3030 = vmatprep.subr.mxu0 0.0
        %3031 = vmatpush1.msra.mxu0 %v2858
        %3032 = vmatprep.subr.mxu0 0.0
        %3033 = vmatpush1.msra.mxu0 0.0
        %3034 = vmatprep.subr.mxu0 0.0
        %3035 = vmatpush1.msra.mxu0 0.0
        %3036 = vmatprep.subr.mxu0 0.0
        %3037 = vmatpush1.msra.mxu0 0.0
        %3038 = vmatprep.subr.mxu0 0.0
        %3039 = vmatpush1.msra.mxu0 0.0
        %3040 = vmatprep.subr.mxu0 0.0
        %3041 = vmatpush1.msra.mxu0 0.0
        %3042 = vmatprep.subr.mxu0 0.0
        %3043 = vmatpush1.msra.mxu0 0.0
        %3044 = vmatprep.subr.mxu0 0.0
        %3045 = vmatpush1.msra.mxu0 0.0
        %3046 = vmatprep.subr.mxu0 0.0
        %3047 = vmatpush1.msra.mxu0 0.0
        %3048 = vmatprep.subr.mxu0 0.0
        %3049 = vmatpush1.msra.mxu0 0.0
        %3050 = vmatprep.subr.mxu0 0.0
        %3051 = vmatpush1.msra.mxu0 0.0
        %3052 = vmatprep.subr.mxu0 0.0
        %3053 = vmatpush1.msra.mxu0 0.0
        %3054 = vmatprep.subr.mxu0 0.0
        %3055 = vmatpush1.msra.mxu0 0.0
        %3056 = vmatprep.subr.mxu0 0.0
        %3057 = vmatpush1.msra.mxu0 0.0
        %3058 = vmatprep.subr.mxu0 0.0
        %3059 = vmatpush1.msra.mxu0 0.0
        %3060 = vmatprep.subr.mxu0 0.0
        %3061 = vmatpush1.msra.mxu0 0.0
        %3062 = vmatprep.subr.mxu0 0.0
        %3063 = vmatpush1.msra.mxu0 0.0
        %3064 = vmatprep.subr.mxu0 0.0
        %3065 = vmatpush1.msra.mxu0 0.0
        %3066 = vmatprep.subr.mxu0 0.0
        %3067 = vmatpush1.msra.mxu0 0.0
        %3068 = vmatprep.subr.mxu0 0.0
        %3069 = vmatpush1.msra.mxu0 0.0
        %3070 = vmatprep.subr.mxu0 0.0
        %3071 = vmatpush1.msra.mxu0 0.0
        %3072 = vmatprep.subr.mxu0 0.0
        %3073 = vmatpush1.msra.mxu0 0.0
        %3074 = vmatprep.subr.mxu0 0.0
        %3075 = vmatpush1.msra.mxu0 0.0
        %3076 = vmatprep.subr.mxu0 0.0
        %3077 = vmatpush1.msra.mxu0 0.0
        %3078 = vmatprep.subr.mxu0 0.0
        %3079 = vmatpush1.msra.mxu0 0.0
        %3080 = vmatprep.subr.mxu0 0.0
        %3081 = vmatpush1.msra.mxu0 0.0
        %3082 = vmatprep.subr.mxu0 0.0
        %3083 = vmatpush1.msra.mxu0 0.0
        %3084 = vmatprep.subr.mxu0 0.0
        %3085 = vmatpush1.msra.mxu0 0.0
        %3086 = vmatprep.subr.mxu0 0.0
        %3087 = vmatpush1.msra.mxu0 0.0
        %3088 = vmatprep.mubr.f32.mxu0 0.0
        %3089 = vmatmul.mubr.f32.gmra.mrb[0].mxu0 %v3022
        %v3090 = vpop.f32.mrb[0].mxu0
        %v3091 = vadd.f32 %v3018, %v3090
        %v3092 = vpop.f32.mrb[0].mxu0
        %3093 = vdwg.mxu0
        %v3094 = vadd.f32 %v2769, %v3091
        %v3095 = vld [vmem:[%s16] sm:$0x1]
        %v3097 = vlaneseq
        %v3098 = vshrl.u32 %v3097, 7
        %v3099 = vsub.s32 0, %v3098
        %v3100 = vrot.slane %v3095, %v3099
        %v3102 = vadd.f32 %v3094, %v3100
        %v3103 = vsel %vm732, %v3102, 0.0
        %3104 = vadd.xlane.f32.xlu0 %v3103
        %v3105 = vpop.xlane.xlu0 %3104
        %v3106 = vmul.f32 %v3105, %v2736
        %v3107 = vsub.f32 %v3102, %v3106
        %v3108 = vmul.f32 %v3107, %v3107
        %v3109 = vsel %vm732, %v3108, 0.0
        %3110 = vadd.xlane.f32.xlu0 %v3109
        %v3111 = vpop.xlane.xlu0 %3110
        %v3112 = vmul.f32 %v3111, 0.032258064
        %v3113 = vrsqrt.pop %v3112
        %v3114 = vmul.f32 %v3112, %v3113
        %vm3115 = vcmp.eq.f32.partialorder %v3112, inf
        %v3116 = vsel %vm3115, %v3112, %v3114
        %vm3117 = vcmp.eq.f32.partialorder %v3112, 0.0
        %v3118 = vand.u32 %v3112, 2147483648
        %v3119 = vsel %vm3117, %v3118, %v3116
        %v3120 = vadd.f32 %v3119, 1e-05
        %v3121 = vrcp.pop %v3120
        %v3122 = vld [vmem:[%s17] sm:$0x1]
        %v3123 = vmul.f32 %v3107, %v3121
        %v3125 = vlaneseq
        %v3126 = vshrl.u32 %v3125, 7
        %v3127 = vsub.s32 0, %v3126
        %v3128 = vrot.slane %v3122, %v3127
        %v3130 = vmul.f32 %v3128, %v3123
        %v3131 = vld [vmem:[%s18] sm:$0x1]
        %v3133 = vlaneseq
        %v3134 = vshrl.u32 %v3133, 7
        %v3135 = vsub.s32 0, %v3134
        %v3136 = vrot.slane %v3131, %v3135
        %v3138 = vadd.f32 %v3130, %v3136
        %3139 = vst.msk [vmem:[%s699] sm:$0xff] %vm732, %v3138
        %s3140 = sand.u32 %s515, 1
        %s3141 = scalar_lea.sflag [#allocation3], %s3140
        %s3142 = sand.u32 %s515, 1
        %s3143 = smul.addr %s3142, 8
        %s3144 = scalar_lea.vmem [#allocation2], %s3143
        // Predicated region
        $region105: #{tpu_custom_call.1} parent=103 // pred_check
          %p3145 = pneg %p525
        $region106: #{tpu_custom_call.1} parent=103 // pred_check_branch
          %3147 = sbr.rel (%p3145) target = $region108
        $region107: #{tpu_custom_call.1} parent=103 // pred_region
          %s3149 = ssub.s32 128, 128
          %3150 = vsyncadd %s3141, %s3149
          %s3151 = smul.addr %s39, 2
          %s3152 = sadd.s32 %s40, %s3151
          %s3153 = smul.addr %s3152, 128
          %s3154 = scalar_lea.hbm %s21, %s3153
          %s3156 = sshll.u32 %s3144, 4
          %s3157 = int_to_ptr.vmem [resolvable:$true] %s3156
          %3159 = dma.vmem_to_hbm [thread:$0]  %s3157, 128, %s3154, %s3141
        $region108: #{tpu_custom_call.1} parent=103 // pred_fallthru
          _
      $region104: #{tpu_custom_call.1} parent=5 // pred_fallthru
        _
      %p3160 = scmp.le.s32.totalorder 2, %s30
      // Predicated region
      $region109: #{tpu_custom_call.1} parent=5 // pred_check
        %p3161 = pneg %p3160
      $region110: #{tpu_custom_call.1} parent=5 // pred_check_branch
        %3163 = sbr.rel (%p3161) target = $region112
      $region111: #{tpu_custom_call.1} parent=5 // pred_region
        %s3164 = ssub.s32 %s30, 2
        // Predicated region
        $region113: #{tpu_custom_call.1} parent=111 // pred_check
          %p3165 = pneg %p531
        $region114: #{tpu_custom_call.1} parent=111 // pred_check_branch
          %3167 = sbr.rel (%p3165) target = $region116
        $region115: #{tpu_custom_call.1} parent=111 // pred_region
          %s3168 = sand.u32 %s516, 1
          %s3169 = scalar_lea.sflag [#allocation3], %s3168
          %s3170 = sand.u32 %s516, 1
          %s3171 = smul.addr %s3170, 8
          %s3172 = scalar_lea.vmem [#allocation2], %s3171
          %3173 = dma.done %s3169, 128
        $region116: #{tpu_custom_call.1} parent=111 // pred_fallthru
          _
      $region112: #{tpu_custom_call.1} parent=5 // pred_fallthru
        _
    $region6: #{tpu_custom_call.1} parent=1 // loop_footer
      %s34 = sadd.s32 1, %s30
    $region7: #{tpu_custom_call.1} parent=1 // loop_footer_branch
      %29 = sbr.rel target = $region3
    $region8: #{tpu_custom_call.1} parent=1 // loop_exit
      _
    %3174 = vsyncpa [#allocation3], 1
    %s3175 = scalar_lea.sflag [#allocation3], 1
    %3176 = vsyncpa %s3175, 1

</llo_original>
